<compile_context>
chip_gen: v7x
topology: tpu7x:2x2x1
jax: 0.10.0
libtpu: 0.0.40
codegen_flags: <defaults>
</compile_context>

<pallas_src>
import math

import numpy as np
import jax
import jax.numpy as jnp
from jax import lax
from jax.experimental import pallas as pl
from jax.experimental.pallas import tpu as pltpu

# High-precision f32 matmuls for both the XLA reference and the kernel dots.
jax.config.update("jax_default_matmul_precision", "highest")

# ---------------- model hyper-parameters (small, consistent with module) ----
B = 2          # batch
T = 8          # decoder (target) sequence length
S = 8          # encoder (source) sequence length
E = 32         # embed_dim
H = 4          # num_heads
DH = E // H    # head dim
FF = 64        # ff_dim
EPS = 1e-5     # nn.LayerNorm default

RQ = B * T         # query rows (folded batch)
RK = B * S         # key rows (folded batch)  -- equals RQ here
HC = H * RK        # block-diagonal score columns = 64

# ---------------- packed weight slab (f32, 128-lane-aligned blocks) ---------
# Every weight block starts at a multiple of 128 lanes so each RHS fetch is a
# clean tile read.  All blocks are (E, out) pre-transposed, except W2 which is
# stored raw (E, FF) and contracted dim1-dim1.
C_QKV_SA = 0      # (E, 3E)  self-attn Wq|Wk|Wv   (Wq pre-scaled by 1/sqrt(DH))
C_OUT_SA = 128    # (E, E)   self-attn out_proj
C_Q_CA = 256      # (E, E)   cross-attn Wq        (pre-scaled)
C_KV_CA = 384     # (E, 2E)  cross-attn Wk|Wv
C_OUT_CA = 512    # (E, E)   cross-attn out_proj
C_W1 = 640        # (E, FF)  FFN first linear
C_W2 = 768        # (E, FF)  FFN second linear, raw layout (contract dim1-dim1)
WCOLS = 896       # 7 * 128

# ---------------- packed constant slab (f32) --------------------------------
# rows 0..12 : biases / LN params (zero-padded to CW lanes)
# rows 16..31: additive batch mask AM   (RQ, H*RK)
# rows 32..95: per-head 0/1 selector MV (H*RK, E)
R_B_QKV_SA, R_B_OUT_SA, R_G1, R_BE1 = 0, 1, 2, 3
R_B_Q_CA, R_B_KV_CA, R_B_OUT_CA, R_G2, R_BE2 = 4, 5, 6, 7, 8
R_B1, R_B2, R_G3, R_BE3 = 9, 10, 11, 12
R_AM = 16
R_MV = 32
CROWS = R_MV + HC      # 96
CW = 3 * E             # 96 lanes (>= 3E and >= HC)


# ---------------------------- Pallas kernel ---------------------------------
def decoder_block_kernel(xenc_ref, w_ref, c_ref, o_ref):
    f32 = jnp.float32

    x = xenc_ref[0:RQ, :]              # (B*T, E) decoder input rows (b, t)
    enc = xenc_ref[RQ:RQ + RK, :]      # (B*S, E) encoder output rows (b, s)

    am = c_ref[R_AM:R_AM + RQ, 0:HC]   # (16, 64) additive batch mask (0 / -1e9)
    mv = c_ref[R_MV:R_MV + HC, 0:E]    # (64, 32) per-head 0/1 column selector

    def vecrow(row, width):
        return c_ref[row:row + 1, 0:width]

    def mm(a, col, width):
        return jnp.dot(a, w_ref[:, col:col + width], preferred_element_type=f32)

    def layernorm(z, g_row, b_row):
        mu = jnp.mean(z, axis=-1, keepdims=True)
        d = z - mu
        var = jnp.mean(d * d, axis=-1, keepdims=True)
        return d * lax.rsqrt(var + EPS) * vecrow(g_row, E) + vecrow(b_row, E)

    def attention(q, k, v):
        # Block-diagonal K/V attention.  k/v are row-tiled H times and all but
        # head h's feature columns are zeroed in block h, so a single score
        # GEMM with a full K=E contraction gives s[r, h*RK + rk] = q_h(r).k_h(rk).
        # The additive mask keeps only same-batch keys; softmax is segmented
        # per 16-lane head block using a global row max (safe: every segment
        # has S valid keys, so the per-head denominator is never zero) and the
        # per-head denominator comes from one matmul with the same selector.
        k_bd = jnp.tile(k, (H, 1)) * mv            # (H*RK, E)
        v_bd = jnp.tile(v, (H, 1)) * mv            # (H*RK, E)
        s = lax.dot_general(q, k_bd, (((1,), (1,)), ((), ())),
                            preferred_element_type=f32) + am   # (RQ, H*RK)
        p = jnp.exp(s - jnp.max(s, axis=-1, keepdims=True))
        pv = jnp.dot(p, v_bd, preferred_element_type=f32)      # (RQ, E)
        den = jnp.dot(p, mv, preferred_element_type=f32)       # (RQ, E) per-head sums
        return pv / den

    # ----- self-attention (unmasked: tgt_mask=None) + residual + norm1 ------
    qkv = mm(x, C_QKV_SA, 3 * E) + vecrow(R_B_QKV_SA, 3 * E)
    att = attention(qkv[:, 0:E], qkv[:, E:2 * E], qkv[:, 2 * E:3 * E])
    sa = mm(att, C_OUT_SA, E) + vecrow(R_B_OUT_SA, E)
    x1 = layernorm(x + sa, R_G1, R_BE1)

    # ----- cross-attention over encoder output + residual + norm2 -----------
    q_ca = mm(x1, C_Q_CA, E) + vecrow(R_B_Q_CA, E)
    kv = mm(enc, C_KV_CA, 2 * E) + vecrow(R_B_KV_CA, 2 * E)
    att2 = attention(q_ca, kv[:, 0:E], kv[:, E:2 * E])
    ca = mm(att2, C_OUT_CA, E) + vecrow(R_B_OUT_CA, E)
    x2 = layernorm(x1 + ca, R_G2, R_BE2)

    # ----- feed-forward (Linear -> ReLU -> Linear) + residual + norm3 -------
    h1 = jnp.maximum(mm(x2, C_W1, FF) + vecrow(R_B1, FF), 0.0)
    ff = lax.dot_general(h1, w_ref[:, C_W2:C_W2 + FF], (((1,), (1,)), ((), ())),
                         preferred_element_type=f32) + vecrow(R_B2, E)
    x3 = layernorm(x2 + ff, R_G3, R_BE3)

    o_ref[...] = x3.astype(o_ref.dtype)


# --------------------- one-time parameter packing (numpy) -------------------
def pack_params(params):
    """Transpose / scale-fold / coalesce the 18 parameters into 2 constant
    slabs.  Runs ONCE at init in numpy -- no per-call packing HLO."""
    p = [np.asarray(jax.device_get(t), dtype=np.float32) for t in params]
    (w_in_sa, b_in_sa, w_out_sa, b_out_sa, g1, be1,
     w_in_ca, b_in_ca, w_out_ca, b_out_ca, g2, be2,
     w1, b1, w2, b2, g3, be3) = p
    scale = 1.0 / math.sqrt(DH)

    wslab = np.zeros((E, WCOLS), np.float32)
    wslab[:, C_QKV_SA:C_QKV_SA + 3 * E] = np.concatenate(
        [w_in_sa[0:E].T * scale, w_in_sa[E:3 * E].T], axis=1)
    wslab[:, C_OUT_SA:C_OUT_SA + E] = w_out_sa.T
    wslab[:, C_Q_CA:C_Q_CA + E] = w_in_ca[0:E].T * scale
    wslab[:, C_KV_CA:C_KV_CA + 2 * E] = w_in_ca[E:3 * E].T
    wslab[:, C_OUT_CA:C_OUT_CA + E] = w_out_ca.T
    wslab[:, C_W1:C_W1 + FF] = w1.T
    wslab[:, C_W2:C_W2 + FF] = w2          # raw (E, FF); contracted dim1-dim1

    cst = np.zeros((CROWS, CW), np.float32)

    def put(row, v):
        v = np.asarray(v, np.float32).reshape(-1)
        cst[row, :v.shape[0]] = v

    b_qkv = b_in_sa.reshape(-1).copy()
    b_qkv[:E] *= scale
    put(R_B_QKV_SA, b_qkv)
    put(R_B_OUT_SA, b_out_sa); put(R_G1, g1); put(R_BE1, be1)
    put(R_B_Q_CA, b_in_ca.reshape(-1)[:E] * scale)
    put(R_B_KV_CA, b_in_ca.reshape(-1)[E:])
    put(R_B_OUT_CA, b_out_ca); put(R_G2, g2); put(R_BE2, be2)
    put(R_B1, b1); put(R_B2, b2); put(R_G3, g3); put(R_BE3, be3)

    # Additive batch mask (shared by both attentions; requires T == S).
    assert T == S
    r = np.arange(RQ)[:, None]
    c = np.arange(HC)[None, :]
    am = np.where((r // T) == ((c % RK) // S), 0.0, -1e9).astype(np.float32)
    cst[R_AM:R_AM + RQ, :HC] = am
    # Per-head 0/1 column selector: keep column j in head block h iff j//DH == h.
    mv = ((np.arange(HC)[:, None] // RK) == (np.arange(E)[None, :] // DH))
    cst[R_MV:R_MV + HC, :E] = mv.astype(np.float32)

    return jnp.asarray(wslab), jnp.asarray(cst)


# ------------------------------ wrapper --------------------------------------
@jax.jit
def transformer_decoder_block(x, enc, wslab, cst):
    xenc = jnp.concatenate([x.reshape(RQ, E), enc.reshape(RK, E)], axis=0)
    out2d = pl.pallas_call(
        decoder_block_kernel,
        out_shape=jax.ShapeDtypeStruct((RQ, E), jnp.float32),
        in_specs=[pl.BlockSpec(memory_space=pltpu.MemorySpace.VMEM)] * 3,
        out_specs=pl.BlockSpec(memory_space=pltpu.MemorySpace.VMEM),
    )(xenc, wslab, cst)
    return out2d.reshape(B, T, E)


# --------------------------- pure-JAX reference -------------------------------
def _mha_ref(q_in, kv_in, w_in, b_in, w_out, b_out):
    q = q_in @ w_in[:E].T + b_in[0, :E]
    k = kv_in @ w_in[E:2 * E].T + b_in[0, E:2 * E]
    v = kv_in @ w_in[2 * E:].T + b_in[0, 2 * E:]
    Bq, Tq, _ = q.shape
    Sk = k.shape[1]
    qh = q.reshape(Bq, Tq, H, DH).transpose(0, 2, 1, 3)
    kh = k.reshape(Bq, Sk, H, DH).transpose(0, 2, 1, 3)
    vh = v.reshape(Bq, Sk, H, DH).transpose(0, 2, 1, 3)
    s = jnp.einsum("bhtd,bhsd->bhts", qh, kh) / math.sqrt(DH)
    p = jax.nn.softmax(s, axis=-1)
    o = jnp.einsum("bhts,bhsd->bhtd", p, vh).transpose(0, 2, 1, 3).reshape(Bq, Tq, E)
    return o @ w_out.T + b_out[0]


def _ln_ref(z, g, b):
    mu = jnp.mean(z, axis=-1, keepdims=True)
    var = jnp.mean((z - mu) ** 2, axis=-1, keepdims=True)
    return (z - mu) / jnp.sqrt(var + EPS) * g[0] + b[0]


def decoder_block_ref(x, enc, params):
    (w_in_sa, b_in_sa, w_out_sa, b_out_sa, g1, be1,
     w_in_ca, b_in_ca, w_out_ca, b_out_ca, g2, be2,
     w1, b1, w2, b2, g3, be3) = params
    x1 = _ln_ref(x + _mha_ref(x, x, w_in_sa, b_in_sa, w_out_sa, b_out_sa), g1, be1)
    x2 = _ln_ref(x1 + _mha_ref(x1, enc, w_in_ca, b_in_ca, w_out_ca, b_out_ca), g2, be2)
    ff = jnp.maximum(x2 @ w1.T + b1[0], 0.0) @ w2.T + b2[0]
    return _ln_ref(x2 + ff, g3, be3)


# ------------------------------- main -----------------------------------------
if __name__ == "__main__":
    key = jax.random.PRNGKey(0)
    keys = jax.random.split(key, 16)

    def nrm(k, shape, scale=0.05):
        return (scale * jax.random.normal(k, shape)).astype(jnp.float32)

    x = nrm(keys[0], (B, T, E), 1.0)
    enc = nrm(keys[1], (B, S, E), 1.0)

    params = (
        # self-attention
        nrm(keys[2], (3 * E, E)), nrm(keys[3], (1, 3 * E)),
        nrm(keys[4], (E, E)),     nrm(keys[5], (1, E)),
        jnp.ones((1, E), jnp.float32), jnp.zeros((1, E), jnp.float32),   # norm1
        # cross-attention
        nrm(keys[6], (3 * E, E)), nrm(keys[7], (1, 3 * E)),
        nrm(keys[8], (E, E)),     nrm(keys[9], (1, E)),
        jnp.ones((1, E), jnp.float32), jnp.zeros((1, E), jnp.float32),   # norm2
        # feed-forward
        nrm(keys[10], (FF, E)), nrm(keys[11], (1, FF)),
        nrm(keys[12], (E, FF)), nrm(keys[13], (1, E)),
        jnp.ones((1, E), jnp.float32), jnp.zeros((1, E), jnp.float32),   # norm3
    )

    # One-time numpy packing (init cost, not per-call).
    wslab, cst = pack_params(params)

    out = transformer_decoder_block(x, enc, wslab, cst)
    out = jax.block_until_ready(out)

    ref = decoder_block_ref(x, enc, params)
    assert out.shape == (B, T, E)
    # All-f32 kernel with exact softmax normalization -> tight tolerance.
    max_err = float(jnp.max(jnp.abs(out - ref)))
    assert max_err < 2e-2, f"mismatch vs reference: max abs err = {max_err}"

    print("KERNEL_OK")
</pallas_src>

<mosaic_0001>
module attributes {stable_mosaic.version = 11 : i64} {
  func.func @decoder_block_kernel(%arg0: memref<32x32xf32, #tpu.memory_space<vmem>>, %arg1: memref<32x896xf32, #tpu.memory_space<vmem>>, %arg2: memref<96x96xf32, #tpu.memory_space<vmem>>, %arg3: memref<16x32xf32, #tpu.memory_space<vmem>>) attributes {dimension_semantics = [], scalar_prefetch = 0 : i64, scratch_operands = 0 : i64, tpu.core_type = #tpu.core_type<tc>} {
    %c0 = arith.constant 0 : index
    %c0_0 = arith.constant 0 : index
    %0 = vector.load %arg0[%c0, %c0_0] : memref<32x32xf32, #tpu.memory_space<vmem>>, vector<16x32xf32>
    %c16 = arith.constant 16 : index
    %c0_1 = arith.constant 0 : index
    %1 = vector.load %arg0[%c16, %c0_1] : memref<32x32xf32, #tpu.memory_space<vmem>>, vector<16x32xf32>
    %c16_2 = arith.constant 16 : index
    %c0_3 = arith.constant 0 : index
    %2 = vector.load %arg2[%c16_2, %c0_3] : memref<96x96xf32, #tpu.memory_space<vmem>>, vector<16x64xf32>
    %c32 = arith.constant 32 : index
    %c0_4 = arith.constant 0 : index
    %3 = vector.load %arg2[%c32, %c0_4] : memref<96x96xf32, #tpu.memory_space<vmem>>, vector<64x32xf32>
    %c0_5 = arith.constant 0 : index
    %c0_6 = arith.constant 0 : index
    %4 = vector.load %arg1[%c0_5, %c0_6] : memref<32x896xf32, #tpu.memory_space<vmem>>, vector<32x96xf32>
    %cst = arith.constant dense<0.000000e+00> : vector<16x96xf32>
    %5 = tpu.matmul %0, %4, %cst {dimension_numbers = #tpu.dot_dimension_numbers<[1], [0], [0], [1], [0, 0, 1, 1], [], []>, precision = #tpu.contract_precision<fp32>} : vector<16x32xf32>, vector<32x96xf32>, vector<16x96xf32> -> vector<16x96xf32>
    %c0_7 = arith.constant 0 : index
    %c0_8 = arith.constant 0 : index
    %6 = vector.load %arg2[%c0_7, %c0_8] : memref<96x96xf32, #tpu.memory_space<vmem>>, vector<1x96xf32>
    %7 = vector.broadcast %6 : vector<1x96xf32> to vector<16x96xf32>
    %8 = arith.addf %5, %7 : vector<16x96xf32>
    %9 = vector.extract_strided_slice %8 {offsets = [0, 0], sizes = [16, 32], strides = [1, 1]} : vector<16x96xf32> to vector<16x32xf32>
    %10 = vector.extract_strided_slice %8 {offsets = [0, 32], sizes = [16, 32], strides = [1, 1]} : vector<16x96xf32> to vector<16x32xf32>
    %11 = vector.extract_strided_slice %8 {offsets = [0, 64], sizes = [16, 32], strides = [1, 1]} : vector<16x96xf32> to vector<16x32xf32>
    %12 = tpu.concatenate %10, %10, %10, %10 in 0 : vector<16x32xf32>, vector<16x32xf32>, vector<16x32xf32>, vector<16x32xf32> -> vector<64x32xf32>
    %13 = arith.mulf %12, %3 : vector<64x32xf32>
    %14 = tpu.concatenate %11, %11, %11, %11 in 0 : vector<16x32xf32>, vector<16x32xf32>, vector<16x32xf32>, vector<16x32xf32> -> vector<64x32xf32>
    %15 = arith.mulf %14, %3 : vector<64x32xf32>
    %cst_9 = arith.constant dense<0.000000e+00> : vector<16x64xf32>
    %16 = tpu.matmul %9, %13, %cst_9 {dimension_numbers = #tpu.dot_dimension_numbers<[1], [1], [0], [0], [0, 0, 1, 0], [], []>, precision = #tpu.contract_precision<fp32>} : vector<16x32xf32>, vector<64x32xf32>, vector<16x64xf32> -> vector<16x64xf32>
    %17 = arith.addf %16, %2 : vector<16x64xf32>
    %cst_10 = arith.constant dense<0xFF800000> : vector<16xf32>
    %18 = vector.multi_reduction <maximumf>, %17, %cst_10 [1] : vector<16x64xf32> to vector<16xf32>
    %19 = vector.shape_cast %18 : vector<16xf32> to vector<16x1xf32>
    %20 = vector.broadcast %19 : vector<16x1xf32> to vector<16x64xf32>
    %21 = arith.subf %17, %20 : vector<16x64xf32>
    %22 = math.exp %21 : vector<16x64xf32>
    %cst_11 = arith.constant dense<0.000000e+00> : vector<16x32xf32>
    %23 = tpu.matmul %22, %15, %cst_11 {dimension_numbers = #tpu.dot_dimension_numbers<[1], [0], [0], [1], [0, 0, 1, 1], [], []>, precision = #tpu.contract_precision<fp32>} : vector<16x64xf32>, vector<64x32xf32>, vector<16x32xf32> -> vector<16x32xf32>
    %cst_12 = arith.constant dense<0.000000e+00> : vector<16x32xf32>
    %24 = tpu.matmul %22, %3, %cst_12 {dimension_numbers = #tpu.dot_dimension_numbers<[1], [0], [0], [1], [0, 0, 1, 1], [], []>, precision = #tpu.contract_precision<fp32>} : vector<16x64xf32>, vector<64x32xf32>, vector<16x32xf32> -> vector<16x32xf32>
    %25 = arith.divf %23, %24 : vector<16x32xf32>
    %c0_13 = arith.constant 0 : index
    %c128 = arith.constant 128 : index
    %26 = vector.load %arg1[%c0_13, %c128] : memref<32x896xf32, #tpu.memory_space<vmem>>, vector<32x32xf32>
    %cst_14 = arith.constant dense<0.000000e+00> : vector<16x32xf32>
    %27 = tpu.matmul %25, %26, %cst_14 {dimension_numbers = #tpu.dot_dimension_numbers<[1], [0], [0], [1], [0, 0, 1, 1], [], []>, precision = #tpu.contract_precision<fp32>} : vector<16x32xf32>, vector<32x32xf32>, vector<16x32xf32> -> vector<16x32xf32>
    %c1 = arith.constant 1 : index
    %c0_15 = arith.constant 0 : index
    %28 = vector.load %arg2[%c1, %c0_15] : memref<96x96xf32, #tpu.memory_space<vmem>>, vector<1x32xf32>
    %29 = vector.broadcast %28 : vector<1x32xf32> to vector<16x32xf32>
    %30 = arith.addf %27, %29 : vector<16x32xf32>
    %31 = arith.addf %0, %30 : vector<16x32xf32>
    %cst_16 = arith.constant dense<0.000000e+00> : vector<16xf32>
    %32 = vector.multi_reduction <add>, %31, %cst_16 [1] : vector<16x32xf32> to vector<16xf32>
    %33 = vector.shape_cast %32 : vector<16xf32> to vector<16x1xf32>
    %cst_17 = arith.constant 3.200000e+01 : f32
    %34 = vector.broadcast %cst_17 : f32 to vector<16x1xf32>
    %35 = arith.divf %33, %34 : vector<16x1xf32>
    %36 = vector.broadcast %35 : vector<16x1xf32> to vector<16x32xf32>
    %37 = arith.subf %31, %36 : vector<16x32xf32>
    %38 = arith.mulf %37, %37 : vector<16x32xf32>
    %cst_18 = arith.constant dense<0.000000e+00> : vector<16xf32>
    %39 = vector.multi_reduction <add>, %38, %cst_18 [1] : vector<16x32xf32> to vector<16xf32>
    %40 = vector.shape_cast %39 : vector<16xf32> to vector<16x1xf32>
    %cst_19 = arith.constant 3.200000e+01 : f32
    %41 = vector.broadcast %cst_19 : f32 to vector<16x1xf32>
    %42 = arith.divf %40, %41 : vector<16x1xf32>
    %cst_20 = arith.constant 9.99999974E-6 : f32
    %43 = vector.broadcast %cst_20 : f32 to vector<16x1xf32>
    %44 = arith.addf %42, %43 : vector<16x1xf32>
    %45 = math.rsqrt %44 : vector<16x1xf32>
    %46 = vector.broadcast %45 : vector<16x1xf32> to vector<16x32xf32>
    %47 = arith.mulf %37, %46 : vector<16x32xf32>
    %c2 = arith.constant 2 : index
    %c0_21 = arith.constant 0 : index
    %48 = vector.load %arg2[%c2, %c0_21] : memref<96x96xf32, #tpu.memory_space<vmem>>, vector<1x32xf32>
    %49 = vector.broadcast %48 : vector<1x32xf32> to vector<16x32xf32>
    %50 = arith.mulf %47, %49 : vector<16x32xf32>
    %c3 = arith.constant 3 : index
    %c0_22 = arith.constant 0 : index
    %51 = vector.load %arg2[%c3, %c0_22] : memref<96x96xf32, #tpu.memory_space<vmem>>, vector<1x32xf32>
    %52 = vector.broadcast %51 : vector<1x32xf32> to vector<16x32xf32>
    %53 = arith.addf %50, %52 : vector<16x32xf32>
    %c0_23 = arith.constant 0 : index
    %c256 = arith.constant 256 : index
    %54 = vector.load %arg1[%c0_23, %c256] : memref<32x896xf32, #tpu.memory_space<vmem>>, vector<32x32xf32>
    %cst_24 = arith.constant dense<0.000000e+00> : vector<16x32xf32>
    %55 = tpu.matmul %53, %54, %cst_24 {dimension_numbers = #tpu.dot_dimension_numbers<[1], [0], [0], [1], [0, 0, 1, 1], [], []>, precision = #tpu.contract_precision<fp32>} : vector<16x32xf32>, vector<32x32xf32>, vector<16x32xf32> -> vector<16x32xf32>
    %c4 = arith.constant 4 : index
    %c0_25 = arith.constant 0 : index
    %56 = vector.load %arg2[%c4, %c0_25] : memref<96x96xf32, #tpu.memory_space<vmem>>, vector<1x32xf32>
    %57 = vector.broadcast %56 : vector<1x32xf32> to vector<16x32xf32>
    %58 = arith.addf %55, %57 : vector<16x32xf32>
    %c0_26 = arith.constant 0 : index
    %c384 = arith.constant 384 : index
    %59 = vector.load %arg1[%c0_26, %c384] : memref<32x896xf32, #tpu.memory_space<vmem>>, vector<32x64xf32>
    %cst_27 = arith.constant dense<0.000000e+00> : vector<16x64xf32>
    %60 = tpu.matmul %1, %59, %cst_27 {dimension_numbers = #tpu.dot_dimension_numbers<[1], [0], [0], [1], [0, 0, 1, 1], [], []>, precision = #tpu.contract_precision<fp32>} : vector<16x32xf32>, vector<32x64xf32>, vector<16x64xf32> -> vector<16x64xf32>
    %c5 = arith.constant 5 : index
    %c0_28 = arith.constant 0 : index
    %61 = vector.load %arg2[%c5, %c0_28] : memref<96x96xf32, #tpu.memory_space<vmem>>, vector<1x64xf32>
    %62 = vector.broadcast %61 : vector<1x64xf32> to vector<16x64xf32>
    %63 = arith.addf %60, %62 : vector<16x64xf32>
    %64 = vector.extract_strided_slice %63 {offsets = [0, 0], sizes = [16, 32], strides = [1, 1]} : vector<16x64xf32> to vector<16x32xf32>
    %65 = vector.extract_strided_slice %63 {offsets = [0, 32], sizes = [16, 32], strides = [1, 1]} : vector<16x64xf32> to vector<16x32xf32>
    %66 = tpu.concatenate %64, %64, %64, %64 in 0 : vector<16x32xf32>, vector<16x32xf32>, vector<16x32xf32>, vector<16x32xf32> -> vector<64x32xf32>
    %67 = arith.mulf %66, %3 : vector<64x32xf32>
    %68 = tpu.concatenate %65, %65, %65, %65 in 0 : vector<16x32xf32>, vector<16x32xf32>, vector<16x32xf32>, vector<16x32xf32> -> vector<64x32xf32>
    %69 = arith.mulf %68, %3 : vector<64x32xf32>
    %cst_29 = arith.constant dense<0.000000e+00> : vector<16x64xf32>
    %70 = tpu.matmul %58, %67, %cst_29 {dimension_numbers = #tpu.dot_dimension_numbers<[1], [1], [0], [0], [0, 0, 1, 0], [], []>, precision = #tpu.contract_precision<fp32>} : vector<16x32xf32>, vector<64x32xf32>, vector<16x64xf32> -> vector<16x64xf32>
    %71 = arith.addf %70, %2 : vector<16x64xf32>
    %cst_30 = arith.constant dense<0xFF800000> : vector<16xf32>
    %72 = vector.multi_reduction <maximumf>, %71, %cst_30 [1] : vector<16x64xf32> to vector<16xf32>
    %73 = vector.shape_cast %72 : vector<16xf32> to vector<16x1xf32>
    %74 = vector.broadcast %73 : vector<16x1xf32> to vector<16x64xf32>
    %75 = arith.subf %71, %74 : vector<16x64xf32>
    %76 = math.exp %75 : vector<16x64xf32>
    %cst_31 = arith.constant dense<0.000000e+00> : vector<16x32xf32>
    %77 = tpu.matmul %76, %69, %cst_31 {dimension_numbers = #tpu.dot_dimension_numbers<[1], [0], [0], [1], [0, 0, 1, 1], [], []>, precision = #tpu.contract_precision<fp32>} : vector<16x64xf32>, vector<64x32xf32>, vector<16x32xf32> -> vector<16x32xf32>
    %cst_32 = arith.constant dense<0.000000e+00> : vector<16x32xf32>
    %78 = tpu.matmul %76, %3, %cst_32 {dimension_numbers = #tpu.dot_dimension_numbers<[1], [0], [0], [1], [0, 0, 1, 1], [], []>, precision = #tpu.contract_precision<fp32>} : vector<16x64xf32>, vector<64x32xf32>, vector<16x32xf32> -> vector<16x32xf32>
    %79 = arith.divf %77, %78 : vector<16x32xf32>
    %c0_33 = arith.constant 0 : index
    %c512 = arith.constant 512 : index
    %80 = vector.load %arg1[%c0_33, %c512] : memref<32x896xf32, #tpu.memory_space<vmem>>, vector<32x32xf32>
    %cst_34 = arith.constant dense<0.000000e+00> : vector<16x32xf32>
    %81 = tpu.matmul %79, %80, %cst_34 {dimension_numbers = #tpu.dot_dimension_numbers<[1], [0], [0], [1], [0, 0, 1, 1], [], []>, precision = #tpu.contract_precision<fp32>} : vector<16x32xf32>, vector<32x32xf32>, vector<16x32xf32> -> vector<16x32xf32>
    %c6 = arith.constant 6 : index
    %c0_35 = arith.constant 0 : index
    %82 = vector.load %arg2[%c6, %c0_35] : memref<96x96xf32, #tpu.memory_space<vmem>>, vector<1x32xf32>
    %83 = vector.broadcast %82 : vector<1x32xf32> to vector<16x32xf32>
    %84 = arith.addf %81, %83 : vector<16x32xf32>
    %85 = arith.addf %53, %84 : vector<16x32xf32>
    %cst_36 = arith.constant dense<0.000000e+00> : vector<16xf32>
    %86 = vector.multi_reduction <add>, %85, %cst_36 [1] : vector<16x32xf32> to vector<16xf32>
    %87 = vector.shape_cast %86 : vector<16xf32> to vector<16x1xf32>
    %cst_37 = arith.constant 3.200000e+01 : f32
    %88 = vector.broadcast %cst_37 : f32 to vector<16x1xf32>
    %89 = arith.divf %87, %88 : vector<16x1xf32>
    %90 = vector.broadcast %89 : vector<16x1xf32> to vector<16x32xf32>
    %91 = arith.subf %85, %90 : vector<16x32xf32>
    %92 = arith.mulf %91, %91 : vector<16x32xf32>
    %cst_38 = arith.constant dense<0.000000e+00> : vector<16xf32>
    %93 = vector.multi_reduction <add>, %92, %cst_38 [1] : vector<16x32xf32> to vector<16xf32>
    %94 = vector.shape_cast %93 : vector<16xf32> to vector<16x1xf32>
    %cst_39 = arith.constant 3.200000e+01 : f32
    %95 = vector.broadcast %cst_39 : f32 to vector<16x1xf32>
    %96 = arith.divf %94, %95 : vector<16x1xf32>
    %cst_40 = arith.constant 9.99999974E-6 : f32
    %97 = vector.broadcast %cst_40 : f32 to vector<16x1xf32>
    %98 = arith.addf %96, %97 : vector<16x1xf32>
    %99 = math.rsqrt %98 : vector<16x1xf32>
    %100 = vector.broadcast %99 : vector<16x1xf32> to vector<16x32xf32>
    %101 = arith.mulf %91, %100 : vector<16x32xf32>
    %c7 = arith.constant 7 : index
    %c0_41 = arith.constant 0 : index
    %102 = vector.load %arg2[%c7, %c0_41] : memref<96x96xf32, #tpu.memory_space<vmem>>, vector<1x32xf32>
    %103 = vector.broadcast %102 : vector<1x32xf32> to vector<16x32xf32>
    %104 = arith.mulf %101, %103 : vector<16x32xf32>
    %c8 = arith.constant 8 : index
    %c0_42 = arith.constant 0 : index
    %105 = vector.load %arg2[%c8, %c0_42] : memref<96x96xf32, #tpu.memory_space<vmem>>, vector<1x32xf32>
    %106 = vector.broadcast %105 : vector<1x32xf32> to vector<16x32xf32>
    %107 = arith.addf %104, %106 : vector<16x32xf32>
    %c0_43 = arith.constant 0 : index
    %c640 = arith.constant 640 : index
    %108 = vector.load %arg1[%c0_43, %c640] : memref<32x896xf32, #tpu.memory_space<vmem>>, vector<32x64xf32>
    %cst_44 = arith.constant dense<0.000000e+00> : vector<16x64xf32>
    %109 = tpu.matmul %107, %108, %cst_44 {dimension_numbers = #tpu.dot_dimension_numbers<[1], [0], [0], [1], [0, 0, 1, 1], [], []>, precision = #tpu.contract_precision<fp32>} : vector<16x32xf32>, vector<32x64xf32>, vector<16x64xf32> -> vector<16x64xf32>
    %c9 = arith.constant 9 : index
    %c0_45 = arith.constant 0 : index
    %110 = vector.load %arg2[%c9, %c0_45] : memref<96x96xf32, #tpu.memory_space<vmem>>, vector<1x64xf32>
    %111 = vector.broadcast %110 : vector<1x64xf32> to vector<16x64xf32>
    %112 = arith.addf %109, %111 : vector<16x64xf32>
    %cst_46 = arith.constant 0.000000e+00 : f32
    %113 = vector.broadcast %cst_46 : f32 to vector<16x64xf32>
    %114 = arith.maximumf %112, %113 : vector<16x64xf32>
    %c0_47 = arith.constant 0 : index
    %c768 = arith.constant 768 : index
    %115 = vector.load %arg1[%c0_47, %c768] : memref<32x896xf32, #tpu.memory_space<vmem>>, vector<32x64xf32>
    %cst_48 = arith.constant dense<0.000000e+00> : vector<16x32xf32>
    %116 = tpu.matmul %114, %115, %cst_48 {dimension_numbers = #tpu.dot_dimension_numbers<[1], [1], [0], [0], [0, 0, 1, 0], [], []>, precision = #tpu.contract_precision<fp32>} : vector<16x64xf32>, vector<32x64xf32>, vector<16x32xf32> -> vector<16x32xf32>
    %c10 = arith.constant 10 : index
    %c0_49 = arith.constant 0 : index
    %117 = vector.load %arg2[%c10, %c0_49] : memref<96x96xf32, #tpu.memory_space<vmem>>, vector<1x32xf32>
    %118 = vector.broadcast %117 : vector<1x32xf32> to vector<16x32xf32>
    %119 = arith.addf %116, %118 : vector<16x32xf32>
    %120 = arith.addf %107, %119 : vector<16x32xf32>
    %cst_50 = arith.constant dense<0.000000e+00> : vector<16xf32>
    %121 = vector.multi_reduction <add>, %120, %cst_50 [1] : vector<16x32xf32> to vector<16xf32>
    %122 = vector.shape_cast %121 : vector<16xf32> to vector<16x1xf32>
    %cst_51 = arith.constant 3.200000e+01 : f32
    %123 = vector.broadcast %cst_51 : f32 to vector<16x1xf32>
    %124 = arith.divf %122, %123 : vector<16x1xf32>
    %125 = vector.broadcast %124 : vector<16x1xf32> to vector<16x32xf32>
    %126 = arith.subf %120, %125 : vector<16x32xf32>
    %127 = arith.mulf %126, %126 : vector<16x32xf32>
    %cst_52 = arith.constant dense<0.000000e+00> : vector<16xf32>
    %128 = vector.multi_reduction <add>, %127, %cst_52 [1] : vector<16x32xf32> to vector<16xf32>
    %129 = vector.shape_cast %128 : vector<16xf32> to vector<16x1xf32>
    %cst_53 = arith.constant 3.200000e+01 : f32
    %130 = vector.broadcast %cst_53 : f32 to vector<16x1xf32>
    %131 = arith.divf %129, %130 : vector<16x1xf32>
    %cst_54 = arith.constant 9.99999974E-6 : f32
    %132 = vector.broadcast %cst_54 : f32 to vector<16x1xf32>
    %133 = arith.addf %131, %132 : vector<16x1xf32>
    %134 = math.rsqrt %133 : vector<16x1xf32>
    %135 = vector.broadcast %134 : vector<16x1xf32> to vector<16x32xf32>
    %136 = arith.mulf %126, %135 : vector<16x32xf32>
    %c11 = arith.constant 11 : index
    %c0_55 = arith.constant 0 : index
    %137 = vector.load %arg2[%c11, %c0_55] : memref<96x96xf32, #tpu.memory_space<vmem>>, vector<1x32xf32>
    %138 = vector.broadcast %137 : vector<1x32xf32> to vector<16x32xf32>
    %139 = arith.mulf %136, %138 : vector<16x32xf32>
    %c12 = arith.constant 12 : index
    %c0_56 = arith.constant 0 : index
    %140 = vector.load %arg2[%c12, %c0_56] : memref<96x96xf32, #tpu.memory_space<vmem>>, vector<1x32xf32>
    %141 = vector.broadcast %140 : vector<1x32xf32> to vector<16x32xf32>
    %142 = arith.addf %139, %141 : vector<16x32xf32>
    %c0_57 = arith.constant 0 : index
    %c0_58 = arith.constant 0 : index
    %143 = vector.load %arg3[%c0_57, %c0_58] : memref<16x32xf32, #tpu.memory_space<vmem>>, vector<16x32xf32>
    tpu.vector_store %arg3[%c0_57, %c0_58], %142 {strides = array<i32>} : memref<16x32xf32, #tpu.memory_space<vmem>>, vector<16x32xf32>,
    return
  }
}

</mosaic_0001>

<llo_original>
// kernel: transformer_decoder_block.1
$region0: #{transformer_decoder_block.1}
  #allocation0 [shape = 'u32[]', space=smem, size = 0x4, offset = 0x4, fixed_abs, tag = 'smem constant byte address 0x4 - core index']
  #allocation1 [shape = 'u32[144,128]{1,0:T(1,128)}', space=vmem, size = 0x12000, scoped, tag = 'internal scratch']
  %s0 = inlined_call_operand.vmem [shape: f32[32,32], index: 0, kind: input, shape index: {}]
  %s1 = inlined_call_operand.hbm [shape: f32[32,896], index: 1, kind: input, shape index: {}]
  %s2 = inlined_call_operand.hbm [shape: f32[96,96], index: 2, kind: input, shape index: {}]
  %s3 = inlined_call_operand.hbm [shape: f32[16,32], index: 3, kind: output, shape index: {}]
  %s4 = sld [smem:[#allocation0]]
  $region30: #{transformer_decoder_block.1} parent=0
    _
  %s6 = ssub.s32 1, %s4
  %s7 = scalar_select 0, %s6, %s4
  $region1: #{transformer_decoder_block.1} parent=0
    #allocation2 [shape = 'u8[114688]{0}', space=vmem, size = 0x1c000, scoped, tag = 'input window, operand 1, single buffered']
    #allocation3 [shape = 's32[1]{0}', space=sflag, size = 0x4, scoped, tag = 'scoped memory for transformer_decoder_block.1']
    #allocation4 [shape = 's32[1]{0}', space=sflag, size = 0x4, scoped, tag = 'scoped memory for transformer_decoder_block.1']
    #allocation5 [shape = 'u8[49152]{0}', space=vmem, size = 0xc000, scoped, tag = 'input window, operand 2, single buffered']
    #allocation6 [shape = 's32[1]{0}', space=sflag, size = 0x4, scoped, tag = 'scoped memory for transformer_decoder_block.1']
    #allocation7 [shape = 'u8[8192]{0}', space=vmem, size = 0x2000, scoped, tag = 'output window, operand 0, single buffered']
    %8 = vsyncpa [#allocation3], 0
    %9 = vsyncpa [#allocation6], 0
    %10 = vsyncpa [#allocation4], 0
    // Predicated region
    $region2: #{transformer_decoder_block.1} parent=1 // pred_check
      _
    $region3: #{transformer_decoder_block.1} parent=1 // pred_check_branch
      %12 = sbr.rel (0) target = $region5
    $region4: #{transformer_decoder_block.1} parent=1 // pred_region
      _
    $region5: #{transformer_decoder_block.1} parent=1 // pred_fallthru
      _
    // Predicated region
    $region6: #{transformer_decoder_block.1} parent=1 // pred_check
      _
    $region7: #{transformer_decoder_block.1} parent=1 // pred_check_branch
      %14 = sbr.rel (0) target = $region9
    $region8: #{transformer_decoder_block.1} parent=1 // pred_region
      %s16 = ssub.s32 3584, 3584
      %17 = vsyncadd [#allocation3], %s16
      %s18 = sshll.u32 [#allocation2], 4
      %s19 = int_to_ptr.vmem [resolvable:$true] %s18
      %24 = dma.hbm_to_vmem [thread:$0]  %s1, 3584, %s19, [#allocation3], 896, 896, 56
    $region9: #{transformer_decoder_block.1} parent=1 // pred_fallthru
      _
    // Predicated region
    $region10: #{transformer_decoder_block.1} parent=1 // pred_check
      _
    $region11: #{transformer_decoder_block.1} parent=1 // pred_check_branch
      %26 = sbr.rel (0) target = $region13
    $region12: #{transformer_decoder_block.1} parent=1 // pred_region
      %s28 = ssub.s32 1536, 1536
      %29 = vsyncadd [#allocation6], %s28
      %s30 = sshll.u32 [#allocation5], 4
      %s31 = int_to_ptr.vmem [resolvable:$true] %s30
      %36 = dma.hbm_to_vmem [thread:$0]  %s2, 1536, %s31, [#allocation6], 128, 128, 8
    $region13: #{transformer_decoder_block.1} parent=1 // pred_fallthru
      _
    // Predicated region
    $region14: #{transformer_decoder_block.1} parent=1 // pred_check
      _
    $region15: #{transformer_decoder_block.1} parent=1 // pred_check_branch
      %38 = sbr.rel (0) target = $region17
    $region16: #{transformer_decoder_block.1} parent=1 // pred_region
      %39 = dma.done [#allocation3], 3584
    $region17: #{transformer_decoder_block.1} parent=1 // pred_fallthru
      _
    // Predicated region
    $region18: #{transformer_decoder_block.1} parent=1 // pred_check
      _
    $region19: #{transformer_decoder_block.1} parent=1 // pred_check_branch
      %41 = sbr.rel (0) target = $region21
    $region20: #{transformer_decoder_block.1} parent=1 // pred_region
      %42 = dma.done [#allocation6], 1536
    $region21: #{transformer_decoder_block.1} parent=1 // pred_fallthru
      _
    %v43 = vld [vmem:[%s0] sm:$0xff]
    %v44 = vld [vmem:[%s0 + $0x8] sm:$0xff]
    %v45 = vld [vmem:[%s0 + $0x10] sm:$0xff]
    %v46 = vld [vmem:[%s0 + $0x18] sm:$0xff]
    %v47 = vld [vmem:[#allocation5 + $0x10] sm:$0xff]
    %v48 = vld [vmem:[#allocation5 + $0x18] sm:$0xff]
    %v49 = vld [vmem:[#allocation5 + $0x20] sm:$0xff]
    %v50 = vld [vmem:[#allocation5 + $0x28] sm:$0xff]
    %v51 = vld [vmem:[#allocation5 + $0x30] sm:$0xff]
    %v52 = vld [vmem:[#allocation5 + $0x38] sm:$0xff]
    %v53 = vld [vmem:[#allocation5 + $0x40] sm:$0xff]
    %v54 = vld [vmem:[#allocation5 + $0x48] sm:$0xff]
    %v55 = vld [vmem:[#allocation5 + $0x50] sm:$0xff]
    %v56 = vld [vmem:[#allocation5 + $0x58] sm:$0xff]
    %v57 = vld [vmem:[#allocation2] sm:$0xff]
    %v58 = vld [vmem:[#allocation2 + $0x38] sm:$0xff]
    %v59 = vld [vmem:[#allocation2 + $0x70] sm:$0xff]
    %v60 = vld [vmem:[#allocation2 + $0xa8] sm:$0xff]
    %v61 = vld [vmem:[#allocation5] sm:$0x1]
    %v62 = vlaneseq
    %v63 = vshrl.u32 %v62, 7
    %v64 = vsub.s32 0, %v63
    %v65 = vrot.slane %v61, %v64
    %vm66 = vcmask 261120
    %v68 = vsel %vm66, %v43, 0
    %v71 = vsel %vm66, %v44, 0
    %73 = vmatprep.subr.mxu0 0.0
    %v74 = vand.u32 %v57, 4294901760
    %75 = vmatpush1.msra.mxu0 %v74
    %76 = vmatprep.subr.mxu0 0.0
    %v77 = vand.u32 %v58, 4294901760
    %78 = vmatpush1.msra.mxu0 %v77
    %79 = vmatprep.subr.mxu0 0.0
    %v80 = vand.u32 %v59, 4294901760
    %81 = vmatpush1.msra.mxu0 %v80
    %82 = vmatprep.subr.mxu0 0.0
    %v83 = vand.u32 %v60, 4294901760
    %84 = vmatpush1.msra.mxu0 %v83
    %85 = vmatprep.subr.mxu0 0.0
    %86 = vmatpush1.msra.mxu0 0.0
    %87 = vmatprep.subr.mxu0 0.0
    %88 = vmatpush1.msra.mxu0 0.0
    %89 = vmatprep.subr.mxu0 0.0
    %90 = vmatpush1.msra.mxu0 0.0
    %91 = vmatprep.subr.mxu0 0.0
    %92 = vmatpush1.msra.mxu0 0.0
    %93 = vmatprep.subr.mxu0 0.0
    %94 = vmatpush1.msra.mxu0 0.0
    %95 = vmatprep.subr.mxu0 0.0
    %96 = vmatpush1.msra.mxu0 0.0
    %97 = vmatprep.subr.mxu0 0.0
    %98 = vmatpush1.msra.mxu0 0.0
    %99 = vmatprep.subr.mxu0 0.0
    %100 = vmatpush1.msra.mxu0 0.0
    %101 = vmatprep.subr.mxu0 0.0
    %102 = vmatpush1.msra.mxu0 0.0
    %103 = vmatprep.subr.mxu0 0.0
    %104 = vmatpush1.msra.mxu0 0.0
    %105 = vmatprep.subr.mxu0 0.0
    %106 = vmatpush1.msra.mxu0 0.0
    %107 = vmatprep.subr.mxu0 0.0
    %108 = vmatpush1.msra.mxu0 0.0
    %109 = vmatprep.subr.mxu0 0.0
    %110 = vmatpush1.msra.mxu0 0.0
    %111 = vmatprep.subr.mxu0 0.0
    %112 = vmatpush1.msra.mxu0 0.0
    %113 = vmatprep.subr.mxu0 0.0
    %114 = vmatpush1.msra.mxu0 0.0
    %115 = vmatprep.subr.mxu0 0.0
    %116 = vmatpush1.msra.mxu0 0.0
    %117 = vmatprep.subr.mxu0 0.0
    %118 = vmatpush1.msra.mxu0 0.0
    %119 = vmatprep.subr.mxu0 0.0
    %120 = vmatpush1.msra.mxu0 0.0
    %121 = vmatprep.subr.mxu0 0.0
    %122 = vmatpush1.msra.mxu0 0.0
    %123 = vmatprep.subr.mxu0 0.0
    %124 = vmatpush1.msra.mxu0 0.0
    %125 = vmatprep.subr.mxu0 0.0
    %126 = vmatpush1.msra.mxu0 0.0
    %127 = vmatprep.subr.mxu0 0.0
    %128 = vmatpush1.msra.mxu0 0.0
    %129 = vmatprep.subr.mxu0 0.0
    %130 = vmatpush1.msra.mxu0 0.0
    %131 = vmatprep.subr.mxu0 0.0
    %132 = vmatpush1.msra.mxu0 0.0
    %133 = vmatprep.subr.mxu0 0.0
    %134 = vmatpush1.msra.mxu0 0.0
    %135 = vmatprep.subr.mxu0 0.0
    %136 = vmatpush1.msra.mxu0 0.0
    %137 = vmatprep.subr.mxu0 0.0
    %138 = vmatpush1.msra.mxu0 0.0
    %139 = vmatprep.subr.mxu0 0.0
    %140 = vmatpush1.msra.mxu0 0.0
    %141 = vmatprep.mubr.f32.mxu0 0.0
    %v142 = vand.u32 %v68, 4294901760
    %v143 = vsub.f32 %v68, %v142
    %v144 = vand.u32 %v143, 4294901760
    %v145 = vsub.f32 %v143, %v144
    %v146 = vand.u32 %v145, 4294901760
    %147 = vmatmul.mubr.f32.gmra.mrb[0].mxu0 %v146
    %v148 = vpop.f32.mrb[0].mxu0
    %v149 = vadd.f32 %v65, %v148
    %v150 = vpop.f32.mrb[0].mxu0
    %151 = vmatprep.mubr.f32.mxu0 0.0
    %v152 = vand.u32 %v71, 4294901760
    %v153 = vsub.f32 %v71, %v152
    %v154 = vand.u32 %v153, 4294901760
    %v155 = vsub.f32 %v153, %v154
    %v156 = vand.u32 %v155, 4294901760
    %157 = vmatmul.mubr.f32.gmra.mrb[0].mxu0 %v156
    %v158 = vpop.f32.mrb[0].mxu0
    %v159 = vadd.f32 %v65, %v158
    %v160 = vpop.f32.mrb[0].mxu0
    %161 = vdwg.mxu0
    %162 = vmatprep.subr.mxu0 0.0
    %v163 = vand.u32 %v57, 4294901760
    %v164 = vsub.f32 %v57, %v163
    %v165 = vand.u32 %v164, 4294901760
    %v166 = vsub.f32 %v164, %v165
    %v167 = vand.u32 %v166, 4294901760
    %168 = vmatpush1.msra.mxu0 %v167
    %169 = vmatprep.subr.mxu0 0.0
    %v170 = vand.u32 %v58, 4294901760
    %v171 = vsub.f32 %v58, %v170
    %v172 = vand.u32 %v171, 4294901760
    %v173 = vsub.f32 %v171, %v172
    %v174 = vand.u32 %v173, 4294901760
    %175 = vmatpush1.msra.mxu0 %v174
    %176 = vmatprep.subr.mxu0 0.0
    %v177 = vand.u32 %v59, 4294901760
    %v178 = vsub.f32 %v59, %v177
    %v179 = vand.u32 %v178, 4294901760
    %v180 = vsub.f32 %v178, %v179
    %v181 = vand.u32 %v180, 4294901760
    %182 = vmatpush1.msra.mxu0 %v181
    %183 = vmatprep.subr.mxu0 0.0
    %v184 = vand.u32 %v60, 4294901760
    %v185 = vsub.f32 %v60, %v184
    %v186 = vand.u32 %v185, 4294901760
    %v187 = vsub.f32 %v185, %v186
    %v188 = vand.u32 %v187, 4294901760
    %189 = vmatpush1.msra.mxu0 %v188
    %190 = vmatprep.subr.mxu0 0.0
    %191 = vmatpush1.msra.mxu0 0.0
    %192 = vmatprep.subr.mxu0 0.0
    %193 = vmatpush1.msra.mxu0 0.0
    %194 = vmatprep.subr.mxu0 0.0
    %195 = vmatpush1.msra.mxu0 0.0
    %196 = vmatprep.subr.mxu0 0.0
    %197 = vmatpush1.msra.mxu0 0.0
    %198 = vmatprep.subr.mxu0 0.0
    %199 = vmatpush1.msra.mxu0 0.0
    %200 = vmatprep.subr.mxu0 0.0
    %201 = vmatpush1.msra.mxu0 0.0
    %202 = vmatprep.subr.mxu0 0.0
    %203 = vmatpush1.msra.mxu0 0.0
    %204 = vmatprep.subr.mxu0 0.0
    %205 = vmatpush1.msra.mxu0 0.0
    %206 = vmatprep.subr.mxu0 0.0
    %207 = vmatpush1.msra.mxu0 0.0
    %208 = vmatprep.subr.mxu0 0.0
    %209 = vmatpush1.msra.mxu0 0.0
    %210 = vmatprep.subr.mxu0 0.0
    %211 = vmatpush1.msra.mxu0 0.0
    %212 = vmatprep.subr.mxu0 0.0
    %213 = vmatpush1.msra.mxu0 0.0
    %214 = vmatprep.subr.mxu0 0.0
    %215 = vmatpush1.msra.mxu0 0.0
    %216 = vmatprep.subr.mxu0 0.0
    %217 = vmatpush1.msra.mxu0 0.0
    %218 = vmatprep.subr.mxu0 0.0
    %219 = vmatpush1.msra.mxu0 0.0
    %220 = vmatprep.subr.mxu0 0.0
    %221 = vmatpush1.msra.mxu0 0.0
    %222 = vmatprep.subr.mxu0 0.0
    %223 = vmatpush1.msra.mxu0 0.0
    %224 = vmatprep.subr.mxu0 0.0
    %225 = vmatpush1.msra.mxu0 0.0
    %226 = vmatprep.subr.mxu0 0.0
    %227 = vmatpush1.msra.mxu0 0.0
    %228 = vmatprep.subr.mxu0 0.0
    %229 = vmatpush1.msra.mxu0 0.0
    %230 = vmatprep.subr.mxu0 0.0
    %231 = vmatpush1.msra.mxu0 0.0
    %232 = vmatprep.subr.mxu0 0.0
    %233 = vmatpush1.msra.mxu0 0.0
    %234 = vmatprep.subr.mxu0 0.0
    %235 = vmatpush1.msra.mxu0 0.0
    %236 = vmatprep.subr.mxu0 0.0
    %237 = vmatpush1.msra.mxu0 0.0
    %238 = vmatprep.subr.mxu0 0.0
    %239 = vmatpush1.msra.mxu0 0.0
    %240 = vmatprep.subr.mxu0 0.0
    %241 = vmatpush1.msra.mxu0 0.0
    %242 = vmatprep.subr.mxu0 0.0
    %243 = vmatpush1.msra.mxu0 0.0
    %244 = vmatprep.subr.mxu0 0.0
    %245 = vmatpush1.msra.mxu0 0.0
    %246 = vmatprep.mubr.f32.mxu0 0.0
    %v247 = vand.u32 %v68, 4294901760
    %248 = vmatmul.mubr.f32.gmra.mrb[0].mxu0 %v247
    %v249 = vpop.f32.mrb[0].mxu0
    %v250 = vadd.f32 %v149, %v249
    %v251 = vpop.f32.mrb[0].mxu0
    %252 = vmatprep.mubr.f32.mxu0 0.0
    %v253 = vand.u32 %v71, 4294901760
    %254 = vmatmul.mubr.f32.gmra.mrb[0].mxu0 %v253
    %v255 = vpop.f32.mrb[0].mxu0
    %v256 = vadd.f32 %v159, %v255
    %v257 = vpop.f32.mrb[0].mxu0
    %258 = vdwg.mxu0
    %259 = vmatprep.subr.mxu0 0.0
    %v260 = vand.u32 %v57, 4294901760
    %v261 = vsub.f32 %v57, %v260
    %262 = vmatpush1.msra.mxu0 %v261
    %263 = vmatprep.subr.mxu0 0.0
    %v264 = vand.u32 %v58, 4294901760
    %v265 = vsub.f32 %v58, %v264
    %266 = vmatpush1.msra.mxu0 %v265
    %267 = vmatprep.subr.mxu0 0.0
    %v268 = vand.u32 %v59, 4294901760
    %v269 = vsub.f32 %v59, %v268
    %270 = vmatpush1.msra.mxu0 %v269
    %271 = vmatprep.subr.mxu0 0.0
    %v272 = vand.u32 %v60, 4294901760
    %v273 = vsub.f32 %v60, %v272
    %274 = vmatpush1.msra.mxu0 %v273
    %275 = vmatprep.subr.mxu0 0.0
    %276 = vmatpush1.msra.mxu0 0.0
    %277 = vmatprep.subr.mxu0 0.0
    %278 = vmatpush1.msra.mxu0 0.0
    %279 = vmatprep.subr.mxu0 0.0
    %280 = vmatpush1.msra.mxu0 0.0
    %281 = vmatprep.subr.mxu0 0.0
    %282 = vmatpush1.msra.mxu0 0.0
    %283 = vmatprep.subr.mxu0 0.0
    %284 = vmatpush1.msra.mxu0 0.0
    %285 = vmatprep.subr.mxu0 0.0
    %286 = vmatpush1.msra.mxu0 0.0
    %287 = vmatprep.subr.mxu0 0.0
    %288 = vmatpush1.msra.mxu0 0.0
    %289 = vmatprep.subr.mxu0 0.0
    %290 = vmatpush1.msra.mxu0 0.0
    %291 = vmatprep.subr.mxu0 0.0
    %292 = vmatpush1.msra.mxu0 0.0
    %293 = vmatprep.subr.mxu0 0.0
    %294 = vmatpush1.msra.mxu0 0.0
    %295 = vmatprep.subr.mxu0 0.0
    %296 = vmatpush1.msra.mxu0 0.0
    %297 = vmatprep.subr.mxu0 0.0
    %298 = vmatpush1.msra.mxu0 0.0
    %299 = vmatprep.subr.mxu0 0.0
    %300 = vmatpush1.msra.mxu0 0.0
    %301 = vmatprep.subr.mxu0 0.0
    %302 = vmatpush1.msra.mxu0 0.0
    %303 = vmatprep.subr.mxu0 0.0
    %304 = vmatpush1.msra.mxu0 0.0
    %305 = vmatprep.subr.mxu0 0.0
    %306 = vmatpush1.msra.mxu0 0.0
    %307 = vmatprep.subr.mxu0 0.0
    %308 = vmatpush1.msra.mxu0 0.0
    %309 = vmatprep.subr.mxu0 0.0
    %310 = vmatpush1.msra.mxu0 0.0
    %311 = vmatprep.subr.mxu0 0.0
    %312 = vmatpush1.msra.mxu0 0.0
    %313 = vmatprep.subr.mxu0 0.0
    %314 = vmatpush1.msra.mxu0 0.0
    %315 = vmatprep.subr.mxu0 0.0
    %316 = vmatpush1.msra.mxu0 0.0
    %317 = vmatprep.subr.mxu0 0.0
    %318 = vmatpush1.msra.mxu0 0.0
    %319 = vmatprep.subr.mxu0 0.0
    %320 = vmatpush1.msra.mxu0 0.0
    %321 = vmatprep.subr.mxu0 0.0
    %322 = vmatpush1.msra.mxu0 0.0
    %323 = vmatprep.subr.mxu0 0.0
    %324 = vmatpush1.msra.mxu0 0.0
    %325 = vmatprep.subr.mxu0 0.0
    %326 = vmatpush1.msra.mxu0 0.0
    %327 = vmatprep.subr.mxu0 0.0
    %328 = vmatpush1.msra.mxu0 0.0
    %329 = vmatprep.subr.mxu0 0.0
    %330 = vmatpush1.msra.mxu0 0.0
    %331 = vmatprep.mubr.f32.mxu0 0.0
    %v332 = vand.u32 %v68, 4294901760
    %v333 = vsub.f32 %v68, %v332
    %334 = vmatmul.mubr.f32.gmra.mrb[0].mxu0 %v333
    %v335 = vpop.f32.mrb[0].mxu0
    %v336 = vadd.f32 %v250, %v335
    %v337 = vpop.f32.mrb[0].mxu0
    %338 = vmatprep.mubr.f32.mxu0 0.0
    %v339 = vand.u32 %v71, 4294901760
    %v340 = vsub.f32 %v71, %v339
    %341 = vmatmul.mubr.f32.gmra.mrb[0].mxu0 %v340
    %v342 = vpop.f32.mrb[0].mxu0
    %v343 = vadd.f32 %v256, %v342
    %v344 = vpop.f32.mrb[0].mxu0
    %345 = vdwg.mxu0
    %346 = vmatprep.subr.mxu0 0.0
    %v347 = vand.u32 %v57, 4294901760
    %348 = vmatpush1.msra.mxu0 %v347
    %349 = vmatprep.subr.mxu0 0.0
    %v350 = vand.u32 %v58, 4294901760
    %351 = vmatpush1.msra.mxu0 %v350
    %352 = vmatprep.subr.mxu0 0.0
    %v353 = vand.u32 %v59, 4294901760
    %354 = vmatpush1.msra.mxu0 %v353
    %355 = vmatprep.subr.mxu0 0.0
    %v356 = vand.u32 %v60, 4294901760
    %357 = vmatpush1.msra.mxu0 %v356
    %358 = vmatprep.subr.mxu0 0.0
    %359 = vmatpush1.msra.mxu0 0.0
    %360 = vmatprep.subr.mxu0 0.0
    %361 = vmatpush1.msra.mxu0 0.0
    %362 = vmatprep.subr.mxu0 0.0
    %363 = vmatpush1.msra.mxu0 0.0
    %364 = vmatprep.subr.mxu0 0.0
    %365 = vmatpush1.msra.mxu0 0.0
    %366 = vmatprep.subr.mxu0 0.0
    %367 = vmatpush1.msra.mxu0 0.0
    %368 = vmatprep.subr.mxu0 0.0
    %369 = vmatpush1.msra.mxu0 0.0
    %370 = vmatprep.subr.mxu0 0.0
    %371 = vmatpush1.msra.mxu0 0.0
    %372 = vmatprep.subr.mxu0 0.0
    %373 = vmatpush1.msra.mxu0 0.0
    %374 = vmatprep.subr.mxu0 0.0
    %375 = vmatpush1.msra.mxu0 0.0
    %376 = vmatprep.subr.mxu0 0.0
    %377 = vmatpush1.msra.mxu0 0.0
    %378 = vmatprep.subr.mxu0 0.0
    %379 = vmatpush1.msra.mxu0 0.0
    %380 = vmatprep.subr.mxu0 0.0
    %381 = vmatpush1.msra.mxu0 0.0
    %382 = vmatprep.subr.mxu0 0.0
    %383 = vmatpush1.msra.mxu0 0.0
    %384 = vmatprep.subr.mxu0 0.0
    %385 = vmatpush1.msra.mxu0 0.0
    %386 = vmatprep.subr.mxu0 0.0
    %387 = vmatpush1.msra.mxu0 0.0
    %388 = vmatprep.subr.mxu0 0.0
    %389 = vmatpush1.msra.mxu0 0.0
    %390 = vmatprep.subr.mxu0 0.0
    %391 = vmatpush1.msra.mxu0 0.0
    %392 = vmatprep.subr.mxu0 0.0
    %393 = vmatpush1.msra.mxu0 0.0
    %394 = vmatprep.subr.mxu0 0.0
    %395 = vmatpush1.msra.mxu0 0.0
    %396 = vmatprep.subr.mxu0 0.0
    %397 = vmatpush1.msra.mxu0 0.0
    %398 = vmatprep.subr.mxu0 0.0
    %399 = vmatpush1.msra.mxu0 0.0
    %400 = vmatprep.subr.mxu0 0.0
    %401 = vmatpush1.msra.mxu0 0.0
    %402 = vmatprep.subr.mxu0 0.0
    %403 = vmatpush1.msra.mxu0 0.0
    %404 = vmatprep.subr.mxu0 0.0
    %405 = vmatpush1.msra.mxu0 0.0
    %406 = vmatprep.subr.mxu0 0.0
    %407 = vmatpush1.msra.mxu0 0.0
    %408 = vmatprep.subr.mxu0 0.0
    %409 = vmatpush1.msra.mxu0 0.0
    %410 = vmatprep.subr.mxu0 0.0
    %411 = vmatpush1.msra.mxu0 0.0
    %412 = vmatprep.subr.mxu0 0.0
    %413 = vmatpush1.msra.mxu0 0.0
    %414 = vmatprep.mubr.f32.mxu0 0.0
    %v415 = vand.u32 %v68, 4294901760
    %v416 = vsub.f32 %v68, %v415
    %v417 = vand.u32 %v416, 4294901760
    %418 = vmatmul.mubr.f32.gmra.mrb[0].mxu0 %v417
    %v419 = vpop.f32.mrb[0].mxu0
    %v420 = vadd.f32 %v336, %v419
    %v421 = vpop.f32.mrb[0].mxu0
    %422 = vmatprep.mubr.f32.mxu0 0.0
    %v423 = vand.u32 %v71, 4294901760
    %v424 = vsub.f32 %v71, %v423
    %v425 = vand.u32 %v424, 4294901760
    %426 = vmatmul.mubr.f32.gmra.mrb[0].mxu0 %v425
    %v427 = vpop.f32.mrb[0].mxu0
    %v428 = vadd.f32 %v343, %v427
    %v429 = vpop.f32.mrb[0].mxu0
    %430 = vdwg.mxu0
    %431 = vmatprep.subr.mxu0 0.0
    %v432 = vand.u32 %v57, 4294901760
    %v433 = vsub.f32 %v57, %v432
    %v434 = vand.u32 %v433, 4294901760
    %435 = vmatpush1.msra.mxu0 %v434
    %436 = vmatprep.subr.mxu0 0.0
    %v437 = vand.u32 %v58, 4294901760
    %v438 = vsub.f32 %v58, %v437
    %v439 = vand.u32 %v438, 4294901760
    %440 = vmatpush1.msra.mxu0 %v439
    %441 = vmatprep.subr.mxu0 0.0
    %v442 = vand.u32 %v59, 4294901760
    %v443 = vsub.f32 %v59, %v442
    %v444 = vand.u32 %v443, 4294901760
    %445 = vmatpush1.msra.mxu0 %v444
    %446 = vmatprep.subr.mxu0 0.0
    %v447 = vand.u32 %v60, 4294901760
    %v448 = vsub.f32 %v60, %v447
    %v449 = vand.u32 %v448, 4294901760
    %450 = vmatpush1.msra.mxu0 %v449
    %451 = vmatprep.subr.mxu0 0.0
    %452 = vmatpush1.msra.mxu0 0.0
    %453 = vmatprep.subr.mxu0 0.0
    %454 = vmatpush1.msra.mxu0 0.0
    %455 = vmatprep.subr.mxu0 0.0
    %456 = vmatpush1.msra.mxu0 0.0
    %457 = vmatprep.subr.mxu0 0.0
    %458 = vmatpush1.msra.mxu0 0.0
    %459 = vmatprep.subr.mxu0 0.0
    %460 = vmatpush1.msra.mxu0 0.0
    %461 = vmatprep.subr.mxu0 0.0
    %462 = vmatpush1.msra.mxu0 0.0
    %463 = vmatprep.subr.mxu0 0.0
    %464 = vmatpush1.msra.mxu0 0.0
    %465 = vmatprep.subr.mxu0 0.0
    %466 = vmatpush1.msra.mxu0 0.0
    %467 = vmatprep.subr.mxu0 0.0
    %468 = vmatpush1.msra.mxu0 0.0
    %469 = vmatprep.subr.mxu0 0.0
    %470 = vmatpush1.msra.mxu0 0.0
    %471 = vmatprep.subr.mxu0 0.0
    %472 = vmatpush1.msra.mxu0 0.0
    %473 = vmatprep.subr.mxu0 0.0
    %474 = vmatpush1.msra.mxu0 0.0
    %475 = vmatprep.subr.mxu0 0.0
    %476 = vmatpush1.msra.mxu0 0.0
    %477 = vmatprep.subr.mxu0 0.0
    %478 = vmatpush1.msra.mxu0 0.0
    %479 = vmatprep.subr.mxu0 0.0
    %480 = vmatpush1.msra.mxu0 0.0
    %481 = vmatprep.subr.mxu0 0.0
    %482 = vmatpush1.msra.mxu0 0.0
    %483 = vmatprep.subr.mxu0 0.0
    %484 = vmatpush1.msra.mxu0 0.0
    %485 = vmatprep.subr.mxu0 0.0
    %486 = vmatpush1.msra.mxu0 0.0
    %487 = vmatprep.subr.mxu0 0.0
    %488 = vmatpush1.msra.mxu0 0.0
    %489 = vmatprep.subr.mxu0 0.0
    %490 = vmatpush1.msra.mxu0 0.0
    %491 = vmatprep.subr.mxu0 0.0
    %492 = vmatpush1.msra.mxu0 0.0
    %493 = vmatprep.subr.mxu0 0.0
    %494 = vmatpush1.msra.mxu0 0.0
    %495 = vmatprep.subr.mxu0 0.0
    %496 = vmatpush1.msra.mxu0 0.0
    %497 = vmatprep.subr.mxu0 0.0
    %498 = vmatpush1.msra.mxu0 0.0
    %499 = vmatprep.subr.mxu0 0.0
    %500 = vmatpush1.msra.mxu0 0.0
    %501 = vmatprep.subr.mxu0 0.0
    %502 = vmatpush1.msra.mxu0 0.0
    %503 = vmatprep.subr.mxu0 0.0
    %504 = vmatpush1.msra.mxu0 0.0
    %505 = vmatprep.subr.mxu0 0.0
    %506 = vmatpush1.msra.mxu0 0.0
    %507 = vmatprep.mubr.f32.mxu0 0.0
    %v508 = vand.u32 %v68, 4294901760
    %509 = vmatmul.mubr.f32.gmra.mrb[0].mxu0 %v508
    %v510 = vpop.f32.mrb[0].mxu0
    %v511 = vadd.f32 %v420, %v510
    %v512 = vpop.f32.mrb[0].mxu0
    %513 = vmatprep.mubr.f32.mxu0 0.0
    %v514 = vand.u32 %v71, 4294901760
    %515 = vmatmul.mubr.f32.gmra.mrb[0].mxu0 %v514
    %v516 = vpop.f32.mrb[0].mxu0
    %v517 = vadd.f32 %v428, %v516
    %v518 = vpop.f32.mrb[0].mxu0
    %519 = vdwg.mxu0
    %520 = vmatprep.subr.mxu0 0.0
    %v521 = vand.u32 %v57, 4294901760
    %522 = vmatpush1.msra.mxu0 %v521
    %523 = vmatprep.subr.mxu0 0.0
    %v524 = vand.u32 %v58, 4294901760
    %525 = vmatpush1.msra.mxu0 %v524
    %526 = vmatprep.subr.mxu0 0.0
    %v527 = vand.u32 %v59, 4294901760
    %528 = vmatpush1.msra.mxu0 %v527
    %529 = vmatprep.subr.mxu0 0.0
    %v530 = vand.u32 %v60, 4294901760
    %531 = vmatpush1.msra.mxu0 %v530
    %532 = vmatprep.subr.mxu0 0.0
    %533 = vmatpush1.msra.mxu0 0.0
    %534 = vmatprep.subr.mxu0 0.0
    %535 = vmatpush1.msra.mxu0 0.0
    %536 = vmatprep.subr.mxu0 0.0
    %537 = vmatpush1.msra.mxu0 0.0
    %538 = vmatprep.subr.mxu0 0.0
    %539 = vmatpush1.msra.mxu0 0.0
    %540 = vmatprep.subr.mxu0 0.0
    %541 = vmatpush1.msra.mxu0 0.0
    %542 = vmatprep.subr.mxu0 0.0
    %543 = vmatpush1.msra.mxu0 0.0
    %544 = vmatprep.subr.mxu0 0.0
    %545 = vmatpush1.msra.mxu0 0.0
    %546 = vmatprep.subr.mxu0 0.0
    %547 = vmatpush1.msra.mxu0 0.0
    %548 = vmatprep.subr.mxu0 0.0
    %549 = vmatpush1.msra.mxu0 0.0
    %550 = vmatprep.subr.mxu0 0.0
    %551 = vmatpush1.msra.mxu0 0.0
    %552 = vmatprep.subr.mxu0 0.0
    %553 = vmatpush1.msra.mxu0 0.0
    %554 = vmatprep.subr.mxu0 0.0
    %555 = vmatpush1.msra.mxu0 0.0
    %556 = vmatprep.subr.mxu0 0.0
    %557 = vmatpush1.msra.mxu0 0.0
    %558 = vmatprep.subr.mxu0 0.0
    %559 = vmatpush1.msra.mxu0 0.0
    %560 = vmatprep.subr.mxu0 0.0
    %561 = vmatpush1.msra.mxu0 0.0
    %562 = vmatprep.subr.mxu0 0.0
    %563 = vmatpush1.msra.mxu0 0.0
    %564 = vmatprep.subr.mxu0 0.0
    %565 = vmatpush1.msra.mxu0 0.0
    %566 = vmatprep.subr.mxu0 0.0
    %567 = vmatpush1.msra.mxu0 0.0
    %568 = vmatprep.subr.mxu0 0.0
    %569 = vmatpush1.msra.mxu0 0.0
    %570 = vmatprep.subr.mxu0 0.0
    %571 = vmatpush1.msra.mxu0 0.0
    %572 = vmatprep.subr.mxu0 0.0
    %573 = vmatpush1.msra.mxu0 0.0
    %574 = vmatprep.subr.mxu0 0.0
    %575 = vmatpush1.msra.mxu0 0.0
    %576 = vmatprep.subr.mxu0 0.0
    %577 = vmatpush1.msra.mxu0 0.0
    %578 = vmatprep.subr.mxu0 0.0
    %579 = vmatpush1.msra.mxu0 0.0
    %580 = vmatprep.subr.mxu0 0.0
    %581 = vmatpush1.msra.mxu0 0.0
    %582 = vmatprep.subr.mxu0 0.0
    %583 = vmatpush1.msra.mxu0 0.0
    %584 = vmatprep.subr.mxu0 0.0
    %585 = vmatpush1.msra.mxu0 0.0
    %586 = vmatprep.subr.mxu0 0.0
    %587 = vmatpush1.msra.mxu0 0.0
    %588 = vmatprep.mubr.f32.mxu0 0.0
    %v589 = vand.u32 %v68, 4294901760
    %590 = vmatmul.mubr.f32.gmra.mrb[0].mxu0 %v589
    %v591 = vpop.f32.mrb[0].mxu0
    %v592 = vadd.f32 %v511, %v591
    %v593 = vpop.f32.mrb[0].mxu0
    %594 = vmatprep.mubr.f32.mxu0 0.0
    %v595 = vand.u32 %v71, 4294901760
    %596 = vmatmul.mubr.f32.gmra.mrb[0].mxu0 %v595
    %v597 = vpop.f32.mrb[0].mxu0
    %v598 = vadd.f32 %v517, %v597
    %v599 = vpop.f32.mrb[0].mxu0
    %600 = vdwg.mxu0
    %609 = vrot.lane.b32.xlu0 %v49, 32
    %v610 = vpop.permute.xlu0 %609
    %611 = vrot.lane.b32.xlu0 %v50, 32
    %v612 = vpop.permute.xlu0 %611
    %613 = vrot.lane.b32.xlu0 %v51, 32
    %v614 = vpop.permute.xlu0 %613
    %615 = vrot.lane.b32.xlu0 %v52, 32
    %v616 = vpop.permute.xlu0 %615
    %617 = vrot.lane.b32.xlu0 %v53, 32
    %v618 = vpop.permute.xlu0 %617
    %619 = vrot.lane.b32.xlu0 %v54, 32
    %v620 = vpop.permute.xlu0 %619
    %621 = vrot.lane.b32.xlu0 %v55, 32
    %v622 = vpop.permute.xlu0 %621
    %623 = vrot.lane.b32.xlu0 %v56, 32
    %v624 = vpop.permute.xlu0 %623
    %v633 = vmul.f32 %v592, %v610
    %v634 = vmul.f32 %v598, %v612
    %v635 = vmul.f32 %v592, %v614
    %v636 = vmul.f32 %v598, %v616
    %v637 = vmul.f32 %v592, %v618
    %v638 = vmul.f32 %v598, %v620
    %v639 = vmul.f32 %v592, %v622
    %v640 = vmul.f32 %v598, %v624
    %641 = vrot.lane.b32.xlu0 %v49, 64
    %v642 = vpop.permute.xlu0 %641
    %643 = vrot.lane.b32.xlu0 %v50, 64
    %v644 = vpop.permute.xlu0 %643
    %645 = vrot.lane.b32.xlu0 %v51, 64
    %v646 = vpop.permute.xlu0 %645
    %647 = vrot.lane.b32.xlu0 %v52, 64
    %v648 = vpop.permute.xlu0 %647
    %649 = vrot.lane.b32.xlu0 %v53, 64
    %v650 = vpop.permute.xlu0 %649
    %651 = vrot.lane.b32.xlu0 %v54, 64
    %v652 = vpop.permute.xlu0 %651
    %653 = vrot.lane.b32.xlu0 %v55, 64
    %v654 = vpop.permute.xlu0 %653
    %655 = vrot.lane.b32.xlu0 %v56, 64
    %v656 = vpop.permute.xlu0 %655
    %v665 = vmul.f32 %v592, %v642
    %v666 = vmul.f32 %v598, %v644
    %v667 = vmul.f32 %v592, %v646
    %v668 = vmul.f32 %v598, %v648
    %v669 = vmul.f32 %v592, %v650
    %v670 = vmul.f32 %v598, %v652
    %v671 = vmul.f32 %v592, %v654
    %v672 = vmul.f32 %v598, %v656
    %681 = vrot.lane.b32.xlu0 %v633, 96
    %v682 = vpop.permute.xlu0 %681
    %683 = vrot.lane.b32.xlu0 %v634, 96
    %v684 = vpop.permute.xlu0 %683
    %685 = vrot.lane.b32.xlu0 %v635, 96
    %v686 = vpop.permute.xlu0 %685
    %687 = vrot.lane.b32.xlu0 %v636, 96
    %v688 = vpop.permute.xlu0 %687
    %689 = vrot.lane.b32.xlu0 %v637, 96
    %v690 = vpop.permute.xlu0 %689
    %691 = vrot.lane.b32.xlu0 %v638, 96
    %v692 = vpop.permute.xlu0 %691
    %693 = vrot.lane.b32.xlu0 %v639, 96
    %v694 = vpop.permute.xlu0 %693
    %695 = vrot.lane.b32.xlu0 %v640, 96
    %v696 = vpop.permute.xlu0 %695
    %v698 = vsel %vm66, %v592, 0
    %v701 = vsel %vm66, %v598, 0
    %v703 = vsel %vm66, %v682, 0
    %v705 = vsel %vm66, %v684, 0
    %v707 = vsel %vm66, %v686, 0
    %v709 = vsel %vm66, %v688, 0
    %v711 = vsel %vm66, %v690, 0
    %v713 = vsel %vm66, %v692, 0
    %v715 = vsel %vm66, %v694, 0
    %v717 = vsel %vm66, %v696, 0
    %719 = vmatprep.subr.mxu0 0.0
    %v720 = vand.u32 %v703, 4294901760
    %721 = vmatpush1.xpose.msra.mxu0 %v720
    %722 = vmatprep.subr.mxu0 0.0
    %v723 = vand.u32 %v705, 4294901760
    %724 = vmatpush1.xpose.msra.mxu0 %v723
    %725 = vmatprep.subr.mxu0 0.0
    %v726 = vand.u32 %v707, 4294901760
    %727 = vmatpush1.xpose.msra.mxu0 %v726
    %728 = vmatprep.subr.mxu0 0.0
    %v729 = vand.u32 %v709, 4294901760
    %730 = vmatpush1.xpose.msra.mxu0 %v729
    %731 = vmatprep.subr.mxu0 0.0
    %v732 = vand.u32 %v711, 4294901760
    %733 = vmatpush1.xpose.msra.mxu0 %v732
    %734 = vmatprep.subr.mxu0 0.0
    %v735 = vand.u32 %v713, 4294901760
    %736 = vmatpush1.xpose.msra.mxu0 %v735
    %737 = vmatprep.subr.mxu0 0.0
    %v738 = vand.u32 %v715, 4294901760
    %739 = vmatpush1.xpose.msra.mxu0 %v738
    %740 = vmatprep.subr.mxu0 0.0
    %v741 = vand.u32 %v717, 4294901760
    %742 = vmatpush1.xpose.msra.mxu0 %v741
    %743 = vmatprep.subr.mxu0 0.0
    %744 = vmatpush1.xpose.msra.mxu0 0.0
    %745 = vmatprep.subr.mxu0 0.0
    %746 = vmatpush1.xpose.msra.mxu0 0.0
    %747 = vmatprep.subr.mxu0 0.0
    %748 = vmatpush1.xpose.msra.mxu0 0.0
    %749 = vmatprep.subr.mxu0 0.0
    %750 = vmatpush1.xpose.msra.mxu0 0.0
    %751 = vmatprep.subr.mxu0 0.0
    %752 = vmatpush1.xpose.msra.mxu0 0.0
    %753 = vmatprep.subr.mxu0 0.0
    %754 = vmatpush1.xpose.msra.mxu0 0.0
    %755 = vmatprep.subr.mxu0 0.0
    %756 = vmatpush1.xpose.msra.mxu0 0.0
    %757 = vmatprep.subr.mxu0 0.0
    %758 = vmatpush1.xpose.msra.mxu0 0.0
    %759 = vmatprep.subr.mxu0 0.0
    %760 = vmatpush1.xpose.msra.mxu0 0.0
    %761 = vmatprep.subr.mxu0 0.0
    %762 = vmatpush1.xpose.msra.mxu0 0.0
    %763 = vmatprep.subr.mxu0 0.0
    %764 = vmatpush1.xpose.msra.mxu0 0.0
    %765 = vmatprep.subr.mxu0 0.0
    %766 = vmatpush1.xpose.msra.mxu0 0.0
    %767 = vmatprep.subr.mxu0 0.0
    %768 = vmatpush1.xpose.msra.mxu0 0.0
    %769 = vmatprep.subr.mxu0 0.0
    %770 = vmatpush1.xpose.msra.mxu0 0.0
    %771 = vmatprep.subr.mxu0 0.0
    %772 = vmatpush1.xpose.msra.mxu0 0.0
    %773 = vmatprep.subr.mxu0 0.0
    %774 = vmatpush1.xpose.msra.mxu0 0.0
    %775 = vmatprep.subr.mxu0 0.0
    %776 = vmatpush1.xpose.msra.mxu0 0.0
    %777 = vmatprep.subr.mxu0 0.0
    %778 = vmatpush1.xpose.msra.mxu0 0.0
    %779 = vmatprep.subr.mxu0 0.0
    %780 = vmatpush1.xpose.msra.mxu0 0.0
    %781 = vmatprep.subr.mxu0 0.0
    %782 = vmatpush1.xpose.msra.mxu0 0.0
    %783 = vmatprep.subr.mxu0 0.0
    %784 = vmatpush1.xpose.msra.mxu0 0.0
    %785 = vmatprep.subr.mxu0 0.0
    %786 = vmatpush1.xpose.msra.mxu0 0.0
    %787 = vmatprep.subr.mxu0 0.0
    %788 = vmatpush1.xpose.msra.mxu0 0.0
    %789 = vmatprep.subr.mxu0 0.0
    %790 = vmatpush1.xpose.msra.mxu0 0.0
    %791 = vmatprep.mubr.f32.mxu0 0.0
    %v792 = vand.u32 %v698, 4294901760
    %v793 = vsub.f32 %v698, %v792
    %v794 = vand.u32 %v793, 4294901760
    %v795 = vsub.f32 %v793, %v794
    %v796 = vand.u32 %v795, 4294901760
    %797 = vmatmul.mubr.f32.gmra.mrb[0].mxu0 %v796
    %v798 = vpop.f32.mrb[0].mxu0
    %v799 = vadd.f32 %v47, %v798
    %v800 = vpop.f32.mrb[0].mxu0
    %801 = vmatprep.mubr.f32.mxu0 0.0
    %v802 = vand.u32 %v701, 4294901760
    %v803 = vsub.f32 %v701, %v802
    %v804 = vand.u32 %v803, 4294901760
    %v805 = vsub.f32 %v803, %v804
    %v806 = vand.u32 %v805, 4294901760
    %807 = vmatmul.mubr.f32.gmra.mrb[0].mxu0 %v806
    %v808 = vpop.f32.mrb[0].mxu0
    %v809 = vadd.f32 %v48, %v808
    %v810 = vpop.f32.mrb[0].mxu0
    %811 = vdwg.mxu0
    %812 = vmatprep.subr.mxu0 0.0
    %v813 = vand.u32 %v703, 4294901760
    %v814 = vsub.f32 %v703, %v813
    %v815 = vand.u32 %v814, 4294901760
    %v816 = vsub.f32 %v814, %v815
    %v817 = vand.u32 %v816, 4294901760
    %818 = vmatpush1.xpose.msra.mxu0 %v817
    %819 = vmatprep.subr.mxu0 0.0
    %v820 = vand.u32 %v705, 4294901760
    %v821 = vsub.f32 %v705, %v820
    %v822 = vand.u32 %v821, 4294901760
    %v823 = vsub.f32 %v821, %v822
    %v824 = vand.u32 %v823, 4294901760
    %825 = vmatpush1.xpose.msra.mxu0 %v824
    %826 = vmatprep.subr.mxu0 0.0
    %v827 = vand.u32 %v707, 4294901760
    %v828 = vsub.f32 %v707, %v827
    %v829 = vand.u32 %v828, 4294901760
    %v830 = vsub.f32 %v828, %v829
    %v831 = vand.u32 %v830, 4294901760
    %832 = vmatpush1.xpose.msra.mxu0 %v831
    %833 = vmatprep.subr.mxu0 0.0
    %v834 = vand.u32 %v709, 4294901760
    %v835 = vsub.f32 %v709, %v834
    %v836 = vand.u32 %v835, 4294901760
    %v837 = vsub.f32 %v835, %v836
    %v838 = vand.u32 %v837, 4294901760
    %839 = vmatpush1.xpose.msra.mxu0 %v838
    %840 = vmatprep.subr.mxu0 0.0
    %v841 = vand.u32 %v711, 4294901760
    %v842 = vsub.f32 %v711, %v841
    %v843 = vand.u32 %v842, 4294901760
    %v844 = vsub.f32 %v842, %v843
    %v845 = vand.u32 %v844, 4294901760
    %846 = vmatpush1.xpose.msra.mxu0 %v845
    %847 = vmatprep.subr.mxu0 0.0
    %v848 = vand.u32 %v713, 4294901760
    %v849 = vsub.f32 %v713, %v848
    %v850 = vand.u32 %v849, 4294901760
    %v851 = vsub.f32 %v849, %v850
    %v852 = vand.u32 %v851, 4294901760
    %853 = vmatpush1.xpose.msra.mxu0 %v852
    %854 = vmatprep.subr.mxu0 0.0
    %v855 = vand.u32 %v715, 4294901760
    %v856 = vsub.f32 %v715, %v855
    %v857 = vand.u32 %v856, 4294901760
    %v858 = vsub.f32 %v856, %v857
    %v859 = vand.u32 %v858, 4294901760
    %860 = vmatpush1.xpose.msra.mxu0 %v859
    %861 = vmatprep.subr.mxu0 0.0
    %v862 = vand.u32 %v717, 4294901760
    %v863 = vsub.f32 %v717, %v862
    %v864 = vand.u32 %v863, 4294901760
    %v865 = vsub.f32 %v863, %v864
    %v866 = vand.u32 %v865, 4294901760
    %867 = vmatpush1.xpose.msra.mxu0 %v866
    %868 = vmatprep.subr.mxu0 0.0
    %869 = vmatpush1.xpose.msra.mxu0 0.0
    %870 = vmatprep.subr.mxu0 0.0
    %871 = vmatpush1.xpose.msra.mxu0 0.0
    %872 = vmatprep.subr.mxu0 0.0
    %873 = vmatpush1.xpose.msra.mxu0 0.0
    %874 = vmatprep.subr.mxu0 0.0
    %875 = vmatpush1.xpose.msra.mxu0 0.0
    %876 = vmatprep.subr.mxu0 0.0
    %877 = vmatpush1.xpose.msra.mxu0 0.0
    %878 = vmatprep.subr.mxu0 0.0
    %879 = vmatpush1.xpose.msra.mxu0 0.0
    %880 = vmatprep.subr.mxu0 0.0
    %881 = vmatpush1.xpose.msra.mxu0 0.0
    %882 = vmatprep.subr.mxu0 0.0
    %883 = vmatpush1.xpose.msra.mxu0 0.0
    %884 = vmatprep.subr.mxu0 0.0
    %885 = vmatpush1.xpose.msra.mxu0 0.0
    %886 = vmatprep.subr.mxu0 0.0
    %887 = vmatpush1.xpose.msra.mxu0 0.0
    %888 = vmatprep.subr.mxu0 0.0
    %889 = vmatpush1.xpose.msra.mxu0 0.0
    %890 = vmatprep.subr.mxu0 0.0
    %891 = vmatpush1.xpose.msra.mxu0 0.0
    %892 = vmatprep.subr.mxu0 0.0
    %893 = vmatpush1.xpose.msra.mxu0 0.0
    %894 = vmatprep.subr.mxu0 0.0
    %895 = vmatpush1.xpose.msra.mxu0 0.0
    %896 = vmatprep.subr.mxu0 0.0
    %897 = vmatpush1.xpose.msra.mxu0 0.0
    %898 = vmatprep.subr.mxu0 0.0
    %899 = vmatpush1.xpose.msra.mxu0 0.0
    %900 = vmatprep.subr.mxu0 0.0
    %901 = vmatpush1.xpose.msra.mxu0 0.0
    %902 = vmatprep.subr.mxu0 0.0
    %903 = vmatpush1.xpose.msra.mxu0 0.0
    %904 = vmatprep.subr.mxu0 0.0
    %905 = vmatpush1.xpose.msra.mxu0 0.0
    %906 = vmatprep.subr.mxu0 0.0
    %907 = vmatpush1.xpose.msra.mxu0 0.0
    %908 = vmatprep.subr.mxu0 0.0
    %909 = vmatpush1.xpose.msra.mxu0 0.0
    %910 = vmatprep.subr.mxu0 0.0
    %911 = vmatpush1.xpose.msra.mxu0 0.0
    %912 = vmatprep.subr.mxu0 0.0
    %913 = vmatpush1.xpose.msra.mxu0 0.0
    %914 = vmatprep.subr.mxu0 0.0
    %915 = vmatpush1.xpose.msra.mxu0 0.0
    %916 = vmatprep.mubr.f32.mxu0 0.0
    %v917 = vand.u32 %v698, 4294901760
    %918 = vmatmul.mubr.f32.gmra.mrb[0].mxu0 %v917
    %v919 = vpop.f32.mrb[0].mxu0
    %v920 = vadd.f32 %v799, %v919
    %v921 = vpop.f32.mrb[0].mxu0
    %922 = vmatprep.mubr.f32.mxu0 0.0
    %v923 = vand.u32 %v701, 4294901760
    %924 = vmatmul.mubr.f32.gmra.mrb[0].mxu0 %v923
    %v925 = vpop.f32.mrb[0].mxu0
    %v926 = vadd.f32 %v809, %v925
    %v927 = vpop.f32.mrb[0].mxu0
    %928 = vdwg.mxu0
    %929 = vmatprep.subr.mxu0 0.0
    %v930 = vand.u32 %v703, 4294901760
    %v931 = vsub.f32 %v703, %v930
    %932 = vmatpush1.xpose.msra.mxu0 %v931
    %933 = vmatprep.subr.mxu0 0.0
    %v934 = vand.u32 %v705, 4294901760
    %v935 = vsub.f32 %v705, %v934
    %936 = vmatpush1.xpose.msra.mxu0 %v935
    %937 = vmatprep.subr.mxu0 0.0
    %v938 = vand.u32 %v707, 4294901760
    %v939 = vsub.f32 %v707, %v938
    %940 = vmatpush1.xpose.msra.mxu0 %v939
    %941 = vmatprep.subr.mxu0 0.0
    %v942 = vand.u32 %v709, 4294901760
    %v943 = vsub.f32 %v709, %v942
    %944 = vmatpush1.xpose.msra.mxu0 %v943
    %945 = vmatprep.subr.mxu0 0.0
    %v946 = vand.u32 %v711, 4294901760
    %v947 = vsub.f32 %v711, %v946
    %948 = vmatpush1.xpose.msra.mxu0 %v947
    %949 = vmatprep.subr.mxu0 0.0
    %v950 = vand.u32 %v713, 4294901760
    %v951 = vsub.f32 %v713, %v950
    %952 = vmatpush1.xpose.msra.mxu0 %v951
    %953 = vmatprep.subr.mxu0 0.0
    %v954 = vand.u32 %v715, 4294901760
    %v955 = vsub.f32 %v715, %v954
    %956 = vmatpush1.xpose.msra.mxu0 %v955
    %957 = vmatprep.subr.mxu0 0.0
    %v958 = vand.u32 %v717, 4294901760
    %v959 = vsub.f32 %v717, %v958
    %960 = vmatpush1.xpose.msra.mxu0 %v959
    %961 = vmatprep.subr.mxu0 0.0
    %962 = vmatpush1.xpose.msra.mxu0 0.0
    %963 = vmatprep.subr.mxu0 0.0
    %964 = vmatpush1.xpose.msra.mxu0 0.0
    %965 = vmatprep.subr.mxu0 0.0
    %966 = vmatpush1.xpose.msra.mxu0 0.0
    %967 = vmatprep.subr.mxu0 0.0
    %968 = vmatpush1.xpose.msra.mxu0 0.0
    %969 = vmatprep.subr.mxu0 0.0
    %970 = vmatpush1.xpose.msra.mxu0 0.0
    %971 = vmatprep.subr.mxu0 0.0
    %972 = vmatpush1.xpose.msra.mxu0 0.0
    %973 = vmatprep.subr.mxu0 0.0
    %974 = vmatpush1.xpose.msra.mxu0 0.0
    %975 = vmatprep.subr.mxu0 0.0
    %976 = vmatpush1.xpose.msra.mxu0 0.0
    %977 = vmatprep.subr.mxu0 0.0
    %978 = vmatpush1.xpose.msra.mxu0 0.0
    %979 = vmatprep.subr.mxu0 0.0
    %980 = vmatpush1.xpose.msra.mxu0 0.0
    %981 = vmatprep.subr.mxu0 0.0
    %982 = vmatpush1.xpose.msra.mxu0 0.0
    %983 = vmatprep.subr.mxu0 0.0
    %984 = vmatpush1.xpose.msra.mxu0 0.0
    %985 = vmatprep.subr.mxu0 0.0
    %986 = vmatpush1.xpose.msra.mxu0 0.0
    %987 = vmatprep.subr.mxu0 0.0
    %988 = vmatpush1.xpose.msra.mxu0 0.0
    %989 = vmatprep.subr.mxu0 0.0
    %990 = vmatpush1.xpose.msra.mxu0 0.0
    %991 = vmatprep.subr.mxu0 0.0
    %992 = vmatpush1.xpose.msra.mxu0 0.0
    %993 = vmatprep.subr.mxu0 0.0
    %994 = vmatpush1.xpose.msra.mxu0 0.0
    %995 = vmatprep.subr.mxu0 0.0
    %996 = vmatpush1.xpose.msra.mxu0 0.0
    %997 = vmatprep.subr.mxu0 0.0
    %998 = vmatpush1.xpose.msra.mxu0 0.0
    %999 = vmatprep.subr.mxu0 0.0
    %1000 = vmatpush1.xpose.msra.mxu0 0.0
    %1001 = vmatprep.subr.mxu0 0.0
    %1002 = vmatpush1.xpose.msra.mxu0 0.0
    %1003 = vmatprep.subr.mxu0 0.0
    %1004 = vmatpush1.xpose.msra.mxu0 0.0
    %1005 = vmatprep.subr.mxu0 0.0
    %1006 = vmatpush1.xpose.msra.mxu0 0.0
    %1007 = vmatprep.subr.mxu0 0.0
    %1008 = vmatpush1.xpose.msra.mxu0 0.0
    %1009 = vmatprep.mubr.f32.mxu0 0.0
    %v1010 = vand.u32 %v698, 4294901760
    %v1011 = vsub.f32 %v698, %v1010
    %1012 = vmatmul.mubr.f32.gmra.mrb[0].mxu0 %v1011
    %v1013 = vpop.f32.mrb[0].mxu0
    %v1014 = vadd.f32 %v920, %v1013
    %v1015 = vpop.f32.mrb[0].mxu0
    %1016 = vmatprep.mubr.f32.mxu0 0.0
    %v1017 = vand.u32 %v701, 4294901760
    %v1018 = vsub.f32 %v701, %v1017
    %1019 = vmatmul.mubr.f32.gmra.mrb[0].mxu0 %v1018
    %v1020 = vpop.f32.mrb[0].mxu0
    %v1021 = vadd.f32 %v926, %v1020
    %v1022 = vpop.f32.mrb[0].mxu0
    %1023 = vdwg.mxu0
    %1024 = vmatprep.subr.mxu0 0.0
    %v1025 = vand.u32 %v703, 4294901760
    %1026 = vmatpush1.xpose.msra.mxu0 %v1025
    %1027 = vmatprep.subr.mxu0 0.0
    %v1028 = vand.u32 %v705, 4294901760
    %1029 = vmatpush1.xpose.msra.mxu0 %v1028
    %1030 = vmatprep.subr.mxu0 0.0
    %v1031 = vand.u32 %v707, 4294901760
    %1032 = vmatpush1.xpose.msra.mxu0 %v1031
    %1033 = vmatprep.subr.mxu0 0.0
    %v1034 = vand.u32 %v709, 4294901760
    %1035 = vmatpush1.xpose.msra.mxu0 %v1034
    %1036 = vmatprep.subr.mxu0 0.0
    %v1037 = vand.u32 %v711, 4294901760
    %1038 = vmatpush1.xpose.msra.mxu0 %v1037
    %1039 = vmatprep.subr.mxu0 0.0
    %v1040 = vand.u32 %v713, 4294901760
    %1041 = vmatpush1.xpose.msra.mxu0 %v1040
    %1042 = vmatprep.subr.mxu0 0.0
    %v1043 = vand.u32 %v715, 4294901760
    %1044 = vmatpush1.xpose.msra.mxu0 %v1043
    %1045 = vmatprep.subr.mxu0 0.0
    %v1046 = vand.u32 %v717, 4294901760
    %1047 = vmatpush1.xpose.msra.mxu0 %v1046
    %1048 = vmatprep.subr.mxu0 0.0
    %1049 = vmatpush1.xpose.msra.mxu0 0.0
    %1050 = vmatprep.subr.mxu0 0.0
    %1051 = vmatpush1.xpose.msra.mxu0 0.0
    %1052 = vmatprep.subr.mxu0 0.0
    %1053 = vmatpush1.xpose.msra.mxu0 0.0
    %1054 = vmatprep.subr.mxu0 0.0
    %1055 = vmatpush1.xpose.msra.mxu0 0.0
    %1056 = vmatprep.subr.mxu0 0.0
    %1057 = vmatpush1.xpose.msra.mxu0 0.0
    %1058 = vmatprep.subr.mxu0 0.0
    %1059 = vmatpush1.xpose.msra.mxu0 0.0
    %1060 = vmatprep.subr.mxu0 0.0
    %1061 = vmatpush1.xpose.msra.mxu0 0.0
    %1062 = vmatprep.subr.mxu0 0.0
    %1063 = vmatpush1.xpose.msra.mxu0 0.0
    %1064 = vmatprep.subr.mxu0 0.0
    %1065 = vmatpush1.xpose.msra.mxu0 0.0
    %1066 = vmatprep.subr.mxu0 0.0
    %1067 = vmatpush1.xpose.msra.mxu0 0.0
    %1068 = vmatprep.subr.mxu0 0.0
    %1069 = vmatpush1.xpose.msra.mxu0 0.0
    %1070 = vmatprep.subr.mxu0 0.0
    %1071 = vmatpush1.xpose.msra.mxu0 0.0
    %1072 = vmatprep.subr.mxu0 0.0
    %1073 = vmatpush1.xpose.msra.mxu0 0.0
    %1074 = vmatprep.subr.mxu0 0.0
    %1075 = vmatpush1.xpose.msra.mxu0 0.0
    %1076 = vmatprep.subr.mxu0 0.0
    %1077 = vmatpush1.xpose.msra.mxu0 0.0
    %1078 = vmatprep.subr.mxu0 0.0
    %1079 = vmatpush1.xpose.msra.mxu0 0.0
    %1080 = vmatprep.subr.mxu0 0.0
    %1081 = vmatpush1.xpose.msra.mxu0 0.0
    %1082 = vmatprep.subr.mxu0 0.0
    %1083 = vmatpush1.xpose.msra.mxu0 0.0
    %1084 = vmatprep.subr.mxu0 0.0
    %1085 = vmatpush1.xpose.msra.mxu0 0.0
    %1086 = vmatprep.subr.mxu0 0.0
    %1087 = vmatpush1.xpose.msra.mxu0 0.0
    %1088 = vmatprep.subr.mxu0 0.0
    %1089 = vmatpush1.xpose.msra.mxu0 0.0
    %1090 = vmatprep.subr.mxu0 0.0
    %1091 = vmatpush1.xpose.msra.mxu0 0.0
    %1092 = vmatprep.subr.mxu0 0.0
    %1093 = vmatpush1.xpose.msra.mxu0 0.0
    %1094 = vmatprep.subr.mxu0 0.0
    %1095 = vmatpush1.xpose.msra.mxu0 0.0
    %1096 = vmatprep.mubr.f32.mxu0 0.0
    %v1097 = vand.u32 %v698, 4294901760
    %v1098 = vsub.f32 %v698, %v1097
    %v1099 = vand.u32 %v1098, 4294901760
    %1100 = vmatmul.mubr.f32.gmra.mrb[0].mxu0 %v1099
    %v1101 = vpop.f32.mrb[0].mxu0
    %v1102 = vadd.f32 %v1014, %v1101
    %v1103 = vpop.f32.mrb[0].mxu0
    %1104 = vmatprep.mubr.f32.mxu0 0.0
    %v1105 = vand.u32 %v701, 4294901760
    %v1106 = vsub.f32 %v701, %v1105
    %v1107 = vand.u32 %v1106, 4294901760
    %1108 = vmatmul.mubr.f32.gmra.mrb[0].mxu0 %v1107
    %v1109 = vpop.f32.mrb[0].mxu0
    %v1110 = vadd.f32 %v1021, %v1109
    %v1111 = vpop.f32.mrb[0].mxu0
    %1112 = vdwg.mxu0
    %1113 = vmatprep.subr.mxu0 0.0
    %v1114 = vand.u32 %v703, 4294901760
    %v1115 = vsub.f32 %v703, %v1114
    %v1116 = vand.u32 %v1115, 4294901760
    %1117 = vmatpush1.xpose.msra.mxu0 %v1116
    %1118 = vmatprep.subr.mxu0 0.0
    %v1119 = vand.u32 %v705, 4294901760
    %v1120 = vsub.f32 %v705, %v1119
    %v1121 = vand.u32 %v1120, 4294901760
    %1122 = vmatpush1.xpose.msra.mxu0 %v1121
    %1123 = vmatprep.subr.mxu0 0.0
    %v1124 = vand.u32 %v707, 4294901760
    %v1125 = vsub.f32 %v707, %v1124
    %v1126 = vand.u32 %v1125, 4294901760
    %1127 = vmatpush1.xpose.msra.mxu0 %v1126
    %1128 = vmatprep.subr.mxu0 0.0
    %v1129 = vand.u32 %v709, 4294901760
    %v1130 = vsub.f32 %v709, %v1129
    %v1131 = vand.u32 %v1130, 4294901760
    %1132 = vmatpush1.xpose.msra.mxu0 %v1131
    %1133 = vmatprep.subr.mxu0 0.0
    %v1134 = vand.u32 %v711, 4294901760
    %v1135 = vsub.f32 %v711, %v1134
    %v1136 = vand.u32 %v1135, 4294901760
    %1137 = vmatpush1.xpose.msra.mxu0 %v1136
    %1138 = vmatprep.subr.mxu0 0.0
    %v1139 = vand.u32 %v713, 4294901760
    %v1140 = vsub.f32 %v713, %v1139
    %v1141 = vand.u32 %v1140, 4294901760
    %1142 = vmatpush1.xpose.msra.mxu0 %v1141
    %1143 = vmatprep.subr.mxu0 0.0
    %v1144 = vand.u32 %v715, 4294901760
    %v1145 = vsub.f32 %v715, %v1144
    %v1146 = vand.u32 %v1145, 4294901760
    %1147 = vmatpush1.xpose.msra.mxu0 %v1146
    %1148 = vmatprep.subr.mxu0 0.0
    %v1149 = vand.u32 %v717, 4294901760
    %v1150 = vsub.f32 %v717, %v1149
    %v1151 = vand.u32 %v1150, 4294901760
    %1152 = vmatpush1.xpose.msra.mxu0 %v1151
    %1153 = vmatprep.subr.mxu0 0.0
    %1154 = vmatpush1.xpose.msra.mxu0 0.0
    %1155 = vmatprep.subr.mxu0 0.0
    %1156 = vmatpush1.xpose.msra.mxu0 0.0
    %1157 = vmatprep.subr.mxu0 0.0
    %1158 = vmatpush1.xpose.msra.mxu0 0.0
    %1159 = vmatprep.subr.mxu0 0.0
    %1160 = vmatpush1.xpose.msra.mxu0 0.0
    %1161 = vmatprep.subr.mxu0 0.0
    %1162 = vmatpush1.xpose.msra.mxu0 0.0
    %1163 = vmatprep.subr.mxu0 0.0
    %1164 = vmatpush1.xpose.msra.mxu0 0.0
    %1165 = vmatprep.subr.mxu0 0.0
    %1166 = vmatpush1.xpose.msra.mxu0 0.0
    %1167 = vmatprep.subr.mxu0 0.0
    %1168 = vmatpush1.xpose.msra.mxu0 0.0
    %1169 = vmatprep.subr.mxu0 0.0
    %1170 = vmatpush1.xpose.msra.mxu0 0.0
    %1171 = vmatprep.subr.mxu0 0.0
    %1172 = vmatpush1.xpose.msra.mxu0 0.0
    %1173 = vmatprep.subr.mxu0 0.0
    %1174 = vmatpush1.xpose.msra.mxu0 0.0
    %1175 = vmatprep.subr.mxu0 0.0
    %1176 = vmatpush1.xpose.msra.mxu0 0.0
    %1177 = vmatprep.subr.mxu0 0.0
    %1178 = vmatpush1.xpose.msra.mxu0 0.0
    %1179 = vmatprep.subr.mxu0 0.0
    %1180 = vmatpush1.xpose.msra.mxu0 0.0
    %1181 = vmatprep.subr.mxu0 0.0
    %1182 = vmatpush1.xpose.msra.mxu0 0.0
    %1183 = vmatprep.subr.mxu0 0.0
    %1184 = vmatpush1.xpose.msra.mxu0 0.0
    %1185 = vmatprep.subr.mxu0 0.0
    %1186 = vmatpush1.xpose.msra.mxu0 0.0
    %1187 = vmatprep.subr.mxu0 0.0
    %1188 = vmatpush1.xpose.msra.mxu0 0.0
    %1189 = vmatprep.subr.mxu0 0.0
    %1190 = vmatpush1.xpose.msra.mxu0 0.0
    %1191 = vmatprep.subr.mxu0 0.0
    %1192 = vmatpush1.xpose.msra.mxu0 0.0
    %1193 = vmatprep.subr.mxu0 0.0
    %1194 = vmatpush1.xpose.msra.mxu0 0.0
    %1195 = vmatprep.subr.mxu0 0.0
    %1196 = vmatpush1.xpose.msra.mxu0 0.0
    %1197 = vmatprep.subr.mxu0 0.0
    %1198 = vmatpush1.xpose.msra.mxu0 0.0
    %1199 = vmatprep.subr.mxu0 0.0
    %1200 = vmatpush1.xpose.msra.mxu0 0.0
    %1201 = vmatprep.mubr.f32.mxu0 0.0
    %v1202 = vand.u32 %v698, 4294901760
    %1203 = vmatmul.mubr.f32.gmra.mrb[0].mxu0 %v1202
    %v1204 = vpop.f32.mrb[0].mxu0
    %v1205 = vadd.f32 %v1102, %v1204
    %v1206 = vpop.f32.mrb[0].mxu0
    %1207 = vmatprep.mubr.f32.mxu0 0.0
    %v1208 = vand.u32 %v701, 4294901760
    %1209 = vmatmul.mubr.f32.gmra.mrb[0].mxu0 %v1208
    %v1210 = vpop.f32.mrb[0].mxu0
    %v1211 = vadd.f32 %v1110, %v1210
    %v1212 = vpop.f32.mrb[0].mxu0
    %1213 = vdwg.mxu0
    %1214 = vmatprep.subr.mxu0 0.0
    %v1215 = vand.u32 %v703, 4294901760
    %1216 = vmatpush1.xpose.msra.mxu0 %v1215
    %1217 = vmatprep.subr.mxu0 0.0
    %v1218 = vand.u32 %v705, 4294901760
    %1219 = vmatpush1.xpose.msra.mxu0 %v1218
    %1220 = vmatprep.subr.mxu0 0.0
    %v1221 = vand.u32 %v707, 4294901760
    %1222 = vmatpush1.xpose.msra.mxu0 %v1221
    %1223 = vmatprep.subr.mxu0 0.0
    %v1224 = vand.u32 %v709, 4294901760
    %1225 = vmatpush1.xpose.msra.mxu0 %v1224
    %1226 = vmatprep.subr.mxu0 0.0
    %v1227 = vand.u32 %v711, 4294901760
    %1228 = vmatpush1.xpose.msra.mxu0 %v1227
    %1229 = vmatprep.subr.mxu0 0.0
    %v1230 = vand.u32 %v713, 4294901760
    %1231 = vmatpush1.xpose.msra.mxu0 %v1230
    %1232 = vmatprep.subr.mxu0 0.0
    %v1233 = vand.u32 %v715, 4294901760
    %1234 = vmatpush1.xpose.msra.mxu0 %v1233
    %1235 = vmatprep.subr.mxu0 0.0
    %v1236 = vand.u32 %v717, 4294901760
    %1237 = vmatpush1.xpose.msra.mxu0 %v1236
    %1238 = vmatprep.subr.mxu0 0.0
    %1239 = vmatpush1.xpose.msra.mxu0 0.0
    %1240 = vmatprep.subr.mxu0 0.0
    %1241 = vmatpush1.xpose.msra.mxu0 0.0
    %1242 = vmatprep.subr.mxu0 0.0
    %1243 = vmatpush1.xpose.msra.mxu0 0.0
    %1244 = vmatprep.subr.mxu0 0.0
    %1245 = vmatpush1.xpose.msra.mxu0 0.0
    %1246 = vmatprep.subr.mxu0 0.0
    %1247 = vmatpush1.xpose.msra.mxu0 0.0
    %1248 = vmatprep.subr.mxu0 0.0
    %1249 = vmatpush1.xpose.msra.mxu0 0.0
    %1250 = vmatprep.subr.mxu0 0.0
    %1251 = vmatpush1.xpose.msra.mxu0 0.0
    %1252 = vmatprep.subr.mxu0 0.0
    %1253 = vmatpush1.xpose.msra.mxu0 0.0
    %1254 = vmatprep.subr.mxu0 0.0
    %1255 = vmatpush1.xpose.msra.mxu0 0.0
    %1256 = vmatprep.subr.mxu0 0.0
    %1257 = vmatpush1.xpose.msra.mxu0 0.0
    %1258 = vmatprep.subr.mxu0 0.0
    %1259 = vmatpush1.xpose.msra.mxu0 0.0
    %1260 = vmatprep.subr.mxu0 0.0
    %1261 = vmatpush1.xpose.msra.mxu0 0.0
    %1262 = vmatprep.subr.mxu0 0.0
    %1263 = vmatpush1.xpose.msra.mxu0 0.0
    %1264 = vmatprep.subr.mxu0 0.0
    %1265 = vmatpush1.xpose.msra.mxu0 0.0
    %1266 = vmatprep.subr.mxu0 0.0
    %1267 = vmatpush1.xpose.msra.mxu0 0.0
    %1268 = vmatprep.subr.mxu0 0.0
    %1269 = vmatpush1.xpose.msra.mxu0 0.0
    %1270 = vmatprep.subr.mxu0 0.0
    %1271 = vmatpush1.xpose.msra.mxu0 0.0
    %1272 = vmatprep.subr.mxu0 0.0
    %1273 = vmatpush1.xpose.msra.mxu0 0.0
    %1274 = vmatprep.subr.mxu0 0.0
    %1275 = vmatpush1.xpose.msra.mxu0 0.0
    %1276 = vmatprep.subr.mxu0 0.0
    %1277 = vmatpush1.xpose.msra.mxu0 0.0
    %1278 = vmatprep.subr.mxu0 0.0
    %1279 = vmatpush1.xpose.msra.mxu0 0.0
    %1280 = vmatprep.subr.mxu0 0.0
    %1281 = vmatpush1.xpose.msra.mxu0 0.0
    %1282 = vmatprep.subr.mxu0 0.0
    %1283 = vmatpush1.xpose.msra.mxu0 0.0
    %1284 = vmatprep.subr.mxu0 0.0
    %1285 = vmatpush1.xpose.msra.mxu0 0.0
    %1286 = vmatprep.mubr.f32.mxu0 0.0
    %v1287 = vand.u32 %v698, 4294901760
    %1288 = vmatmul.mubr.f32.gmra.mrb[0].mxu0 %v1287
    %v1289 = vpop.f32.mrb[0].mxu0
    %v1290 = vadd.f32 %v1205, %v1289
    %v1291 = vpop.f32.mrb[0].mxu0
    %1292 = vmatprep.mubr.f32.mxu0 0.0
    %v1293 = vand.u32 %v701, 4294901760
    %1294 = vmatmul.mubr.f32.gmra.mrb[0].mxu0 %v1293
    %v1295 = vpop.f32.mrb[0].mxu0
    %v1296 = vadd.f32 %v1211, %v1295
    %v1297 = vpop.f32.mrb[0].mxu0
    %1298 = vdwg.mxu0
    %vm1299 = vcmask 523264
    %v1300 = vsel %vm1299, %v1290, -inf
    %1301 = vmax.xlane.f32.xlu0 %v1300
    %v1302 = vpop.xlane.xlu0 %1301
    %v1303 = vsel %vm1299, %v1296, -inf
    %1304 = vmax.xlane.f32.xlu0 %v1303
    %v1305 = vpop.xlane.xlu0 %1304
    %v1306 = vsub.f32 %v1290, %v1302
    %v1307 = vsub.f32 %v1296, %v1305
    %v1308 = vmul.f32 %v1306, 1.442695
    %v1309 = vpow.pop %v1308
    %v1310 = vmul.f32 %v1307, 1.442695
    %v1311 = vpow.pop %v1310
    %1320 = vrot.lane.b32.xlu0 %v665, 64
    %v1321 = vpop.permute.xlu0 %1320
    %1322 = vrot.lane.b32.xlu0 %v666, 64
    %v1323 = vpop.permute.xlu0 %1322
    %1324 = vrot.lane.b32.xlu0 %v667, 64
    %v1325 = vpop.permute.xlu0 %1324
    %1326 = vrot.lane.b32.xlu0 %v668, 64
    %v1327 = vpop.permute.xlu0 %1326
    %1328 = vrot.lane.b32.xlu0 %v669, 64
    %v1329 = vpop.permute.xlu0 %1328
    %1330 = vrot.lane.b32.xlu0 %v670, 64
    %v1331 = vpop.permute.xlu0 %1330
    %1332 = vrot.lane.b32.xlu0 %v671, 64
    %v1333 = vpop.permute.xlu0 %1332
    %1334 = vrot.lane.b32.xlu0 %v672, 64
    %v1335 = vpop.permute.xlu0 %1334
    %v1345 = vsel %vm1299, %v1309, 0
    %v1348 = vsel %vm1299, %v1311, 0
    %1350 = vmatprep.subr.mxu0 0.0
    %v1351 = vand.u32 %v1321, 4294901760
    %1352 = vmatpush1.msra.mxu0 %v1351
    %1353 = vmatprep.subr.mxu0 0.0
    %v1354 = vand.u32 %v1323, 4294901760
    %1355 = vmatpush1.msra.mxu0 %v1354
    %1356 = vmatprep.subr.mxu0 0.0
    %v1357 = vand.u32 %v1325, 4294901760
    %1358 = vmatpush1.msra.mxu0 %v1357
    %1359 = vmatprep.subr.mxu0 0.0
    %v1360 = vand.u32 %v1327, 4294901760
    %1361 = vmatpush1.msra.mxu0 %v1360
    %1362 = vmatprep.subr.mxu0 0.0
    %v1363 = vand.u32 %v1329, 4294901760
    %1364 = vmatpush1.msra.mxu0 %v1363
    %1365 = vmatprep.subr.mxu0 0.0
    %v1366 = vand.u32 %v1331, 4294901760
    %1367 = vmatpush1.msra.mxu0 %v1366
    %1368 = vmatprep.subr.mxu0 0.0
    %v1369 = vand.u32 %v1333, 4294901760
    %1370 = vmatpush1.msra.mxu0 %v1369
    %1371 = vmatprep.subr.mxu0 0.0
    %v1372 = vand.u32 %v1335, 4294901760
    %1373 = vmatpush1.msra.mxu0 %v1372
    %1374 = vmatprep.subr.mxu0 0.0
    %1375 = vmatpush1.msra.mxu0 0.0
    %1376 = vmatprep.subr.mxu0 0.0
    %1377 = vmatpush1.msra.mxu0 0.0
    %1378 = vmatprep.subr.mxu0 0.0
    %1379 = vmatpush1.msra.mxu0 0.0
    %1380 = vmatprep.subr.mxu0 0.0
    %1381 = vmatpush1.msra.mxu0 0.0
    %1382 = vmatprep.subr.mxu0 0.0
    %1383 = vmatpush1.msra.mxu0 0.0
    %1384 = vmatprep.subr.mxu0 0.0
    %1385 = vmatpush1.msra.mxu0 0.0
    %1386 = vmatprep.subr.mxu0 0.0
    %1387 = vmatpush1.msra.mxu0 0.0
    %1388 = vmatprep.subr.mxu0 0.0
    %1389 = vmatpush1.msra.mxu0 0.0
    %1390 = vmatprep.subr.mxu0 0.0
    %1391 = vmatpush1.msra.mxu0 0.0
    %1392 = vmatprep.subr.mxu0 0.0
    %1393 = vmatpush1.msra.mxu0 0.0
    %1394 = vmatprep.subr.mxu0 0.0
    %1395 = vmatpush1.msra.mxu0 0.0
    %1396 = vmatprep.subr.mxu0 0.0
    %1397 = vmatpush1.msra.mxu0 0.0
    %1398 = vmatprep.subr.mxu0 0.0
    %1399 = vmatpush1.msra.mxu0 0.0
    %1400 = vmatprep.subr.mxu0 0.0
    %1401 = vmatpush1.msra.mxu0 0.0
    %1402 = vmatprep.subr.mxu0 0.0
    %1403 = vmatpush1.msra.mxu0 0.0
    %1404 = vmatprep.subr.mxu0 0.0
    %1405 = vmatpush1.msra.mxu0 0.0
    %1406 = vmatprep.subr.mxu0 0.0
    %1407 = vmatpush1.msra.mxu0 0.0
    %1408 = vmatprep.subr.mxu0 0.0
    %1409 = vmatpush1.msra.mxu0 0.0
    %1410 = vmatprep.subr.mxu0 0.0
    %1411 = vmatpush1.msra.mxu0 0.0
    %1412 = vmatprep.subr.mxu0 0.0
    %1413 = vmatpush1.msra.mxu0 0.0
    %1414 = vmatprep.subr.mxu0 0.0
    %1415 = vmatpush1.msra.mxu0 0.0
    %1416 = vmatprep.subr.mxu0 0.0
    %1417 = vmatpush1.msra.mxu0 0.0
    %1418 = vmatprep.subr.mxu0 0.0
    %1419 = vmatpush1.msra.mxu0 0.0
    %1420 = vmatprep.subr.mxu0 0.0
    %1421 = vmatpush1.msra.mxu0 0.0
    %1422 = vmatprep.mubr.f32.mxu0 0.0
    %v1423 = vand.u32 %v1345, 4294901760
    %v1424 = vsub.f32 %v1345, %v1423
    %v1425 = vand.u32 %v1424, 4294901760
    %v1426 = vsub.f32 %v1424, %v1425
    %v1427 = vand.u32 %v1426, 4294901760
    %1428 = vmatmul.mubr.f32.gmra.mrb[0].mxu0 %v1427
    %v1429 = vpop.f32.mrb[0].mxu0
    %v1430 = vadd.f32 0.0, %v1429
    %v1431 = vpop.f32.mrb[0].mxu0
    %1432 = vmatprep.mubr.f32.mxu0 0.0
    %v1433 = vand.u32 %v1348, 4294901760
    %v1434 = vsub.f32 %v1348, %v1433
    %v1435 = vand.u32 %v1434, 4294901760
    %v1436 = vsub.f32 %v1434, %v1435
    %v1437 = vand.u32 %v1436, 4294901760
    %1438 = vmatmul.mubr.f32.gmra.mrb[0].mxu0 %v1437
    %v1439 = vpop.f32.mrb[0].mxu0
    %v1440 = vadd.f32 0.0, %v1439
    %v1441 = vpop.f32.mrb[0].mxu0
    %1442 = vdwg.mxu0
    %1443 = vmatprep.subr.mxu0 0.0
    %v1444 = vand.u32 %v1321, 4294901760
    %v1445 = vsub.f32 %v1321, %v1444
    %v1446 = vand.u32 %v1445, 4294901760
    %v1447 = vsub.f32 %v1445, %v1446
    %v1448 = vand.u32 %v1447, 4294901760
    %1449 = vmatpush1.msra.mxu0 %v1448
    %1450 = vmatprep.subr.mxu0 0.0
    %v1451 = vand.u32 %v1323, 4294901760
    %v1452 = vsub.f32 %v1323, %v1451
    %v1453 = vand.u32 %v1452, 4294901760
    %v1454 = vsub.f32 %v1452, %v1453
    %v1455 = vand.u32 %v1454, 4294901760
    %1456 = vmatpush1.msra.mxu0 %v1455
    %1457 = vmatprep.subr.mxu0 0.0
    %v1458 = vand.u32 %v1325, 4294901760
    %v1459 = vsub.f32 %v1325, %v1458
    %v1460 = vand.u32 %v1459, 4294901760
    %v1461 = vsub.f32 %v1459, %v1460
    %v1462 = vand.u32 %v1461, 4294901760
    %1463 = vmatpush1.msra.mxu0 %v1462
    %1464 = vmatprep.subr.mxu0 0.0
    %v1465 = vand.u32 %v1327, 4294901760
    %v1466 = vsub.f32 %v1327, %v1465
    %v1467 = vand.u32 %v1466, 4294901760
    %v1468 = vsub.f32 %v1466, %v1467
    %v1469 = vand.u32 %v1468, 4294901760
    %1470 = vmatpush1.msra.mxu0 %v1469
    %1471 = vmatprep.subr.mxu0 0.0
    %v1472 = vand.u32 %v1329, 4294901760
    %v1473 = vsub.f32 %v1329, %v1472
    %v1474 = vand.u32 %v1473, 4294901760
    %v1475 = vsub.f32 %v1473, %v1474
    %v1476 = vand.u32 %v1475, 4294901760
    %1477 = vmatpush1.msra.mxu0 %v1476
    %1478 = vmatprep.subr.mxu0 0.0
    %v1479 = vand.u32 %v1331, 4294901760
    %v1480 = vsub.f32 %v1331, %v1479
    %v1481 = vand.u32 %v1480, 4294901760
    %v1482 = vsub.f32 %v1480, %v1481
    %v1483 = vand.u32 %v1482, 4294901760
    %1484 = vmatpush1.msra.mxu0 %v1483
    %1485 = vmatprep.subr.mxu0 0.0
    %v1486 = vand.u32 %v1333, 4294901760
    %v1487 = vsub.f32 %v1333, %v1486
    %v1488 = vand.u32 %v1487, 4294901760
    %v1489 = vsub.f32 %v1487, %v1488
    %v1490 = vand.u32 %v1489, 4294901760
    %1491 = vmatpush1.msra.mxu0 %v1490
    %1492 = vmatprep.subr.mxu0 0.0
    %v1493 = vand.u32 %v1335, 4294901760
    %v1494 = vsub.f32 %v1335, %v1493
    %v1495 = vand.u32 %v1494, 4294901760
    %v1496 = vsub.f32 %v1494, %v1495
    %v1497 = vand.u32 %v1496, 4294901760
    %1498 = vmatpush1.msra.mxu0 %v1497
    %1499 = vmatprep.subr.mxu0 0.0
    %1500 = vmatpush1.msra.mxu0 0.0
    %1501 = vmatprep.subr.mxu0 0.0
    %1502 = vmatpush1.msra.mxu0 0.0
    %1503 = vmatprep.subr.mxu0 0.0
    %1504 = vmatpush1.msra.mxu0 0.0
    %1505 = vmatprep.subr.mxu0 0.0
    %1506 = vmatpush1.msra.mxu0 0.0
    %1507 = vmatprep.subr.mxu0 0.0
    %1508 = vmatpush1.msra.mxu0 0.0
    %1509 = vmatprep.subr.mxu0 0.0
    %1510 = vmatpush1.msra.mxu0 0.0
    %1511 = vmatprep.subr.mxu0 0.0
    %1512 = vmatpush1.msra.mxu0 0.0
    %1513 = vmatprep.subr.mxu0 0.0
    %1514 = vmatpush1.msra.mxu0 0.0
    %1515 = vmatprep.subr.mxu0 0.0
    %1516 = vmatpush1.msra.mxu0 0.0
    %1517 = vmatprep.subr.mxu0 0.0
    %1518 = vmatpush1.msra.mxu0 0.0
    %1519 = vmatprep.subr.mxu0 0.0
    %1520 = vmatpush1.msra.mxu0 0.0
    %1521 = vmatprep.subr.mxu0 0.0
    %1522 = vmatpush1.msra.mxu0 0.0
    %1523 = vmatprep.subr.mxu0 0.0
    %1524 = vmatpush1.msra.mxu0 0.0
    %1525 = vmatprep.subr.mxu0 0.0
    %1526 = vmatpush1.msra.mxu0 0.0
    %1527 = vmatprep.subr.mxu0 0.0
    %1528 = vmatpush1.msra.mxu0 0.0
    %1529 = vmatprep.subr.mxu0 0.0
    %1530 = vmatpush1.msra.mxu0 0.0
    %1531 = vmatprep.subr.mxu0 0.0
    %1532 = vmatpush1.msra.mxu0 0.0
    %1533 = vmatprep.subr.mxu0 0.0
    %1534 = vmatpush1.msra.mxu0 0.0
    %1535 = vmatprep.subr.mxu0 0.0
    %1536 = vmatpush1.msra.mxu0 0.0
    %1537 = vmatprep.subr.mxu0 0.0
    %1538 = vmatpush1.msra.mxu0 0.0
    %1539 = vmatprep.subr.mxu0 0.0
    %1540 = vmatpush1.msra.mxu0 0.0
    %1541 = vmatprep.subr.mxu0 0.0
    %1542 = vmatpush1.msra.mxu0 0.0
    %1543 = vmatprep.subr.mxu0 0.0
    %1544 = vmatpush1.msra.mxu0 0.0
    %1545 = vmatprep.subr.mxu0 0.0
    %1546 = vmatpush1.msra.mxu0 0.0
    %1547 = vmatprep.mubr.f32.mxu0 0.0
    %v1548 = vand.u32 %v1345, 4294901760
    %1549 = vmatmul.mubr.f32.gmra.mrb[0].mxu0 %v1548
    %v1550 = vpop.f32.mrb[0].mxu0
    %v1551 = vadd.f32 %v1430, %v1550
    %v1552 = vpop.f32.mrb[0].mxu0
    %1553 = vmatprep.mubr.f32.mxu0 0.0
    %v1554 = vand.u32 %v1348, 4294901760
    %1555 = vmatmul.mubr.f32.gmra.mrb[0].mxu0 %v1554
    %v1556 = vpop.f32.mrb[0].mxu0
    %v1557 = vadd.f32 %v1440, %v1556
    %v1558 = vpop.f32.mrb[0].mxu0
    %1559 = vdwg.mxu0
    %1560 = vmatprep.subr.mxu0 0.0
    %v1561 = vand.u32 %v1321, 4294901760
    %v1562 = vsub.f32 %v1321, %v1561
    %1563 = vmatpush1.msra.mxu0 %v1562
    %1564 = vmatprep.subr.mxu0 0.0
    %v1565 = vand.u32 %v1323, 4294901760
    %v1566 = vsub.f32 %v1323, %v1565
    %1567 = vmatpush1.msra.mxu0 %v1566
    %1568 = vmatprep.subr.mxu0 0.0
    %v1569 = vand.u32 %v1325, 4294901760
    %v1570 = vsub.f32 %v1325, %v1569
    %1571 = vmatpush1.msra.mxu0 %v1570
    %1572 = vmatprep.subr.mxu0 0.0
    %v1573 = vand.u32 %v1327, 4294901760
    %v1574 = vsub.f32 %v1327, %v1573
    %1575 = vmatpush1.msra.mxu0 %v1574
    %1576 = vmatprep.subr.mxu0 0.0
    %v1577 = vand.u32 %v1329, 4294901760
    %v1578 = vsub.f32 %v1329, %v1577
    %1579 = vmatpush1.msra.mxu0 %v1578
    %1580 = vmatprep.subr.mxu0 0.0
    %v1581 = vand.u32 %v1331, 4294901760
    %v1582 = vsub.f32 %v1331, %v1581
    %1583 = vmatpush1.msra.mxu0 %v1582
    %1584 = vmatprep.subr.mxu0 0.0
    %v1585 = vand.u32 %v1333, 4294901760
    %v1586 = vsub.f32 %v1333, %v1585
    %1587 = vmatpush1.msra.mxu0 %v1586
    %1588 = vmatprep.subr.mxu0 0.0
    %v1589 = vand.u32 %v1335, 4294901760
    %v1590 = vsub.f32 %v1335, %v1589
    %1591 = vmatpush1.msra.mxu0 %v1590
    %1592 = vmatprep.subr.mxu0 0.0
    %1593 = vmatpush1.msra.mxu0 0.0
    %1594 = vmatprep.subr.mxu0 0.0
    %1595 = vmatpush1.msra.mxu0 0.0
    %1596 = vmatprep.subr.mxu0 0.0
    %1597 = vmatpush1.msra.mxu0 0.0
    %1598 = vmatprep.subr.mxu0 0.0
    %1599 = vmatpush1.msra.mxu0 0.0
    %1600 = vmatprep.subr.mxu0 0.0
    %1601 = vmatpush1.msra.mxu0 0.0
    %1602 = vmatprep.subr.mxu0 0.0
    %1603 = vmatpush1.msra.mxu0 0.0
    %1604 = vmatprep.subr.mxu0 0.0
    %1605 = vmatpush1.msra.mxu0 0.0
    %1606 = vmatprep.subr.mxu0 0.0
    %1607 = vmatpush1.msra.mxu0 0.0
    %1608 = vmatprep.subr.mxu0 0.0
    %1609 = vmatpush1.msra.mxu0 0.0
    %1610 = vmatprep.subr.mxu0 0.0
    %1611 = vmatpush1.msra.mxu0 0.0
    %1612 = vmatprep.subr.mxu0 0.0
    %1613 = vmatpush1.msra.mxu0 0.0
    %1614 = vmatprep.subr.mxu0 0.0
    %1615 = vmatpush1.msra.mxu0 0.0
    %1616 = vmatprep.subr.mxu0 0.0
    %1617 = vmatpush1.msra.mxu0 0.0
    %1618 = vmatprep.subr.mxu0 0.0
    %1619 = vmatpush1.msra.mxu0 0.0
    %1620 = vmatprep.subr.mxu0 0.0
    %1621 = vmatpush1.msra.mxu0 0.0
    %1622 = vmatprep.subr.mxu0 0.0
    %1623 = vmatpush1.msra.mxu0 0.0
    %1624 = vmatprep.subr.mxu0 0.0
    %1625 = vmatpush1.msra.mxu0 0.0
    %1626 = vmatprep.subr.mxu0 0.0
    %1627 = vmatpush1.msra.mxu0 0.0
    %1628 = vmatprep.subr.mxu0 0.0
    %1629 = vmatpush1.msra.mxu0 0.0
    %1630 = vmatprep.subr.mxu0 0.0
    %1631 = vmatpush1.msra.mxu0 0.0
    %1632 = vmatprep.subr.mxu0 0.0
    %1633 = vmatpush1.msra.mxu0 0.0
    %1634 = vmatprep.subr.mxu0 0.0
    %1635 = vmatpush1.msra.mxu0 0.0
    %1636 = vmatprep.subr.mxu0 0.0
    %1637 = vmatpush1.msra.mxu0 0.0
    %1638 = vmatprep.subr.mxu0 0.0
    %1639 = vmatpush1.msra.mxu0 0.0
    %1640 = vmatprep.mubr.f32.mxu0 0.0
    %v1641 = vand.u32 %v1345, 4294901760
    %v1642 = vsub.f32 %v1345, %v1641
    %1643 = vmatmul.mubr.f32.gmra.mrb[0].mxu0 %v1642
    %v1644 = vpop.f32.mrb[0].mxu0
    %v1645 = vadd.f32 %v1551, %v1644
    %v1646 = vpop.f32.mrb[0].mxu0
    %1647 = vmatprep.mubr.f32.mxu0 0.0
    %v1648 = vand.u32 %v1348, 4294901760
    %v1649 = vsub.f32 %v1348, %v1648
    %1650 = vmatmul.mubr.f32.gmra.mrb[0].mxu0 %v1649
    %v1651 = vpop.f32.mrb[0].mxu0
    %v1652 = vadd.f32 %v1557, %v1651
    %v1653 = vpop.f32.mrb[0].mxu0
    %1654 = vdwg.mxu0
    %1655 = vmatprep.subr.mxu0 0.0
    %v1656 = vand.u32 %v1321, 4294901760
    %1657 = vmatpush1.msra.mxu0 %v1656
    %1658 = vmatprep.subr.mxu0 0.0
    %v1659 = vand.u32 %v1323, 4294901760
    %1660 = vmatpush1.msra.mxu0 %v1659
    %1661 = vmatprep.subr.mxu0 0.0
    %v1662 = vand.u32 %v1325, 4294901760
    %1663 = vmatpush1.msra.mxu0 %v1662
    %1664 = vmatprep.subr.mxu0 0.0
    %v1665 = vand.u32 %v1327, 4294901760
    %1666 = vmatpush1.msra.mxu0 %v1665
    %1667 = vmatprep.subr.mxu0 0.0
    %v1668 = vand.u32 %v1329, 4294901760
    %1669 = vmatpush1.msra.mxu0 %v1668
    %1670 = vmatprep.subr.mxu0 0.0
    %v1671 = vand.u32 %v1331, 4294901760
    %1672 = vmatpush1.msra.mxu0 %v1671
    %1673 = vmatprep.subr.mxu0 0.0
    %v1674 = vand.u32 %v1333, 4294901760
    %1675 = vmatpush1.msra.mxu0 %v1674
    %1676 = vmatprep.subr.mxu0 0.0
    %v1677 = vand.u32 %v1335, 4294901760
    %1678 = vmatpush1.msra.mxu0 %v1677
    %1679 = vmatprep.subr.mxu0 0.0
    %1680 = vmatpush1.msra.mxu0 0.0
    %1681 = vmatprep.subr.mxu0 0.0
    %1682 = vmatpush1.msra.mxu0 0.0
    %1683 = vmatprep.subr.mxu0 0.0
    %1684 = vmatpush1.msra.mxu0 0.0
    %1685 = vmatprep.subr.mxu0 0.0
    %1686 = vmatpush1.msra.mxu0 0.0
    %1687 = vmatprep.subr.mxu0 0.0
    %1688 = vmatpush1.msra.mxu0 0.0
    %1689 = vmatprep.subr.mxu0 0.0
    %1690 = vmatpush1.msra.mxu0 0.0
    %1691 = vmatprep.subr.mxu0 0.0
    %1692 = vmatpush1.msra.mxu0 0.0
    %1693 = vmatprep.subr.mxu0 0.0
    %1694 = vmatpush1.msra.mxu0 0.0
    %1695 = vmatprep.subr.mxu0 0.0
    %1696 = vmatpush1.msra.mxu0 0.0
    %1697 = vmatprep.subr.mxu0 0.0
    %1698 = vmatpush1.msra.mxu0 0.0
    %1699 = vmatprep.subr.mxu0 0.0
    %1700 = vmatpush1.msra.mxu0 0.0
    %1701 = vmatprep.subr.mxu0 0.0
    %1702 = vmatpush1.msra.mxu0 0.0
    %1703 = vmatprep.subr.mxu0 0.0
    %1704 = vmatpush1.msra.mxu0 0.0
    %1705 = vmatprep.subr.mxu0 0.0
    %1706 = vmatpush1.msra.mxu0 0.0
    %1707 = vmatprep.subr.mxu0 0.0
    %1708 = vmatpush1.msra.mxu0 0.0
    %1709 = vmatprep.subr.mxu0 0.0
    %1710 = vmatpush1.msra.mxu0 0.0
    %1711 = vmatprep.subr.mxu0 0.0
    %1712 = vmatpush1.msra.mxu0 0.0
    %1713 = vmatprep.subr.mxu0 0.0
    %1714 = vmatpush1.msra.mxu0 0.0
    %1715 = vmatprep.subr.mxu0 0.0
    %1716 = vmatpush1.msra.mxu0 0.0
    %1717 = vmatprep.subr.mxu0 0.0
    %1718 = vmatpush1.msra.mxu0 0.0
    %1719 = vmatprep.subr.mxu0 0.0
    %1720 = vmatpush1.msra.mxu0 0.0
    %1721 = vmatprep.subr.mxu0 0.0
    %1722 = vmatpush1.msra.mxu0 0.0
    %1723 = vmatprep.subr.mxu0 0.0
    %1724 = vmatpush1.msra.mxu0 0.0
    %1725 = vmatprep.subr.mxu0 0.0
    %1726 = vmatpush1.msra.mxu0 0.0
    %1727 = vmatprep.mubr.f32.mxu0 0.0
    %v1728 = vand.u32 %v1345, 4294901760
    %v1729 = vsub.f32 %v1345, %v1728
    %v1730 = vand.u32 %v1729, 4294901760
    %1731 = vmatmul.mubr.f32.gmra.mrb[0].mxu0 %v1730
    %v1732 = vpop.f32.mrb[0].mxu0
    %v1733 = vadd.f32 %v1645, %v1732
    %v1734 = vpop.f32.mrb[0].mxu0
    %1735 = vmatprep.mubr.f32.mxu0 0.0
    %v1736 = vand.u32 %v1348, 4294901760
    %v1737 = vsub.f32 %v1348, %v1736
    %v1738 = vand.u32 %v1737, 4294901760
    %1739 = vmatmul.mubr.f32.gmra.mrb[0].mxu0 %v1738
    %v1740 = vpop.f32.mrb[0].mxu0
    %v1741 = vadd.f32 %v1652, %v1740
    %v1742 = vpop.f32.mrb[0].mxu0
    %1743 = vdwg.mxu0
    %1744 = vmatprep.subr.mxu0 0.0
    %v1745 = vand.u32 %v1321, 4294901760
    %v1746 = vsub.f32 %v1321, %v1745
    %v1747 = vand.u32 %v1746, 4294901760
    %1748 = vmatpush1.msra.mxu0 %v1747
    %1749 = vmatprep.subr.mxu0 0.0
    %v1750 = vand.u32 %v1323, 4294901760
    %v1751 = vsub.f32 %v1323, %v1750
    %v1752 = vand.u32 %v1751, 4294901760
    %1753 = vmatpush1.msra.mxu0 %v1752
    %1754 = vmatprep.subr.mxu0 0.0
    %v1755 = vand.u32 %v1325, 4294901760
    %v1756 = vsub.f32 %v1325, %v1755
    %v1757 = vand.u32 %v1756, 4294901760
    %1758 = vmatpush1.msra.mxu0 %v1757
    %1759 = vmatprep.subr.mxu0 0.0
    %v1760 = vand.u32 %v1327, 4294901760
    %v1761 = vsub.f32 %v1327, %v1760
    %v1762 = vand.u32 %v1761, 4294901760
    %1763 = vmatpush1.msra.mxu0 %v1762
    %1764 = vmatprep.subr.mxu0 0.0
    %v1765 = vand.u32 %v1329, 4294901760
    %v1766 = vsub.f32 %v1329, %v1765
    %v1767 = vand.u32 %v1766, 4294901760
    %1768 = vmatpush1.msra.mxu0 %v1767
    %1769 = vmatprep.subr.mxu0 0.0
    %v1770 = vand.u32 %v1331, 4294901760
    %v1771 = vsub.f32 %v1331, %v1770
    %v1772 = vand.u32 %v1771, 4294901760
    %1773 = vmatpush1.msra.mxu0 %v1772
    %1774 = vmatprep.subr.mxu0 0.0
    %v1775 = vand.u32 %v1333, 4294901760
    %v1776 = vsub.f32 %v1333, %v1775
    %v1777 = vand.u32 %v1776, 4294901760
    %1778 = vmatpush1.msra.mxu0 %v1777
    %1779 = vmatprep.subr.mxu0 0.0
    %v1780 = vand.u32 %v1335, 4294901760
    %v1781 = vsub.f32 %v1335, %v1780
    %v1782 = vand.u32 %v1781, 4294901760
    %1783 = vmatpush1.msra.mxu0 %v1782
    %1784 = vmatprep.subr.mxu0 0.0
    %1785 = vmatpush1.msra.mxu0 0.0
    %1786 = vmatprep.subr.mxu0 0.0
    %1787 = vmatpush1.msra.mxu0 0.0
    %1788 = vmatprep.subr.mxu0 0.0
    %1789 = vmatpush1.msra.mxu0 0.0
    %1790 = vmatprep.subr.mxu0 0.0
    %1791 = vmatpush1.msra.mxu0 0.0
    %1792 = vmatprep.subr.mxu0 0.0
    %1793 = vmatpush1.msra.mxu0 0.0
    %1794 = vmatprep.subr.mxu0 0.0
    %1795 = vmatpush1.msra.mxu0 0.0
    %1796 = vmatprep.subr.mxu0 0.0
    %1797 = vmatpush1.msra.mxu0 0.0
    %1798 = vmatprep.subr.mxu0 0.0
    %1799 = vmatpush1.msra.mxu0 0.0
    %1800 = vmatprep.subr.mxu0 0.0
    %1801 = vmatpush1.msra.mxu0 0.0
    %1802 = vmatprep.subr.mxu0 0.0
    %1803 = vmatpush1.msra.mxu0 0.0
    %1804 = vmatprep.subr.mxu0 0.0
    %1805 = vmatpush1.msra.mxu0 0.0
    %1806 = vmatprep.subr.mxu0 0.0
    %1807 = vmatpush1.msra.mxu0 0.0
    %1808 = vmatprep.subr.mxu0 0.0
    %1809 = vmatpush1.msra.mxu0 0.0
    %1810 = vmatprep.subr.mxu0 0.0
    %1811 = vmatpush1.msra.mxu0 0.0
    %1812 = vmatprep.subr.mxu0 0.0
    %1813 = vmatpush1.msra.mxu0 0.0
    %1814 = vmatprep.subr.mxu0 0.0
    %1815 = vmatpush1.msra.mxu0 0.0
    %1816 = vmatprep.subr.mxu0 0.0
    %1817 = vmatpush1.msra.mxu0 0.0
    %1818 = vmatprep.subr.mxu0 0.0
    %1819 = vmatpush1.msra.mxu0 0.0
    %1820 = vmatprep.subr.mxu0 0.0
    %1821 = vmatpush1.msra.mxu0 0.0
    %1822 = vmatprep.subr.mxu0 0.0
    %1823 = vmatpush1.msra.mxu0 0.0
    %1824 = vmatprep.subr.mxu0 0.0
    %1825 = vmatpush1.msra.mxu0 0.0
    %1826 = vmatprep.subr.mxu0 0.0
    %1827 = vmatpush1.msra.mxu0 0.0
    %1828 = vmatprep.subr.mxu0 0.0
    %1829 = vmatpush1.msra.mxu0 0.0
    %1830 = vmatprep.subr.mxu0 0.0
    %1831 = vmatpush1.msra.mxu0 0.0
    %1832 = vmatprep.mubr.f32.mxu0 0.0
    %v1833 = vand.u32 %v1345, 4294901760
    %1834 = vmatmul.mubr.f32.gmra.mrb[0].mxu0 %v1833
    %v1835 = vpop.f32.mrb[0].mxu0
    %v1836 = vadd.f32 %v1733, %v1835
    %v1837 = vpop.f32.mrb[0].mxu0
    %1838 = vmatprep.mubr.f32.mxu0 0.0
    %v1839 = vand.u32 %v1348, 4294901760
    %1840 = vmatmul.mubr.f32.gmra.mrb[0].mxu0 %v1839
    %v1841 = vpop.f32.mrb[0].mxu0
    %v1842 = vadd.f32 %v1741, %v1841
    %v1843 = vpop.f32.mrb[0].mxu0
    %1844 = vdwg.mxu0
    %1845 = vmatprep.subr.mxu0 0.0
    %v1846 = vand.u32 %v1321, 4294901760
    %1847 = vmatpush1.msra.mxu0 %v1846
    %1848 = vmatprep.subr.mxu0 0.0
    %v1849 = vand.u32 %v1323, 4294901760
    %1850 = vmatpush1.msra.mxu0 %v1849
    %1851 = vmatprep.subr.mxu0 0.0
    %v1852 = vand.u32 %v1325, 4294901760
    %1853 = vmatpush1.msra.mxu0 %v1852
    %1854 = vmatprep.subr.mxu0 0.0
    %v1855 = vand.u32 %v1327, 4294901760
    %1856 = vmatpush1.msra.mxu0 %v1855
    %1857 = vmatprep.subr.mxu0 0.0
    %v1858 = vand.u32 %v1329, 4294901760
    %1859 = vmatpush1.msra.mxu0 %v1858
    %1860 = vmatprep.subr.mxu0 0.0
    %v1861 = vand.u32 %v1331, 4294901760
    %1862 = vmatpush1.msra.mxu0 %v1861
    %1863 = vmatprep.subr.mxu0 0.0
    %v1864 = vand.u32 %v1333, 4294901760
    %1865 = vmatpush1.msra.mxu0 %v1864
    %1866 = vmatprep.subr.mxu0 0.0
    %v1867 = vand.u32 %v1335, 4294901760
    %1868 = vmatpush1.msra.mxu0 %v1867
    %1869 = vmatprep.subr.mxu0 0.0
    %1870 = vmatpush1.msra.mxu0 0.0
    %1871 = vmatprep.subr.mxu0 0.0
    %1872 = vmatpush1.msra.mxu0 0.0
    %1873 = vmatprep.subr.mxu0 0.0
    %1874 = vmatpush1.msra.mxu0 0.0
    %1875 = vmatprep.subr.mxu0 0.0
    %1876 = vmatpush1.msra.mxu0 0.0
    %1877 = vmatprep.subr.mxu0 0.0
    %1878 = vmatpush1.msra.mxu0 0.0
    %1879 = vmatprep.subr.mxu0 0.0
    %1880 = vmatpush1.msra.mxu0 0.0
    %1881 = vmatprep.subr.mxu0 0.0
    %1882 = vmatpush1.msra.mxu0 0.0
    %1883 = vmatprep.subr.mxu0 0.0
    %1884 = vmatpush1.msra.mxu0 0.0
    %1885 = vmatprep.subr.mxu0 0.0
    %1886 = vmatpush1.msra.mxu0 0.0
    %1887 = vmatprep.subr.mxu0 0.0
    %1888 = vmatpush1.msra.mxu0 0.0
    %1889 = vmatprep.subr.mxu0 0.0
    %1890 = vmatpush1.msra.mxu0 0.0
    %1891 = vmatprep.subr.mxu0 0.0
    %1892 = vmatpush1.msra.mxu0 0.0
    %1893 = vmatprep.subr.mxu0 0.0
    %1894 = vmatpush1.msra.mxu0 0.0
    %1895 = vmatprep.subr.mxu0 0.0
    %1896 = vmatpush1.msra.mxu0 0.0
    %1897 = vmatprep.subr.mxu0 0.0
    %1898 = vmatpush1.msra.mxu0 0.0
    %1899 = vmatprep.subr.mxu0 0.0
    %1900 = vmatpush1.msra.mxu0 0.0
    %1901 = vmatprep.subr.mxu0 0.0
    %1902 = vmatpush1.msra.mxu0 0.0
    %1903 = vmatprep.subr.mxu0 0.0
    %1904 = vmatpush1.msra.mxu0 0.0
    %1905 = vmatprep.subr.mxu0 0.0
    %1906 = vmatpush1.msra.mxu0 0.0
    %1907 = vmatprep.subr.mxu0 0.0
    %1908 = vmatpush1.msra.mxu0 0.0
    %1909 = vmatprep.subr.mxu0 0.0
    %1910 = vmatpush1.msra.mxu0 0.0
    %1911 = vmatprep.subr.mxu0 0.0
    %1912 = vmatpush1.msra.mxu0 0.0
    %1913 = vmatprep.subr.mxu0 0.0
    %1914 = vmatpush1.msra.mxu0 0.0
    %1915 = vmatprep.subr.mxu0 0.0
    %1916 = vmatpush1.msra.mxu0 0.0
    %1917 = vmatprep.mubr.f32.mxu0 0.0
    %v1918 = vand.u32 %v1345, 4294901760
    %1919 = vmatmul.mubr.f32.gmra.mrb[0].mxu0 %v1918
    %v1920 = vpop.f32.mrb[0].mxu0
    %v1921 = vadd.f32 %v1836, %v1920
    %v1922 = vpop.f32.mrb[0].mxu0
    %1923 = vmatprep.mubr.f32.mxu0 0.0
    %v1924 = vand.u32 %v1348, 4294901760
    %1925 = vmatmul.mubr.f32.gmra.mrb[0].mxu0 %v1924
    %v1926 = vpop.f32.mrb[0].mxu0
    %v1927 = vadd.f32 %v1842, %v1926
    %v1928 = vpop.f32.mrb[0].mxu0
    %1929 = vdwg.mxu0
    %1930 = vmatprep.subr.mxu0 0.0
    %v1931 = vand.u32 %v49, 4294901760
    %1932 = vmatpush1.msra.mxu0 %v1931
    %1933 = vmatprep.subr.mxu0 0.0
    %v1934 = vand.u32 %v50, 4294901760
    %1935 = vmatpush1.msra.mxu0 %v1934
    %1936 = vmatprep.subr.mxu0 0.0
    %v1937 = vand.u32 %v51, 4294901760
    %1938 = vmatpush1.msra.mxu0 %v1937
    %1939 = vmatprep.subr.mxu0 0.0
    %v1940 = vand.u32 %v52, 4294901760
    %1941 = vmatpush1.msra.mxu0 %v1940
    %1942 = vmatprep.subr.mxu0 0.0
    %v1943 = vand.u32 %v53, 4294901760
    %1944 = vmatpush1.msra.mxu0 %v1943
    %1945 = vmatprep.subr.mxu0 0.0
    %v1946 = vand.u32 %v54, 4294901760
    %1947 = vmatpush1.msra.mxu0 %v1946
    %1948 = vmatprep.subr.mxu0 0.0
    %v1949 = vand.u32 %v55, 4294901760
    %1950 = vmatpush1.msra.mxu0 %v1949
    %1951 = vmatprep.subr.mxu0 0.0
    %v1952 = vand.u32 %v56, 4294901760
    %1953 = vmatpush1.msra.mxu0 %v1952
    %1954 = vmatprep.subr.mxu0 0.0
    %1955 = vmatpush1.msra.mxu0 0.0
    %1956 = vmatprep.subr.mxu0 0.0
    %1957 = vmatpush1.msra.mxu0 0.0
    %1958 = vmatprep.subr.mxu0 0.0
    %1959 = vmatpush1.msra.mxu0 0.0
    %1960 = vmatprep.subr.mxu0 0.0
    %1961 = vmatpush1.msra.mxu0 0.0
    %1962 = vmatprep.subr.mxu0 0.0
    %1963 = vmatpush1.msra.mxu0 0.0
    %1964 = vmatprep.subr.mxu0 0.0
    %1965 = vmatpush1.msra.mxu0 0.0
    %1966 = vmatprep.subr.mxu0 0.0
    %1967 = vmatpush1.msra.mxu0 0.0
    %1968 = vmatprep.subr.mxu0 0.0
    %1969 = vmatpush1.msra.mxu0 0.0
    %1970 = vmatprep.subr.mxu0 0.0
    %1971 = vmatpush1.msra.mxu0 0.0
    %1972 = vmatprep.subr.mxu0 0.0
    %1973 = vmatpush1.msra.mxu0 0.0
    %1974 = vmatprep.subr.mxu0 0.0
    %1975 = vmatpush1.msra.mxu0 0.0
    %1976 = vmatprep.subr.mxu0 0.0
    %1977 = vmatpush1.msra.mxu0 0.0
    %1978 = vmatprep.subr.mxu0 0.0
    %1979 = vmatpush1.msra.mxu0 0.0
    %1980 = vmatprep.subr.mxu0 0.0
    %1981 = vmatpush1.msra.mxu0 0.0
    %1982 = vmatprep.subr.mxu0 0.0
    %1983 = vmatpush1.msra.mxu0 0.0
    %1984 = vmatprep.subr.mxu0 0.0
    %1985 = vmatpush1.msra.mxu0 0.0
    %1986 = vmatprep.subr.mxu0 0.0
    %1987 = vmatpush1.msra.mxu0 0.0
    %1988 = vmatprep.subr.mxu0 0.0
    %1989 = vmatpush1.msra.mxu0 0.0
    %1990 = vmatprep.subr.mxu0 0.0
    %1991 = vmatpush1.msra.mxu0 0.0
    %1992 = vmatprep.subr.mxu0 0.0
    %1993 = vmatpush1.msra.mxu0 0.0
    %1994 = vmatprep.subr.mxu0 0.0
    %1995 = vmatpush1.msra.mxu0 0.0
    %1996 = vmatprep.subr.mxu0 0.0
    %1997 = vmatpush1.msra.mxu0 0.0
    %1998 = vmatprep.subr.mxu0 0.0
    %1999 = vmatpush1.msra.mxu0 0.0
    %2000 = vmatprep.subr.mxu0 0.0
    %2001 = vmatpush1.msra.mxu0 0.0
    %2002 = vmatprep.mubr.f32.mxu0 0.0
    %v2003 = vand.u32 %v1345, 4294901760
    %v2004 = vsub.f32 %v1345, %v2003
    %v2005 = vand.u32 %v2004, 4294901760
    %v2006 = vsub.f32 %v2004, %v2005
    %v2007 = vand.u32 %v2006, 4294901760
    %2008 = vmatmul.mubr.f32.gmra.mrb[0].mxu0 %v2007
    %v2009 = vpop.f32.mrb[0].mxu0
    %v2010 = vadd.f32 0.0, %v2009
    %v2011 = vpop.f32.mrb[0].mxu0
    %2012 = vmatprep.mubr.f32.mxu0 0.0
    %v2013 = vand.u32 %v1348, 4294901760
    %v2014 = vsub.f32 %v1348, %v2013
    %v2015 = vand.u32 %v2014, 4294901760
    %v2016 = vsub.f32 %v2014, %v2015
    %v2017 = vand.u32 %v2016, 4294901760
    %2018 = vmatmul.mubr.f32.gmra.mrb[0].mxu0 %v2017
    %v2019 = vpop.f32.mrb[0].mxu0
    %v2020 = vadd.f32 0.0, %v2019
    %v2021 = vpop.f32.mrb[0].mxu0
    %2022 = vdwg.mxu0
    %2023 = vmatprep.subr.mxu0 0.0
    %v2024 = vand.u32 %v49, 4294901760
    %v2025 = vsub.f32 %v49, %v2024
    %v2026 = vand.u32 %v2025, 4294901760
    %v2027 = vsub.f32 %v2025, %v2026
    %v2028 = vand.u32 %v2027, 4294901760
    %2029 = vmatpush1.msra.mxu0 %v2028
    %2030 = vmatprep.subr.mxu0 0.0
    %v2031 = vand.u32 %v50, 4294901760
    %v2032 = vsub.f32 %v50, %v2031
    %v2033 = vand.u32 %v2032, 4294901760
    %v2034 = vsub.f32 %v2032, %v2033
    %v2035 = vand.u32 %v2034, 4294901760
    %2036 = vmatpush1.msra.mxu0 %v2035
    %2037 = vmatprep.subr.mxu0 0.0
    %v2038 = vand.u32 %v51, 4294901760
    %v2039 = vsub.f32 %v51, %v2038
    %v2040 = vand.u32 %v2039, 4294901760
    %v2041 = vsub.f32 %v2039, %v2040
    %v2042 = vand.u32 %v2041, 4294901760
    %2043 = vmatpush1.msra.mxu0 %v2042
    %2044 = vmatprep.subr.mxu0 0.0
    %v2045 = vand.u32 %v52, 4294901760
    %v2046 = vsub.f32 %v52, %v2045
    %v2047 = vand.u32 %v2046, 4294901760
    %v2048 = vsub.f32 %v2046, %v2047
    %v2049 = vand.u32 %v2048, 4294901760
    %2050 = vmatpush1.msra.mxu0 %v2049
    %2051 = vmatprep.subr.mxu0 0.0
    %v2052 = vand.u32 %v53, 4294901760
    %v2053 = vsub.f32 %v53, %v2052
    %v2054 = vand.u32 %v2053, 4294901760
    %v2055 = vsub.f32 %v2053, %v2054
    %v2056 = vand.u32 %v2055, 4294901760
    %2057 = vmatpush1.msra.mxu0 %v2056
    %2058 = vmatprep.subr.mxu0 0.0
    %v2059 = vand.u32 %v54, 4294901760
    %v2060 = vsub.f32 %v54, %v2059
    %v2061 = vand.u32 %v2060, 4294901760
    %v2062 = vsub.f32 %v2060, %v2061
    %v2063 = vand.u32 %v2062, 4294901760
    %2064 = vmatpush1.msra.mxu0 %v2063
    %2065 = vmatprep.subr.mxu0 0.0
    %v2066 = vand.u32 %v55, 4294901760
    %v2067 = vsub.f32 %v55, %v2066
    %v2068 = vand.u32 %v2067, 4294901760
    %v2069 = vsub.f32 %v2067, %v2068
    %v2070 = vand.u32 %v2069, 4294901760
    %2071 = vmatpush1.msra.mxu0 %v2070
    %2072 = vmatprep.subr.mxu0 0.0
    %v2073 = vand.u32 %v56, 4294901760
    %v2074 = vsub.f32 %v56, %v2073
    %v2075 = vand.u32 %v2074, 4294901760
    %v2076 = vsub.f32 %v2074, %v2075
    %v2077 = vand.u32 %v2076, 4294901760
    %2078 = vmatpush1.msra.mxu0 %v2077
    %2079 = vmatprep.subr.mxu0 0.0
    %2080 = vmatpush1.msra.mxu0 0.0
    %2081 = vmatprep.subr.mxu0 0.0
    %2082 = vmatpush1.msra.mxu0 0.0
    %2083 = vmatprep.subr.mxu0 0.0
    %2084 = vmatpush1.msra.mxu0 0.0
    %2085 = vmatprep.subr.mxu0 0.0
    %2086 = vmatpush1.msra.mxu0 0.0
    %2087 = vmatprep.subr.mxu0 0.0
    %2088 = vmatpush1.msra.mxu0 0.0
    %2089 = vmatprep.subr.mxu0 0.0
    %2090 = vmatpush1.msra.mxu0 0.0
    %2091 = vmatprep.subr.mxu0 0.0
    %2092 = vmatpush1.msra.mxu0 0.0
    %2093 = vmatprep.subr.mxu0 0.0
    %2094 = vmatpush1.msra.mxu0 0.0
    %2095 = vmatprep.subr.mxu0 0.0
    %2096 = vmatpush1.msra.mxu0 0.0
    %2097 = vmatprep.subr.mxu0 0.0
    %2098 = vmatpush1.msra.mxu0 0.0
    %2099 = vmatprep.subr.mxu0 0.0
    %2100 = vmatpush1.msra.mxu0 0.0
    %2101 = vmatprep.subr.mxu0 0.0
    %2102 = vmatpush1.msra.mxu0 0.0
    %2103 = vmatprep.subr.mxu0 0.0
    %2104 = vmatpush1.msra.mxu0 0.0
    %2105 = vmatprep.subr.mxu0 0.0
    %2106 = vmatpush1.msra.mxu0 0.0
    %2107 = vmatprep.subr.mxu0 0.0
    %2108 = vmatpush1.msra.mxu0 0.0
    %2109 = vmatprep.subr.mxu0 0.0
    %2110 = vmatpush1.msra.mxu0 0.0
    %2111 = vmatprep.subr.mxu0 0.0
    %2112 = vmatpush1.msra.mxu0 0.0
    %2113 = vmatprep.subr.mxu0 0.0
    %2114 = vmatpush1.msra.mxu0 0.0
    %2115 = vmatprep.subr.mxu0 0.0
    %2116 = vmatpush1.msra.mxu0 0.0
    %2117 = vmatprep.subr.mxu0 0.0
    %2118 = vmatpush1.msra.mxu0 0.0
    %2119 = vmatprep.subr.mxu0 0.0
    %2120 = vmatpush1.msra.mxu0 0.0
    %2121 = vmatprep.subr.mxu0 0.0
    %2122 = vmatpush1.msra.mxu0 0.0
    %2123 = vmatprep.subr.mxu0 0.0
    %2124 = vmatpush1.msra.mxu0 0.0
    %2125 = vmatprep.subr.mxu0 0.0
    %2126 = vmatpush1.msra.mxu0 0.0
    %2127 = vmatprep.mubr.f32.mxu0 0.0
    %v2128 = vand.u32 %v1345, 4294901760
    %2129 = vmatmul.mubr.f32.gmra.mrb[0].mxu0 %v2128
    %v2130 = vpop.f32.mrb[0].mxu0
    %v2131 = vadd.f32 %v2010, %v2130
    %v2132 = vpop.f32.mrb[0].mxu0
    %2133 = vmatprep.mubr.f32.mxu0 0.0
    %v2134 = vand.u32 %v1348, 4294901760
    %2135 = vmatmul.mubr.f32.gmra.mrb[0].mxu0 %v2134
    %v2136 = vpop.f32.mrb[0].mxu0
    %v2137 = vadd.f32 %v2020, %v2136
    %v2138 = vpop.f32.mrb[0].mxu0
    %2139 = vdwg.mxu0
    %2140 = vmatprep.subr.mxu0 0.0
    %v2141 = vand.u32 %v49, 4294901760
    %v2142 = vsub.f32 %v49, %v2141
    %2143 = vmatpush1.msra.mxu0 %v2142
    %2144 = vmatprep.subr.mxu0 0.0
    %v2145 = vand.u32 %v50, 4294901760
    %v2146 = vsub.f32 %v50, %v2145
    %2147 = vmatpush1.msra.mxu0 %v2146
    %2148 = vmatprep.subr.mxu0 0.0
    %v2149 = vand.u32 %v51, 4294901760
    %v2150 = vsub.f32 %v51, %v2149
    %2151 = vmatpush1.msra.mxu0 %v2150
    %2152 = vmatprep.subr.mxu0 0.0
    %v2153 = vand.u32 %v52, 4294901760
    %v2154 = vsub.f32 %v52, %v2153
    %2155 = vmatpush1.msra.mxu0 %v2154
    %2156 = vmatprep.subr.mxu0 0.0
    %v2157 = vand.u32 %v53, 4294901760
    %v2158 = vsub.f32 %v53, %v2157
    %2159 = vmatpush1.msra.mxu0 %v2158
    %2160 = vmatprep.subr.mxu0 0.0
    %v2161 = vand.u32 %v54, 4294901760
    %v2162 = vsub.f32 %v54, %v2161
    %2163 = vmatpush1.msra.mxu0 %v2162
    %2164 = vmatprep.subr.mxu0 0.0
    %v2165 = vand.u32 %v55, 4294901760
    %v2166 = vsub.f32 %v55, %v2165
    %2167 = vmatpush1.msra.mxu0 %v2166
    %2168 = vmatprep.subr.mxu0 0.0
    %v2169 = vand.u32 %v56, 4294901760
    %v2170 = vsub.f32 %v56, %v2169
    %2171 = vmatpush1.msra.mxu0 %v2170
    %2172 = vmatprep.subr.mxu0 0.0
    %2173 = vmatpush1.msra.mxu0 0.0
    %2174 = vmatprep.subr.mxu0 0.0
    %2175 = vmatpush1.msra.mxu0 0.0
    %2176 = vmatprep.subr.mxu0 0.0
    %2177 = vmatpush1.msra.mxu0 0.0
    %2178 = vmatprep.subr.mxu0 0.0
    %2179 = vmatpush1.msra.mxu0 0.0
    %2180 = vmatprep.subr.mxu0 0.0
    %2181 = vmatpush1.msra.mxu0 0.0
    %2182 = vmatprep.subr.mxu0 0.0
    %2183 = vmatpush1.msra.mxu0 0.0
    %2184 = vmatprep.subr.mxu0 0.0
    %2185 = vmatpush1.msra.mxu0 0.0
    %2186 = vmatprep.subr.mxu0 0.0
    %2187 = vmatpush1.msra.mxu0 0.0
    %2188 = vmatprep.subr.mxu0 0.0
    %2189 = vmatpush1.msra.mxu0 0.0
    %2190 = vmatprep.subr.mxu0 0.0
    %2191 = vmatpush1.msra.mxu0 0.0
    %2192 = vmatprep.subr.mxu0 0.0
    %2193 = vmatpush1.msra.mxu0 0.0
    %2194 = vmatprep.subr.mxu0 0.0
    %2195 = vmatpush1.msra.mxu0 0.0
    %2196 = vmatprep.subr.mxu0 0.0
    %2197 = vmatpush1.msra.mxu0 0.0
    %2198 = vmatprep.subr.mxu0 0.0
    %2199 = vmatpush1.msra.mxu0 0.0
    %2200 = vmatprep.subr.mxu0 0.0
    %2201 = vmatpush1.msra.mxu0 0.0
    %2202 = vmatprep.subr.mxu0 0.0
    %2203 = vmatpush1.msra.mxu0 0.0
    %2204 = vmatprep.subr.mxu0 0.0
    %2205 = vmatpush1.msra.mxu0 0.0
    %2206 = vmatprep.subr.mxu0 0.0
    %2207 = vmatpush1.msra.mxu0 0.0
    %2208 = vmatprep.subr.mxu0 0.0
    %2209 = vmatpush1.msra.mxu0 0.0
    %2210 = vmatprep.subr.mxu0 0.0
    %2211 = vmatpush1.msra.mxu0 0.0
    %2212 = vmatprep.subr.mxu0 0.0
    %2213 = vmatpush1.msra.mxu0 0.0
    %2214 = vmatprep.subr.mxu0 0.0
    %2215 = vmatpush1.msra.mxu0 0.0
    %2216 = vmatprep.subr.mxu0 0.0
    %2217 = vmatpush1.msra.mxu0 0.0
    %2218 = vmatprep.subr.mxu0 0.0
    %2219 = vmatpush1.msra.mxu0 0.0
    %2220 = vmatprep.mubr.f32.mxu0 0.0
    %v2221 = vand.u32 %v1345, 4294901760
    %v2222 = vsub.f32 %v1345, %v2221
    %2223 = vmatmul.mubr.f32.gmra.mrb[0].mxu0 %v2222
    %v2224 = vpop.f32.mrb[0].mxu0
    %v2225 = vadd.f32 %v2131, %v2224
    %v2226 = vpop.f32.mrb[0].mxu0
    %2227 = vmatprep.mubr.f32.mxu0 0.0
    %v2228 = vand.u32 %v1348, 4294901760
    %v2229 = vsub.f32 %v1348, %v2228
    %2230 = vmatmul.mubr.f32.gmra.mrb[0].mxu0 %v2229
    %v2231 = vpop.f32.mrb[0].mxu0
    %v2232 = vadd.f32 %v2137, %v2231
    %v2233 = vpop.f32.mrb[0].mxu0
    %2234 = vdwg.mxu0
    %2235 = vmatprep.subr.mxu0 0.0
    %v2236 = vand.u32 %v49, 4294901760
    %2237 = vmatpush1.msra.mxu0 %v2236
    %2238 = vmatprep.subr.mxu0 0.0
    %v2239 = vand.u32 %v50, 4294901760
    %2240 = vmatpush1.msra.mxu0 %v2239
    %2241 = vmatprep.subr.mxu0 0.0
    %v2242 = vand.u32 %v51, 4294901760
    %2243 = vmatpush1.msra.mxu0 %v2242
    %2244 = vmatprep.subr.mxu0 0.0
    %v2245 = vand.u32 %v52, 4294901760
    %2246 = vmatpush1.msra.mxu0 %v2245
    %2247 = vmatprep.subr.mxu0 0.0
    %v2248 = vand.u32 %v53, 4294901760
    %2249 = vmatpush1.msra.mxu0 %v2248
    %2250 = vmatprep.subr.mxu0 0.0
    %v2251 = vand.u32 %v54, 4294901760
    %2252 = vmatpush1.msra.mxu0 %v2251
    %2253 = vmatprep.subr.mxu0 0.0
    %v2254 = vand.u32 %v55, 4294901760
    %2255 = vmatpush1.msra.mxu0 %v2254
    %2256 = vmatprep.subr.mxu0 0.0
    %v2257 = vand.u32 %v56, 4294901760
    %2258 = vmatpush1.msra.mxu0 %v2257
    %2259 = vmatprep.subr.mxu0 0.0
    %2260 = vmatpush1.msra.mxu0 0.0
    %2261 = vmatprep.subr.mxu0 0.0
    %2262 = vmatpush1.msra.mxu0 0.0
    %2263 = vmatprep.subr.mxu0 0.0
    %2264 = vmatpush1.msra.mxu0 0.0
    %2265 = vmatprep.subr.mxu0 0.0
    %2266 = vmatpush1.msra.mxu0 0.0
    %2267 = vmatprep.subr.mxu0 0.0
    %2268 = vmatpush1.msra.mxu0 0.0
    %2269 = vmatprep.subr.mxu0 0.0
    %2270 = vmatpush1.msra.mxu0 0.0
    %2271 = vmatprep.subr.mxu0 0.0
    %2272 = vmatpush1.msra.mxu0 0.0
    %2273 = vmatprep.subr.mxu0 0.0
    %2274 = vmatpush1.msra.mxu0 0.0
    %2275 = vmatprep.subr.mxu0 0.0
    %2276 = vmatpush1.msra.mxu0 0.0
    %2277 = vmatprep.subr.mxu0 0.0
    %2278 = vmatpush1.msra.mxu0 0.0
    %2279 = vmatprep.subr.mxu0 0.0
    %2280 = vmatpush1.msra.mxu0 0.0
    %2281 = vmatprep.subr.mxu0 0.0
    %2282 = vmatpush1.msra.mxu0 0.0
    %2283 = vmatprep.subr.mxu0 0.0
    %2284 = vmatpush1.msra.mxu0 0.0
    %2285 = vmatprep.subr.mxu0 0.0
    %2286 = vmatpush1.msra.mxu0 0.0
    %2287 = vmatprep.subr.mxu0 0.0
    %2288 = vmatpush1.msra.mxu0 0.0
    %2289 = vmatprep.subr.mxu0 0.0
    %2290 = vmatpush1.msra.mxu0 0.0
    %2291 = vmatprep.subr.mxu0 0.0
    %2292 = vmatpush1.msra.mxu0 0.0
    %2293 = vmatprep.subr.mxu0 0.0
    %2294 = vmatpush1.msra.mxu0 0.0
    %2295 = vmatprep.subr.mxu0 0.0
    %2296 = vmatpush1.msra.mxu0 0.0
    %2297 = vmatprep.subr.mxu0 0.0
    %2298 = vmatpush1.msra.mxu0 0.0
    %2299 = vmatprep.subr.mxu0 0.0
    %2300 = vmatpush1.msra.mxu0 0.0
    %2301 = vmatprep.subr.mxu0 0.0
    %2302 = vmatpush1.msra.mxu0 0.0
    %2303 = vmatprep.subr.mxu0 0.0
    %2304 = vmatpush1.msra.mxu0 0.0
    %2305 = vmatprep.subr.mxu0 0.0
    %2306 = vmatpush1.msra.mxu0 0.0
    %2307 = vmatprep.mubr.f32.mxu0 0.0
    %v2308 = vand.u32 %v1345, 4294901760
    %v2309 = vsub.f32 %v1345, %v2308
    %v2310 = vand.u32 %v2309, 4294901760
    %2311 = vmatmul.mubr.f32.gmra.mrb[0].mxu0 %v2310
    %v2312 = vpop.f32.mrb[0].mxu0
    %v2313 = vadd.f32 %v2225, %v2312
    %v2314 = vpop.f32.mrb[0].mxu0
    %2315 = vmatprep.mubr.f32.mxu0 0.0
    %v2316 = vand.u32 %v1348, 4294901760
    %v2317 = vsub.f32 %v1348, %v2316
    %v2318 = vand.u32 %v2317, 4294901760
    %2319 = vmatmul.mubr.f32.gmra.mrb[0].mxu0 %v2318
    %v2320 = vpop.f32.mrb[0].mxu0
    %v2321 = vadd.f32 %v2232, %v2320
    %v2322 = vpop.f32.mrb[0].mxu0
    %2323 = vdwg.mxu0
    %2324 = vmatprep.subr.mxu0 0.0
    %v2325 = vand.u32 %v49, 4294901760
    %v2326 = vsub.f32 %v49, %v2325
    %v2327 = vand.u32 %v2326, 4294901760
    %2328 = vmatpush1.msra.mxu0 %v2327
    %2329 = vmatprep.subr.mxu0 0.0
    %v2330 = vand.u32 %v50, 4294901760
    %v2331 = vsub.f32 %v50, %v2330
    %v2332 = vand.u32 %v2331, 4294901760
    %2333 = vmatpush1.msra.mxu0 %v2332
    %2334 = vmatprep.subr.mxu0 0.0
    %v2335 = vand.u32 %v51, 4294901760
    %v2336 = vsub.f32 %v51, %v2335
    %v2337 = vand.u32 %v2336, 4294901760
    %2338 = vmatpush1.msra.mxu0 %v2337
    %2339 = vmatprep.subr.mxu0 0.0
    %v2340 = vand.u32 %v52, 4294901760
    %v2341 = vsub.f32 %v52, %v2340
    %v2342 = vand.u32 %v2341, 4294901760
    %2343 = vmatpush1.msra.mxu0 %v2342
    %2344 = vmatprep.subr.mxu0 0.0
    %v2345 = vand.u32 %v53, 4294901760
    %v2346 = vsub.f32 %v53, %v2345
    %v2347 = vand.u32 %v2346, 4294901760
    %2348 = vmatpush1.msra.mxu0 %v2347
    %2349 = vmatprep.subr.mxu0 0.0
    %v2350 = vand.u32 %v54, 4294901760
    %v2351 = vsub.f32 %v54, %v2350
    %v2352 = vand.u32 %v2351, 4294901760
    %2353 = vmatpush1.msra.mxu0 %v2352
    %2354 = vmatprep.subr.mxu0 0.0
    %v2355 = vand.u32 %v55, 4294901760
    %v2356 = vsub.f32 %v55, %v2355
    %v2357 = vand.u32 %v2356, 4294901760
    %2358 = vmatpush1.msra.mxu0 %v2357
    %2359 = vmatprep.subr.mxu0 0.0
    %v2360 = vand.u32 %v56, 4294901760
    %v2361 = vsub.f32 %v56, %v2360
    %v2362 = vand.u32 %v2361, 4294901760
    %2363 = vmatpush1.msra.mxu0 %v2362
    %2364 = vmatprep.subr.mxu0 0.0
    %2365 = vmatpush1.msra.mxu0 0.0
    %2366 = vmatprep.subr.mxu0 0.0
    %2367 = vmatpush1.msra.mxu0 0.0
    %2368 = vmatprep.subr.mxu0 0.0
    %2369 = vmatpush1.msra.mxu0 0.0
    %2370 = vmatprep.subr.mxu0 0.0
    %2371 = vmatpush1.msra.mxu0 0.0
    %2372 = vmatprep.subr.mxu0 0.0
    %2373 = vmatpush1.msra.mxu0 0.0
    %2374 = vmatprep.subr.mxu0 0.0
    %2375 = vmatpush1.msra.mxu0 0.0
    %2376 = vmatprep.subr.mxu0 0.0
    %2377 = vmatpush1.msra.mxu0 0.0
    %2378 = vmatprep.subr.mxu0 0.0
    %2379 = vmatpush1.msra.mxu0 0.0
    %2380 = vmatprep.subr.mxu0 0.0
    %2381 = vmatpush1.msra.mxu0 0.0
    %2382 = vmatprep.subr.mxu0 0.0
    %2383 = vmatpush1.msra.mxu0 0.0
    %2384 = vmatprep.subr.mxu0 0.0
    %2385 = vmatpush1.msra.mxu0 0.0
    %2386 = vmatprep.subr.mxu0 0.0
    %2387 = vmatpush1.msra.mxu0 0.0
    %2388 = vmatprep.subr.mxu0 0.0
    %2389 = vmatpush1.msra.mxu0 0.0
    %2390 = vmatprep.subr.mxu0 0.0
    %2391 = vmatpush1.msra.mxu0 0.0
    %2392 = vmatprep.subr.mxu0 0.0
    %2393 = vmatpush1.msra.mxu0 0.0
    %2394 = vmatprep.subr.mxu0 0.0
    %2395 = vmatpush1.msra.mxu0 0.0
    %2396 = vmatprep.subr.mxu0 0.0
    %2397 = vmatpush1.msra.mxu0 0.0
    %2398 = vmatprep.subr.mxu0 0.0
    %2399 = vmatpush1.msra.mxu0 0.0
    %2400 = vmatprep.subr.mxu0 0.0
    %2401 = vmatpush1.msra.mxu0 0.0
    %2402 = vmatprep.subr.mxu0 0.0
    %2403 = vmatpush1.msra.mxu0 0.0
    %2404 = vmatprep.subr.mxu0 0.0
    %2405 = vmatpush1.msra.mxu0 0.0
    %2406 = vmatprep.subr.mxu0 0.0
    %2407 = vmatpush1.msra.mxu0 0.0
    %2408 = vmatprep.subr.mxu0 0.0
    %2409 = vmatpush1.msra.mxu0 0.0
    %2410 = vmatprep.subr.mxu0 0.0
    %2411 = vmatpush1.msra.mxu0 0.0
    %2412 = vmatprep.mubr.f32.mxu0 0.0
    %v2413 = vand.u32 %v1345, 4294901760
    %2414 = vmatmul.mubr.f32.gmra.mrb[0].mxu0 %v2413
    %v2415 = vpop.f32.mrb[0].mxu0
    %v2416 = vadd.f32 %v2313, %v2415
    %v2417 = vpop.f32.mrb[0].mxu0
    %2418 = vmatprep.mubr.f32.mxu0 0.0
    %v2419 = vand.u32 %v1348, 4294901760
    %2420 = vmatmul.mubr.f32.gmra.mrb[0].mxu0 %v2419
    %v2421 = vpop.f32.mrb[0].mxu0
    %v2422 = vadd.f32 %v2321, %v2421
    %v2423 = vpop.f32.mrb[0].mxu0
    %2424 = vdwg.mxu0
    %2425 = vmatprep.subr.mxu0 0.0
    %v2426 = vand.u32 %v49, 4294901760
    %2427 = vmatpush1.msra.mxu0 %v2426
    %2428 = vmatprep.subr.mxu0 0.0
    %v2429 = vand.u32 %v50, 4294901760
    %2430 = vmatpush1.msra.mxu0 %v2429
    %2431 = vmatprep.subr.mxu0 0.0
    %v2432 = vand.u32 %v51, 4294901760
    %2433 = vmatpush1.msra.mxu0 %v2432
    %2434 = vmatprep.subr.mxu0 0.0
    %v2435 = vand.u32 %v52, 4294901760
    %2436 = vmatpush1.msra.mxu0 %v2435
    %2437 = vmatprep.subr.mxu0 0.0
    %v2438 = vand.u32 %v53, 4294901760
    %2439 = vmatpush1.msra.mxu0 %v2438
    %2440 = vmatprep.subr.mxu0 0.0
    %v2441 = vand.u32 %v54, 4294901760
    %2442 = vmatpush1.msra.mxu0 %v2441
    %2443 = vmatprep.subr.mxu0 0.0
    %v2444 = vand.u32 %v55, 4294901760
    %2445 = vmatpush1.msra.mxu0 %v2444
    %2446 = vmatprep.subr.mxu0 0.0
    %v2447 = vand.u32 %v56, 4294901760
    %2448 = vmatpush1.msra.mxu0 %v2447
    %2449 = vmatprep.subr.mxu0 0.0
    %2450 = vmatpush1.msra.mxu0 0.0
    %2451 = vmatprep.subr.mxu0 0.0
    %2452 = vmatpush1.msra.mxu0 0.0
    %2453 = vmatprep.subr.mxu0 0.0
    %2454 = vmatpush1.msra.mxu0 0.0
    %2455 = vmatprep.subr.mxu0 0.0
    %2456 = vmatpush1.msra.mxu0 0.0
    %2457 = vmatprep.subr.mxu0 0.0
    %2458 = vmatpush1.msra.mxu0 0.0
    %2459 = vmatprep.subr.mxu0 0.0
    %2460 = vmatpush1.msra.mxu0 0.0
    %2461 = vmatprep.subr.mxu0 0.0
    %2462 = vmatpush1.msra.mxu0 0.0
    %2463 = vmatprep.subr.mxu0 0.0
    %2464 = vmatpush1.msra.mxu0 0.0
    %2465 = vmatprep.subr.mxu0 0.0
    %2466 = vmatpush1.msra.mxu0 0.0
    %2467 = vmatprep.subr.mxu0 0.0
    %2468 = vmatpush1.msra.mxu0 0.0
    %2469 = vmatprep.subr.mxu0 0.0
    %2470 = vmatpush1.msra.mxu0 0.0
    %2471 = vmatprep.subr.mxu0 0.0
    %2472 = vmatpush1.msra.mxu0 0.0
    %2473 = vmatprep.subr.mxu0 0.0
    %2474 = vmatpush1.msra.mxu0 0.0
    %2475 = vmatprep.subr.mxu0 0.0
    %2476 = vmatpush1.msra.mxu0 0.0
    %2477 = vmatprep.subr.mxu0 0.0
    %2478 = vmatpush1.msra.mxu0 0.0
    %2479 = vmatprep.subr.mxu0 0.0
    %2480 = vmatpush1.msra.mxu0 0.0
    %2481 = vmatprep.subr.mxu0 0.0
    %2482 = vmatpush1.msra.mxu0 0.0
    %2483 = vmatprep.subr.mxu0 0.0
    %2484 = vmatpush1.msra.mxu0 0.0
    %2485 = vmatprep.subr.mxu0 0.0
    %2486 = vmatpush1.msra.mxu0 0.0
    %2487 = vmatprep.subr.mxu0 0.0
    %2488 = vmatpush1.msra.mxu0 0.0
    %2489 = vmatprep.subr.mxu0 0.0
    %2490 = vmatpush1.msra.mxu0 0.0
    %2491 = vmatprep.subr.mxu0 0.0
    %2492 = vmatpush1.msra.mxu0 0.0
    %2493 = vmatprep.subr.mxu0 0.0
    %2494 = vmatpush1.msra.mxu0 0.0
    %2495 = vmatprep.subr.mxu0 0.0
    %2496 = vmatpush1.msra.mxu0 0.0
    %2497 = vmatprep.mubr.f32.mxu0 0.0
    %v2498 = vand.u32 %v1345, 4294901760
    %2499 = vmatmul.mubr.f32.gmra.mrb[0].mxu0 %v2498
    %v2500 = vpop.f32.mrb[0].mxu0
    %v2501 = vadd.f32 %v2416, %v2500
    %v2502 = vpop.f32.mrb[0].mxu0
    %2503 = vmatprep.mubr.f32.mxu0 0.0
    %v2504 = vand.u32 %v1348, 4294901760
    %2505 = vmatmul.mubr.f32.gmra.mrb[0].mxu0 %v2504
    %v2506 = vpop.f32.mrb[0].mxu0
    %v2507 = vadd.f32 %v2422, %v2506
    %v2508 = vpop.f32.mrb[0].mxu0
    %2509 = vdwg.mxu0
    %v2510 = vrcp.pop %v2501
    %v2511 = vmul.f32 %v1921, %v2510
    %v2512 = vrcp.pop %v2507
    %v2513 = vmul.f32 %v1927, %v2512
    %v2514 = vld [vmem:[#allocation2 + $0x8] sm:$0xff]
    %v2515 = vld [vmem:[#allocation2 + $0x40] sm:$0xff]
    %v2516 = vld [vmem:[#allocation2 + $0x78] sm:$0xff]
    %v2517 = vld [vmem:[#allocation2 + $0xb0] sm:$0xff]
    %v2518 = vld [vmem:[#allocation5 + $0x1] sm:$0x1]
    %v2519 = vlaneseq
    %v2520 = vshrl.u32 %v2519, 7
    %v2521 = vsub.s32 0, %v2520
    %v2522 = vrot.slane %v2518, %v2521
    %v2524 = vsel %vm66, %v2511, 0
    %v2527 = vsel %vm66, %v2513, 0
    %2529 = vmatprep.subr.mxu0 0.0
    %v2530 = vand.u32 %v2514, 4294901760
    %2531 = vmatpush1.msra.mxu0 %v2530
    %2532 = vmatprep.subr.mxu0 0.0
    %v2533 = vand.u32 %v2515, 4294901760
    %2534 = vmatpush1.msra.mxu0 %v2533
    %2535 = vmatprep.subr.mxu0 0.0
    %v2536 = vand.u32 %v2516, 4294901760
    %2537 = vmatpush1.msra.mxu0 %v2536
    %2538 = vmatprep.subr.mxu0 0.0
    %v2539 = vand.u32 %v2517, 4294901760
    %2540 = vmatpush1.msra.mxu0 %v2539
    %2541 = vmatprep.subr.mxu0 0.0
    %2542 = vmatpush1.msra.mxu0 0.0
    %2543 = vmatprep.subr.mxu0 0.0
    %2544 = vmatpush1.msra.mxu0 0.0
    %2545 = vmatprep.subr.mxu0 0.0
    %2546 = vmatpush1.msra.mxu0 0.0
    %2547 = vmatprep.subr.mxu0 0.0
    %2548 = vmatpush1.msra.mxu0 0.0
    %2549 = vmatprep.subr.mxu0 0.0
    %2550 = vmatpush1.msra.mxu0 0.0
    %2551 = vmatprep.subr.mxu0 0.0
    %2552 = vmatpush1.msra.mxu0 0.0
    %2553 = vmatprep.subr.mxu0 0.0
    %2554 = vmatpush1.msra.mxu0 0.0
    %2555 = vmatprep.subr.mxu0 0.0
    %2556 = vmatpush1.msra.mxu0 0.0
    %2557 = vmatprep.subr.mxu0 0.0
    %2558 = vmatpush1.msra.mxu0 0.0
    %2559 = vmatprep.subr.mxu0 0.0
    %2560 = vmatpush1.msra.mxu0 0.0
    %2561 = vmatprep.subr.mxu0 0.0
    %2562 = vmatpush1.msra.mxu0 0.0
    %2563 = vmatprep.subr.mxu0 0.0
    %2564 = vmatpush1.msra.mxu0 0.0
    %2565 = vmatprep.subr.mxu0 0.0
    %2566 = vmatpush1.msra.mxu0 0.0
    %2567 = vmatprep.subr.mxu0 0.0
    %2568 = vmatpush1.msra.mxu0 0.0
    %2569 = vmatprep.subr.mxu0 0.0
    %2570 = vmatpush1.msra.mxu0 0.0
    %2571 = vmatprep.subr.mxu0 0.0
    %2572 = vmatpush1.msra.mxu0 0.0
    %2573 = vmatprep.subr.mxu0 0.0
    %2574 = vmatpush1.msra.mxu0 0.0
    %2575 = vmatprep.subr.mxu0 0.0
    %2576 = vmatpush1.msra.mxu0 0.0
    %2577 = vmatprep.subr.mxu0 0.0
    %2578 = vmatpush1.msra.mxu0 0.0
    %2579 = vmatprep.subr.mxu0 0.0
    %2580 = vmatpush1.msra.mxu0 0.0
    %2581 = vmatprep.subr.mxu0 0.0
    %2582 = vmatpush1.msra.mxu0 0.0
    %2583 = vmatprep.subr.mxu0 0.0
    %2584 = vmatpush1.msra.mxu0 0.0
    %2585 = vmatprep.subr.mxu0 0.0
    %2586 = vmatpush1.msra.mxu0 0.0
    %2587 = vmatprep.subr.mxu0 0.0
    %2588 = vmatpush1.msra.mxu0 0.0
    %2589 = vmatprep.subr.mxu0 0.0
    %2590 = vmatpush1.msra.mxu0 0.0
    %2591 = vmatprep.subr.mxu0 0.0
    %2592 = vmatpush1.msra.mxu0 0.0
    %2593 = vmatprep.subr.mxu0 0.0
    %2594 = vmatpush1.msra.mxu0 0.0
    %2595 = vmatprep.subr.mxu0 0.0
    %2596 = vmatpush1.msra.mxu0 0.0
    %2597 = vmatprep.mubr.f32.mxu0 0.0
    %v2598 = vand.u32 %v2524, 4294901760
    %v2599 = vsub.f32 %v2524, %v2598
    %v2600 = vand.u32 %v2599, 4294901760
    %v2601 = vsub.f32 %v2599, %v2600
    %v2602 = vand.u32 %v2601, 4294901760
    %2603 = vmatmul.mubr.f32.gmra.mrb[0].mxu0 %v2602
    %v2604 = vpop.f32.mrb[0].mxu0
    %v2605 = vadd.f32 %v2522, %v2604
    %v2606 = vpop.f32.mrb[0].mxu0
    %2607 = vmatprep.mubr.f32.mxu0 0.0
    %v2608 = vand.u32 %v2527, 4294901760
    %v2609 = vsub.f32 %v2527, %v2608
    %v2610 = vand.u32 %v2609, 4294901760
    %v2611 = vsub.f32 %v2609, %v2610
    %v2612 = vand.u32 %v2611, 4294901760
    %2613 = vmatmul.mubr.f32.gmra.mrb[0].mxu0 %v2612
    %v2614 = vpop.f32.mrb[0].mxu0
    %v2615 = vadd.f32 %v2522, %v2614
    %v2616 = vpop.f32.mrb[0].mxu0
    %2617 = vdwg.mxu0
    %2618 = vmatprep.subr.mxu0 0.0
    %v2619 = vand.u32 %v2514, 4294901760
    %v2620 = vsub.f32 %v2514, %v2619
    %v2621 = vand.u32 %v2620, 4294901760
    %v2622 = vsub.f32 %v2620, %v2621
    %v2623 = vand.u32 %v2622, 4294901760
    %2624 = vmatpush1.msra.mxu0 %v2623
    %2625 = vmatprep.subr.mxu0 0.0
    %v2626 = vand.u32 %v2515, 4294901760
    %v2627 = vsub.f32 %v2515, %v2626
    %v2628 = vand.u32 %v2627, 4294901760
    %v2629 = vsub.f32 %v2627, %v2628
    %v2630 = vand.u32 %v2629, 4294901760
    %2631 = vmatpush1.msra.mxu0 %v2630
    %2632 = vmatprep.subr.mxu0 0.0
    %v2633 = vand.u32 %v2516, 4294901760
    %v2634 = vsub.f32 %v2516, %v2633
    %v2635 = vand.u32 %v2634, 4294901760
    %v2636 = vsub.f32 %v2634, %v2635
    %v2637 = vand.u32 %v2636, 4294901760
    %2638 = vmatpush1.msra.mxu0 %v2637
    %2639 = vmatprep.subr.mxu0 0.0
    %v2640 = vand.u32 %v2517, 4294901760
    %v2641 = vsub.f32 %v2517, %v2640
    %v2642 = vand.u32 %v2641, 4294901760
    %v2643 = vsub.f32 %v2641, %v2642
    %v2644 = vand.u32 %v2643, 4294901760
    %2645 = vmatpush1.msra.mxu0 %v2644
    %2646 = vmatprep.subr.mxu0 0.0
    %2647 = vmatpush1.msra.mxu0 0.0
    %2648 = vmatprep.subr.mxu0 0.0
    %2649 = vmatpush1.msra.mxu0 0.0
    %2650 = vmatprep.subr.mxu0 0.0
    %2651 = vmatpush1.msra.mxu0 0.0
    %2652 = vmatprep.subr.mxu0 0.0
    %2653 = vmatpush1.msra.mxu0 0.0
    %2654 = vmatprep.subr.mxu0 0.0
    %2655 = vmatpush1.msra.mxu0 0.0
    %2656 = vmatprep.subr.mxu0 0.0
    %2657 = vmatpush1.msra.mxu0 0.0
    %2658 = vmatprep.subr.mxu0 0.0
    %2659 = vmatpush1.msra.mxu0 0.0
    %2660 = vmatprep.subr.mxu0 0.0
    %2661 = vmatpush1.msra.mxu0 0.0
    %2662 = vmatprep.subr.mxu0 0.0
    %2663 = vmatpush1.msra.mxu0 0.0
    %2664 = vmatprep.subr.mxu0 0.0
    %2665 = vmatpush1.msra.mxu0 0.0
    %2666 = vmatprep.subr.mxu0 0.0
    %2667 = vmatpush1.msra.mxu0 0.0
    %2668 = vmatprep.subr.mxu0 0.0
    %2669 = vmatpush1.msra.mxu0 0.0
    %2670 = vmatprep.subr.mxu0 0.0
    %2671 = vmatpush1.msra.mxu0 0.0
    %2672 = vmatprep.subr.mxu0 0.0
    %2673 = vmatpush1.msra.mxu0 0.0
    %2674 = vmatprep.subr.mxu0 0.0
    %2675 = vmatpush1.msra.mxu0 0.0
    %2676 = vmatprep.subr.mxu0 0.0
    %2677 = vmatpush1.msra.mxu0 0.0
    %2678 = vmatprep.subr.mxu0 0.0
    %2679 = vmatpush1.msra.mxu0 0.0
    %2680 = vmatprep.subr.mxu0 0.0
    %2681 = vmatpush1.msra.mxu0 0.0
    %2682 = vmatprep.subr.mxu0 0.0
    %2683 = vmatpush1.msra.mxu0 0.0
    %2684 = vmatprep.subr.mxu0 0.0
    %2685 = vmatpush1.msra.mxu0 0.0
    %2686 = vmatprep.subr.mxu0 0.0
    %2687 = vmatpush1.msra.mxu0 0.0
    %2688 = vmatprep.subr.mxu0 0.0
    %2689 = vmatpush1.msra.mxu0 0.0
    %2690 = vmatprep.subr.mxu0 0.0
    %2691 = vmatpush1.msra.mxu0 0.0
    %2692 = vmatprep.subr.mxu0 0.0
    %2693 = vmatpush1.msra.mxu0 0.0
    %2694 = vmatprep.subr.mxu0 0.0
    %2695 = vmatpush1.msra.mxu0 0.0
    %2696 = vmatprep.subr.mxu0 0.0
    %2697 = vmatpush1.msra.mxu0 0.0
    %2698 = vmatprep.subr.mxu0 0.0
    %2699 = vmatpush1.msra.mxu0 0.0
    %2700 = vmatprep.subr.mxu0 0.0
    %2701 = vmatpush1.msra.mxu0 0.0
    %2702 = vmatprep.mubr.f32.mxu0 0.0
    %v2703 = vand.u32 %v2524, 4294901760
    %2704 = vmatmul.mubr.f32.gmra.mrb[0].mxu0 %v2703
    %v2705 = vpop.f32.mrb[0].mxu0
    %v2706 = vadd.f32 %v2605, %v2705
    %v2707 = vpop.f32.mrb[0].mxu0
    %2708 = vmatprep.mubr.f32.mxu0 0.0
    %v2709 = vand.u32 %v2527, 4294901760
    %2710 = vmatmul.mubr.f32.gmra.mrb[0].mxu0 %v2709
    %v2711 = vpop.f32.mrb[0].mxu0
    %v2712 = vadd.f32 %v2615, %v2711
    %v2713 = vpop.f32.mrb[0].mxu0
    %2714 = vdwg.mxu0
    %2715 = vmatprep.subr.mxu0 0.0
    %v2716 = vand.u32 %v2514, 4294901760
    %v2717 = vsub.f32 %v2514, %v2716
    %2718 = vmatpush1.msra.mxu0 %v2717
    %2719 = vmatprep.subr.mxu0 0.0
    %v2720 = vand.u32 %v2515, 4294901760
    %v2721 = vsub.f32 %v2515, %v2720
    %2722 = vmatpush1.msra.mxu0 %v2721
    %2723 = vmatprep.subr.mxu0 0.0
    %v2724 = vand.u32 %v2516, 4294901760
    %v2725 = vsub.f32 %v2516, %v2724
    %2726 = vmatpush1.msra.mxu0 %v2725
    %2727 = vmatprep.subr.mxu0 0.0
    %v2728 = vand.u32 %v2517, 4294901760
    %v2729 = vsub.f32 %v2517, %v2728
    %2730 = vmatpush1.msra.mxu0 %v2729
    %2731 = vmatprep.subr.mxu0 0.0
    %2732 = vmatpush1.msra.mxu0 0.0
    %2733 = vmatprep.subr.mxu0 0.0
    %2734 = vmatpush1.msra.mxu0 0.0
    %2735 = vmatprep.subr.mxu0 0.0
    %2736 = vmatpush1.msra.mxu0 0.0
    %2737 = vmatprep.subr.mxu0 0.0
    %2738 = vmatpush1.msra.mxu0 0.0
    %2739 = vmatprep.subr.mxu0 0.0
    %2740 = vmatpush1.msra.mxu0 0.0
    %2741 = vmatprep.subr.mxu0 0.0
    %2742 = vmatpush1.msra.mxu0 0.0
    %2743 = vmatprep.subr.mxu0 0.0
    %2744 = vmatpush1.msra.mxu0 0.0
    %2745 = vmatprep.subr.mxu0 0.0
    %2746 = vmatpush1.msra.mxu0 0.0
    %2747 = vmatprep.subr.mxu0 0.0
    %2748 = vmatpush1.msra.mxu0 0.0
    %2749 = vmatprep.subr.mxu0 0.0
    %2750 = vmatpush1.msra.mxu0 0.0
    %2751 = vmatprep.subr.mxu0 0.0
    %2752 = vmatpush1.msra.mxu0 0.0
    %2753 = vmatprep.subr.mxu0 0.0
    %2754 = vmatpush1.msra.mxu0 0.0
    %2755 = vmatprep.subr.mxu0 0.0
    %2756 = vmatpush1.msra.mxu0 0.0
    %2757 = vmatprep.subr.mxu0 0.0
    %2758 = vmatpush1.msra.mxu0 0.0
    %2759 = vmatprep.subr.mxu0 0.0
    %2760 = vmatpush1.msra.mxu0 0.0
    %2761 = vmatprep.subr.mxu0 0.0
    %2762 = vmatpush1.msra.mxu0 0.0
    %2763 = vmatprep.subr.mxu0 0.0
    %2764 = vmatpush1.msra.mxu0 0.0
    %2765 = vmatprep.subr.mxu0 0.0
    %2766 = vmatpush1.msra.mxu0 0.0
    %2767 = vmatprep.subr.mxu0 0.0
    %2768 = vmatpush1.msra.mxu0 0.0
    %2769 = vmatprep.subr.mxu0 0.0
    %2770 = vmatpush1.msra.mxu0 0.0
    %2771 = vmatprep.subr.mxu0 0.0
    %2772 = vmatpush1.msra.mxu0 0.0
    %2773 = vmatprep.subr.mxu0 0.0
    %2774 = vmatpush1.msra.mxu0 0.0
    %2775 = vmatprep.subr.mxu0 0.0
    %2776 = vmatpush1.msra.mxu0 0.0
    %2777 = vmatprep.subr.mxu0 0.0
    %2778 = vmatpush1.msra.mxu0 0.0
    %2779 = vmatprep.subr.mxu0 0.0
    %2780 = vmatpush1.msra.mxu0 0.0
    %2781 = vmatprep.subr.mxu0 0.0
    %2782 = vmatpush1.msra.mxu0 0.0
    %2783 = vmatprep.subr.mxu0 0.0
    %2784 = vmatpush1.msra.mxu0 0.0
    %2785 = vmatprep.subr.mxu0 0.0
    %2786 = vmatpush1.msra.mxu0 0.0
    %2787 = vmatprep.mubr.f32.mxu0 0.0
    %v2788 = vand.u32 %v2524, 4294901760
    %v2789 = vsub.f32 %v2524, %v2788
    %2790 = vmatmul.mubr.f32.gmra.mrb[0].mxu0 %v2789
    %v2791 = vpop.f32.mrb[0].mxu0
    %v2792 = vadd.f32 %v2706, %v2791
    %v2793 = vpop.f32.mrb[0].mxu0
    %2794 = vmatprep.mubr.f32.mxu0 0.0
    %v2795 = vand.u32 %v2527, 4294901760
    %v2796 = vsub.f32 %v2527, %v2795
    %2797 = vmatmul.mubr.f32.gmra.mrb[0].mxu0 %v2796
    %v2798 = vpop.f32.mrb[0].mxu0
    %v2799 = vadd.f32 %v2712, %v2798
    %v2800 = vpop.f32.mrb[0].mxu0
    %2801 = vdwg.mxu0
    %2802 = vmatprep.subr.mxu0 0.0
    %v2803 = vand.u32 %v2514, 4294901760
    %2804 = vmatpush1.msra.mxu0 %v2803
    %2805 = vmatprep.subr.mxu0 0.0
    %v2806 = vand.u32 %v2515, 4294901760
    %2807 = vmatpush1.msra.mxu0 %v2806
    %2808 = vmatprep.subr.mxu0 0.0
    %v2809 = vand.u32 %v2516, 4294901760
    %2810 = vmatpush1.msra.mxu0 %v2809
    %2811 = vmatprep.subr.mxu0 0.0
    %v2812 = vand.u32 %v2517, 4294901760
    %2813 = vmatpush1.msra.mxu0 %v2812
    %2814 = vmatprep.subr.mxu0 0.0
    %2815 = vmatpush1.msra.mxu0 0.0
    %2816 = vmatprep.subr.mxu0 0.0
    %2817 = vmatpush1.msra.mxu0 0.0
    %2818 = vmatprep.subr.mxu0 0.0
    %2819 = vmatpush1.msra.mxu0 0.0
    %2820 = vmatprep.subr.mxu0 0.0
    %2821 = vmatpush1.msra.mxu0 0.0
    %2822 = vmatprep.subr.mxu0 0.0
    %2823 = vmatpush1.msra.mxu0 0.0
    %2824 = vmatprep.subr.mxu0 0.0
    %2825 = vmatpush1.msra.mxu0 0.0
    %2826 = vmatprep.subr.mxu0 0.0
    %2827 = vmatpush1.msra.mxu0 0.0
    %2828 = vmatprep.subr.mxu0 0.0
    %2829 = vmatpush1.msra.mxu0 0.0
    %2830 = vmatprep.subr.mxu0 0.0
    %2831 = vmatpush1.msra.mxu0 0.0
    %2832 = vmatprep.subr.mxu0 0.0
    %2833 = vmatpush1.msra.mxu0 0.0
    %2834 = vmatprep.subr.mxu0 0.0
    %2835 = vmatpush1.msra.mxu0 0.0
    %2836 = vmatprep.subr.mxu0 0.0
    %2837 = vmatpush1.msra.mxu0 0.0
    %2838 = vmatprep.subr.mxu0 0.0
    %2839 = vmatpush1.msra.mxu0 0.0
    %2840 = vmatprep.subr.mxu0 0.0
    %2841 = vmatpush1.msra.mxu0 0.0
    %2842 = vmatprep.subr.mxu0 0.0
    %2843 = vmatpush1.msra.mxu0 0.0
    %2844 = vmatprep.subr.mxu0 0.0
    %2845 = vmatpush1.msra.mxu0 0.0
    %2846 = vmatprep.subr.mxu0 0.0
    %2847 = vmatpush1.msra.mxu0 0.0
    %2848 = vmatprep.subr.mxu0 0.0
    %2849 = vmatpush1.msra.mxu0 0.0
    %2850 = vmatprep.subr.mxu0 0.0
    %2851 = vmatpush1.msra.mxu0 0.0
    %2852 = vmatprep.subr.mxu0 0.0
    %2853 = vmatpush1.msra.mxu0 0.0
    %2854 = vmatprep.subr.mxu0 0.0
    %2855 = vmatpush1.msra.mxu0 0.0
    %2856 = vmatprep.subr.mxu0 0.0
    %2857 = vmatpush1.msra.mxu0 0.0
    %2858 = vmatprep.subr.mxu0 0.0
    %2859 = vmatpush1.msra.mxu0 0.0
    %2860 = vmatprep.subr.mxu0 0.0
    %2861 = vmatpush1.msra.mxu0 0.0
    %2862 = vmatprep.subr.mxu0 0.0
    %2863 = vmatpush1.msra.mxu0 0.0
    %2864 = vmatprep.subr.mxu0 0.0
    %2865 = vmatpush1.msra.mxu0 0.0
    %2866 = vmatprep.subr.mxu0 0.0
    %2867 = vmatpush1.msra.mxu0 0.0
    %2868 = vmatprep.subr.mxu0 0.0
    %2869 = vmatpush1.msra.mxu0 0.0
    %2870 = vmatprep.mubr.f32.mxu0 0.0
    %v2871 = vand.u32 %v2524, 4294901760
    %v2872 = vsub.f32 %v2524, %v2871
    %v2873 = vand.u32 %v2872, 4294901760
    %2874 = vmatmul.mubr.f32.gmra.mrb[0].mxu0 %v2873
    %v2875 = vpop.f32.mrb[0].mxu0
    %v2876 = vadd.f32 %v2792, %v2875
    %v2877 = vpop.f32.mrb[0].mxu0
    %2878 = vmatprep.mubr.f32.mxu0 0.0
    %v2879 = vand.u32 %v2527, 4294901760
    %v2880 = vsub.f32 %v2527, %v2879
    %v2881 = vand.u32 %v2880, 4294901760
    %2882 = vmatmul.mubr.f32.gmra.mrb[0].mxu0 %v2881
    %v2883 = vpop.f32.mrb[0].mxu0
    %v2884 = vadd.f32 %v2799, %v2883
    %v2885 = vpop.f32.mrb[0].mxu0
    %2886 = vdwg.mxu0
    %2887 = vmatprep.subr.mxu0 0.0
    %v2888 = vand.u32 %v2514, 4294901760
    %v2889 = vsub.f32 %v2514, %v2888
    %v2890 = vand.u32 %v2889, 4294901760
    %2891 = vmatpush1.msra.mxu0 %v2890
    %2892 = vmatprep.subr.mxu0 0.0
    %v2893 = vand.u32 %v2515, 4294901760
    %v2894 = vsub.f32 %v2515, %v2893
    %v2895 = vand.u32 %v2894, 4294901760
    %2896 = vmatpush1.msra.mxu0 %v2895
    %2897 = vmatprep.subr.mxu0 0.0
    %v2898 = vand.u32 %v2516, 4294901760
    %v2899 = vsub.f32 %v2516, %v2898
    %v2900 = vand.u32 %v2899, 4294901760
    %2901 = vmatpush1.msra.mxu0 %v2900
    %2902 = vmatprep.subr.mxu0 0.0
    %v2903 = vand.u32 %v2517, 4294901760
    %v2904 = vsub.f32 %v2517, %v2903
    %v2905 = vand.u32 %v2904, 4294901760
    %2906 = vmatpush1.msra.mxu0 %v2905
    %2907 = vmatprep.subr.mxu0 0.0
    %2908 = vmatpush1.msra.mxu0 0.0
    %2909 = vmatprep.subr.mxu0 0.0
    %2910 = vmatpush1.msra.mxu0 0.0
    %2911 = vmatprep.subr.mxu0 0.0
    %2912 = vmatpush1.msra.mxu0 0.0
    %2913 = vmatprep.subr.mxu0 0.0
    %2914 = vmatpush1.msra.mxu0 0.0
    %2915 = vmatprep.subr.mxu0 0.0
    %2916 = vmatpush1.msra.mxu0 0.0
    %2917 = vmatprep.subr.mxu0 0.0
    %2918 = vmatpush1.msra.mxu0 0.0
    %2919 = vmatprep.subr.mxu0 0.0
    %2920 = vmatpush1.msra.mxu0 0.0
    %2921 = vmatprep.subr.mxu0 0.0
    %2922 = vmatpush1.msra.mxu0 0.0
    %2923 = vmatprep.subr.mxu0 0.0
    %2924 = vmatpush1.msra.mxu0 0.0
    %2925 = vmatprep.subr.mxu0 0.0
    %2926 = vmatpush1.msra.mxu0 0.0
    %2927 = vmatprep.subr.mxu0 0.0
    %2928 = vmatpush1.msra.mxu0 0.0
    %2929 = vmatprep.subr.mxu0 0.0
    %2930 = vmatpush1.msra.mxu0 0.0
    %2931 = vmatprep.subr.mxu0 0.0
    %2932 = vmatpush1.msra.mxu0 0.0
    %2933 = vmatprep.subr.mxu0 0.0
    %2934 = vmatpush1.msra.mxu0 0.0
    %2935 = vmatprep.subr.mxu0 0.0
    %2936 = vmatpush1.msra.mxu0 0.0
    %2937 = vmatprep.subr.mxu0 0.0
    %2938 = vmatpush1.msra.mxu0 0.0
    %2939 = vmatprep.subr.mxu0 0.0
    %2940 = vmatpush1.msra.mxu0 0.0
    %2941 = vmatprep.subr.mxu0 0.0
    %2942 = vmatpush1.msra.mxu0 0.0
    %2943 = vmatprep.subr.mxu0 0.0
    %2944 = vmatpush1.msra.mxu0 0.0
    %2945 = vmatprep.subr.mxu0 0.0
    %2946 = vmatpush1.msra.mxu0 0.0
    %2947 = vmatprep.subr.mxu0 0.0
    %2948 = vmatpush1.msra.mxu0 0.0
    %2949 = vmatprep.subr.mxu0 0.0
    %2950 = vmatpush1.msra.mxu0 0.0
    %2951 = vmatprep.subr.mxu0 0.0
    %2952 = vmatpush1.msra.mxu0 0.0
    %2953 = vmatprep.subr.mxu0 0.0
    %2954 = vmatpush1.msra.mxu0 0.0
    %2955 = vmatprep.subr.mxu0 0.0
    %2956 = vmatpush1.msra.mxu0 0.0
    %2957 = vmatprep.subr.mxu0 0.0
    %2958 = vmatpush1.msra.mxu0 0.0
    %2959 = vmatprep.subr.mxu0 0.0
    %2960 = vmatpush1.msra.mxu0 0.0
    %2961 = vmatprep.subr.mxu0 0.0
    %2962 = vmatpush1.msra.mxu0 0.0
    %2963 = vmatprep.mubr.f32.mxu0 0.0
    %v2964 = vand.u32 %v2524, 4294901760
    %2965 = vmatmul.mubr.f32.gmra.mrb[0].mxu0 %v2964
    %v2966 = vpop.f32.mrb[0].mxu0
    %v2967 = vadd.f32 %v2876, %v2966
    %v2968 = vpop.f32.mrb[0].mxu0
    %2969 = vmatprep.mubr.f32.mxu0 0.0
    %v2970 = vand.u32 %v2527, 4294901760
    %2971 = vmatmul.mubr.f32.gmra.mrb[0].mxu0 %v2970
    %v2972 = vpop.f32.mrb[0].mxu0
    %v2973 = vadd.f32 %v2884, %v2972
    %v2974 = vpop.f32.mrb[0].mxu0
    %2975 = vdwg.mxu0
    %2976 = vmatprep.subr.mxu0 0.0
    %v2977 = vand.u32 %v2514, 4294901760
    %2978 = vmatpush1.msra.mxu0 %v2977
    %2979 = vmatprep.subr.mxu0 0.0
    %v2980 = vand.u32 %v2515, 4294901760
    %2981 = vmatpush1.msra.mxu0 %v2980
    %2982 = vmatprep.subr.mxu0 0.0
    %v2983 = vand.u32 %v2516, 4294901760
    %2984 = vmatpush1.msra.mxu0 %v2983
    %2985 = vmatprep.subr.mxu0 0.0
    %v2986 = vand.u32 %v2517, 4294901760
    %2987 = vmatpush1.msra.mxu0 %v2986
    %2988 = vmatprep.subr.mxu0 0.0
    %2989 = vmatpush1.msra.mxu0 0.0
    %2990 = vmatprep.subr.mxu0 0.0
    %2991 = vmatpush1.msra.mxu0 0.0
    %2992 = vmatprep.subr.mxu0 0.0
    %2993 = vmatpush1.msra.mxu0 0.0
    %2994 = vmatprep.subr.mxu0 0.0
    %2995 = vmatpush1.msra.mxu0 0.0
    %2996 = vmatprep.subr.mxu0 0.0
    %2997 = vmatpush1.msra.mxu0 0.0
    %2998 = vmatprep.subr.mxu0 0.0
    %2999 = vmatpush1.msra.mxu0 0.0
    %3000 = vmatprep.subr.mxu0 0.0
    %3001 = vmatpush1.msra.mxu0 0.0
    %3002 = vmatprep.subr.mxu0 0.0
    %3003 = vmatpush1.msra.mxu0 0.0
    %3004 = vmatprep.subr.mxu0 0.0
    %3005 = vmatpush1.msra.mxu0 0.0
    %3006 = vmatprep.subr.mxu0 0.0
    %3007 = vmatpush1.msra.mxu0 0.0
    %3008 = vmatprep.subr.mxu0 0.0
    %3009 = vmatpush1.msra.mxu0 0.0
    %3010 = vmatprep.subr.mxu0 0.0
    %3011 = vmatpush1.msra.mxu0 0.0
    %3012 = vmatprep.subr.mxu0 0.0
    %3013 = vmatpush1.msra.mxu0 0.0
    %3014 = vmatprep.subr.mxu0 0.0
    %3015 = vmatpush1.msra.mxu0 0.0
    %3016 = vmatprep.subr.mxu0 0.0
    %3017 = vmatpush1.msra.mxu0 0.0
    %3018 = vmatprep.subr.mxu0 0.0
    %3019 = vmatpush1.msra.mxu0 0.0
    %3020 = vmatprep.subr.mxu0 0.0
    %3021 = vmatpush1.msra.mxu0 0.0
    %3022 = vmatprep.subr.mxu0 0.0
    %3023 = vmatpush1.msra.mxu0 0.0
    %3024 = vmatprep.subr.mxu0 0.0
    %3025 = vmatpush1.msra.mxu0 0.0
    %3026 = vmatprep.subr.mxu0 0.0
    %3027 = vmatpush1.msra.mxu0 0.0
    %3028 = vmatprep.subr.mxu0 0.0
    %3029 = vmatpush1.msra.mxu0 0.0
    %3030 = vmatprep.subr.mxu0 0.0
    %3031 = vmatpush1.msra.mxu0 0.0
    %3032 = vmatprep.subr.mxu0 0.0
    %3033 = vmatpush1.msra.mxu0 0.0
    %3034 = vmatprep.subr.mxu0 0.0
    %3035 = vmatpush1.msra.mxu0 0.0
    %3036 = vmatprep.subr.mxu0 0.0
    %3037 = vmatpush1.msra.mxu0 0.0
    %3038 = vmatprep.subr.mxu0 0.0
    %3039 = vmatpush1.msra.mxu0 0.0
    %3040 = vmatprep.subr.mxu0 0.0
    %3041 = vmatpush1.msra.mxu0 0.0
    %3042 = vmatprep.subr.mxu0 0.0
    %3043 = vmatpush1.msra.mxu0 0.0
    %3044 = vmatprep.mubr.f32.mxu0 0.0
    %v3045 = vand.u32 %v2524, 4294901760
    %3046 = vmatmul.mubr.f32.gmra.mrb[0].mxu0 %v3045
    %v3047 = vpop.f32.mrb[0].mxu0
    %v3048 = vadd.f32 %v2967, %v3047
    %v3049 = vpop.f32.mrb[0].mxu0
    %3050 = vmatprep.mubr.f32.mxu0 0.0
    %v3051 = vand.u32 %v2527, 4294901760
    %3052 = vmatmul.mubr.f32.gmra.mrb[0].mxu0 %v3051
    %v3053 = vpop.f32.mrb[0].mxu0
    %v3054 = vadd.f32 %v2973, %v3053
    %v3055 = vpop.f32.mrb[0].mxu0
    %3056 = vdwg.mxu0
    %v3057 = vadd.f32 %v43, %v3048
    %v3058 = vadd.f32 %v44, %v3054
    %v3059 = vsel %vm66, %v3057, 0.0
    %3060 = vadd.xlane.f32.xlu0 %v3059
    %v3061 = vpop.xlane.xlu0 %3060
    %v3062 = vsel %vm66, %v3058, 0.0
    %3063 = vadd.xlane.f32.xlu0 %v3062
    %v3064 = vpop.xlane.xlu0 %3063
    %v3065 = vrcp.pop 32.0
    %v3066 = vmul.f32 %v3061, %v3065
    %v3067 = vmul.f32 %v3064, %v3065
    %v3068 = vsub.f32 %v3057, %v3066
    %v3069 = vsub.f32 %v3058, %v3067
    %v3070 = vmul.f32 %v3068, %v3068
    %v3071 = vmul.f32 %v3069, %v3069
    %v3072 = vsel %vm66, %v3070, 0.0
    %3073 = vadd.xlane.f32.xlu0 %v3072
    %v3074 = vpop.xlane.xlu0 %3073
    %v3075 = vsel %vm66, %v3071, 0.0
    %3076 = vadd.xlane.f32.xlu0 %v3075
    %v3077 = vpop.xlane.xlu0 %3076
    %v3078 = vmul.f32 %v3074, %v3065
    %v3079 = vmul.f32 %v3077, %v3065
    %v3080 = vadd.f32 %v3078, 1e-05
    %v3081 = vadd.f32 %v3079, 1e-05
    %v3082 = vrsqrt.pop %v3080
    %v3083 = vrsqrt.pop %v3081
    %v3084 = vmul.f32 %v3068, %v3082
    %v3085 = vmul.f32 %v3069, %v3083
    %v3086 = vld [vmem:[#allocation5 + $0x2] sm:$0x1]
    %v3087 = vlaneseq
    %v3088 = vshrl.u32 %v3087, 7
    %v3089 = vsub.s32 0, %v3088
    %v3090 = vrot.slane %v3086, %v3089
    %v3091 = vmul.f32 %v3084, %v3090
    %v3092 = vmul.f32 %v3085, %v3090
    %v3093 = vld [vmem:[#allocation5 + $0x3] sm:$0x1]
    %v3094 = vlaneseq
    %v3095 = vshrl.u32 %v3094, 7
    %v3096 = vsub.s32 0, %v3095
    %v3097 = vrot.slane %v3093, %v3096
    %v3098 = vadd.f32 %v3091, %v3097
    %v3099 = vadd.f32 %v3092, %v3097
    %v3100 = vld [vmem:[#allocation2 + $0x10] sm:$0xff]
    %v3101 = vld [vmem:[#allocation2 + $0x48] sm:$0xff]
    %v3102 = vld [vmem:[#allocation2 + $0x80] sm:$0xff]
    %v3103 = vld [vmem:[#allocation2 + $0xb8] sm:$0xff]
    %v3104 = vld [vmem:[#allocation5 + $0x4] sm:$0x1]
    %v3105 = vlaneseq
    %v3106 = vshrl.u32 %v3105, 7
    %v3107 = vsub.s32 0, %v3106
    %v3108 = vrot.slane %v3104, %v3107
    %v3110 = vsel %vm66, %v3098, 0
    %v3113 = vsel %vm66, %v3099, 0
    %3115 = vmatprep.subr.mxu0 0.0
    %v3116 = vand.u32 %v3100, 4294901760
    %3117 = vmatpush1.msra.mxu0 %v3116
    %3118 = vmatprep.subr.mxu0 0.0
    %v3119 = vand.u32 %v3101, 4294901760
    %3120 = vmatpush1.msra.mxu0 %v3119
    %3121 = vmatprep.subr.mxu0 0.0
    %v3122 = vand.u32 %v3102, 4294901760
    %3123 = vmatpush1.msra.mxu0 %v3122
    %3124 = vmatprep.subr.mxu0 0.0
    %v3125 = vand.u32 %v3103, 4294901760
    %3126 = vmatpush1.msra.mxu0 %v3125
    %3127 = vmatprep.subr.mxu0 0.0
    %3128 = vmatpush1.msra.mxu0 0.0
    %3129 = vmatprep.subr.mxu0 0.0
    %3130 = vmatpush1.msra.mxu0 0.0
    %3131 = vmatprep.subr.mxu0 0.0
    %3132 = vmatpush1.msra.mxu0 0.0
    %3133 = vmatprep.subr.mxu0 0.0
    %3134 = vmatpush1.msra.mxu0 0.0
    %3135 = vmatprep.subr.mxu0 0.0
    %3136 = vmatpush1.msra.mxu0 0.0
    %3137 = vmatprep.subr.mxu0 0.0
    %3138 = vmatpush1.msra.mxu0 0.0
    %3139 = vmatprep.subr.mxu0 0.0
    %3140 = vmatpush1.msra.mxu0 0.0
    %3141 = vmatprep.subr.mxu0 0.0
    %3142 = vmatpush1.msra.mxu0 0.0
    %3143 = vmatprep.subr.mxu0 0.0
    %3144 = vmatpush1.msra.mxu0 0.0
    %3145 = vmatprep.subr.mxu0 0.0
    %3146 = vmatpush1.msra.mxu0 0.0
    %3147 = vmatprep.subr.mxu0 0.0
    %3148 = vmatpush1.msra.mxu0 0.0
    %3149 = vmatprep.subr.mxu0 0.0
    %3150 = vmatpush1.msra.mxu0 0.0
    %3151 = vmatprep.subr.mxu0 0.0
    %3152 = vmatpush1.msra.mxu0 0.0
    %3153 = vmatprep.subr.mxu0 0.0
    %3154 = vmatpush1.msra.mxu0 0.0
    %3155 = vmatprep.subr.mxu0 0.0
    %3156 = vmatpush1.msra.mxu0 0.0
    %3157 = vmatprep.subr.mxu0 0.0
    %3158 = vmatpush1.msra.mxu0 0.0
    %3159 = vmatprep.subr.mxu0 0.0
    %3160 = vmatpush1.msra.mxu0 0.0
    %3161 = vmatprep.subr.mxu0 0.0
    %3162 = vmatpush1.msra.mxu0 0.0
    %3163 = vmatprep.subr.mxu0 0.0
    %3164 = vmatpush1.msra.mxu0 0.0
    %3165 = vmatprep.subr.mxu0 0.0
    %3166 = vmatpush1.msra.mxu0 0.0
    %3167 = vmatprep.subr.mxu0 0.0
    %3168 = vmatpush1.msra.mxu0 0.0
    %3169 = vmatprep.subr.mxu0 0.0
    %3170 = vmatpush1.msra.mxu0 0.0
    %3171 = vmatprep.subr.mxu0 0.0
    %3172 = vmatpush1.msra.mxu0 0.0
    %3173 = vmatprep.subr.mxu0 0.0
    %3174 = vmatpush1.msra.mxu0 0.0
    %3175 = vmatprep.subr.mxu0 0.0
    %3176 = vmatpush1.msra.mxu0 0.0
    %3177 = vmatprep.subr.mxu0 0.0
    %3178 = vmatpush1.msra.mxu0 0.0
    %3179 = vmatprep.subr.mxu0 0.0
    %3180 = vmatpush1.msra.mxu0 0.0
    %3181 = vmatprep.subr.mxu0 0.0
    %3182 = vmatpush1.msra.mxu0 0.0
    %3183 = vmatprep.mubr.f32.mxu0 0.0
    %v3184 = vand.u32 %v3110, 4294901760
    %v3185 = vsub.f32 %v3110, %v3184
    %v3186 = vand.u32 %v3185, 4294901760
    %v3187 = vsub.f32 %v3185, %v3186
    %v3188 = vand.u32 %v3187, 4294901760
    %3189 = vmatmul.mubr.f32.gmra.mrb[0].mxu0 %v3188
    %v3190 = vpop.f32.mrb[0].mxu0
    %v3191 = vadd.f32 %v3108, %v3190
    %v3192 = vpop.f32.mrb[0].mxu0
    %3193 = vmatprep.mubr.f32.mxu0 0.0
    %v3194 = vand.u32 %v3113, 4294901760
    %v3195 = vsub.f32 %v3113, %v3194
    %v3196 = vand.u32 %v3195, 4294901760
    %v3197 = vsub.f32 %v3195, %v3196
    %v3198 = vand.u32 %v3197, 4294901760
    %3199 = vmatmul.mubr.f32.gmra.mrb[0].mxu0 %v3198
    %v3200 = vpop.f32.mrb[0].mxu0
    %v3201 = vadd.f32 %v3108, %v3200
    %v3202 = vpop.f32.mrb[0].mxu0
    %3203 = vdwg.mxu0
    %3204 = vmatprep.subr.mxu0 0.0
    %v3205 = vand.u32 %v3100, 4294901760
    %v3206 = vsub.f32 %v3100, %v3205
    %v3207 = vand.u32 %v3206, 4294901760
    %v3208 = vsub.f32 %v3206, %v3207
    %v3209 = vand.u32 %v3208, 4294901760
    %3210 = vmatpush1.msra.mxu0 %v3209
    %3211 = vmatprep.subr.mxu0 0.0
    %v3212 = vand.u32 %v3101, 4294901760
    %v3213 = vsub.f32 %v3101, %v3212
    %v3214 = vand.u32 %v3213, 4294901760
    %v3215 = vsub.f32 %v3213, %v3214
    %v3216 = vand.u32 %v3215, 4294901760
    %3217 = vmatpush1.msra.mxu0 %v3216
    %3218 = vmatprep.subr.mxu0 0.0
    %v3219 = vand.u32 %v3102, 4294901760
    %v3220 = vsub.f32 %v3102, %v3219
    %v3221 = vand.u32 %v3220, 4294901760
    %v3222 = vsub.f32 %v3220, %v3221
    %v3223 = vand.u32 %v3222, 4294901760
    %3224 = vmatpush1.msra.mxu0 %v3223
    %3225 = vmatprep.subr.mxu0 0.0
    %v3226 = vand.u32 %v3103, 4294901760
    %v3227 = vsub.f32 %v3103, %v3226
    %v3228 = vand.u32 %v3227, 4294901760
    %v3229 = vsub.f32 %v3227, %v3228
    %v3230 = vand.u32 %v3229, 4294901760
    %3231 = vmatpush1.msra.mxu0 %v3230
    %3232 = vmatprep.subr.mxu0 0.0
    %3233 = vmatpush1.msra.mxu0 0.0
    %3234 = vmatprep.subr.mxu0 0.0
    %3235 = vmatpush1.msra.mxu0 0.0
    %3236 = vmatprep.subr.mxu0 0.0
    %3237 = vmatpush1.msra.mxu0 0.0
    %3238 = vmatprep.subr.mxu0 0.0
    %3239 = vmatpush1.msra.mxu0 0.0
    %3240 = vmatprep.subr.mxu0 0.0
    %3241 = vmatpush1.msra.mxu0 0.0
    %3242 = vmatprep.subr.mxu0 0.0
    %3243 = vmatpush1.msra.mxu0 0.0
    %3244 = vmatprep.subr.mxu0 0.0
    %3245 = vmatpush1.msra.mxu0 0.0
    %3246 = vmatprep.subr.mxu0 0.0
    %3247 = vmatpush1.msra.mxu0 0.0
    %3248 = vmatprep.subr.mxu0 0.0
    %3249 = vmatpush1.msra.mxu0 0.0
    %3250 = vmatprep.subr.mxu0 0.0
    %3251 = vmatpush1.msra.mxu0 0.0
    %3252 = vmatprep.subr.mxu0 0.0
    %3253 = vmatpush1.msra.mxu0 0.0
    %3254 = vmatprep.subr.mxu0 0.0
    %3255 = vmatpush1.msra.mxu0 0.0
    %3256 = vmatprep.subr.mxu0 0.0
    %3257 = vmatpush1.msra.mxu0 0.0
    %3258 = vmatprep.subr.mxu0 0.0
    %3259 = vmatpush1.msra.mxu0 0.0
    %3260 = vmatprep.subr.mxu0 0.0
    %3261 = vmatpush1.msra.mxu0 0.0
    %3262 = vmatprep.subr.mxu0 0.0
    %3263 = vmatpush1.msra.mxu0 0.0
    %3264 = vmatprep.subr.mxu0 0.0
    %3265 = vmatpush1.msra.mxu0 0.0
    %3266 = vmatprep.subr.mxu0 0.0
    %3267 = vmatpush1.msra.mxu0 0.0
    %3268 = vmatprep.subr.mxu0 0.0
    %3269 = vmatpush1.msra.mxu0 0.0
    %3270 = vmatprep.subr.mxu0 0.0
    %3271 = vmatpush1.msra.mxu0 0.0
    %3272 = vmatprep.subr.mxu0 0.0
    %3273 = vmatpush1.msra.mxu0 0.0
    %3274 = vmatprep.subr.mxu0 0.0
    %3275 = vmatpush1.msra.mxu0 0.0
    %3276 = vmatprep.subr.mxu0 0.0
    %3277 = vmatpush1.msra.mxu0 0.0
    %3278 = vmatprep.subr.mxu0 0.0
    %3279 = vmatpush1.msra.mxu0 0.0
    %3280 = vmatprep.subr.mxu0 0.0
    %3281 = vmatpush1.msra.mxu0 0.0
    %3282 = vmatprep.subr.mxu0 0.0
    %3283 = vmatpush1.msra.mxu0 0.0
    %3284 = vmatprep.subr.mxu0 0.0
    %3285 = vmatpush1.msra.mxu0 0.0
    %3286 = vmatprep.subr.mxu0 0.0
    %3287 = vmatpush1.msra.mxu0 0.0
    %3288 = vmatprep.mubr.f32.mxu0 0.0
    %v3289 = vand.u32 %v3110, 4294901760
    %3290 = vmatmul.mubr.f32.gmra.mrb[0].mxu0 %v3289
    %v3291 = vpop.f32.mrb[0].mxu0
    %v3292 = vadd.f32 %v3191, %v3291
    %v3293 = vpop.f32.mrb[0].mxu0
    %3294 = vmatprep.mubr.f32.mxu0 0.0
    %v3295 = vand.u32 %v3113, 4294901760
    %3296 = vmatmul.mubr.f32.gmra.mrb[0].mxu0 %v3295
    %v3297 = vpop.f32.mrb[0].mxu0
    %v3298 = vadd.f32 %v3201, %v3297
    %v3299 = vpop.f32.mrb[0].mxu0
    %3300 = vdwg.mxu0
    %3301 = vmatprep.subr.mxu0 0.0
    %v3302 = vand.u32 %v3100, 4294901760
    %v3303 = vsub.f32 %v3100, %v3302
    %3304 = vmatpush1.msra.mxu0 %v3303
    %3305 = vmatprep.subr.mxu0 0.0
    %v3306 = vand.u32 %v3101, 4294901760
    %v3307 = vsub.f32 %v3101, %v3306
    %3308 = vmatpush1.msra.mxu0 %v3307
    %3309 = vmatprep.subr.mxu0 0.0
    %v3310 = vand.u32 %v3102, 4294901760
    %v3311 = vsub.f32 %v3102, %v3310
    %3312 = vmatpush1.msra.mxu0 %v3311
    %3313 = vmatprep.subr.mxu0 0.0
    %v3314 = vand.u32 %v3103, 4294901760
    %v3315 = vsub.f32 %v3103, %v3314
    %3316 = vmatpush1.msra.mxu0 %v3315
    %3317 = vmatprep.subr.mxu0 0.0
    %3318 = vmatpush1.msra.mxu0 0.0
    %3319 = vmatprep.subr.mxu0 0.0
    %3320 = vmatpush1.msra.mxu0 0.0
    %3321 = vmatprep.subr.mxu0 0.0
    %3322 = vmatpush1.msra.mxu0 0.0
    %3323 = vmatprep.subr.mxu0 0.0
    %3324 = vmatpush1.msra.mxu0 0.0
    %3325 = vmatprep.subr.mxu0 0.0
    %3326 = vmatpush1.msra.mxu0 0.0
    %3327 = vmatprep.subr.mxu0 0.0
    %3328 = vmatpush1.msra.mxu0 0.0
    %3329 = vmatprep.subr.mxu0 0.0
    %3330 = vmatpush1.msra.mxu0 0.0
    %3331 = vmatprep.subr.mxu0 0.0
    %3332 = vmatpush1.msra.mxu0 0.0
    %3333 = vmatprep.subr.mxu0 0.0
    %3334 = vmatpush1.msra.mxu0 0.0
    %3335 = vmatprep.subr.mxu0 0.0
    %3336 = vmatpush1.msra.mxu0 0.0
    %3337 = vmatprep.subr.mxu0 0.0
    %3338 = vmatpush1.msra.mxu0 0.0
    %3339 = vmatprep.subr.mxu0 0.0
    %3340 = vmatpush1.msra.mxu0 0.0
    %3341 = vmatprep.subr.mxu0 0.0
    %3342 = vmatpush1.msra.mxu0 0.0
    %3343 = vmatprep.subr.mxu0 0.0
    %3344 = vmatpush1.msra.mxu0 0.0
    %3345 = vmatprep.subr.mxu0 0.0
    %3346 = vmatpush1.msra.mxu0 0.0
    %3347 = vmatprep.subr.mxu0 0.0
    %3348 = vmatpush1.msra.mxu0 0.0
    %3349 = vmatprep.subr.mxu0 0.0
    %3350 = vmatpush1.msra.mxu0 0.0
    %3351 = vmatprep.subr.mxu0 0.0
    %3352 = vmatpush1.msra.mxu0 0.0
    %3353 = vmatprep.subr.mxu0 0.0
    %3354 = vmatpush1.msra.mxu0 0.0
    %3355 = vmatprep.subr.mxu0 0.0
    %3356 = vmatpush1.msra.mxu0 0.0
    %3357 = vmatprep.subr.mxu0 0.0
    %3358 = vmatpush1.msra.mxu0 0.0
    %3359 = vmatprep.subr.mxu0 0.0
    %3360 = vmatpush1.msra.mxu0 0.0
    %3361 = vmatprep.subr.mxu0 0.0
    %3362 = vmatpush1.msra.mxu0 0.0
    %3363 = vmatprep.subr.mxu0 0.0
    %3364 = vmatpush1.msra.mxu0 0.0
    %3365 = vmatprep.subr.mxu0 0.0
    %3366 = vmatpush1.msra.mxu0 0.0
    %3367 = vmatprep.subr.mxu0 0.0
    %3368 = vmatpush1.msra.mxu0 0.0
    %3369 = vmatprep.subr.mxu0 0.0
    %3370 = vmatpush1.msra.mxu0 0.0
    %3371 = vmatprep.subr.mxu0 0.0
    %3372 = vmatpush1.msra.mxu0 0.0
    %3373 = vmatprep.mubr.f32.mxu0 0.0
    %v3374 = vand.u32 %v3110, 4294901760
    %v3375 = vsub.f32 %v3110, %v3374
    %3376 = vmatmul.mubr.f32.gmra.mrb[0].mxu0 %v3375
    %v3377 = vpop.f32.mrb[0].mxu0
    %v3378 = vadd.f32 %v3292, %v3377
    %v3379 = vpop.f32.mrb[0].mxu0
    %3380 = vmatprep.mubr.f32.mxu0 0.0
    %v3381 = vand.u32 %v3113, 4294901760
    %v3382 = vsub.f32 %v3113, %v3381
    %3383 = vmatmul.mubr.f32.gmra.mrb[0].mxu0 %v3382
    %v3384 = vpop.f32.mrb[0].mxu0
    %v3385 = vadd.f32 %v3298, %v3384
    %v3386 = vpop.f32.mrb[0].mxu0
    %3387 = vdwg.mxu0
    %3388 = vmatprep.subr.mxu0 0.0
    %v3389 = vand.u32 %v3100, 4294901760
    %3390 = vmatpush1.msra.mxu0 %v3389
    %3391 = vmatprep.subr.mxu0 0.0
    %v3392 = vand.u32 %v3101, 4294901760
    %3393 = vmatpush1.msra.mxu0 %v3392
    %3394 = vmatprep.subr.mxu0 0.0
    %v3395 = vand.u32 %v3102, 4294901760
    %3396 = vmatpush1.msra.mxu0 %v3395
    %3397 = vmatprep.subr.mxu0 0.0
    %v3398 = vand.u32 %v3103, 4294901760
    %3399 = vmatpush1.msra.mxu0 %v3398
    %3400 = vmatprep.subr.mxu0 0.0
    %3401 = vmatpush1.msra.mxu0 0.0
    %3402 = vmatprep.subr.mxu0 0.0
    %3403 = vmatpush1.msra.mxu0 0.0
    %3404 = vmatprep.subr.mxu0 0.0
    %3405 = vmatpush1.msra.mxu0 0.0
    %3406 = vmatprep.subr.mxu0 0.0
    %3407 = vmatpush1.msra.mxu0 0.0
    %3408 = vmatprep.subr.mxu0 0.0
    %3409 = vmatpush1.msra.mxu0 0.0
    %3410 = vmatprep.subr.mxu0 0.0
    %3411 = vmatpush1.msra.mxu0 0.0
    %3412 = vmatprep.subr.mxu0 0.0
    %3413 = vmatpush1.msra.mxu0 0.0
    %3414 = vmatprep.subr.mxu0 0.0
    %3415 = vmatpush1.msra.mxu0 0.0
    %3416 = vmatprep.subr.mxu0 0.0
    %3417 = vmatpush1.msra.mxu0 0.0
    %3418 = vmatprep.subr.mxu0 0.0
    %3419 = vmatpush1.msra.mxu0 0.0
    %3420 = vmatprep.subr.mxu0 0.0
    %3421 = vmatpush1.msra.mxu0 0.0
    %3422 = vmatprep.subr.mxu0 0.0
    %3423 = vmatpush1.msra.mxu0 0.0
    %3424 = vmatprep.subr.mxu0 0.0
    %3425 = vmatpush1.msra.mxu0 0.0
    %3426 = vmatprep.subr.mxu0 0.0
    %3427 = vmatpush1.msra.mxu0 0.0
    %3428 = vmatprep.subr.mxu0 0.0
    %3429 = vmatpush1.msra.mxu0 0.0
    %3430 = vmatprep.subr.mxu0 0.0
    %3431 = vmatpush1.msra.mxu0 0.0
    %3432 = vmatprep.subr.mxu0 0.0
    %3433 = vmatpush1.msra.mxu0 0.0
    %3434 = vmatprep.subr.mxu0 0.0
    %3435 = vmatpush1.msra.mxu0 0.0
    %3436 = vmatprep.subr.mxu0 0.0
    %3437 = vmatpush1.msra.mxu0 0.0
    %3438 = vmatprep.subr.mxu0 0.0
    %3439 = vmatpush1.msra.mxu0 0.0
    %3440 = vmatprep.subr.mxu0 0.0
    %3441 = vmatpush1.msra.mxu0 0.0
    %3442 = vmatprep.subr.mxu0 0.0
    %3443 = vmatpush1.msra.mxu0 0.0
    %3444 = vmatprep.subr.mxu0 0.0
    %3445 = vmatpush1.msra.mxu0 0.0
    %3446 = vmatprep.subr.mxu0 0.0
    %3447 = vmatpush1.msra.mxu0 0.0
    %3448 = vmatprep.subr.mxu0 0.0
    %3449 = vmatpush1.msra.mxu0 0.0
    %3450 = vmatprep.subr.mxu0 0.0
    %3451 = vmatpush1.msra.mxu0 0.0
    %3452 = vmatprep.subr.mxu0 0.0
    %3453 = vmatpush1.msra.mxu0 0.0
    %3454 = vmatprep.subr.mxu0 0.0
    %3455 = vmatpush1.msra.mxu0 0.0
    %3456 = vmatprep.mubr.f32.mxu0 0.0
    %v3457 = vand.u32 %v3110, 4294901760
    %v3458 = vsub.f32 %v3110, %v3457
    %v3459 = vand.u32 %v3458, 4294901760
    %3460 = vmatmul.mubr.f32.gmra.mrb[0].mxu0 %v3459
    %v3461 = vpop.f32.mrb[0].mxu0
    %v3462 = vadd.f32 %v3378, %v3461
    %v3463 = vpop.f32.mrb[0].mxu0
    %3464 = vmatprep.mubr.f32.mxu0 0.0
    %v3465 = vand.u32 %v3113, 4294901760
    %v3466 = vsub.f32 %v3113, %v3465
    %v3467 = vand.u32 %v3466, 4294901760
    %3468 = vmatmul.mubr.f32.gmra.mrb[0].mxu0 %v3467
    %v3469 = vpop.f32.mrb[0].mxu0
    %v3470 = vadd.f32 %v3385, %v3469
    %v3471 = vpop.f32.mrb[0].mxu0
    %3472 = vdwg.mxu0
    %3473 = vmatprep.subr.mxu0 0.0
    %v3474 = vand.u32 %v3100, 4294901760
    %v3475 = vsub.f32 %v3100, %v3474
    %v3476 = vand.u32 %v3475, 4294901760
    %3477 = vmatpush1.msra.mxu0 %v3476
    %3478 = vmatprep.subr.mxu0 0.0
    %v3479 = vand.u32 %v3101, 4294901760
    %v3480 = vsub.f32 %v3101, %v3479
    %v3481 = vand.u32 %v3480, 4294901760
    %3482 = vmatpush1.msra.mxu0 %v3481
    %3483 = vmatprep.subr.mxu0 0.0
    %v3484 = vand.u32 %v3102, 4294901760
    %v3485 = vsub.f32 %v3102, %v3484
    %v3486 = vand.u32 %v3485, 4294901760
    %3487 = vmatpush1.msra.mxu0 %v3486
    %3488 = vmatprep.subr.mxu0 0.0
    %v3489 = vand.u32 %v3103, 4294901760
    %v3490 = vsub.f32 %v3103, %v3489
    %v3491 = vand.u32 %v3490, 4294901760
    %3492 = vmatpush1.msra.mxu0 %v3491
    %3493 = vmatprep.subr.mxu0 0.0
    %3494 = vmatpush1.msra.mxu0 0.0
    %3495 = vmatprep.subr.mxu0 0.0
    %3496 = vmatpush1.msra.mxu0 0.0
    %3497 = vmatprep.subr.mxu0 0.0
    %3498 = vmatpush1.msra.mxu0 0.0
    %3499 = vmatprep.subr.mxu0 0.0
    %3500 = vmatpush1.msra.mxu0 0.0
    %3501 = vmatprep.subr.mxu0 0.0
    %3502 = vmatpush1.msra.mxu0 0.0
    %3503 = vmatprep.subr.mxu0 0.0
    %3504 = vmatpush1.msra.mxu0 0.0
    %3505 = vmatprep.subr.mxu0 0.0
    %3506 = vmatpush1.msra.mxu0 0.0
    %3507 = vmatprep.subr.mxu0 0.0
    %3508 = vmatpush1.msra.mxu0 0.0
    %3509 = vmatprep.subr.mxu0 0.0
    %3510 = vmatpush1.msra.mxu0 0.0
    %3511 = vmatprep.subr.mxu0 0.0
    %3512 = vmatpush1.msra.mxu0 0.0
    %3513 = vmatprep.subr.mxu0 0.0
    %3514 = vmatpush1.msra.mxu0 0.0
    %3515 = vmatprep.subr.mxu0 0.0
    %3516 = vmatpush1.msra.mxu0 0.0
    %3517 = vmatprep.subr.mxu0 0.0
    %3518 = vmatpush1.msra.mxu0 0.0
    %3519 = vmatprep.subr.mxu0 0.0
    %3520 = vmatpush1.msra.mxu0 0.0
    %3521 = vmatprep.subr.mxu0 0.0
    %3522 = vmatpush1.msra.mxu0 0.0
    %3523 = vmatprep.subr.mxu0 0.0
    %3524 = vmatpush1.msra.mxu0 0.0
    %3525 = vmatprep.subr.mxu0 0.0
    %3526 = vmatpush1.msra.mxu0 0.0
    %3527 = vmatprep.subr.mxu0 0.0
    %3528 = vmatpush1.msra.mxu0 0.0
    %3529 = vmatprep.subr.mxu0 0.0
    %3530 = vmatpush1.msra.mxu0 0.0
    %3531 = vmatprep.subr.mxu0 0.0
    %3532 = vmatpush1.msra.mxu0 0.0
    %3533 = vmatprep.subr.mxu0 0.0
    %3534 = vmatpush1.msra.mxu0 0.0
    %3535 = vmatprep.subr.mxu0 0.0
    %3536 = vmatpush1.msra.mxu0 0.0
    %3537 = vmatprep.subr.mxu0 0.0
    %3538 = vmatpush1.msra.mxu0 0.0
    %3539 = vmatprep.subr.mxu0 0.0
    %3540 = vmatpush1.msra.mxu0 0.0
    %3541 = vmatprep.subr.mxu0 0.0
    %3542 = vmatpush1.msra.mxu0 0.0
    %3543 = vmatprep.subr.mxu0 0.0
    %3544 = vmatpush1.msra.mxu0 0.0
    %3545 = vmatprep.subr.mxu0 0.0
    %3546 = vmatpush1.msra.mxu0 0.0
    %3547 = vmatprep.subr.mxu0 0.0
    %3548 = vmatpush1.msra.mxu0 0.0
    %3549 = vmatprep.mubr.f32.mxu0 0.0
    %v3550 = vand.u32 %v3110, 4294901760
    %3551 = vmatmul.mubr.f32.gmra.mrb[0].mxu0 %v3550
    %v3552 = vpop.f32.mrb[0].mxu0
    %v3553 = vadd.f32 %v3462, %v3552
    %v3554 = vpop.f32.mrb[0].mxu0
    %3555 = vmatprep.mubr.f32.mxu0 0.0
    %v3556 = vand.u32 %v3113, 4294901760
    %3557 = vmatmul.mubr.f32.gmra.mrb[0].mxu0 %v3556
    %v3558 = vpop.f32.mrb[0].mxu0
    %v3559 = vadd.f32 %v3470, %v3558
    %v3560 = vpop.f32.mrb[0].mxu0
    %3561 = vdwg.mxu0
    %3562 = vmatprep.subr.mxu0 0.0
    %v3563 = vand.u32 %v3100, 4294901760
    %3564 = vmatpush1.msra.mxu0 %v3563
    %3565 = vmatprep.subr.mxu0 0.0
    %v3566 = vand.u32 %v3101, 4294901760
    %3567 = vmatpush1.msra.mxu0 %v3566
    %3568 = vmatprep.subr.mxu0 0.0
    %v3569 = vand.u32 %v3102, 4294901760
    %3570 = vmatpush1.msra.mxu0 %v3569
    %3571 = vmatprep.subr.mxu0 0.0
    %v3572 = vand.u32 %v3103, 4294901760
    %3573 = vmatpush1.msra.mxu0 %v3572
    %3574 = vmatprep.subr.mxu0 0.0
    %3575 = vmatpush1.msra.mxu0 0.0
    %3576 = vmatprep.subr.mxu0 0.0
    %3577 = vmatpush1.msra.mxu0 0.0
    %3578 = vmatprep.subr.mxu0 0.0
    %3579 = vmatpush1.msra.mxu0 0.0
    %3580 = vmatprep.subr.mxu0 0.0
    %3581 = vmatpush1.msra.mxu0 0.0
    %3582 = vmatprep.subr.mxu0 0.0
    %3583 = vmatpush1.msra.mxu0 0.0
    %3584 = vmatprep.subr.mxu0 0.0
    %3585 = vmatpush1.msra.mxu0 0.0
    %3586 = vmatprep.subr.mxu0 0.0
    %3587 = vmatpush1.msra.mxu0 0.0
    %3588 = vmatprep.subr.mxu0 0.0
    %3589 = vmatpush1.msra.mxu0 0.0
    %3590 = vmatprep.subr.mxu0 0.0
    %3591 = vmatpush1.msra.mxu0 0.0
    %3592 = vmatprep.subr.mxu0 0.0
    %3593 = vmatpush1.msra.mxu0 0.0
    %3594 = vmatprep.subr.mxu0 0.0
    %3595 = vmatpush1.msra.mxu0 0.0
    %3596 = vmatprep.subr.mxu0 0.0
    %3597 = vmatpush1.msra.mxu0 0.0
    %3598 = vmatprep.subr.mxu0 0.0
    %3599 = vmatpush1.msra.mxu0 0.0
    %3600 = vmatprep.subr.mxu0 0.0
    %3601 = vmatpush1.msra.mxu0 0.0
    %3602 = vmatprep.subr.mxu0 0.0
    %3603 = vmatpush1.msra.mxu0 0.0
    %3604 = vmatprep.subr.mxu0 0.0
    %3605 = vmatpush1.msra.mxu0 0.0
    %3606 = vmatprep.subr.mxu0 0.0
    %3607 = vmatpush1.msra.mxu0 0.0
    %3608 = vmatprep.subr.mxu0 0.0
    %3609 = vmatpush1.msra.mxu0 0.0
    %3610 = vmatprep.subr.mxu0 0.0
    %3611 = vmatpush1.msra.mxu0 0.0
    %3612 = vmatprep.subr.mxu0 0.0
    %3613 = vmatpush1.msra.mxu0 0.0
    %3614 = vmatprep.subr.mxu0 0.0
    %3615 = vmatpush1.msra.mxu0 0.0
    %3616 = vmatprep.subr.mxu0 0.0
    %3617 = vmatpush1.msra.mxu0 0.0
    %3618 = vmatprep.subr.mxu0 0.0
    %3619 = vmatpush1.msra.mxu0 0.0
    %3620 = vmatprep.subr.mxu0 0.0
    %3621 = vmatpush1.msra.mxu0 0.0
    %3622 = vmatprep.subr.mxu0 0.0
    %3623 = vmatpush1.msra.mxu0 0.0
    %3624 = vmatprep.subr.mxu0 0.0
    %3625 = vmatpush1.msra.mxu0 0.0
    %3626 = vmatprep.subr.mxu0 0.0
    %3627 = vmatpush1.msra.mxu0 0.0
    %3628 = vmatprep.subr.mxu0 0.0
    %3629 = vmatpush1.msra.mxu0 0.0
    %3630 = vmatprep.mubr.f32.mxu0 0.0
    %v3631 = vand.u32 %v3110, 4294901760
    %3632 = vmatmul.mubr.f32.gmra.mrb[0].mxu0 %v3631
    %v3633 = vpop.f32.mrb[0].mxu0
    %v3634 = vadd.f32 %v3553, %v3633
    %v3635 = vpop.f32.mrb[0].mxu0
    %3636 = vmatprep.mubr.f32.mxu0 0.0
    %v3637 = vand.u32 %v3113, 4294901760
    %3638 = vmatmul.mubr.f32.gmra.mrb[0].mxu0 %v3637
    %v3639 = vpop.f32.mrb[0].mxu0
    %v3640 = vadd.f32 %v3559, %v3639
    %v3641 = vpop.f32.mrb[0].mxu0
    %3642 = vdwg.mxu0
    %v3643 = vld [vmem:[#allocation2 + $0x18] sm:$0xff]
    %v3644 = vld [vmem:[#allocation2 + $0x50] sm:$0xff]
    %v3645 = vld [vmem:[#allocation2 + $0x88] sm:$0xff]
    %v3646 = vld [vmem:[#allocation2 + $0xc0] sm:$0xff]
    %v3647 = vld [vmem:[#allocation5 + $0x5] sm:$0x1]
    %v3648 = vlaneseq
    %v3649 = vshrl.u32 %v3648, 7
    %v3650 = vsub.s32 0, %v3649
    %v3651 = vrot.slane %v3647, %v3650
    %v3653 = vsel %vm66, %v45, 0
    %v3656 = vsel %vm66, %v46, 0
    %3658 = vmatprep.subr.mxu0 0.0
    %v3659 = vand.u32 %v3643, 4294901760
    %3660 = vmatpush1.msra.mxu0 %v3659
    %3661 = vmatprep.subr.mxu0 0.0
    %v3662 = vand.u32 %v3644, 4294901760
    %3663 = vmatpush1.msra.mxu0 %v3662
    %3664 = vmatprep.subr.mxu0 0.0
    %v3665 = vand.u32 %v3645, 4294901760
    %3666 = vmatpush1.msra.mxu0 %v3665
    %3667 = vmatprep.subr.mxu0 0.0
    %v3668 = vand.u32 %v3646, 4294901760
    %3669 = vmatpush1.msra.mxu0 %v3668
    %3670 = vmatprep.subr.mxu0 0.0
    %3671 = vmatpush1.msra.mxu0 0.0
    %3672 = vmatprep.subr.mxu0 0.0
    %3673 = vmatpush1.msra.mxu0 0.0
    %3674 = vmatprep.subr.mxu0 0.0
    %3675 = vmatpush1.msra.mxu0 0.0
    %3676 = vmatprep.subr.mxu0 0.0
    %3677 = vmatpush1.msra.mxu0 0.0
    %3678 = vmatprep.subr.mxu0 0.0
    %3679 = vmatpush1.msra.mxu0 0.0
    %3680 = vmatprep.subr.mxu0 0.0
    %3681 = vmatpush1.msra.mxu0 0.0
    %3682 = vmatprep.subr.mxu0 0.0
    %3683 = vmatpush1.msra.mxu0 0.0
    %3684 = vmatprep.subr.mxu0 0.0
    %3685 = vmatpush1.msra.mxu0 0.0
    %3686 = vmatprep.subr.mxu0 0.0
    %3687 = vmatpush1.msra.mxu0 0.0
    %3688 = vmatprep.subr.mxu0 0.0
    %3689 = vmatpush1.msra.mxu0 0.0
    %3690 = vmatprep.subr.mxu0 0.0
    %3691 = vmatpush1.msra.mxu0 0.0
    %3692 = vmatprep.subr.mxu0 0.0
    %3693 = vmatpush1.msra.mxu0 0.0
    %3694 = vmatprep.subr.mxu0 0.0
    %3695 = vmatpush1.msra.mxu0 0.0
    %3696 = vmatprep.subr.mxu0 0.0
    %3697 = vmatpush1.msra.mxu0 0.0
    %3698 = vmatprep.subr.mxu0 0.0
    %3699 = vmatpush1.msra.mxu0 0.0
    %3700 = vmatprep.subr.mxu0 0.0
    %3701 = vmatpush1.msra.mxu0 0.0
    %3702 = vmatprep.subr.mxu0 0.0
    %3703 = vmatpush1.msra.mxu0 0.0
    %3704 = vmatprep.subr.mxu0 0.0
    %3705 = vmatpush1.msra.mxu0 0.0
    %3706 = vmatprep.subr.mxu0 0.0
    %3707 = vmatpush1.msra.mxu0 0.0
    %3708 = vmatprep.subr.mxu0 0.0
    %3709 = vmatpush1.msra.mxu0 0.0
    %3710 = vmatprep.subr.mxu0 0.0
    %3711 = vmatpush1.msra.mxu0 0.0
    %3712 = vmatprep.subr.mxu0 0.0
    %3713 = vmatpush1.msra.mxu0 0.0
    %3714 = vmatprep.subr.mxu0 0.0
    %3715 = vmatpush1.msra.mxu0 0.0
    %3716 = vmatprep.subr.mxu0 0.0
    %3717 = vmatpush1.msra.mxu0 0.0
    %3718 = vmatprep.subr.mxu0 0.0
    %3719 = vmatpush1.msra.mxu0 0.0
    %3720 = vmatprep.subr.mxu0 0.0
    %3721 = vmatpush1.msra.mxu0 0.0
    %3722 = vmatprep.subr.mxu0 0.0
    %3723 = vmatpush1.msra.mxu0 0.0
    %3724 = vmatprep.subr.mxu0 0.0
    %3725 = vmatpush1.msra.mxu0 0.0
    %3726 = vmatprep.mubr.f32.mxu0 0.0
    %v3727 = vand.u32 %v3653, 4294901760
    %v3728 = vsub.f32 %v3653, %v3727
    %v3729 = vand.u32 %v3728, 4294901760
    %v3730 = vsub.f32 %v3728, %v3729
    %v3731 = vand.u32 %v3730, 4294901760
    %3732 = vmatmul.mubr.f32.gmra.mrb[0].mxu0 %v3731
    %v3733 = vpop.f32.mrb[0].mxu0
    %v3734 = vadd.f32 %v3651, %v3733
    %v3735 = vpop.f32.mrb[0].mxu0
    %3736 = vmatprep.mubr.f32.mxu0 0.0
    %v3737 = vand.u32 %v3656, 4294901760
    %v3738 = vsub.f32 %v3656, %v3737
    %v3739 = vand.u32 %v3738, 4294901760
    %v3740 = vsub.f32 %v3738, %v3739
    %v3741 = vand.u32 %v3740, 4294901760
    %3742 = vmatmul.mubr.f32.gmra.mrb[0].mxu0 %v3741
    %v3743 = vpop.f32.mrb[0].mxu0
    %v3744 = vadd.f32 %v3651, %v3743
    %v3745 = vpop.f32.mrb[0].mxu0
    %3746 = vdwg.mxu0
    %3747 = vmatprep.subr.mxu0 0.0
    %v3748 = vand.u32 %v3643, 4294901760
    %v3749 = vsub.f32 %v3643, %v3748
    %v3750 = vand.u32 %v3749, 4294901760
    %v3751 = vsub.f32 %v3749, %v3750
    %v3752 = vand.u32 %v3751, 4294901760
    %3753 = vmatpush1.msra.mxu0 %v3752
    %3754 = vmatprep.subr.mxu0 0.0
    %v3755 = vand.u32 %v3644, 4294901760
    %v3756 = vsub.f32 %v3644, %v3755
    %v3757 = vand.u32 %v3756, 4294901760
    %v3758 = vsub.f32 %v3756, %v3757
    %v3759 = vand.u32 %v3758, 4294901760
    %3760 = vmatpush1.msra.mxu0 %v3759
    %3761 = vmatprep.subr.mxu0 0.0
    %v3762 = vand.u32 %v3645, 4294901760
    %v3763 = vsub.f32 %v3645, %v3762
    %v3764 = vand.u32 %v3763, 4294901760
    %v3765 = vsub.f32 %v3763, %v3764
    %v3766 = vand.u32 %v3765, 4294901760
    %3767 = vmatpush1.msra.mxu0 %v3766
    %3768 = vmatprep.subr.mxu0 0.0
    %v3769 = vand.u32 %v3646, 4294901760
    %v3770 = vsub.f32 %v3646, %v3769
    %v3771 = vand.u32 %v3770, 4294901760
    %v3772 = vsub.f32 %v3770, %v3771
    %v3773 = vand.u32 %v3772, 4294901760
    %3774 = vmatpush1.msra.mxu0 %v3773
    %3775 = vmatprep.subr.mxu0 0.0
    %3776 = vmatpush1.msra.mxu0 0.0
    %3777 = vmatprep.subr.mxu0 0.0
    %3778 = vmatpush1.msra.mxu0 0.0
    %3779 = vmatprep.subr.mxu0 0.0
    %3780 = vmatpush1.msra.mxu0 0.0
    %3781 = vmatprep.subr.mxu0 0.0
    %3782 = vmatpush1.msra.mxu0 0.0
    %3783 = vmatprep.subr.mxu0 0.0
    %3784 = vmatpush1.msra.mxu0 0.0
    %3785 = vmatprep.subr.mxu0 0.0
    %3786 = vmatpush1.msra.mxu0 0.0
    %3787 = vmatprep.subr.mxu0 0.0
    %3788 = vmatpush1.msra.mxu0 0.0
    %3789 = vmatprep.subr.mxu0 0.0
    %3790 = vmatpush1.msra.mxu0 0.0
    %3791 = vmatprep.subr.mxu0 0.0
    %3792 = vmatpush1.msra.mxu0 0.0
    %3793 = vmatprep.subr.mxu0 0.0
    %3794 = vmatpush1.msra.mxu0 0.0
    %3795 = vmatprep.subr.mxu0 0.0
    %3796 = vmatpush1.msra.mxu0 0.0
    %3797 = vmatprep.subr.mxu0 0.0
    %3798 = vmatpush1.msra.mxu0 0.0
    %3799 = vmatprep.subr.mxu0 0.0
    %3800 = vmatpush1.msra.mxu0 0.0
    %3801 = vmatprep.subr.mxu0 0.0
    %3802 = vmatpush1.msra.mxu0 0.0
    %3803 = vmatprep.subr.mxu0 0.0
    %3804 = vmatpush1.msra.mxu0 0.0
    %3805 = vmatprep.subr.mxu0 0.0
    %3806 = vmatpush1.msra.mxu0 0.0
    %3807 = vmatprep.subr.mxu0 0.0
    %3808 = vmatpush1.msra.mxu0 0.0
    %3809 = vmatprep.subr.mxu0 0.0
    %3810 = vmatpush1.msra.mxu0 0.0
    %3811 = vmatprep.subr.mxu0 0.0
    %3812 = vmatpush1.msra.mxu0 0.0
    %3813 = vmatprep.subr.mxu0 0.0
    %3814 = vmatpush1.msra.mxu0 0.0
    %3815 = vmatprep.subr.mxu0 0.0
    %3816 = vmatpush1.msra.mxu0 0.0
    %3817 = vmatprep.subr.mxu0 0.0
    %3818 = vmatpush1.msra.mxu0 0.0
    %3819 = vmatprep.subr.mxu0 0.0
    %3820 = vmatpush1.msra.mxu0 0.0
    %3821 = vmatprep.subr.mxu0 0.0
    %3822 = vmatpush1.msra.mxu0 0.0
    %3823 = vmatprep.subr.mxu0 0.0
    %3824 = vmatpush1.msra.mxu0 0.0
    %3825 = vmatprep.subr.mxu0 0.0
    %3826 = vmatpush1.msra.mxu0 0.0
    %3827 = vmatprep.subr.mxu0 0.0
    %3828 = vmatpush1.msra.mxu0 0.0
    %3829 = vmatprep.subr.mxu0 0.0
    %3830 = vmatpush1.msra.mxu0 0.0
    %3831 = vmatprep.mubr.f32.mxu0 0.0
    %v3832 = vand.u32 %v3653, 4294901760
    %3833 = vmatmul.mubr.f32.gmra.mrb[0].mxu0 %v3832
    %v3834 = vpop.f32.mrb[0].mxu0
    %v3835 = vadd.f32 %v3734, %v3834
    %v3836 = vpop.f32.mrb[0].mxu0
    %3837 = vmatprep.mubr.f32.mxu0 0.0
    %v3838 = vand.u32 %v3656, 4294901760
    %3839 = vmatmul.mubr.f32.gmra.mrb[0].mxu0 %v3838
    %v3840 = vpop.f32.mrb[0].mxu0
    %v3841 = vadd.f32 %v3744, %v3840
    %v3842 = vpop.f32.mrb[0].mxu0
    %3843 = vdwg.mxu0
    %3844 = vmatprep.subr.mxu0 0.0
    %v3845 = vand.u32 %v3643, 4294901760
    %v3846 = vsub.f32 %v3643, %v3845
    %3847 = vmatpush1.msra.mxu0 %v3846
    %3848 = vmatprep.subr.mxu0 0.0
    %v3849 = vand.u32 %v3644, 4294901760
    %v3850 = vsub.f32 %v3644, %v3849
    %3851 = vmatpush1.msra.mxu0 %v3850
    %3852 = vmatprep.subr.mxu0 0.0
    %v3853 = vand.u32 %v3645, 4294901760
    %v3854 = vsub.f32 %v3645, %v3853
    %3855 = vmatpush1.msra.mxu0 %v3854
    %3856 = vmatprep.subr.mxu0 0.0
    %v3857 = vand.u32 %v3646, 4294901760
    %v3858 = vsub.f32 %v3646, %v3857
    %3859 = vmatpush1.msra.mxu0 %v3858
    %3860 = vmatprep.subr.mxu0 0.0
    %3861 = vmatpush1.msra.mxu0 0.0
    %3862 = vmatprep.subr.mxu0 0.0
    %3863 = vmatpush1.msra.mxu0 0.0
    %3864 = vmatprep.subr.mxu0 0.0
    %3865 = vmatpush1.msra.mxu0 0.0
    %3866 = vmatprep.subr.mxu0 0.0
    %3867 = vmatpush1.msra.mxu0 0.0
    %3868 = vmatprep.subr.mxu0 0.0
    %3869 = vmatpush1.msra.mxu0 0.0
    %3870 = vmatprep.subr.mxu0 0.0
    %3871 = vmatpush1.msra.mxu0 0.0
    %3872 = vmatprep.subr.mxu0 0.0
    %3873 = vmatpush1.msra.mxu0 0.0
    %3874 = vmatprep.subr.mxu0 0.0
    %3875 = vmatpush1.msra.mxu0 0.0
    %3876 = vmatprep.subr.mxu0 0.0
    %3877 = vmatpush1.msra.mxu0 0.0
    %3878 = vmatprep.subr.mxu0 0.0
    %3879 = vmatpush1.msra.mxu0 0.0
    %3880 = vmatprep.subr.mxu0 0.0
    %3881 = vmatpush1.msra.mxu0 0.0
    %3882 = vmatprep.subr.mxu0 0.0
    %3883 = vmatpush1.msra.mxu0 0.0
    %3884 = vmatprep.subr.mxu0 0.0
    %3885 = vmatpush1.msra.mxu0 0.0
    %3886 = vmatprep.subr.mxu0 0.0
    %3887 = vmatpush1.msra.mxu0 0.0
    %3888 = vmatprep.subr.mxu0 0.0
    %3889 = vmatpush1.msra.mxu0 0.0
    %3890 = vmatprep.subr.mxu0 0.0
    %3891 = vmatpush1.msra.mxu0 0.0
    %3892 = vmatprep.subr.mxu0 0.0
    %3893 = vmatpush1.msra.mxu0 0.0
    %3894 = vmatprep.subr.mxu0 0.0
    %3895 = vmatpush1.msra.mxu0 0.0
    %3896 = vmatprep.subr.mxu0 0.0
    %3897 = vmatpush1.msra.mxu0 0.0
    %3898 = vmatprep.subr.mxu0 0.0
    %3899 = vmatpush1.msra.mxu0 0.0
    %3900 = vmatprep.subr.mxu0 0.0
    %3901 = vmatpush1.msra.mxu0 0.0
    %3902 = vmatprep.subr.mxu0 0.0
    %3903 = vmatpush1.msra.mxu0 0.0
    %3904 = vmatprep.subr.mxu0 0.0
    %3905 = vmatpush1.msra.mxu0 0.0
    %3906 = vmatprep.subr.mxu0 0.0
    %3907 = vmatpush1.msra.mxu0 0.0
    %3908 = vmatprep.subr.mxu0 0.0
    %3909 = vmatpush1.msra.mxu0 0.0
    %3910 = vmatprep.subr.mxu0 0.0
    %3911 = vmatpush1.msra.mxu0 0.0
    %3912 = vmatprep.subr.mxu0 0.0
    %3913 = vmatpush1.msra.mxu0 0.0
    %3914 = vmatprep.subr.mxu0 0.0
    %3915 = vmatpush1.msra.mxu0 0.0
    %3916 = vmatprep.mubr.f32.mxu0 0.0
    %v3917 = vand.u32 %v3653, 4294901760
    %v3918 = vsub.f32 %v3653, %v3917
    %3919 = vmatmul.mubr.f32.gmra.mrb[0].mxu0 %v3918
    %v3920 = vpop.f32.mrb[0].mxu0
    %v3921 = vadd.f32 %v3835, %v3920
    %v3922 = vpop.f32.mrb[0].mxu0
    %3923 = vmatprep.mubr.f32.mxu0 0.0
    %v3924 = vand.u32 %v3656, 4294901760
    %v3925 = vsub.f32 %v3656, %v3924
    %3926 = vmatmul.mubr.f32.gmra.mrb[0].mxu0 %v3925
    %v3927 = vpop.f32.mrb[0].mxu0
    %v3928 = vadd.f32 %v3841, %v3927
    %v3929 = vpop.f32.mrb[0].mxu0
    %3930 = vdwg.mxu0
    %3931 = vmatprep.subr.mxu0 0.0
    %v3932 = vand.u32 %v3643, 4294901760
    %3933 = vmatpush1.msra.mxu0 %v3932
    %3934 = vmatprep.subr.mxu0 0.0
    %v3935 = vand.u32 %v3644, 4294901760
    %3936 = vmatpush1.msra.mxu0 %v3935
    %3937 = vmatprep.subr.mxu0 0.0
    %v3938 = vand.u32 %v3645, 4294901760
    %3939 = vmatpush1.msra.mxu0 %v3938
    %3940 = vmatprep.subr.mxu0 0.0
    %v3941 = vand.u32 %v3646, 4294901760
    %3942 = vmatpush1.msra.mxu0 %v3941
    %3943 = vmatprep.subr.mxu0 0.0
    %3944 = vmatpush1.msra.mxu0 0.0
    %3945 = vmatprep.subr.mxu0 0.0
    %3946 = vmatpush1.msra.mxu0 0.0
    %3947 = vmatprep.subr.mxu0 0.0
    %3948 = vmatpush1.msra.mxu0 0.0
    %3949 = vmatprep.subr.mxu0 0.0
    %3950 = vmatpush1.msra.mxu0 0.0
    %3951 = vmatprep.subr.mxu0 0.0
    %3952 = vmatpush1.msra.mxu0 0.0
    %3953 = vmatprep.subr.mxu0 0.0
    %3954 = vmatpush1.msra.mxu0 0.0
    %3955 = vmatprep.subr.mxu0 0.0
    %3956 = vmatpush1.msra.mxu0 0.0
    %3957 = vmatprep.subr.mxu0 0.0
    %3958 = vmatpush1.msra.mxu0 0.0
    %3959 = vmatprep.subr.mxu0 0.0
    %3960 = vmatpush1.msra.mxu0 0.0
    %3961 = vmatprep.subr.mxu0 0.0
    %3962 = vmatpush1.msra.mxu0 0.0
    %3963 = vmatprep.subr.mxu0 0.0
    %3964 = vmatpush1.msra.mxu0 0.0
    %3965 = vmatprep.subr.mxu0 0.0
    %3966 = vmatpush1.msra.mxu0 0.0
    %3967 = vmatprep.subr.mxu0 0.0
    %3968 = vmatpush1.msra.mxu0 0.0
    %3969 = vmatprep.subr.mxu0 0.0
    %3970 = vmatpush1.msra.mxu0 0.0
    %3971 = vmatprep.subr.mxu0 0.0
    %3972 = vmatpush1.msra.mxu0 0.0
    %3973 = vmatprep.subr.mxu0 0.0
    %3974 = vmatpush1.msra.mxu0 0.0
    %3975 = vmatprep.subr.mxu0 0.0
    %3976 = vmatpush1.msra.mxu0 0.0
    %3977 = vmatprep.subr.mxu0 0.0
    %3978 = vmatpush1.msra.mxu0 0.0
    %3979 = vmatprep.subr.mxu0 0.0
    %3980 = vmatpush1.msra.mxu0 0.0
    %3981 = vmatprep.subr.mxu0 0.0
    %3982 = vmatpush1.msra.mxu0 0.0
    %3983 = vmatprep.subr.mxu0 0.0
    %3984 = vmatpush1.msra.mxu0 0.0
    %3985 = vmatprep.subr.mxu0 0.0
    %3986 = vmatpush1.msra.mxu0 0.0
    %3987 = vmatprep.subr.mxu0 0.0
    %3988 = vmatpush1.msra.mxu0 0.0
    %3989 = vmatprep.subr.mxu0 0.0
    %3990 = vmatpush1.msra.mxu0 0.0
    %3991 = vmatprep.subr.mxu0 0.0
    %3992 = vmatpush1.msra.mxu0 0.0
    %3993 = vmatprep.subr.mxu0 0.0
    %3994 = vmatpush1.msra.mxu0 0.0
    %3995 = vmatprep.subr.mxu0 0.0
    %3996 = vmatpush1.msra.mxu0 0.0
    %3997 = vmatprep.subr.mxu0 0.0
    %3998 = vmatpush1.msra.mxu0 0.0
    %3999 = vmatprep.mubr.f32.mxu0 0.0
    %v4000 = vand.u32 %v3653, 4294901760
    %v4001 = vsub.f32 %v3653, %v4000
    %v4002 = vand.u32 %v4001, 4294901760
    %4003 = vmatmul.mubr.f32.gmra.mrb[0].mxu0 %v4002
    %v4004 = vpop.f32.mrb[0].mxu0
    %v4005 = vadd.f32 %v3921, %v4004
    %v4006 = vpop.f32.mrb[0].mxu0
    %4007 = vmatprep.mubr.f32.mxu0 0.0
    %v4008 = vand.u32 %v3656, 4294901760
    %v4009 = vsub.f32 %v3656, %v4008
    %v4010 = vand.u32 %v4009, 4294901760
    %4011 = vmatmul.mubr.f32.gmra.mrb[0].mxu0 %v4010
    %v4012 = vpop.f32.mrb[0].mxu0
    %v4013 = vadd.f32 %v3928, %v4012
    %v4014 = vpop.f32.mrb[0].mxu0
    %4015 = vdwg.mxu0
    %4016 = vmatprep.subr.mxu0 0.0
    %v4017 = vand.u32 %v3643, 4294901760
    %v4018 = vsub.f32 %v3643, %v4017
    %v4019 = vand.u32 %v4018, 4294901760
    %4020 = vmatpush1.msra.mxu0 %v4019
    %4021 = vmatprep.subr.mxu0 0.0
    %v4022 = vand.u32 %v3644, 4294901760
    %v4023 = vsub.f32 %v3644, %v4022
    %v4024 = vand.u32 %v4023, 4294901760
    %4025 = vmatpush1.msra.mxu0 %v4024
    %4026 = vmatprep.subr.mxu0 0.0
    %v4027 = vand.u32 %v3645, 4294901760
    %v4028 = vsub.f32 %v3645, %v4027
    %v4029 = vand.u32 %v4028, 4294901760
    %4030 = vmatpush1.msra.mxu0 %v4029
    %4031 = vmatprep.subr.mxu0 0.0
    %v4032 = vand.u32 %v3646, 4294901760
    %v4033 = vsub.f32 %v3646, %v4032
    %v4034 = vand.u32 %v4033, 4294901760
    %4035 = vmatpush1.msra.mxu0 %v4034
    %4036 = vmatprep.subr.mxu0 0.0
    %4037 = vmatpush1.msra.mxu0 0.0
    %4038 = vmatprep.subr.mxu0 0.0
    %4039 = vmatpush1.msra.mxu0 0.0
    %4040 = vmatprep.subr.mxu0 0.0
    %4041 = vmatpush1.msra.mxu0 0.0
    %4042 = vmatprep.subr.mxu0 0.0
    %4043 = vmatpush1.msra.mxu0 0.0
    %4044 = vmatprep.subr.mxu0 0.0
    %4045 = vmatpush1.msra.mxu0 0.0
    %4046 = vmatprep.subr.mxu0 0.0
    %4047 = vmatpush1.msra.mxu0 0.0
    %4048 = vmatprep.subr.mxu0 0.0
    %4049 = vmatpush1.msra.mxu0 0.0
    %4050 = vmatprep.subr.mxu0 0.0
    %4051 = vmatpush1.msra.mxu0 0.0
    %4052 = vmatprep.subr.mxu0 0.0
    %4053 = vmatpush1.msra.mxu0 0.0
    %4054 = vmatprep.subr.mxu0 0.0
    %4055 = vmatpush1.msra.mxu0 0.0
    %4056 = vmatprep.subr.mxu0 0.0
    %4057 = vmatpush1.msra.mxu0 0.0
    %4058 = vmatprep.subr.mxu0 0.0
    %4059 = vmatpush1.msra.mxu0 0.0
    %4060 = vmatprep.subr.mxu0 0.0
    %4061 = vmatpush1.msra.mxu0 0.0
    %4062 = vmatprep.subr.mxu0 0.0
    %4063 = vmatpush1.msra.mxu0 0.0
    %4064 = vmatprep.subr.mxu0 0.0
    %4065 = vmatpush1.msra.mxu0 0.0
    %4066 = vmatprep.subr.mxu0 0.0
    %4067 = vmatpush1.msra.mxu0 0.0
    %4068 = vmatprep.subr.mxu0 0.0
    %4069 = vmatpush1.msra.mxu0 0.0
    %4070 = vmatprep.subr.mxu0 0.0
    %4071 = vmatpush1.msra.mxu0 0.0
    %4072 = vmatprep.subr.mxu0 0.0
    %4073 = vmatpush1.msra.mxu0 0.0
    %4074 = vmatprep.subr.mxu0 0.0
    %4075 = vmatpush1.msra.mxu0 0.0
    %4076 = vmatprep.subr.mxu0 0.0
    %4077 = vmatpush1.msra.mxu0 0.0
    %4078 = vmatprep.subr.mxu0 0.0
    %4079 = vmatpush1.msra.mxu0 0.0
    %4080 = vmatprep.subr.mxu0 0.0
    %4081 = vmatpush1.msra.mxu0 0.0
    %4082 = vmatprep.subr.mxu0 0.0
    %4083 = vmatpush1.msra.mxu0 0.0
    %4084 = vmatprep.subr.mxu0 0.0
    %4085 = vmatpush1.msra.mxu0 0.0
    %4086 = vmatprep.subr.mxu0 0.0
    %4087 = vmatpush1.msra.mxu0 0.0
    %4088 = vmatprep.subr.mxu0 0.0
    %4089 = vmatpush1.msra.mxu0 0.0
    %4090 = vmatprep.subr.mxu0 0.0
    %4091 = vmatpush1.msra.mxu0 0.0
    %4092 = vmatprep.mubr.f32.mxu0 0.0
    %v4093 = vand.u32 %v3653, 4294901760
    %4094 = vmatmul.mubr.f32.gmra.mrb[0].mxu0 %v4093
    %v4095 = vpop.f32.mrb[0].mxu0
    %v4096 = vadd.f32 %v4005, %v4095
    %v4097 = vpop.f32.mrb[0].mxu0
    %4098 = vmatprep.mubr.f32.mxu0 0.0
    %v4099 = vand.u32 %v3656, 4294901760
    %4100 = vmatmul.mubr.f32.gmra.mrb[0].mxu0 %v4099
    %v4101 = vpop.f32.mrb[0].mxu0
    %v4102 = vadd.f32 %v4013, %v4101
    %v4103 = vpop.f32.mrb[0].mxu0
    %4104 = vdwg.mxu0
    %4105 = vmatprep.subr.mxu0 0.0
    %v4106 = vand.u32 %v3643, 4294901760
    %4107 = vmatpush1.msra.mxu0 %v4106
    %4108 = vmatprep.subr.mxu0 0.0
    %v4109 = vand.u32 %v3644, 4294901760
    %4110 = vmatpush1.msra.mxu0 %v4109
    %4111 = vmatprep.subr.mxu0 0.0
    %v4112 = vand.u32 %v3645, 4294901760
    %4113 = vmatpush1.msra.mxu0 %v4112
    %4114 = vmatprep.subr.mxu0 0.0
    %v4115 = vand.u32 %v3646, 4294901760
    %4116 = vmatpush1.msra.mxu0 %v4115
    %4117 = vmatprep.subr.mxu0 0.0
    %4118 = vmatpush1.msra.mxu0 0.0
    %4119 = vmatprep.subr.mxu0 0.0
    %4120 = vmatpush1.msra.mxu0 0.0
    %4121 = vmatprep.subr.mxu0 0.0
    %4122 = vmatpush1.msra.mxu0 0.0
    %4123 = vmatprep.subr.mxu0 0.0
    %4124 = vmatpush1.msra.mxu0 0.0
    %4125 = vmatprep.subr.mxu0 0.0
    %4126 = vmatpush1.msra.mxu0 0.0
    %4127 = vmatprep.subr.mxu0 0.0
    %4128 = vmatpush1.msra.mxu0 0.0
    %4129 = vmatprep.subr.mxu0 0.0
    %4130 = vmatpush1.msra.mxu0 0.0
    %4131 = vmatprep.subr.mxu0 0.0
    %4132 = vmatpush1.msra.mxu0 0.0
    %4133 = vmatprep.subr.mxu0 0.0
    %4134 = vmatpush1.msra.mxu0 0.0
    %4135 = vmatprep.subr.mxu0 0.0
    %4136 = vmatpush1.msra.mxu0 0.0
    %4137 = vmatprep.subr.mxu0 0.0
    %4138 = vmatpush1.msra.mxu0 0.0
    %4139 = vmatprep.subr.mxu0 0.0
    %4140 = vmatpush1.msra.mxu0 0.0
    %4141 = vmatprep.subr.mxu0 0.0
    %4142 = vmatpush1.msra.mxu0 0.0
    %4143 = vmatprep.subr.mxu0 0.0
    %4144 = vmatpush1.msra.mxu0 0.0
    %4145 = vmatprep.subr.mxu0 0.0
    %4146 = vmatpush1.msra.mxu0 0.0
    %4147 = vmatprep.subr.mxu0 0.0
    %4148 = vmatpush1.msra.mxu0 0.0
    %4149 = vmatprep.subr.mxu0 0.0
    %4150 = vmatpush1.msra.mxu0 0.0
    %4151 = vmatprep.subr.mxu0 0.0
    %4152 = vmatpush1.msra.mxu0 0.0
    %4153 = vmatprep.subr.mxu0 0.0
    %4154 = vmatpush1.msra.mxu0 0.0
    %4155 = vmatprep.subr.mxu0 0.0
    %4156 = vmatpush1.msra.mxu0 0.0
    %4157 = vmatprep.subr.mxu0 0.0
    %4158 = vmatpush1.msra.mxu0 0.0
    %4159 = vmatprep.subr.mxu0 0.0
    %4160 = vmatpush1.msra.mxu0 0.0
    %4161 = vmatprep.subr.mxu0 0.0
    %4162 = vmatpush1.msra.mxu0 0.0
    %4163 = vmatprep.subr.mxu0 0.0
    %4164 = vmatpush1.msra.mxu0 0.0
    %4165 = vmatprep.subr.mxu0 0.0
    %4166 = vmatpush1.msra.mxu0 0.0
    %4167 = vmatprep.subr.mxu0 0.0
    %4168 = vmatpush1.msra.mxu0 0.0
    %4169 = vmatprep.subr.mxu0 0.0
    %4170 = vmatpush1.msra.mxu0 0.0
    %4171 = vmatprep.subr.mxu0 0.0
    %4172 = vmatpush1.msra.mxu0 0.0
    %4173 = vmatprep.mubr.f32.mxu0 0.0
    %v4174 = vand.u32 %v3653, 4294901760
    %4175 = vmatmul.mubr.f32.gmra.mrb[0].mxu0 %v4174
    %v4176 = vpop.f32.mrb[0].mxu0
    %v4177 = vadd.f32 %v4096, %v4176
    %v4178 = vpop.f32.mrb[0].mxu0
    %4179 = vmatprep.mubr.f32.mxu0 0.0
    %v4180 = vand.u32 %v3656, 4294901760
    %4181 = vmatmul.mubr.f32.gmra.mrb[0].mxu0 %v4180
    %v4182 = vpop.f32.mrb[0].mxu0
    %v4183 = vadd.f32 %v4102, %v4182
    %v4184 = vpop.f32.mrb[0].mxu0
    %4185 = vdwg.mxu0
    %v4186 = vmul.f32 %v4177, %v49
    %v4187 = vmul.f32 %v4183, %v50
    %v4188 = vmul.f32 %v4177, %v51
    %v4189 = vmul.f32 %v4183, %v52
    %v4190 = vmul.f32 %v4177, %v53
    %v4191 = vmul.f32 %v4183, %v54
    %v4192 = vmul.f32 %v4177, %v55
    %v4193 = vmul.f32 %v4183, %v56
    %v4194 = vmul.f32 %v4177, %v610
    %v4195 = vmul.f32 %v4183, %v612
    %v4196 = vmul.f32 %v4177, %v614
    %v4197 = vmul.f32 %v4183, %v616
    %v4198 = vmul.f32 %v4177, %v618
    %v4199 = vmul.f32 %v4183, %v620
    %v4200 = vmul.f32 %v4177, %v622
    %v4201 = vmul.f32 %v4183, %v624
    %v4203 = vsel %vm66, %v3634, 0
    %v4206 = vsel %vm66, %v3640, 0
    %v4209 = vsel %vm66, %v4186, 0
    %v4212 = vsel %vm66, %v4187, 0
    %v4215 = vsel %vm66, %v4188, 0
    %v4218 = vsel %vm66, %v4189, 0
    %v4221 = vsel %vm66, %v4190, 0
    %v4224 = vsel %vm66, %v4191, 0
    %v4227 = vsel %vm66, %v4192, 0
    %v4230 = vsel %vm66, %v4193, 0
    %4232 = vmatprep.subr.mxu0 0.0
    %v4233 = vand.u32 %v4209, 4294901760
    %4234 = vmatpush1.xpose.msra.mxu0 %v4233
    %4235 = vmatprep.subr.mxu0 0.0
    %v4236 = vand.u32 %v4212, 4294901760
    %4237 = vmatpush1.xpose.msra.mxu0 %v4236
    %4238 = vmatprep.subr.mxu0 0.0
    %v4239 = vand.u32 %v4215, 4294901760
    %4240 = vmatpush1.xpose.msra.mxu0 %v4239
    %4241 = vmatprep.subr.mxu0 0.0
    %v4242 = vand.u32 %v4218, 4294901760
    %4243 = vmatpush1.xpose.msra.mxu0 %v4242
    %4244 = vmatprep.subr.mxu0 0.0
    %v4245 = vand.u32 %v4221, 4294901760
    %4246 = vmatpush1.xpose.msra.mxu0 %v4245
    %4247 = vmatprep.subr.mxu0 0.0
    %v4248 = vand.u32 %v4224, 4294901760
    %4249 = vmatpush1.xpose.msra.mxu0 %v4248
    %4250 = vmatprep.subr.mxu0 0.0
    %v4251 = vand.u32 %v4227, 4294901760
    %4252 = vmatpush1.xpose.msra.mxu0 %v4251
    %4253 = vmatprep.subr.mxu0 0.0
    %v4254 = vand.u32 %v4230, 4294901760
    %4255 = vmatpush1.xpose.msra.mxu0 %v4254
    %4256 = vmatprep.subr.mxu0 0.0
    %4257 = vmatpush1.xpose.msra.mxu0 0.0
    %4258 = vmatprep.subr.mxu0 0.0
    %4259 = vmatpush1.xpose.msra.mxu0 0.0
    %4260 = vmatprep.subr.mxu0 0.0
    %4261 = vmatpush1.xpose.msra.mxu0 0.0
    %4262 = vmatprep.subr.mxu0 0.0
    %4263 = vmatpush1.xpose.msra.mxu0 0.0
    %4264 = vmatprep.subr.mxu0 0.0
    %4265 = vmatpush1.xpose.msra.mxu0 0.0
    %4266 = vmatprep.subr.mxu0 0.0
    %4267 = vmatpush1.xpose.msra.mxu0 0.0
    %4268 = vmatprep.subr.mxu0 0.0
    %4269 = vmatpush1.xpose.msra.mxu0 0.0
    %4270 = vmatprep.subr.mxu0 0.0
    %4271 = vmatpush1.xpose.msra.mxu0 0.0
    %4272 = vmatprep.subr.mxu0 0.0
    %4273 = vmatpush1.xpose.msra.mxu0 0.0
    %4274 = vmatprep.subr.mxu0 0.0
    %4275 = vmatpush1.xpose.msra.mxu0 0.0
    %4276 = vmatprep.subr.mxu0 0.0
    %4277 = vmatpush1.xpose.msra.mxu0 0.0
    %4278 = vmatprep.subr.mxu0 0.0
    %4279 = vmatpush1.xpose.msra.mxu0 0.0
    %4280 = vmatprep.subr.mxu0 0.0
    %4281 = vmatpush1.xpose.msra.mxu0 0.0
    %4282 = vmatprep.subr.mxu0 0.0
    %4283 = vmatpush1.xpose.msra.mxu0 0.0
    %4284 = vmatprep.subr.mxu0 0.0
    %4285 = vmatpush1.xpose.msra.mxu0 0.0
    %4286 = vmatprep.subr.mxu0 0.0
    %4287 = vmatpush1.xpose.msra.mxu0 0.0
    %4288 = vmatprep.subr.mxu0 0.0
    %4289 = vmatpush1.xpose.msra.mxu0 0.0
    %4290 = vmatprep.subr.mxu0 0.0
    %4291 = vmatpush1.xpose.msra.mxu0 0.0
    %4292 = vmatprep.subr.mxu0 0.0
    %4293 = vmatpush1.xpose.msra.mxu0 0.0
    %4294 = vmatprep.subr.mxu0 0.0
    %4295 = vmatpush1.xpose.msra.mxu0 0.0
    %4296 = vmatprep.subr.mxu0 0.0
    %4297 = vmatpush1.xpose.msra.mxu0 0.0
    %4298 = vmatprep.subr.mxu0 0.0
    %4299 = vmatpush1.xpose.msra.mxu0 0.0
    %4300 = vmatprep.subr.mxu0 0.0
    %4301 = vmatpush1.xpose.msra.mxu0 0.0
    %4302 = vmatprep.subr.mxu0 0.0
    %4303 = vmatpush1.xpose.msra.mxu0 0.0
    %4304 = vmatprep.mubr.f32.mxu0 0.0
    %v4305 = vand.u32 %v4203, 4294901760
    %v4306 = vsub.f32 %v4203, %v4305
    %v4307 = vand.u32 %v4306, 4294901760
    %v4308 = vsub.f32 %v4306, %v4307
    %v4309 = vand.u32 %v4308, 4294901760
    %4310 = vmatmul.mubr.f32.gmra.mrb[0].mxu0 %v4309
    %v4311 = vpop.f32.mrb[0].mxu0
    %v4312 = vadd.f32 %v47, %v4311
    %v4313 = vpop.f32.mrb[0].mxu0
    %4314 = vmatprep.mubr.f32.mxu0 0.0
    %v4315 = vand.u32 %v4206, 4294901760
    %v4316 = vsub.f32 %v4206, %v4315
    %v4317 = vand.u32 %v4316, 4294901760
    %v4318 = vsub.f32 %v4316, %v4317
    %v4319 = vand.u32 %v4318, 4294901760
    %4320 = vmatmul.mubr.f32.gmra.mrb[0].mxu0 %v4319
    %v4321 = vpop.f32.mrb[0].mxu0
    %v4322 = vadd.f32 %v48, %v4321
    %v4323 = vpop.f32.mrb[0].mxu0
    %4324 = vdwg.mxu0
    %4325 = vmatprep.subr.mxu0 0.0
    %v4326 = vand.u32 %v4209, 4294901760
    %v4327 = vsub.f32 %v4209, %v4326
    %v4328 = vand.u32 %v4327, 4294901760
    %v4329 = vsub.f32 %v4327, %v4328
    %v4330 = vand.u32 %v4329, 4294901760
    %4331 = vmatpush1.xpose.msra.mxu0 %v4330
    %4332 = vmatprep.subr.mxu0 0.0
    %v4333 = vand.u32 %v4212, 4294901760
    %v4334 = vsub.f32 %v4212, %v4333
    %v4335 = vand.u32 %v4334, 4294901760
    %v4336 = vsub.f32 %v4334, %v4335
    %v4337 = vand.u32 %v4336, 4294901760
    %4338 = vmatpush1.xpose.msra.mxu0 %v4337
    %4339 = vmatprep.subr.mxu0 0.0
    %v4340 = vand.u32 %v4215, 4294901760
    %v4341 = vsub.f32 %v4215, %v4340
    %v4342 = vand.u32 %v4341, 4294901760
    %v4343 = vsub.f32 %v4341, %v4342
    %v4344 = vand.u32 %v4343, 4294901760
    %4345 = vmatpush1.xpose.msra.mxu0 %v4344
    %4346 = vmatprep.subr.mxu0 0.0
    %v4347 = vand.u32 %v4218, 4294901760
    %v4348 = vsub.f32 %v4218, %v4347
    %v4349 = vand.u32 %v4348, 4294901760
    %v4350 = vsub.f32 %v4348, %v4349
    %v4351 = vand.u32 %v4350, 4294901760
    %4352 = vmatpush1.xpose.msra.mxu0 %v4351
    %4353 = vmatprep.subr.mxu0 0.0
    %v4354 = vand.u32 %v4221, 4294901760
    %v4355 = vsub.f32 %v4221, %v4354
    %v4356 = vand.u32 %v4355, 4294901760
    %v4357 = vsub.f32 %v4355, %v4356
    %v4358 = vand.u32 %v4357, 4294901760
    %4359 = vmatpush1.xpose.msra.mxu0 %v4358
    %4360 = vmatprep.subr.mxu0 0.0
    %v4361 = vand.u32 %v4224, 4294901760
    %v4362 = vsub.f32 %v4224, %v4361
    %v4363 = vand.u32 %v4362, 4294901760
    %v4364 = vsub.f32 %v4362, %v4363
    %v4365 = vand.u32 %v4364, 4294901760
    %4366 = vmatpush1.xpose.msra.mxu0 %v4365
    %4367 = vmatprep.subr.mxu0 0.0
    %v4368 = vand.u32 %v4227, 4294901760
    %v4369 = vsub.f32 %v4227, %v4368
    %v4370 = vand.u32 %v4369, 4294901760
    %v4371 = vsub.f32 %v4369, %v4370
    %v4372 = vand.u32 %v4371, 4294901760
    %4373 = vmatpush1.xpose.msra.mxu0 %v4372
    %4374 = vmatprep.subr.mxu0 0.0
    %v4375 = vand.u32 %v4230, 4294901760
    %v4376 = vsub.f32 %v4230, %v4375
    %v4377 = vand.u32 %v4376, 4294901760
    %v4378 = vsub.f32 %v4376, %v4377
    %v4379 = vand.u32 %v4378, 4294901760
    %4380 = vmatpush1.xpose.msra.mxu0 %v4379
    %4381 = vmatprep.subr.mxu0 0.0
    %4382 = vmatpush1.xpose.msra.mxu0 0.0
    %4383 = vmatprep.subr.mxu0 0.0
    %4384 = vmatpush1.xpose.msra.mxu0 0.0
    %4385 = vmatprep.subr.mxu0 0.0
    %4386 = vmatpush1.xpose.msra.mxu0 0.0
    %4387 = vmatprep.subr.mxu0 0.0
    %4388 = vmatpush1.xpose.msra.mxu0 0.0
    %4389 = vmatprep.subr.mxu0 0.0
    %4390 = vmatpush1.xpose.msra.mxu0 0.0
    %4391 = vmatprep.subr.mxu0 0.0
    %4392 = vmatpush1.xpose.msra.mxu0 0.0
    %4393 = vmatprep.subr.mxu0 0.0
    %4394 = vmatpush1.xpose.msra.mxu0 0.0
    %4395 = vmatprep.subr.mxu0 0.0
    %4396 = vmatpush1.xpose.msra.mxu0 0.0
    %4397 = vmatprep.subr.mxu0 0.0
    %4398 = vmatpush1.xpose.msra.mxu0 0.0
    %4399 = vmatprep.subr.mxu0 0.0
    %4400 = vmatpush1.xpose.msra.mxu0 0.0
    %4401 = vmatprep.subr.mxu0 0.0
    %4402 = vmatpush1.xpose.msra.mxu0 0.0
    %4403 = vmatprep.subr.mxu0 0.0
    %4404 = vmatpush1.xpose.msra.mxu0 0.0
    %4405 = vmatprep.subr.mxu0 0.0
    %4406 = vmatpush1.xpose.msra.mxu0 0.0
    %4407 = vmatprep.subr.mxu0 0.0
    %4408 = vmatpush1.xpose.msra.mxu0 0.0
    %4409 = vmatprep.subr.mxu0 0.0
    %4410 = vmatpush1.xpose.msra.mxu0 0.0
    %4411 = vmatprep.subr.mxu0 0.0
    %4412 = vmatpush1.xpose.msra.mxu0 0.0
    %4413 = vmatprep.subr.mxu0 0.0
    %4414 = vmatpush1.xpose.msra.mxu0 0.0
    %4415 = vmatprep.subr.mxu0 0.0
    %4416 = vmatpush1.xpose.msra.mxu0 0.0
    %4417 = vmatprep.subr.mxu0 0.0
    %4418 = vmatpush1.xpose.msra.mxu0 0.0
    %4419 = vmatprep.subr.mxu0 0.0
    %4420 = vmatpush1.xpose.msra.mxu0 0.0
    %4421 = vmatprep.subr.mxu0 0.0
    %4422 = vmatpush1.xpose.msra.mxu0 0.0
    %4423 = vmatprep.subr.mxu0 0.0
    %4424 = vmatpush1.xpose.msra.mxu0 0.0
    %4425 = vmatprep.subr.mxu0 0.0
    %4426 = vmatpush1.xpose.msra.mxu0 0.0
    %4427 = vmatprep.subr.mxu0 0.0
    %4428 = vmatpush1.xpose.msra.mxu0 0.0
    %4429 = vmatprep.mubr.f32.mxu0 0.0
    %v4430 = vand.u32 %v4203, 4294901760
    %4431 = vmatmul.mubr.f32.gmra.mrb[0].mxu0 %v4430
    %v4432 = vpop.f32.mrb[0].mxu0
    %v4433 = vadd.f32 %v4312, %v4432
    %v4434 = vpop.f32.mrb[0].mxu0
    %4435 = vmatprep.mubr.f32.mxu0 0.0
    %v4436 = vand.u32 %v4206, 4294901760
    %4437 = vmatmul.mubr.f32.gmra.mrb[0].mxu0 %v4436
    %v4438 = vpop.f32.mrb[0].mxu0
    %v4439 = vadd.f32 %v4322, %v4438
    %v4440 = vpop.f32.mrb[0].mxu0
    %4441 = vdwg.mxu0
    %4442 = vmatprep.subr.mxu0 0.0
    %v4443 = vand.u32 %v4209, 4294901760
    %v4444 = vsub.f32 %v4209, %v4443
    %4445 = vmatpush1.xpose.msra.mxu0 %v4444
    %4446 = vmatprep.subr.mxu0 0.0
    %v4447 = vand.u32 %v4212, 4294901760
    %v4448 = vsub.f32 %v4212, %v4447
    %4449 = vmatpush1.xpose.msra.mxu0 %v4448
    %4450 = vmatprep.subr.mxu0 0.0
    %v4451 = vand.u32 %v4215, 4294901760
    %v4452 = vsub.f32 %v4215, %v4451
    %4453 = vmatpush1.xpose.msra.mxu0 %v4452
    %4454 = vmatprep.subr.mxu0 0.0
    %v4455 = vand.u32 %v4218, 4294901760
    %v4456 = vsub.f32 %v4218, %v4455
    %4457 = vmatpush1.xpose.msra.mxu0 %v4456
    %4458 = vmatprep.subr.mxu0 0.0
    %v4459 = vand.u32 %v4221, 4294901760
    %v4460 = vsub.f32 %v4221, %v4459
    %4461 = vmatpush1.xpose.msra.mxu0 %v4460
    %4462 = vmatprep.subr.mxu0 0.0
    %v4463 = vand.u32 %v4224, 4294901760
    %v4464 = vsub.f32 %v4224, %v4463
    %4465 = vmatpush1.xpose.msra.mxu0 %v4464
    %4466 = vmatprep.subr.mxu0 0.0
    %v4467 = vand.u32 %v4227, 4294901760
    %v4468 = vsub.f32 %v4227, %v4467
    %4469 = vmatpush1.xpose.msra.mxu0 %v4468
    %4470 = vmatprep.subr.mxu0 0.0
    %v4471 = vand.u32 %v4230, 4294901760
    %v4472 = vsub.f32 %v4230, %v4471
    %4473 = vmatpush1.xpose.msra.mxu0 %v4472
    %4474 = vmatprep.subr.mxu0 0.0
    %4475 = vmatpush1.xpose.msra.mxu0 0.0
    %4476 = vmatprep.subr.mxu0 0.0
    %4477 = vmatpush1.xpose.msra.mxu0 0.0
    %4478 = vmatprep.subr.mxu0 0.0
    %4479 = vmatpush1.xpose.msra.mxu0 0.0
    %4480 = vmatprep.subr.mxu0 0.0
    %4481 = vmatpush1.xpose.msra.mxu0 0.0
    %4482 = vmatprep.subr.mxu0 0.0
    %4483 = vmatpush1.xpose.msra.mxu0 0.0
    %4484 = vmatprep.subr.mxu0 0.0
    %4485 = vmatpush1.xpose.msra.mxu0 0.0
    %4486 = vmatprep.subr.mxu0 0.0
    %4487 = vmatpush1.xpose.msra.mxu0 0.0
    %4488 = vmatprep.subr.mxu0 0.0
    %4489 = vmatpush1.xpose.msra.mxu0 0.0
    %4490 = vmatprep.subr.mxu0 0.0
    %4491 = vmatpush1.xpose.msra.mxu0 0.0
    %4492 = vmatprep.subr.mxu0 0.0
    %4493 = vmatpush1.xpose.msra.mxu0 0.0
    %4494 = vmatprep.subr.mxu0 0.0
    %4495 = vmatpush1.xpose.msra.mxu0 0.0
    %4496 = vmatprep.subr.mxu0 0.0
    %4497 = vmatpush1.xpose.msra.mxu0 0.0
    %4498 = vmatprep.subr.mxu0 0.0
    %4499 = vmatpush1.xpose.msra.mxu0 0.0
    %4500 = vmatprep.subr.mxu0 0.0
    %4501 = vmatpush1.xpose.msra.mxu0 0.0
    %4502 = vmatprep.subr.mxu0 0.0
    %4503 = vmatpush1.xpose.msra.mxu0 0.0
    %4504 = vmatprep.subr.mxu0 0.0
    %4505 = vmatpush1.xpose.msra.mxu0 0.0
    %4506 = vmatprep.subr.mxu0 0.0
    %4507 = vmatpush1.xpose.msra.mxu0 0.0
    %4508 = vmatprep.subr.mxu0 0.0
    %4509 = vmatpush1.xpose.msra.mxu0 0.0
    %4510 = vmatprep.subr.mxu0 0.0
    %4511 = vmatpush1.xpose.msra.mxu0 0.0
    %4512 = vmatprep.subr.mxu0 0.0
    %4513 = vmatpush1.xpose.msra.mxu0 0.0
    %4514 = vmatprep.subr.mxu0 0.0
    %4515 = vmatpush1.xpose.msra.mxu0 0.0
    %4516 = vmatprep.subr.mxu0 0.0
    %4517 = vmatpush1.xpose.msra.mxu0 0.0
    %4518 = vmatprep.subr.mxu0 0.0
    %4519 = vmatpush1.xpose.msra.mxu0 0.0
    %4520 = vmatprep.subr.mxu0 0.0
    %4521 = vmatpush1.xpose.msra.mxu0 0.0
    %4522 = vmatprep.mubr.f32.mxu0 0.0
    %v4523 = vand.u32 %v4203, 4294901760
    %v4524 = vsub.f32 %v4203, %v4523
    %4525 = vmatmul.mubr.f32.gmra.mrb[0].mxu0 %v4524
    %v4526 = vpop.f32.mrb[0].mxu0
    %v4527 = vadd.f32 %v4433, %v4526
    %v4528 = vpop.f32.mrb[0].mxu0
    %4529 = vmatprep.mubr.f32.mxu0 0.0
    %v4530 = vand.u32 %v4206, 4294901760
    %v4531 = vsub.f32 %v4206, %v4530
    %4532 = vmatmul.mubr.f32.gmra.mrb[0].mxu0 %v4531
    %v4533 = vpop.f32.mrb[0].mxu0
    %v4534 = vadd.f32 %v4439, %v4533
    %v4535 = vpop.f32.mrb[0].mxu0
    %4536 = vdwg.mxu0
    %4537 = vmatprep.subr.mxu0 0.0
    %v4538 = vand.u32 %v4209, 4294901760
    %4539 = vmatpush1.xpose.msra.mxu0 %v4538
    %4540 = vmatprep.subr.mxu0 0.0
    %v4541 = vand.u32 %v4212, 4294901760
    %4542 = vmatpush1.xpose.msra.mxu0 %v4541
    %4543 = vmatprep.subr.mxu0 0.0
    %v4544 = vand.u32 %v4215, 4294901760
    %4545 = vmatpush1.xpose.msra.mxu0 %v4544
    %4546 = vmatprep.subr.mxu0 0.0
    %v4547 = vand.u32 %v4218, 4294901760
    %4548 = vmatpush1.xpose.msra.mxu0 %v4547
    %4549 = vmatprep.subr.mxu0 0.0
    %v4550 = vand.u32 %v4221, 4294901760
    %4551 = vmatpush1.xpose.msra.mxu0 %v4550
    %4552 = vmatprep.subr.mxu0 0.0
    %v4553 = vand.u32 %v4224, 4294901760
    %4554 = vmatpush1.xpose.msra.mxu0 %v4553
    %4555 = vmatprep.subr.mxu0 0.0
    %v4556 = vand.u32 %v4227, 4294901760
    %4557 = vmatpush1.xpose.msra.mxu0 %v4556
    %4558 = vmatprep.subr.mxu0 0.0
    %v4559 = vand.u32 %v4230, 4294901760
    %4560 = vmatpush1.xpose.msra.mxu0 %v4559
    %4561 = vmatprep.subr.mxu0 0.0
    %4562 = vmatpush1.xpose.msra.mxu0 0.0
    %4563 = vmatprep.subr.mxu0 0.0
    %4564 = vmatpush1.xpose.msra.mxu0 0.0
    %4565 = vmatprep.subr.mxu0 0.0
    %4566 = vmatpush1.xpose.msra.mxu0 0.0
    %4567 = vmatprep.subr.mxu0 0.0
    %4568 = vmatpush1.xpose.msra.mxu0 0.0
    %4569 = vmatprep.subr.mxu0 0.0
    %4570 = vmatpush1.xpose.msra.mxu0 0.0
    %4571 = vmatprep.subr.mxu0 0.0
    %4572 = vmatpush1.xpose.msra.mxu0 0.0
    %4573 = vmatprep.subr.mxu0 0.0
    %4574 = vmatpush1.xpose.msra.mxu0 0.0
    %4575 = vmatprep.subr.mxu0 0.0
    %4576 = vmatpush1.xpose.msra.mxu0 0.0
    %4577 = vmatprep.subr.mxu0 0.0
    %4578 = vmatpush1.xpose.msra.mxu0 0.0
    %4579 = vmatprep.subr.mxu0 0.0
    %4580 = vmatpush1.xpose.msra.mxu0 0.0
    %4581 = vmatprep.subr.mxu0 0.0
    %4582 = vmatpush1.xpose.msra.mxu0 0.0
    %4583 = vmatprep.subr.mxu0 0.0
    %4584 = vmatpush1.xpose.msra.mxu0 0.0
    %4585 = vmatprep.subr.mxu0 0.0
    %4586 = vmatpush1.xpose.msra.mxu0 0.0
    %4587 = vmatprep.subr.mxu0 0.0
    %4588 = vmatpush1.xpose.msra.mxu0 0.0
    %4589 = vmatprep.subr.mxu0 0.0
    %4590 = vmatpush1.xpose.msra.mxu0 0.0
    %4591 = vmatprep.subr.mxu0 0.0
    %4592 = vmatpush1.xpose.msra.mxu0 0.0
    %4593 = vmatprep.subr.mxu0 0.0
    %4594 = vmatpush1.xpose.msra.mxu0 0.0
    %4595 = vmatprep.subr.mxu0 0.0
    %4596 = vmatpush1.xpose.msra.mxu0 0.0
    %4597 = vmatprep.subr.mxu0 0.0
    %4598 = vmatpush1.xpose.msra.mxu0 0.0
    %4599 = vmatprep.subr.mxu0 0.0
    %4600 = vmatpush1.xpose.msra.mxu0 0.0
    %4601 = vmatprep.subr.mxu0 0.0
    %4602 = vmatpush1.xpose.msra.mxu0 0.0
    %4603 = vmatprep.subr.mxu0 0.0
    %4604 = vmatpush1.xpose.msra.mxu0 0.0
    %4605 = vmatprep.subr.mxu0 0.0
    %4606 = vmatpush1.xpose.msra.mxu0 0.0
    %4607 = vmatprep.subr.mxu0 0.0
    %4608 = vmatpush1.xpose.msra.mxu0 0.0
    %4609 = vmatprep.mubr.f32.mxu0 0.0
    %v4610 = vand.u32 %v4203, 4294901760
    %v4611 = vsub.f32 %v4203, %v4610
    %v4612 = vand.u32 %v4611, 4294901760
    %4613 = vmatmul.mubr.f32.gmra.mrb[0].mxu0 %v4612
    %v4614 = vpop.f32.mrb[0].mxu0
    %v4615 = vadd.f32 %v4527, %v4614
    %v4616 = vpop.f32.mrb[0].mxu0
    %4617 = vmatprep.mubr.f32.mxu0 0.0
    %v4618 = vand.u32 %v4206, 4294901760
    %v4619 = vsub.f32 %v4206, %v4618
    %v4620 = vand.u32 %v4619, 4294901760
    %4621 = vmatmul.mubr.f32.gmra.mrb[0].mxu0 %v4620
    %v4622 = vpop.f32.mrb[0].mxu0
    %v4623 = vadd.f32 %v4534, %v4622
    %v4624 = vpop.f32.mrb[0].mxu0
    %4625 = vdwg.mxu0
    %4626 = vmatprep.subr.mxu0 0.0
    %v4627 = vand.u32 %v4209, 4294901760
    %v4628 = vsub.f32 %v4209, %v4627
    %v4629 = vand.u32 %v4628, 4294901760
    %4630 = vmatpush1.xpose.msra.mxu0 %v4629
    %4631 = vmatprep.subr.mxu0 0.0
    %v4632 = vand.u32 %v4212, 4294901760
    %v4633 = vsub.f32 %v4212, %v4632
    %v4634 = vand.u32 %v4633, 4294901760
    %4635 = vmatpush1.xpose.msra.mxu0 %v4634
    %4636 = vmatprep.subr.mxu0 0.0
    %v4637 = vand.u32 %v4215, 4294901760
    %v4638 = vsub.f32 %v4215, %v4637
    %v4639 = vand.u32 %v4638, 4294901760
    %4640 = vmatpush1.xpose.msra.mxu0 %v4639
    %4641 = vmatprep.subr.mxu0 0.0
    %v4642 = vand.u32 %v4218, 4294901760
    %v4643 = vsub.f32 %v4218, %v4642
    %v4644 = vand.u32 %v4643, 4294901760
    %4645 = vmatpush1.xpose.msra.mxu0 %v4644
    %4646 = vmatprep.subr.mxu0 0.0
    %v4647 = vand.u32 %v4221, 4294901760
    %v4648 = vsub.f32 %v4221, %v4647
    %v4649 = vand.u32 %v4648, 4294901760
    %4650 = vmatpush1.xpose.msra.mxu0 %v4649
    %4651 = vmatprep.subr.mxu0 0.0
    %v4652 = vand.u32 %v4224, 4294901760
    %v4653 = vsub.f32 %v4224, %v4652
    %v4654 = vand.u32 %v4653, 4294901760
    %4655 = vmatpush1.xpose.msra.mxu0 %v4654
    %4656 = vmatprep.subr.mxu0 0.0
    %v4657 = vand.u32 %v4227, 4294901760
    %v4658 = vsub.f32 %v4227, %v4657
    %v4659 = vand.u32 %v4658, 4294901760
    %4660 = vmatpush1.xpose.msra.mxu0 %v4659
    %4661 = vmatprep.subr.mxu0 0.0
    %v4662 = vand.u32 %v4230, 4294901760
    %v4663 = vsub.f32 %v4230, %v4662
    %v4664 = vand.u32 %v4663, 4294901760
    %4665 = vmatpush1.xpose.msra.mxu0 %v4664
    %4666 = vmatprep.subr.mxu0 0.0
    %4667 = vmatpush1.xpose.msra.mxu0 0.0
    %4668 = vmatprep.subr.mxu0 0.0
    %4669 = vmatpush1.xpose.msra.mxu0 0.0
    %4670 = vmatprep.subr.mxu0 0.0
    %4671 = vmatpush1.xpose.msra.mxu0 0.0
    %4672 = vmatprep.subr.mxu0 0.0
    %4673 = vmatpush1.xpose.msra.mxu0 0.0
    %4674 = vmatprep.subr.mxu0 0.0
    %4675 = vmatpush1.xpose.msra.mxu0 0.0
    %4676 = vmatprep.subr.mxu0 0.0
    %4677 = vmatpush1.xpose.msra.mxu0 0.0
    %4678 = vmatprep.subr.mxu0 0.0
    %4679 = vmatpush1.xpose.msra.mxu0 0.0
    %4680 = vmatprep.subr.mxu0 0.0
    %4681 = vmatpush1.xpose.msra.mxu0 0.0
    %4682 = vmatprep.subr.mxu0 0.0
    %4683 = vmatpush1.xpose.msra.mxu0 0.0
    %4684 = vmatprep.subr.mxu0 0.0
    %4685 = vmatpush1.xpose.msra.mxu0 0.0
    %4686 = vmatprep.subr.mxu0 0.0
    %4687 = vmatpush1.xpose.msra.mxu0 0.0
    %4688 = vmatprep.subr.mxu0 0.0
    %4689 = vmatpush1.xpose.msra.mxu0 0.0
    %4690 = vmatprep.subr.mxu0 0.0
    %4691 = vmatpush1.xpose.msra.mxu0 0.0
    %4692 = vmatprep.subr.mxu0 0.0
    %4693 = vmatpush1.xpose.msra.mxu0 0.0
    %4694 = vmatprep.subr.mxu0 0.0
    %4695 = vmatpush1.xpose.msra.mxu0 0.0
    %4696 = vmatprep.subr.mxu0 0.0
    %4697 = vmatpush1.xpose.msra.mxu0 0.0
    %4698 = vmatprep.subr.mxu0 0.0
    %4699 = vmatpush1.xpose.msra.mxu0 0.0
    %4700 = vmatprep.subr.mxu0 0.0
    %4701 = vmatpush1.xpose.msra.mxu0 0.0
    %4702 = vmatprep.subr.mxu0 0.0
    %4703 = vmatpush1.xpose.msra.mxu0 0.0
    %4704 = vmatprep.subr.mxu0 0.0
    %4705 = vmatpush1.xpose.msra.mxu0 0.0
    %4706 = vmatprep.subr.mxu0 0.0
    %4707 = vmatpush1.xpose.msra.mxu0 0.0
    %4708 = vmatprep.subr.mxu0 0.0
    %4709 = vmatpush1.xpose.msra.mxu0 0.0
    %4710 = vmatprep.subr.mxu0 0.0
    %4711 = vmatpush1.xpose.msra.mxu0 0.0
    %4712 = vmatprep.subr.mxu0 0.0
    %4713 = vmatpush1.xpose.msra.mxu0 0.0
    %4714 = vmatprep.mubr.f32.mxu0 0.0
    %v4715 = vand.u32 %v4203, 4294901760
    %4716 = vmatmul.mubr.f32.gmra.mrb[0].mxu0 %v4715
    %v4717 = vpop.f32.mrb[0].mxu0
    %v4718 = vadd.f32 %v4615, %v4717
    %v4719 = vpop.f32.mrb[0].mxu0
    %4720 = vmatprep.mubr.f32.mxu0 0.0
    %v4721 = vand.u32 %v4206, 4294901760
    %4722 = vmatmul.mubr.f32.gmra.mrb[0].mxu0 %v4721
    %v4723 = vpop.f32.mrb[0].mxu0
    %v4724 = vadd.f32 %v4623, %v4723
    %v4725 = vpop.f32.mrb[0].mxu0
    %4726 = vdwg.mxu0
    %4727 = vmatprep.subr.mxu0 0.0
    %v4728 = vand.u32 %v4209, 4294901760
    %4729 = vmatpush1.xpose.msra.mxu0 %v4728
    %4730 = vmatprep.subr.mxu0 0.0
    %v4731 = vand.u32 %v4212, 4294901760
    %4732 = vmatpush1.xpose.msra.mxu0 %v4731
    %4733 = vmatprep.subr.mxu0 0.0
    %v4734 = vand.u32 %v4215, 4294901760
    %4735 = vmatpush1.xpose.msra.mxu0 %v4734
    %4736 = vmatprep.subr.mxu0 0.0
    %v4737 = vand.u32 %v4218, 4294901760
    %4738 = vmatpush1.xpose.msra.mxu0 %v4737
    %4739 = vmatprep.subr.mxu0 0.0
    %v4740 = vand.u32 %v4221, 4294901760
    %4741 = vmatpush1.xpose.msra.mxu0 %v4740
    %4742 = vmatprep.subr.mxu0 0.0
    %v4743 = vand.u32 %v4224, 4294901760
    %4744 = vmatpush1.xpose.msra.mxu0 %v4743
    %4745 = vmatprep.subr.mxu0 0.0
    %v4746 = vand.u32 %v4227, 4294901760
    %4747 = vmatpush1.xpose.msra.mxu0 %v4746
    %4748 = vmatprep.subr.mxu0 0.0
    %v4749 = vand.u32 %v4230, 4294901760
    %4750 = vmatpush1.xpose.msra.mxu0 %v4749
    %4751 = vmatprep.subr.mxu0 0.0
    %4752 = vmatpush1.xpose.msra.mxu0 0.0
    %4753 = vmatprep.subr.mxu0 0.0
    %4754 = vmatpush1.xpose.msra.mxu0 0.0
    %4755 = vmatprep.subr.mxu0 0.0
    %4756 = vmatpush1.xpose.msra.mxu0 0.0
    %4757 = vmatprep.subr.mxu0 0.0
    %4758 = vmatpush1.xpose.msra.mxu0 0.0
    %4759 = vmatprep.subr.mxu0 0.0
    %4760 = vmatpush1.xpose.msra.mxu0 0.0
    %4761 = vmatprep.subr.mxu0 0.0
    %4762 = vmatpush1.xpose.msra.mxu0 0.0
    %4763 = vmatprep.subr.mxu0 0.0
    %4764 = vmatpush1.xpose.msra.mxu0 0.0
    %4765 = vmatprep.subr.mxu0 0.0
    %4766 = vmatpush1.xpose.msra.mxu0 0.0
    %4767 = vmatprep.subr.mxu0 0.0
    %4768 = vmatpush1.xpose.msra.mxu0 0.0
    %4769 = vmatprep.subr.mxu0 0.0
    %4770 = vmatpush1.xpose.msra.mxu0 0.0
    %4771 = vmatprep.subr.mxu0 0.0
    %4772 = vmatpush1.xpose.msra.mxu0 0.0
    %4773 = vmatprep.subr.mxu0 0.0
    %4774 = vmatpush1.xpose.msra.mxu0 0.0
    %4775 = vmatprep.subr.mxu0 0.0
    %4776 = vmatpush1.xpose.msra.mxu0 0.0
    %4777 = vmatprep.subr.mxu0 0.0
    %4778 = vmatpush1.xpose.msra.mxu0 0.0
    %4779 = vmatprep.subr.mxu0 0.0
    %4780 = vmatpush1.xpose.msra.mxu0 0.0
    %4781 = vmatprep.subr.mxu0 0.0
    %4782 = vmatpush1.xpose.msra.mxu0 0.0
    %4783 = vmatprep.subr.mxu0 0.0
    %4784 = vmatpush1.xpose.msra.mxu0 0.0
    %4785 = vmatprep.subr.mxu0 0.0
    %4786 = vmatpush1.xpose.msra.mxu0 0.0
    %4787 = vmatprep.subr.mxu0 0.0
    %4788 = vmatpush1.xpose.msra.mxu0 0.0
    %4789 = vmatprep.subr.mxu0 0.0
    %4790 = vmatpush1.xpose.msra.mxu0 0.0
    %4791 = vmatprep.subr.mxu0 0.0
    %4792 = vmatpush1.xpose.msra.mxu0 0.0
    %4793 = vmatprep.subr.mxu0 0.0
    %4794 = vmatpush1.xpose.msra.mxu0 0.0
    %4795 = vmatprep.subr.mxu0 0.0
    %4796 = vmatpush1.xpose.msra.mxu0 0.0
    %4797 = vmatprep.subr.mxu0 0.0
    %4798 = vmatpush1.xpose.msra.mxu0 0.0
    %4799 = vmatprep.mubr.f32.mxu0 0.0
    %v4800 = vand.u32 %v4203, 4294901760
    %4801 = vmatmul.mubr.f32.gmra.mrb[0].mxu0 %v4800
    %v4802 = vpop.f32.mrb[0].mxu0
    %v4803 = vadd.f32 %v4718, %v4802
    %v4804 = vpop.f32.mrb[0].mxu0
    %4805 = vmatprep.mubr.f32.mxu0 0.0
    %v4806 = vand.u32 %v4206, 4294901760
    %4807 = vmatmul.mubr.f32.gmra.mrb[0].mxu0 %v4806
    %v4808 = vpop.f32.mrb[0].mxu0
    %v4809 = vadd.f32 %v4724, %v4808
    %v4810 = vpop.f32.mrb[0].mxu0
    %4811 = vdwg.mxu0
    %v4812 = vsel %vm1299, %v4803, -inf
    %4813 = vmax.xlane.f32.xlu0 %v4812
    %v4814 = vpop.xlane.xlu0 %4813
    %v4815 = vsel %vm1299, %v4809, -inf
    %4816 = vmax.xlane.f32.xlu0 %v4815
    %v4817 = vpop.xlane.xlu0 %4816
    %v4818 = vsub.f32 %v4803, %v4814
    %v4819 = vsub.f32 %v4809, %v4817
    %v4820 = vmul.f32 %v4818, 1.442695
    %v4821 = vpow.pop %v4820
    %v4822 = vmul.f32 %v4819, 1.442695
    %v4823 = vpow.pop %v4822
    %4832 = vrot.lane.b32.xlu0 %v4194, 96
    %v4833 = vpop.permute.xlu0 %4832
    %4834 = vrot.lane.b32.xlu0 %v4195, 96
    %v4835 = vpop.permute.xlu0 %4834
    %4836 = vrot.lane.b32.xlu0 %v4196, 96
    %v4837 = vpop.permute.xlu0 %4836
    %4838 = vrot.lane.b32.xlu0 %v4197, 96
    %v4839 = vpop.permute.xlu0 %4838
    %4840 = vrot.lane.b32.xlu0 %v4198, 96
    %v4841 = vpop.permute.xlu0 %4840
    %4842 = vrot.lane.b32.xlu0 %v4199, 96
    %v4843 = vpop.permute.xlu0 %4842
    %4844 = vrot.lane.b32.xlu0 %v4200, 96
    %v4845 = vpop.permute.xlu0 %4844
    %4846 = vrot.lane.b32.xlu0 %v4201, 96
    %v4847 = vpop.permute.xlu0 %4846
    %v4857 = vsel %vm1299, %v4821, 0
    %v4860 = vsel %vm1299, %v4823, 0
    %4862 = vmatprep.subr.mxu0 0.0
    %v4863 = vand.u32 %v4833, 4294901760
    %4864 = vmatpush1.msra.mxu0 %v4863
    %4865 = vmatprep.subr.mxu0 0.0
    %v4866 = vand.u32 %v4835, 4294901760
    %4867 = vmatpush1.msra.mxu0 %v4866
    %4868 = vmatprep.subr.mxu0 0.0
    %v4869 = vand.u32 %v4837, 4294901760
    %4870 = vmatpush1.msra.mxu0 %v4869
    %4871 = vmatprep.subr.mxu0 0.0
    %v4872 = vand.u32 %v4839, 4294901760
    %4873 = vmatpush1.msra.mxu0 %v4872
    %4874 = vmatprep.subr.mxu0 0.0
    %v4875 = vand.u32 %v4841, 4294901760
    %4876 = vmatpush1.msra.mxu0 %v4875
    %4877 = vmatprep.subr.mxu0 0.0
    %v4878 = vand.u32 %v4843, 4294901760
    %4879 = vmatpush1.msra.mxu0 %v4878
    %4880 = vmatprep.subr.mxu0 0.0
    %v4881 = vand.u32 %v4845, 4294901760
    %4882 = vmatpush1.msra.mxu0 %v4881
    %4883 = vmatprep.subr.mxu0 0.0
    %v4884 = vand.u32 %v4847, 4294901760
    %4885 = vmatpush1.msra.mxu0 %v4884
    %4886 = vmatprep.subr.mxu0 0.0
    %4887 = vmatpush1.msra.mxu0 0.0
    %4888 = vmatprep.subr.mxu0 0.0
    %4889 = vmatpush1.msra.mxu0 0.0
    %4890 = vmatprep.subr.mxu0 0.0
    %4891 = vmatpush1.msra.mxu0 0.0
    %4892 = vmatprep.subr.mxu0 0.0
    %4893 = vmatpush1.msra.mxu0 0.0
    %4894 = vmatprep.subr.mxu0 0.0
    %4895 = vmatpush1.msra.mxu0 0.0
    %4896 = vmatprep.subr.mxu0 0.0
    %4897 = vmatpush1.msra.mxu0 0.0
    %4898 = vmatprep.subr.mxu0 0.0
    %4899 = vmatpush1.msra.mxu0 0.0
    %4900 = vmatprep.subr.mxu0 0.0
    %4901 = vmatpush1.msra.mxu0 0.0
    %4902 = vmatprep.subr.mxu0 0.0
    %4903 = vmatpush1.msra.mxu0 0.0
    %4904 = vmatprep.subr.mxu0 0.0
    %4905 = vmatpush1.msra.mxu0 0.0
    %4906 = vmatprep.subr.mxu0 0.0
    %4907 = vmatpush1.msra.mxu0 0.0
    %4908 = vmatprep.subr.mxu0 0.0
    %4909 = vmatpush1.msra.mxu0 0.0
    %4910 = vmatprep.subr.mxu0 0.0
    %4911 = vmatpush1.msra.mxu0 0.0
    %4912 = vmatprep.subr.mxu0 0.0
    %4913 = vmatpush1.msra.mxu0 0.0
    %4914 = vmatprep.subr.mxu0 0.0
    %4915 = vmatpush1.msra.mxu0 0.0
    %4916 = vmatprep.subr.mxu0 0.0
    %4917 = vmatpush1.msra.mxu0 0.0
    %4918 = vmatprep.subr.mxu0 0.0
    %4919 = vmatpush1.msra.mxu0 0.0
    %4920 = vmatprep.subr.mxu0 0.0
    %4921 = vmatpush1.msra.mxu0 0.0
    %4922 = vmatprep.subr.mxu0 0.0
    %4923 = vmatpush1.msra.mxu0 0.0
    %4924 = vmatprep.subr.mxu0 0.0
    %4925 = vmatpush1.msra.mxu0 0.0
    %4926 = vmatprep.subr.mxu0 0.0
    %4927 = vmatpush1.msra.mxu0 0.0
    %4928 = vmatprep.subr.mxu0 0.0
    %4929 = vmatpush1.msra.mxu0 0.0
    %4930 = vmatprep.subr.mxu0 0.0
    %4931 = vmatpush1.msra.mxu0 0.0
    %4932 = vmatprep.subr.mxu0 0.0
    %4933 = vmatpush1.msra.mxu0 0.0
    %4934 = vmatprep.mubr.f32.mxu0 0.0
    %v4935 = vand.u32 %v4857, 4294901760
    %v4936 = vsub.f32 %v4857, %v4935
    %v4937 = vand.u32 %v4936, 4294901760
    %v4938 = vsub.f32 %v4936, %v4937
    %v4939 = vand.u32 %v4938, 4294901760
    %4940 = vmatmul.mubr.f32.gmra.mrb[0].mxu0 %v4939
    %v4941 = vpop.f32.mrb[0].mxu0
    %v4942 = vadd.f32 0.0, %v4941
    %v4943 = vpop.f32.mrb[0].mxu0
    %4944 = vmatprep.mubr.f32.mxu0 0.0
    %v4945 = vand.u32 %v4860, 4294901760
    %v4946 = vsub.f32 %v4860, %v4945
    %v4947 = vand.u32 %v4946, 4294901760
    %v4948 = vsub.f32 %v4946, %v4947
    %v4949 = vand.u32 %v4948, 4294901760
    %4950 = vmatmul.mubr.f32.gmra.mrb[0].mxu0 %v4949
    %v4951 = vpop.f32.mrb[0].mxu0
    %v4952 = vadd.f32 0.0, %v4951
    %v4953 = vpop.f32.mrb[0].mxu0
    %4954 = vdwg.mxu0
    %4955 = vmatprep.subr.mxu0 0.0
    %v4956 = vand.u32 %v4833, 4294901760
    %v4957 = vsub.f32 %v4833, %v4956
    %v4958 = vand.u32 %v4957, 4294901760
    %v4959 = vsub.f32 %v4957, %v4958
    %v4960 = vand.u32 %v4959, 4294901760
    %4961 = vmatpush1.msra.mxu0 %v4960
    %4962 = vmatprep.subr.mxu0 0.0
    %v4963 = vand.u32 %v4835, 4294901760
    %v4964 = vsub.f32 %v4835, %v4963
    %v4965 = vand.u32 %v4964, 4294901760
    %v4966 = vsub.f32 %v4964, %v4965
    %v4967 = vand.u32 %v4966, 4294901760
    %4968 = vmatpush1.msra.mxu0 %v4967
    %4969 = vmatprep.subr.mxu0 0.0
    %v4970 = vand.u32 %v4837, 4294901760
    %v4971 = vsub.f32 %v4837, %v4970
    %v4972 = vand.u32 %v4971, 4294901760
    %v4973 = vsub.f32 %v4971, %v4972
    %v4974 = vand.u32 %v4973, 4294901760
    %4975 = vmatpush1.msra.mxu0 %v4974
    %4976 = vmatprep.subr.mxu0 0.0
    %v4977 = vand.u32 %v4839, 4294901760
    %v4978 = vsub.f32 %v4839, %v4977
    %v4979 = vand.u32 %v4978, 4294901760
    %v4980 = vsub.f32 %v4978, %v4979
    %v4981 = vand.u32 %v4980, 4294901760
    %4982 = vmatpush1.msra.mxu0 %v4981
    %4983 = vmatprep.subr.mxu0 0.0
    %v4984 = vand.u32 %v4841, 4294901760
    %v4985 = vsub.f32 %v4841, %v4984
    %v4986 = vand.u32 %v4985, 4294901760
    %v4987 = vsub.f32 %v4985, %v4986
    %v4988 = vand.u32 %v4987, 4294901760
    %4989 = vmatpush1.msra.mxu0 %v4988
    %4990 = vmatprep.subr.mxu0 0.0
    %v4991 = vand.u32 %v4843, 4294901760
    %v4992 = vsub.f32 %v4843, %v4991
    %v4993 = vand.u32 %v4992, 4294901760
    %v4994 = vsub.f32 %v4992, %v4993
    %v4995 = vand.u32 %v4994, 4294901760
    %4996 = vmatpush1.msra.mxu0 %v4995
    %4997 = vmatprep.subr.mxu0 0.0
    %v4998 = vand.u32 %v4845, 4294901760
    %v4999 = vsub.f32 %v4845, %v4998
    %v5000 = vand.u32 %v4999, 4294901760
    %v5001 = vsub.f32 %v4999, %v5000
    %v5002 = vand.u32 %v5001, 4294901760
    %5003 = vmatpush1.msra.mxu0 %v5002
    %5004 = vmatprep.subr.mxu0 0.0
    %v5005 = vand.u32 %v4847, 4294901760
    %v5006 = vsub.f32 %v4847, %v5005
    %v5007 = vand.u32 %v5006, 4294901760
    %v5008 = vsub.f32 %v5006, %v5007
    %v5009 = vand.u32 %v5008, 4294901760
    %5010 = vmatpush1.msra.mxu0 %v5009
    %5011 = vmatprep.subr.mxu0 0.0
    %5012 = vmatpush1.msra.mxu0 0.0
    %5013 = vmatprep.subr.mxu0 0.0
    %5014 = vmatpush1.msra.mxu0 0.0
    %5015 = vmatprep.subr.mxu0 0.0
    %5016 = vmatpush1.msra.mxu0 0.0
    %5017 = vmatprep.subr.mxu0 0.0
    %5018 = vmatpush1.msra.mxu0 0.0
    %5019 = vmatprep.subr.mxu0 0.0
    %5020 = vmatpush1.msra.mxu0 0.0
    %5021 = vmatprep.subr.mxu0 0.0
    %5022 = vmatpush1.msra.mxu0 0.0
    %5023 = vmatprep.subr.mxu0 0.0
    %5024 = vmatpush1.msra.mxu0 0.0
    %5025 = vmatprep.subr.mxu0 0.0
    %5026 = vmatpush1.msra.mxu0 0.0
    %5027 = vmatprep.subr.mxu0 0.0
    %5028 = vmatpush1.msra.mxu0 0.0
    %5029 = vmatprep.subr.mxu0 0.0
    %5030 = vmatpush1.msra.mxu0 0.0
    %5031 = vmatprep.subr.mxu0 0.0
    %5032 = vmatpush1.msra.mxu0 0.0
    %5033 = vmatprep.subr.mxu0 0.0
    %5034 = vmatpush1.msra.mxu0 0.0
    %5035 = vmatprep.subr.mxu0 0.0
    %5036 = vmatpush1.msra.mxu0 0.0
    %5037 = vmatprep.subr.mxu0 0.0
    %5038 = vmatpush1.msra.mxu0 0.0
    %5039 = vmatprep.subr.mxu0 0.0
    %5040 = vmatpush1.msra.mxu0 0.0
    %5041 = vmatprep.subr.mxu0 0.0
    %5042 = vmatpush1.msra.mxu0 0.0
    %5043 = vmatprep.subr.mxu0 0.0
    %5044 = vmatpush1.msra.mxu0 0.0
    %5045 = vmatprep.subr.mxu0 0.0
    %5046 = vmatpush1.msra.mxu0 0.0
    %5047 = vmatprep.subr.mxu0 0.0
    %5048 = vmatpush1.msra.mxu0 0.0
    %5049 = vmatprep.subr.mxu0 0.0
    %5050 = vmatpush1.msra.mxu0 0.0
    %5051 = vmatprep.subr.mxu0 0.0
    %5052 = vmatpush1.msra.mxu0 0.0
    %5053 = vmatprep.subr.mxu0 0.0
    %5054 = vmatpush1.msra.mxu0 0.0
    %5055 = vmatprep.subr.mxu0 0.0
    %5056 = vmatpush1.msra.mxu0 0.0
    %5057 = vmatprep.subr.mxu0 0.0
    %5058 = vmatpush1.msra.mxu0 0.0
    %5059 = vmatprep.mubr.f32.mxu0 0.0
    %v5060 = vand.u32 %v4857, 4294901760
    %5061 = vmatmul.mubr.f32.gmra.mrb[0].mxu0 %v5060
    %v5062 = vpop.f32.mrb[0].mxu0
    %v5063 = vadd.f32 %v4942, %v5062
    %v5064 = vpop.f32.mrb[0].mxu0
    %5065 = vmatprep.mubr.f32.mxu0 0.0
    %v5066 = vand.u32 %v4860, 4294901760
    %5067 = vmatmul.mubr.f32.gmra.mrb[0].mxu0 %v5066
    %v5068 = vpop.f32.mrb[0].mxu0
    %v5069 = vadd.f32 %v4952, %v5068
    %v5070 = vpop.f32.mrb[0].mxu0
    %5071 = vdwg.mxu0
    %5072 = vmatprep.subr.mxu0 0.0
    %v5073 = vand.u32 %v4833, 4294901760
    %v5074 = vsub.f32 %v4833, %v5073
    %5075 = vmatpush1.msra.mxu0 %v5074
    %5076 = vmatprep.subr.mxu0 0.0
    %v5077 = vand.u32 %v4835, 4294901760
    %v5078 = vsub.f32 %v4835, %v5077
    %5079 = vmatpush1.msra.mxu0 %v5078
    %5080 = vmatprep.subr.mxu0 0.0
    %v5081 = vand.u32 %v4837, 4294901760
    %v5082 = vsub.f32 %v4837, %v5081
    %5083 = vmatpush1.msra.mxu0 %v5082
    %5084 = vmatprep.subr.mxu0 0.0
    %v5085 = vand.u32 %v4839, 4294901760
    %v5086 = vsub.f32 %v4839, %v5085
    %5087 = vmatpush1.msra.mxu0 %v5086
    %5088 = vmatprep.subr.mxu0 0.0
    %v5089 = vand.u32 %v4841, 4294901760
    %v5090 = vsub.f32 %v4841, %v5089
    %5091 = vmatpush1.msra.mxu0 %v5090
    %5092 = vmatprep.subr.mxu0 0.0
    %v5093 = vand.u32 %v4843, 4294901760
    %v5094 = vsub.f32 %v4843, %v5093
    %5095 = vmatpush1.msra.mxu0 %v5094
    %5096 = vmatprep.subr.mxu0 0.0
    %v5097 = vand.u32 %v4845, 4294901760
    %v5098 = vsub.f32 %v4845, %v5097
    %5099 = vmatpush1.msra.mxu0 %v5098
    %5100 = vmatprep.subr.mxu0 0.0
    %v5101 = vand.u32 %v4847, 4294901760
    %v5102 = vsub.f32 %v4847, %v5101
    %5103 = vmatpush1.msra.mxu0 %v5102
    %5104 = vmatprep.subr.mxu0 0.0
    %5105 = vmatpush1.msra.mxu0 0.0
    %5106 = vmatprep.subr.mxu0 0.0
    %5107 = vmatpush1.msra.mxu0 0.0
    %5108 = vmatprep.subr.mxu0 0.0
    %5109 = vmatpush1.msra.mxu0 0.0
    %5110 = vmatprep.subr.mxu0 0.0
    %5111 = vmatpush1.msra.mxu0 0.0
    %5112 = vmatprep.subr.mxu0 0.0
    %5113 = vmatpush1.msra.mxu0 0.0
    %5114 = vmatprep.subr.mxu0 0.0
    %5115 = vmatpush1.msra.mxu0 0.0
    %5116 = vmatprep.subr.mxu0 0.0
    %5117 = vmatpush1.msra.mxu0 0.0
    %5118 = vmatprep.subr.mxu0 0.0
    %5119 = vmatpush1.msra.mxu0 0.0
    %5120 = vmatprep.subr.mxu0 0.0
    %5121 = vmatpush1.msra.mxu0 0.0
    %5122 = vmatprep.subr.mxu0 0.0
    %5123 = vmatpush1.msra.mxu0 0.0
    %5124 = vmatprep.subr.mxu0 0.0
    %5125 = vmatpush1.msra.mxu0 0.0
    %5126 = vmatprep.subr.mxu0 0.0
    %5127 = vmatpush1.msra.mxu0 0.0
    %5128 = vmatprep.subr.mxu0 0.0
    %5129 = vmatpush1.msra.mxu0 0.0
    %5130 = vmatprep.subr.mxu0 0.0
    %5131 = vmatpush1.msra.mxu0 0.0
    %5132 = vmatprep.subr.mxu0 0.0
    %5133 = vmatpush1.msra.mxu0 0.0
    %5134 = vmatprep.subr.mxu0 0.0
    %5135 = vmatpush1.msra.mxu0 0.0
    %5136 = vmatprep.subr.mxu0 0.0
    %5137 = vmatpush1.msra.mxu0 0.0
    %5138 = vmatprep.subr.mxu0 0.0
    %5139 = vmatpush1.msra.mxu0 0.0
    %5140 = vmatprep.subr.mxu0 0.0
    %5141 = vmatpush1.msra.mxu0 0.0
    %5142 = vmatprep.subr.mxu0 0.0
    %5143 = vmatpush1.msra.mxu0 0.0
    %5144 = vmatprep.subr.mxu0 0.0
    %5145 = vmatpush1.msra.mxu0 0.0
    %5146 = vmatprep.subr.mxu0 0.0
    %5147 = vmatpush1.msra.mxu0 0.0
    %5148 = vmatprep.subr.mxu0 0.0
    %5149 = vmatpush1.msra.mxu0 0.0
    %5150 = vmatprep.subr.mxu0 0.0
    %5151 = vmatpush1.msra.mxu0 0.0
    %5152 = vmatprep.mubr.f32.mxu0 0.0
    %v5153 = vand.u32 %v4857, 4294901760
    %v5154 = vsub.f32 %v4857, %v5153
    %5155 = vmatmul.mubr.f32.gmra.mrb[0].mxu0 %v5154
    %v5156 = vpop.f32.mrb[0].mxu0
    %v5157 = vadd.f32 %v5063, %v5156
    %v5158 = vpop.f32.mrb[0].mxu0
    %5159 = vmatprep.mubr.f32.mxu0 0.0
    %v5160 = vand.u32 %v4860, 4294901760
    %v5161 = vsub.f32 %v4860, %v5160
    %5162 = vmatmul.mubr.f32.gmra.mrb[0].mxu0 %v5161
    %v5163 = vpop.f32.mrb[0].mxu0
    %v5164 = vadd.f32 %v5069, %v5163
    %v5165 = vpop.f32.mrb[0].mxu0
    %5166 = vdwg.mxu0
    %5167 = vmatprep.subr.mxu0 0.0
    %v5168 = vand.u32 %v4833, 4294901760
    %5169 = vmatpush1.msra.mxu0 %v5168
    %5170 = vmatprep.subr.mxu0 0.0
    %v5171 = vand.u32 %v4835, 4294901760
    %5172 = vmatpush1.msra.mxu0 %v5171
    %5173 = vmatprep.subr.mxu0 0.0
    %v5174 = vand.u32 %v4837, 4294901760
    %5175 = vmatpush1.msra.mxu0 %v5174
    %5176 = vmatprep.subr.mxu0 0.0
    %v5177 = vand.u32 %v4839, 4294901760
    %5178 = vmatpush1.msra.mxu0 %v5177
    %5179 = vmatprep.subr.mxu0 0.0
    %v5180 = vand.u32 %v4841, 4294901760
    %5181 = vmatpush1.msra.mxu0 %v5180
    %5182 = vmatprep.subr.mxu0 0.0
    %v5183 = vand.u32 %v4843, 4294901760
    %5184 = vmatpush1.msra.mxu0 %v5183
    %5185 = vmatprep.subr.mxu0 0.0
    %v5186 = vand.u32 %v4845, 4294901760
    %5187 = vmatpush1.msra.mxu0 %v5186
    %5188 = vmatprep.subr.mxu0 0.0
    %v5189 = vand.u32 %v4847, 4294901760
    %5190 = vmatpush1.msra.mxu0 %v5189
    %5191 = vmatprep.subr.mxu0 0.0
    %5192 = vmatpush1.msra.mxu0 0.0
    %5193 = vmatprep.subr.mxu0 0.0
    %5194 = vmatpush1.msra.mxu0 0.0
    %5195 = vmatprep.subr.mxu0 0.0
    %5196 = vmatpush1.msra.mxu0 0.0
    %5197 = vmatprep.subr.mxu0 0.0
    %5198 = vmatpush1.msra.mxu0 0.0
    %5199 = vmatprep.subr.mxu0 0.0
    %5200 = vmatpush1.msra.mxu0 0.0
    %5201 = vmatprep.subr.mxu0 0.0
    %5202 = vmatpush1.msra.mxu0 0.0
    %5203 = vmatprep.subr.mxu0 0.0
    %5204 = vmatpush1.msra.mxu0 0.0
    %5205 = vmatprep.subr.mxu0 0.0
    %5206 = vmatpush1.msra.mxu0 0.0
    %5207 = vmatprep.subr.mxu0 0.0
    %5208 = vmatpush1.msra.mxu0 0.0
    %5209 = vmatprep.subr.mxu0 0.0
    %5210 = vmatpush1.msra.mxu0 0.0
    %5211 = vmatprep.subr.mxu0 0.0
    %5212 = vmatpush1.msra.mxu0 0.0
    %5213 = vmatprep.subr.mxu0 0.0
    %5214 = vmatpush1.msra.mxu0 0.0
    %5215 = vmatprep.subr.mxu0 0.0
    %5216 = vmatpush1.msra.mxu0 0.0
    %5217 = vmatprep.subr.mxu0 0.0
    %5218 = vmatpush1.msra.mxu0 0.0
    %5219 = vmatprep.subr.mxu0 0.0
    %5220 = vmatpush1.msra.mxu0 0.0
    %5221 = vmatprep.subr.mxu0 0.0
    %5222 = vmatpush1.msra.mxu0 0.0
    %5223 = vmatprep.subr.mxu0 0.0
    %5224 = vmatpush1.msra.mxu0 0.0
    %5225 = vmatprep.subr.mxu0 0.0
    %5226 = vmatpush1.msra.mxu0 0.0
    %5227 = vmatprep.subr.mxu0 0.0
    %5228 = vmatpush1.msra.mxu0 0.0
    %5229 = vmatprep.subr.mxu0 0.0
    %5230 = vmatpush1.msra.mxu0 0.0
    %5231 = vmatprep.subr.mxu0 0.0
    %5232 = vmatpush1.msra.mxu0 0.0
    %5233 = vmatprep.subr.mxu0 0.0
    %5234 = vmatpush1.msra.mxu0 0.0
    %5235 = vmatprep.subr.mxu0 0.0
    %5236 = vmatpush1.msra.mxu0 0.0
    %5237 = vmatprep.subr.mxu0 0.0
    %5238 = vmatpush1.msra.mxu0 0.0
    %5239 = vmatprep.mubr.f32.mxu0 0.0
    %v5240 = vand.u32 %v4857, 4294901760
    %v5241 = vsub.f32 %v4857, %v5240
    %v5242 = vand.u32 %v5241, 4294901760
    %5243 = vmatmul.mubr.f32.gmra.mrb[0].mxu0 %v5242
    %v5244 = vpop.f32.mrb[0].mxu0
    %v5245 = vadd.f32 %v5157, %v5244
    %v5246 = vpop.f32.mrb[0].mxu0
    %5247 = vmatprep.mubr.f32.mxu0 0.0
    %v5248 = vand.u32 %v4860, 4294901760
    %v5249 = vsub.f32 %v4860, %v5248
    %v5250 = vand.u32 %v5249, 4294901760
    %5251 = vmatmul.mubr.f32.gmra.mrb[0].mxu0 %v5250
    %v5252 = vpop.f32.mrb[0].mxu0
    %v5253 = vadd.f32 %v5164, %v5252
    %v5254 = vpop.f32.mrb[0].mxu0
    %5255 = vdwg.mxu0
    %5256 = vmatprep.subr.mxu0 0.0
    %v5257 = vand.u32 %v4833, 4294901760
    %v5258 = vsub.f32 %v4833, %v5257
    %v5259 = vand.u32 %v5258, 4294901760
    %5260 = vmatpush1.msra.mxu0 %v5259
    %5261 = vmatprep.subr.mxu0 0.0
    %v5262 = vand.u32 %v4835, 4294901760
    %v5263 = vsub.f32 %v4835, %v5262
    %v5264 = vand.u32 %v5263, 4294901760
    %5265 = vmatpush1.msra.mxu0 %v5264
    %5266 = vmatprep.subr.mxu0 0.0
    %v5267 = vand.u32 %v4837, 4294901760
    %v5268 = vsub.f32 %v4837, %v5267
    %v5269 = vand.u32 %v5268, 4294901760
    %5270 = vmatpush1.msra.mxu0 %v5269
    %5271 = vmatprep.subr.mxu0 0.0
    %v5272 = vand.u32 %v4839, 4294901760
    %v5273 = vsub.f32 %v4839, %v5272
    %v5274 = vand.u32 %v5273, 4294901760
    %5275 = vmatpush1.msra.mxu0 %v5274
    %5276 = vmatprep.subr.mxu0 0.0
    %v5277 = vand.u32 %v4841, 4294901760
    %v5278 = vsub.f32 %v4841, %v5277
    %v5279 = vand.u32 %v5278, 4294901760
    %5280 = vmatpush1.msra.mxu0 %v5279
    %5281 = vmatprep.subr.mxu0 0.0
    %v5282 = vand.u32 %v4843, 4294901760
    %v5283 = vsub.f32 %v4843, %v5282
    %v5284 = vand.u32 %v5283, 4294901760
    %5285 = vmatpush1.msra.mxu0 %v5284
    %5286 = vmatprep.subr.mxu0 0.0
    %v5287 = vand.u32 %v4845, 4294901760
    %v5288 = vsub.f32 %v4845, %v5287
    %v5289 = vand.u32 %v5288, 4294901760
    %5290 = vmatpush1.msra.mxu0 %v5289
    %5291 = vmatprep.subr.mxu0 0.0
    %v5292 = vand.u32 %v4847, 4294901760
    %v5293 = vsub.f32 %v4847, %v5292
    %v5294 = vand.u32 %v5293, 4294901760
    %5295 = vmatpush1.msra.mxu0 %v5294
    %5296 = vmatprep.subr.mxu0 0.0
    %5297 = vmatpush1.msra.mxu0 0.0
    %5298 = vmatprep.subr.mxu0 0.0
    %5299 = vmatpush1.msra.mxu0 0.0
    %5300 = vmatprep.subr.mxu0 0.0
    %5301 = vmatpush1.msra.mxu0 0.0
    %5302 = vmatprep.subr.mxu0 0.0
    %5303 = vmatpush1.msra.mxu0 0.0
    %5304 = vmatprep.subr.mxu0 0.0
    %5305 = vmatpush1.msra.mxu0 0.0
    %5306 = vmatprep.subr.mxu0 0.0
    %5307 = vmatpush1.msra.mxu0 0.0
    %5308 = vmatprep.subr.mxu0 0.0
    %5309 = vmatpush1.msra.mxu0 0.0
    %5310 = vmatprep.subr.mxu0 0.0
    %5311 = vmatpush1.msra.mxu0 0.0
    %5312 = vmatprep.subr.mxu0 0.0
    %5313 = vmatpush1.msra.mxu0 0.0
    %5314 = vmatprep.subr.mxu0 0.0
    %5315 = vmatpush1.msra.mxu0 0.0
    %5316 = vmatprep.subr.mxu0 0.0
    %5317 = vmatpush1.msra.mxu0 0.0
    %5318 = vmatprep.subr.mxu0 0.0
    %5319 = vmatpush1.msra.mxu0 0.0
    %5320 = vmatprep.subr.mxu0 0.0
    %5321 = vmatpush1.msra.mxu0 0.0
    %5322 = vmatprep.subr.mxu0 0.0
    %5323 = vmatpush1.msra.mxu0 0.0
    %5324 = vmatprep.subr.mxu0 0.0
    %5325 = vmatpush1.msra.mxu0 0.0
    %5326 = vmatprep.subr.mxu0 0.0
    %5327 = vmatpush1.msra.mxu0 0.0
    %5328 = vmatprep.subr.mxu0 0.0
    %5329 = vmatpush1.msra.mxu0 0.0
    %5330 = vmatprep.subr.mxu0 0.0
    %5331 = vmatpush1.msra.mxu0 0.0
    %5332 = vmatprep.subr.mxu0 0.0
    %5333 = vmatpush1.msra.mxu0 0.0
    %5334 = vmatprep.subr.mxu0 0.0
    %5335 = vmatpush1.msra.mxu0 0.0
    %5336 = vmatprep.subr.mxu0 0.0
    %5337 = vmatpush1.msra.mxu0 0.0
    %5338 = vmatprep.subr.mxu0 0.0
    %5339 = vmatpush1.msra.mxu0 0.0
    %5340 = vmatprep.subr.mxu0 0.0
    %5341 = vmatpush1.msra.mxu0 0.0
    %5342 = vmatprep.subr.mxu0 0.0
    %5343 = vmatpush1.msra.mxu0 0.0
    %5344 = vmatprep.mubr.f32.mxu0 0.0
    %v5345 = vand.u32 %v4857, 4294901760
    %5346 = vmatmul.mubr.f32.gmra.mrb[0].mxu0 %v5345
    %v5347 = vpop.f32.mrb[0].mxu0
    %v5348 = vadd.f32 %v5245, %v5347
    %v5349 = vpop.f32.mrb[0].mxu0
    %5350 = vmatprep.mubr.f32.mxu0 0.0
    %v5351 = vand.u32 %v4860, 4294901760
    %5352 = vmatmul.mubr.f32.gmra.mrb[0].mxu0 %v5351
    %v5353 = vpop.f32.mrb[0].mxu0
    %v5354 = vadd.f32 %v5253, %v5353
    %v5355 = vpop.f32.mrb[0].mxu0
    %5356 = vdwg.mxu0
    %5357 = vmatprep.subr.mxu0 0.0
    %v5358 = vand.u32 %v4833, 4294901760
    %5359 = vmatpush1.msra.mxu0 %v5358
    %5360 = vmatprep.subr.mxu0 0.0
    %v5361 = vand.u32 %v4835, 4294901760
    %5362 = vmatpush1.msra.mxu0 %v5361
    %5363 = vmatprep.subr.mxu0 0.0
    %v5364 = vand.u32 %v4837, 4294901760
    %5365 = vmatpush1.msra.mxu0 %v5364
    %5366 = vmatprep.subr.mxu0 0.0
    %v5367 = vand.u32 %v4839, 4294901760
    %5368 = vmatpush1.msra.mxu0 %v5367
    %5369 = vmatprep.subr.mxu0 0.0
    %v5370 = vand.u32 %v4841, 4294901760
    %5371 = vmatpush1.msra.mxu0 %v5370
    %5372 = vmatprep.subr.mxu0 0.0
    %v5373 = vand.u32 %v4843, 4294901760
    %5374 = vmatpush1.msra.mxu0 %v5373
    %5375 = vmatprep.subr.mxu0 0.0
    %v5376 = vand.u32 %v4845, 4294901760
    %5377 = vmatpush1.msra.mxu0 %v5376
    %5378 = vmatprep.subr.mxu0 0.0
    %v5379 = vand.u32 %v4847, 4294901760
    %5380 = vmatpush1.msra.mxu0 %v5379
    %5381 = vmatprep.subr.mxu0 0.0
    %5382 = vmatpush1.msra.mxu0 0.0
    %5383 = vmatprep.subr.mxu0 0.0
    %5384 = vmatpush1.msra.mxu0 0.0
    %5385 = vmatprep.subr.mxu0 0.0
    %5386 = vmatpush1.msra.mxu0 0.0
    %5387 = vmatprep.subr.mxu0 0.0
    %5388 = vmatpush1.msra.mxu0 0.0
    %5389 = vmatprep.subr.mxu0 0.0
    %5390 = vmatpush1.msra.mxu0 0.0
    %5391 = vmatprep.subr.mxu0 0.0
    %5392 = vmatpush1.msra.mxu0 0.0
    %5393 = vmatprep.subr.mxu0 0.0
    %5394 = vmatpush1.msra.mxu0 0.0
    %5395 = vmatprep.subr.mxu0 0.0
    %5396 = vmatpush1.msra.mxu0 0.0
    %5397 = vmatprep.subr.mxu0 0.0
    %5398 = vmatpush1.msra.mxu0 0.0
    %5399 = vmatprep.subr.mxu0 0.0
    %5400 = vmatpush1.msra.mxu0 0.0
    %5401 = vmatprep.subr.mxu0 0.0
    %5402 = vmatpush1.msra.mxu0 0.0
    %5403 = vmatprep.subr.mxu0 0.0
    %5404 = vmatpush1.msra.mxu0 0.0
    %5405 = vmatprep.subr.mxu0 0.0
    %5406 = vmatpush1.msra.mxu0 0.0
    %5407 = vmatprep.subr.mxu0 0.0
    %5408 = vmatpush1.msra.mxu0 0.0
    %5409 = vmatprep.subr.mxu0 0.0
    %5410 = vmatpush1.msra.mxu0 0.0
    %5411 = vmatprep.subr.mxu0 0.0
    %5412 = vmatpush1.msra.mxu0 0.0
    %5413 = vmatprep.subr.mxu0 0.0
    %5414 = vmatpush1.msra.mxu0 0.0
    %5415 = vmatprep.subr.mxu0 0.0
    %5416 = vmatpush1.msra.mxu0 0.0
    %5417 = vmatprep.subr.mxu0 0.0
    %5418 = vmatpush1.msra.mxu0 0.0
    %5419 = vmatprep.subr.mxu0 0.0
    %5420 = vmatpush1.msra.mxu0 0.0
    %5421 = vmatprep.subr.mxu0 0.0
    %5422 = vmatpush1.msra.mxu0 0.0
    %5423 = vmatprep.subr.mxu0 0.0
    %5424 = vmatpush1.msra.mxu0 0.0
    %5425 = vmatprep.subr.mxu0 0.0
    %5426 = vmatpush1.msra.mxu0 0.0
    %5427 = vmatprep.subr.mxu0 0.0
    %5428 = vmatpush1.msra.mxu0 0.0
    %5429 = vmatprep.mubr.f32.mxu0 0.0
    %v5430 = vand.u32 %v4857, 4294901760
    %5431 = vmatmul.mubr.f32.gmra.mrb[0].mxu0 %v5430
    %v5432 = vpop.f32.mrb[0].mxu0
    %v5433 = vadd.f32 %v5348, %v5432
    %v5434 = vpop.f32.mrb[0].mxu0
    %5435 = vmatprep.mubr.f32.mxu0 0.0
    %v5436 = vand.u32 %v4860, 4294901760
    %5437 = vmatmul.mubr.f32.gmra.mrb[0].mxu0 %v5436
    %v5438 = vpop.f32.mrb[0].mxu0
    %v5439 = vadd.f32 %v5354, %v5438
    %v5440 = vpop.f32.mrb[0].mxu0
    %5441 = vdwg.mxu0
    %5442 = vmatprep.subr.mxu0 0.0
    %v5443 = vand.u32 %v49, 4294901760
    %5444 = vmatpush1.msra.mxu0 %v5443
    %5445 = vmatprep.subr.mxu0 0.0
    %v5446 = vand.u32 %v50, 4294901760
    %5447 = vmatpush1.msra.mxu0 %v5446
    %5448 = vmatprep.subr.mxu0 0.0
    %v5449 = vand.u32 %v51, 4294901760
    %5450 = vmatpush1.msra.mxu0 %v5449
    %5451 = vmatprep.subr.mxu0 0.0
    %v5452 = vand.u32 %v52, 4294901760
    %5453 = vmatpush1.msra.mxu0 %v5452
    %5454 = vmatprep.subr.mxu0 0.0
    %v5455 = vand.u32 %v53, 4294901760
    %5456 = vmatpush1.msra.mxu0 %v5455
    %5457 = vmatprep.subr.mxu0 0.0
    %v5458 = vand.u32 %v54, 4294901760
    %5459 = vmatpush1.msra.mxu0 %v5458
    %5460 = vmatprep.subr.mxu0 0.0
    %v5461 = vand.u32 %v55, 4294901760
    %5462 = vmatpush1.msra.mxu0 %v5461
    %5463 = vmatprep.subr.mxu0 0.0
    %v5464 = vand.u32 %v56, 4294901760
    %5465 = vmatpush1.msra.mxu0 %v5464
    %5466 = vmatprep.subr.mxu0 0.0
    %5467 = vmatpush1.msra.mxu0 0.0
    %5468 = vmatprep.subr.mxu0 0.0
    %5469 = vmatpush1.msra.mxu0 0.0
    %5470 = vmatprep.subr.mxu0 0.0
    %5471 = vmatpush1.msra.mxu0 0.0
    %5472 = vmatprep.subr.mxu0 0.0
    %5473 = vmatpush1.msra.mxu0 0.0
    %5474 = vmatprep.subr.mxu0 0.0
    %5475 = vmatpush1.msra.mxu0 0.0
    %5476 = vmatprep.subr.mxu0 0.0
    %5477 = vmatpush1.msra.mxu0 0.0
    %5478 = vmatprep.subr.mxu0 0.0
    %5479 = vmatpush1.msra.mxu0 0.0
    %5480 = vmatprep.subr.mxu0 0.0
    %5481 = vmatpush1.msra.mxu0 0.0
    %5482 = vmatprep.subr.mxu0 0.0
    %5483 = vmatpush1.msra.mxu0 0.0
    %5484 = vmatprep.subr.mxu0 0.0
    %5485 = vmatpush1.msra.mxu0 0.0
    %5486 = vmatprep.subr.mxu0 0.0
    %5487 = vmatpush1.msra.mxu0 0.0
    %5488 = vmatprep.subr.mxu0 0.0
    %5489 = vmatpush1.msra.mxu0 0.0
    %5490 = vmatprep.subr.mxu0 0.0
    %5491 = vmatpush1.msra.mxu0 0.0
    %5492 = vmatprep.subr.mxu0 0.0
    %5493 = vmatpush1.msra.mxu0 0.0
    %5494 = vmatprep.subr.mxu0 0.0
    %5495 = vmatpush1.msra.mxu0 0.0
    %5496 = vmatprep.subr.mxu0 0.0
    %5497 = vmatpush1.msra.mxu0 0.0
    %5498 = vmatprep.subr.mxu0 0.0
    %5499 = vmatpush1.msra.mxu0 0.0
    %5500 = vmatprep.subr.mxu0 0.0
    %5501 = vmatpush1.msra.mxu0 0.0
    %5502 = vmatprep.subr.mxu0 0.0
    %5503 = vmatpush1.msra.mxu0 0.0
    %5504 = vmatprep.subr.mxu0 0.0
    %5505 = vmatpush1.msra.mxu0 0.0
    %5506 = vmatprep.subr.mxu0 0.0
    %5507 = vmatpush1.msra.mxu0 0.0
    %5508 = vmatprep.subr.mxu0 0.0
    %5509 = vmatpush1.msra.mxu0 0.0
    %5510 = vmatprep.subr.mxu0 0.0
    %5511 = vmatpush1.msra.mxu0 0.0
    %5512 = vmatprep.subr.mxu0 0.0
    %5513 = vmatpush1.msra.mxu0 0.0
    %5514 = vmatprep.mubr.f32.mxu0 0.0
    %v5515 = vand.u32 %v4857, 4294901760
    %v5516 = vsub.f32 %v4857, %v5515
    %v5517 = vand.u32 %v5516, 4294901760
    %v5518 = vsub.f32 %v5516, %v5517
    %v5519 = vand.u32 %v5518, 4294901760
    %5520 = vmatmul.mubr.f32.gmra.mrb[0].mxu0 %v5519
    %v5521 = vpop.f32.mrb[0].mxu0
    %v5522 = vadd.f32 0.0, %v5521
    %v5523 = vpop.f32.mrb[0].mxu0
    %5524 = vmatprep.mubr.f32.mxu0 0.0
    %v5525 = vand.u32 %v4860, 4294901760
    %v5526 = vsub.f32 %v4860, %v5525
    %v5527 = vand.u32 %v5526, 4294901760
    %v5528 = vsub.f32 %v5526, %v5527
    %v5529 = vand.u32 %v5528, 4294901760
    %5530 = vmatmul.mubr.f32.gmra.mrb[0].mxu0 %v5529
    %v5531 = vpop.f32.mrb[0].mxu0
    %v5532 = vadd.f32 0.0, %v5531
    %v5533 = vpop.f32.mrb[0].mxu0
    %5534 = vdwg.mxu0
    %5535 = vmatprep.subr.mxu0 0.0
    %v5536 = vand.u32 %v49, 4294901760
    %v5537 = vsub.f32 %v49, %v5536
    %v5538 = vand.u32 %v5537, 4294901760
    %v5539 = vsub.f32 %v5537, %v5538
    %v5540 = vand.u32 %v5539, 4294901760
    %5541 = vmatpush1.msra.mxu0 %v5540
    %5542 = vmatprep.subr.mxu0 0.0
    %v5543 = vand.u32 %v50, 4294901760
    %v5544 = vsub.f32 %v50, %v5543
    %v5545 = vand.u32 %v5544, 4294901760
    %v5546 = vsub.f32 %v5544, %v5545
    %v5547 = vand.u32 %v5546, 4294901760
    %5548 = vmatpush1.msra.mxu0 %v5547
    %5549 = vmatprep.subr.mxu0 0.0
    %v5550 = vand.u32 %v51, 4294901760
    %v5551 = vsub.f32 %v51, %v5550
    %v5552 = vand.u32 %v5551, 4294901760
    %v5553 = vsub.f32 %v5551, %v5552
    %v5554 = vand.u32 %v5553, 4294901760
    %5555 = vmatpush1.msra.mxu0 %v5554
    %5556 = vmatprep.subr.mxu0 0.0
    %v5557 = vand.u32 %v52, 4294901760
    %v5558 = vsub.f32 %v52, %v5557
    %v5559 = vand.u32 %v5558, 4294901760
    %v5560 = vsub.f32 %v5558, %v5559
    %v5561 = vand.u32 %v5560, 4294901760
    %5562 = vmatpush1.msra.mxu0 %v5561
    %5563 = vmatprep.subr.mxu0 0.0
    %v5564 = vand.u32 %v53, 4294901760
    %v5565 = vsub.f32 %v53, %v5564
    %v5566 = vand.u32 %v5565, 4294901760
    %v5567 = vsub.f32 %v5565, %v5566
    %v5568 = vand.u32 %v5567, 4294901760
    %5569 = vmatpush1.msra.mxu0 %v5568
    %5570 = vmatprep.subr.mxu0 0.0
    %v5571 = vand.u32 %v54, 4294901760
    %v5572 = vsub.f32 %v54, %v5571
    %v5573 = vand.u32 %v5572, 4294901760
    %v5574 = vsub.f32 %v5572, %v5573
    %v5575 = vand.u32 %v5574, 4294901760
    %5576 = vmatpush1.msra.mxu0 %v5575
    %5577 = vmatprep.subr.mxu0 0.0
    %v5578 = vand.u32 %v55, 4294901760
    %v5579 = vsub.f32 %v55, %v5578
    %v5580 = vand.u32 %v5579, 4294901760
    %v5581 = vsub.f32 %v5579, %v5580
    %v5582 = vand.u32 %v5581, 4294901760
    %5583 = vmatpush1.msra.mxu0 %v5582
    %5584 = vmatprep.subr.mxu0 0.0
    %v5585 = vand.u32 %v56, 4294901760
    %v5586 = vsub.f32 %v56, %v5585
    %v5587 = vand.u32 %v5586, 4294901760
    %v5588 = vsub.f32 %v5586, %v5587
    %v5589 = vand.u32 %v5588, 4294901760
    %5590 = vmatpush1.msra.mxu0 %v5589
    %5591 = vmatprep.subr.mxu0 0.0
    %5592 = vmatpush1.msra.mxu0 0.0
    %5593 = vmatprep.subr.mxu0 0.0
    %5594 = vmatpush1.msra.mxu0 0.0
    %5595 = vmatprep.subr.mxu0 0.0
    %5596 = vmatpush1.msra.mxu0 0.0
    %5597 = vmatprep.subr.mxu0 0.0
    %5598 = vmatpush1.msra.mxu0 0.0
    %5599 = vmatprep.subr.mxu0 0.0
    %5600 = vmatpush1.msra.mxu0 0.0
    %5601 = vmatprep.subr.mxu0 0.0
    %5602 = vmatpush1.msra.mxu0 0.0
    %5603 = vmatprep.subr.mxu0 0.0
    %5604 = vmatpush1.msra.mxu0 0.0
    %5605 = vmatprep.subr.mxu0 0.0
    %5606 = vmatpush1.msra.mxu0 0.0
    %5607 = vmatprep.subr.mxu0 0.0
    %5608 = vmatpush1.msra.mxu0 0.0
    %5609 = vmatprep.subr.mxu0 0.0
    %5610 = vmatpush1.msra.mxu0 0.0
    %5611 = vmatprep.subr.mxu0 0.0
    %5612 = vmatpush1.msra.mxu0 0.0
    %5613 = vmatprep.subr.mxu0 0.0
    %5614 = vmatpush1.msra.mxu0 0.0
    %5615 = vmatprep.subr.mxu0 0.0
    %5616 = vmatpush1.msra.mxu0 0.0
    %5617 = vmatprep.subr.mxu0 0.0
    %5618 = vmatpush1.msra.mxu0 0.0
    %5619 = vmatprep.subr.mxu0 0.0
    %5620 = vmatpush1.msra.mxu0 0.0
    %5621 = vmatprep.subr.mxu0 0.0
    %5622 = vmatpush1.msra.mxu0 0.0
    %5623 = vmatprep.subr.mxu0 0.0
    %5624 = vmatpush1.msra.mxu0 0.0
    %5625 = vmatprep.subr.mxu0 0.0
    %5626 = vmatpush1.msra.mxu0 0.0
    %5627 = vmatprep.subr.mxu0 0.0
    %5628 = vmatpush1.msra.mxu0 0.0
    %5629 = vmatprep.subr.mxu0 0.0
    %5630 = vmatpush1.msra.mxu0 0.0
    %5631 = vmatprep.subr.mxu0 0.0
    %5632 = vmatpush1.msra.mxu0 0.0
    %5633 = vmatprep.subr.mxu0 0.0
    %5634 = vmatpush1.msra.mxu0 0.0
    %5635 = vmatprep.subr.mxu0 0.0
    %5636 = vmatpush1.msra.mxu0 0.0
    %5637 = vmatprep.subr.mxu0 0.0
    %5638 = vmatpush1.msra.mxu0 0.0
    %5639 = vmatprep.mubr.f32.mxu0 0.0
    %v5640 = vand.u32 %v4857, 4294901760
    %5641 = vmatmul.mubr.f32.gmra.mrb[0].mxu0 %v5640
    %v5642 = vpop.f32.mrb[0].mxu0
    %v5643 = vadd.f32 %v5522, %v5642
    %v5644 = vpop.f32.mrb[0].mxu0
    %5645 = vmatprep.mubr.f32.mxu0 0.0
    %v5646 = vand.u32 %v4860, 4294901760
    %5647 = vmatmul.mubr.f32.gmra.mrb[0].mxu0 %v5646
    %v5648 = vpop.f32.mrb[0].mxu0
    %v5649 = vadd.f32 %v5532, %v5648
    %v5650 = vpop.f32.mrb[0].mxu0
    %5651 = vdwg.mxu0
    %5652 = vmatprep.subr.mxu0 0.0
    %v5653 = vand.u32 %v49, 4294901760
    %v5654 = vsub.f32 %v49, %v5653
    %5655 = vmatpush1.msra.mxu0 %v5654
    %5656 = vmatprep.subr.mxu0 0.0
    %v5657 = vand.u32 %v50, 4294901760
    %v5658 = vsub.f32 %v50, %v5657
    %5659 = vmatpush1.msra.mxu0 %v5658
    %5660 = vmatprep.subr.mxu0 0.0
    %v5661 = vand.u32 %v51, 4294901760
    %v5662 = vsub.f32 %v51, %v5661
    %5663 = vmatpush1.msra.mxu0 %v5662
    %5664 = vmatprep.subr.mxu0 0.0
    %v5665 = vand.u32 %v52, 4294901760
    %v5666 = vsub.f32 %v52, %v5665
    %5667 = vmatpush1.msra.mxu0 %v5666
    %5668 = vmatprep.subr.mxu0 0.0
    %v5669 = vand.u32 %v53, 4294901760
    %v5670 = vsub.f32 %v53, %v5669
    %5671 = vmatpush1.msra.mxu0 %v5670
    %5672 = vmatprep.subr.mxu0 0.0
    %v5673 = vand.u32 %v54, 4294901760
    %v5674 = vsub.f32 %v54, %v5673
    %5675 = vmatpush1.msra.mxu0 %v5674
    %5676 = vmatprep.subr.mxu0 0.0
    %v5677 = vand.u32 %v55, 4294901760
    %v5678 = vsub.f32 %v55, %v5677
    %5679 = vmatpush1.msra.mxu0 %v5678
    %5680 = vmatprep.subr.mxu0 0.0
    %v5681 = vand.u32 %v56, 4294901760
    %v5682 = vsub.f32 %v56, %v5681
    %5683 = vmatpush1.msra.mxu0 %v5682
    %5684 = vmatprep.subr.mxu0 0.0
    %5685 = vmatpush1.msra.mxu0 0.0
    %5686 = vmatprep.subr.mxu0 0.0
    %5687 = vmatpush1.msra.mxu0 0.0
    %5688 = vmatprep.subr.mxu0 0.0
    %5689 = vmatpush1.msra.mxu0 0.0
    %5690 = vmatprep.subr.mxu0 0.0
    %5691 = vmatpush1.msra.mxu0 0.0
    %5692 = vmatprep.subr.mxu0 0.0
    %5693 = vmatpush1.msra.mxu0 0.0
    %5694 = vmatprep.subr.mxu0 0.0
    %5695 = vmatpush1.msra.mxu0 0.0
    %5696 = vmatprep.subr.mxu0 0.0
    %5697 = vmatpush1.msra.mxu0 0.0
    %5698 = vmatprep.subr.mxu0 0.0
    %5699 = vmatpush1.msra.mxu0 0.0
    %5700 = vmatprep.subr.mxu0 0.0
    %5701 = vmatpush1.msra.mxu0 0.0
    %5702 = vmatprep.subr.mxu0 0.0
    %5703 = vmatpush1.msra.mxu0 0.0
    %5704 = vmatprep.subr.mxu0 0.0
    %5705 = vmatpush1.msra.mxu0 0.0
    %5706 = vmatprep.subr.mxu0 0.0
    %5707 = vmatpush1.msra.mxu0 0.0
    %5708 = vmatprep.subr.mxu0 0.0
    %5709 = vmatpush1.msra.mxu0 0.0
    %5710 = vmatprep.subr.mxu0 0.0
    %5711 = vmatpush1.msra.mxu0 0.0
    %5712 = vmatprep.subr.mxu0 0.0
    %5713 = vmatpush1.msra.mxu0 0.0
    %5714 = vmatprep.subr.mxu0 0.0
    %5715 = vmatpush1.msra.mxu0 0.0
    %5716 = vmatprep.subr.mxu0 0.0
    %5717 = vmatpush1.msra.mxu0 0.0
    %5718 = vmatprep.subr.mxu0 0.0
    %5719 = vmatpush1.msra.mxu0 0.0
    %5720 = vmatprep.subr.mxu0 0.0
    %5721 = vmatpush1.msra.mxu0 0.0
    %5722 = vmatprep.subr.mxu0 0.0
    %5723 = vmatpush1.msra.mxu0 0.0
    %5724 = vmatprep.subr.mxu0 0.0
    %5725 = vmatpush1.msra.mxu0 0.0
    %5726 = vmatprep.subr.mxu0 0.0
    %5727 = vmatpush1.msra.mxu0 0.0
    %5728 = vmatprep.subr.mxu0 0.0
    %5729 = vmatpush1.msra.mxu0 0.0
    %5730 = vmatprep.subr.mxu0 0.0
    %5731 = vmatpush1.msra.mxu0 0.0
    %5732 = vmatprep.mubr.f32.mxu0 0.0
    %v5733 = vand.u32 %v4857, 4294901760
    %v5734 = vsub.f32 %v4857, %v5733
    %5735 = vmatmul.mubr.f32.gmra.mrb[0].mxu0 %v5734
    %v5736 = vpop.f32.mrb[0].mxu0
    %v5737 = vadd.f32 %v5643, %v5736
    %v5738 = vpop.f32.mrb[0].mxu0
    %5739 = vmatprep.mubr.f32.mxu0 0.0
    %v5740 = vand.u32 %v4860, 4294901760
    %v5741 = vsub.f32 %v4860, %v5740
    %5742 = vmatmul.mubr.f32.gmra.mrb[0].mxu0 %v5741
    %v5743 = vpop.f32.mrb[0].mxu0
    %v5744 = vadd.f32 %v5649, %v5743
    %v5745 = vpop.f32.mrb[0].mxu0
    %5746 = vdwg.mxu0
    %5747 = vmatprep.subr.mxu0 0.0
    %v5748 = vand.u32 %v49, 4294901760
    %5749 = vmatpush1.msra.mxu0 %v5748
    %5750 = vmatprep.subr.mxu0 0.0
    %v5751 = vand.u32 %v50, 4294901760
    %5752 = vmatpush1.msra.mxu0 %v5751
    %5753 = vmatprep.subr.mxu0 0.0
    %v5754 = vand.u32 %v51, 4294901760
    %5755 = vmatpush1.msra.mxu0 %v5754
    %5756 = vmatprep.subr.mxu0 0.0
    %v5757 = vand.u32 %v52, 4294901760
    %5758 = vmatpush1.msra.mxu0 %v5757
    %5759 = vmatprep.subr.mxu0 0.0
    %v5760 = vand.u32 %v53, 4294901760
    %5761 = vmatpush1.msra.mxu0 %v5760
    %5762 = vmatprep.subr.mxu0 0.0
    %v5763 = vand.u32 %v54, 4294901760
    %5764 = vmatpush1.msra.mxu0 %v5763
    %5765 = vmatprep.subr.mxu0 0.0
    %v5766 = vand.u32 %v55, 4294901760
    %5767 = vmatpush1.msra.mxu0 %v5766
    %5768 = vmatprep.subr.mxu0 0.0
    %v5769 = vand.u32 %v56, 4294901760
    %5770 = vmatpush1.msra.mxu0 %v5769
    %5771 = vmatprep.subr.mxu0 0.0
    %5772 = vmatpush1.msra.mxu0 0.0
    %5773 = vmatprep.subr.mxu0 0.0
    %5774 = vmatpush1.msra.mxu0 0.0
    %5775 = vmatprep.subr.mxu0 0.0
    %5776 = vmatpush1.msra.mxu0 0.0
    %5777 = vmatprep.subr.mxu0 0.0
    %5778 = vmatpush1.msra.mxu0 0.0
    %5779 = vmatprep.subr.mxu0 0.0
    %5780 = vmatpush1.msra.mxu0 0.0
    %5781 = vmatprep.subr.mxu0 0.0
    %5782 = vmatpush1.msra.mxu0 0.0
    %5783 = vmatprep.subr.mxu0 0.0
    %5784 = vmatpush1.msra.mxu0 0.0
    %5785 = vmatprep.subr.mxu0 0.0
    %5786 = vmatpush1.msra.mxu0 0.0
    %5787 = vmatprep.subr.mxu0 0.0
    %5788 = vmatpush1.msra.mxu0 0.0
    %5789 = vmatprep.subr.mxu0 0.0
    %5790 = vmatpush1.msra.mxu0 0.0
    %5791 = vmatprep.subr.mxu0 0.0
    %5792 = vmatpush1.msra.mxu0 0.0
    %5793 = vmatprep.subr.mxu0 0.0
    %5794 = vmatpush1.msra.mxu0 0.0
    %5795 = vmatprep.subr.mxu0 0.0
    %5796 = vmatpush1.msra.mxu0 0.0
    %5797 = vmatprep.subr.mxu0 0.0
    %5798 = vmatpush1.msra.mxu0 0.0
    %5799 = vmatprep.subr.mxu0 0.0
    %5800 = vmatpush1.msra.mxu0 0.0
    %5801 = vmatprep.subr.mxu0 0.0
    %5802 = vmatpush1.msra.mxu0 0.0
    %5803 = vmatprep.subr.mxu0 0.0
    %5804 = vmatpush1.msra.mxu0 0.0
    %5805 = vmatprep.subr.mxu0 0.0
    %5806 = vmatpush1.msra.mxu0 0.0
    %5807 = vmatprep.subr.mxu0 0.0
    %5808 = vmatpush1.msra.mxu0 0.0
    %5809 = vmatprep.subr.mxu0 0.0
    %5810 = vmatpush1.msra.mxu0 0.0
    %5811 = vmatprep.subr.mxu0 0.0
    %5812 = vmatpush1.msra.mxu0 0.0
    %5813 = vmatprep.subr.mxu0 0.0
    %5814 = vmatpush1.msra.mxu0 0.0
    %5815 = vmatprep.subr.mxu0 0.0
    %5816 = vmatpush1.msra.mxu0 0.0
    %5817 = vmatprep.subr.mxu0 0.0
    %5818 = vmatpush1.msra.mxu0 0.0
    %5819 = vmatprep.mubr.f32.mxu0 0.0
    %v5820 = vand.u32 %v4857, 4294901760
    %v5821 = vsub.f32 %v4857, %v5820
    %v5822 = vand.u32 %v5821, 4294901760
    %5823 = vmatmul.mubr.f32.gmra.mrb[0].mxu0 %v5822
    %v5824 = vpop.f32.mrb[0].mxu0
    %v5825 = vadd.f32 %v5737, %v5824
    %v5826 = vpop.f32.mrb[0].mxu0
    %5827 = vmatprep.mubr.f32.mxu0 0.0
    %v5828 = vand.u32 %v4860, 4294901760
    %v5829 = vsub.f32 %v4860, %v5828
    %v5830 = vand.u32 %v5829, 4294901760
    %5831 = vmatmul.mubr.f32.gmra.mrb[0].mxu0 %v5830
    %v5832 = vpop.f32.mrb[0].mxu0
    %v5833 = vadd.f32 %v5744, %v5832
    %v5834 = vpop.f32.mrb[0].mxu0
    %5835 = vdwg.mxu0
    %5836 = vmatprep.subr.mxu0 0.0
    %v5837 = vand.u32 %v49, 4294901760
    %v5838 = vsub.f32 %v49, %v5837
    %v5839 = vand.u32 %v5838, 4294901760
    %5840 = vmatpush1.msra.mxu0 %v5839
    %5841 = vmatprep.subr.mxu0 0.0
    %v5842 = vand.u32 %v50, 4294901760
    %v5843 = vsub.f32 %v50, %v5842
    %v5844 = vand.u32 %v5843, 4294901760
    %5845 = vmatpush1.msra.mxu0 %v5844
    %5846 = vmatprep.subr.mxu0 0.0
    %v5847 = vand.u32 %v51, 4294901760
    %v5848 = vsub.f32 %v51, %v5847
    %v5849 = vand.u32 %v5848, 4294901760
    %5850 = vmatpush1.msra.mxu0 %v5849
    %5851 = vmatprep.subr.mxu0 0.0
    %v5852 = vand.u32 %v52, 4294901760
    %v5853 = vsub.f32 %v52, %v5852
    %v5854 = vand.u32 %v5853, 4294901760
    %5855 = vmatpush1.msra.mxu0 %v5854
    %5856 = vmatprep.subr.mxu0 0.0
    %v5857 = vand.u32 %v53, 4294901760
    %v5858 = vsub.f32 %v53, %v5857
    %v5859 = vand.u32 %v5858, 4294901760
    %5860 = vmatpush1.msra.mxu0 %v5859
    %5861 = vmatprep.subr.mxu0 0.0
    %v5862 = vand.u32 %v54, 4294901760
    %v5863 = vsub.f32 %v54, %v5862
    %v5864 = vand.u32 %v5863, 4294901760
    %5865 = vmatpush1.msra.mxu0 %v5864
    %5866 = vmatprep.subr.mxu0 0.0
    %v5867 = vand.u32 %v55, 4294901760
    %v5868 = vsub.f32 %v55, %v5867
    %v5869 = vand.u32 %v5868, 4294901760
    %5870 = vmatpush1.msra.mxu0 %v5869
    %5871 = vmatprep.subr.mxu0 0.0
    %v5872 = vand.u32 %v56, 4294901760
    %v5873 = vsub.f32 %v56, %v5872
    %v5874 = vand.u32 %v5873, 4294901760
    %5875 = vmatpush1.msra.mxu0 %v5874
    %5876 = vmatprep.subr.mxu0 0.0
    %5877 = vmatpush1.msra.mxu0 0.0
    %5878 = vmatprep.subr.mxu0 0.0
    %5879 = vmatpush1.msra.mxu0 0.0
    %5880 = vmatprep.subr.mxu0 0.0
    %5881 = vmatpush1.msra.mxu0 0.0
    %5882 = vmatprep.subr.mxu0 0.0
    %5883 = vmatpush1.msra.mxu0 0.0
    %5884 = vmatprep.subr.mxu0 0.0
    %5885 = vmatpush1.msra.mxu0 0.0
    %5886 = vmatprep.subr.mxu0 0.0
    %5887 = vmatpush1.msra.mxu0 0.0
    %5888 = vmatprep.subr.mxu0 0.0
    %5889 = vmatpush1.msra.mxu0 0.0
    %5890 = vmatprep.subr.mxu0 0.0
    %5891 = vmatpush1.msra.mxu0 0.0
    %5892 = vmatprep.subr.mxu0 0.0
    %5893 = vmatpush1.msra.mxu0 0.0
    %5894 = vmatprep.subr.mxu0 0.0
    %5895 = vmatpush1.msra.mxu0 0.0
    %5896 = vmatprep.subr.mxu0 0.0
    %5897 = vmatpush1.msra.mxu0 0.0
    %5898 = vmatprep.subr.mxu0 0.0
    %5899 = vmatpush1.msra.mxu0 0.0
    %5900 = vmatprep.subr.mxu0 0.0
    %5901 = vmatpush1.msra.mxu0 0.0
    %5902 = vmatprep.subr.mxu0 0.0
    %5903 = vmatpush1.msra.mxu0 0.0
    %5904 = vmatprep.subr.mxu0 0.0
    %5905 = vmatpush1.msra.mxu0 0.0
    %5906 = vmatprep.subr.mxu0 0.0
    %5907 = vmatpush1.msra.mxu0 0.0
    %5908 = vmatprep.subr.mxu0 0.0
    %5909 = vmatpush1.msra.mxu0 0.0
    %5910 = vmatprep.subr.mxu0 0.0
    %5911 = vmatpush1.msra.mxu0 0.0
    %5912 = vmatprep.subr.mxu0 0.0
    %5913 = vmatpush1.msra.mxu0 0.0
    %5914 = vmatprep.subr.mxu0 0.0
    %5915 = vmatpush1.msra.mxu0 0.0
    %5916 = vmatprep.subr.mxu0 0.0
    %5917 = vmatpush1.msra.mxu0 0.0
    %5918 = vmatprep.subr.mxu0 0.0
    %5919 = vmatpush1.msra.mxu0 0.0
    %5920 = vmatprep.subr.mxu0 0.0
    %5921 = vmatpush1.msra.mxu0 0.0
    %5922 = vmatprep.subr.mxu0 0.0
    %5923 = vmatpush1.msra.mxu0 0.0
    %5924 = vmatprep.mubr.f32.mxu0 0.0
    %v5925 = vand.u32 %v4857, 4294901760
    %5926 = vmatmul.mubr.f32.gmra.mrb[0].mxu0 %v5925
    %v5927 = vpop.f32.mrb[0].mxu0
    %v5928 = vadd.f32 %v5825, %v5927
    %v5929 = vpop.f32.mrb[0].mxu0
    %5930 = vmatprep.mubr.f32.mxu0 0.0
    %v5931 = vand.u32 %v4860, 4294901760
    %5932 = vmatmul.mubr.f32.gmra.mrb[0].mxu0 %v5931
    %v5933 = vpop.f32.mrb[0].mxu0
    %v5934 = vadd.f32 %v5833, %v5933
    %v5935 = vpop.f32.mrb[0].mxu0
    %5936 = vdwg.mxu0
    %5937 = vmatprep.subr.mxu0 0.0
    %v5938 = vand.u32 %v49, 4294901760
    %5939 = vmatpush1.msra.mxu0 %v5938
    %5940 = vmatprep.subr.mxu0 0.0
    %v5941 = vand.u32 %v50, 4294901760
    %5942 = vmatpush1.msra.mxu0 %v5941
    %5943 = vmatprep.subr.mxu0 0.0
    %v5944 = vand.u32 %v51, 4294901760
    %5945 = vmatpush1.msra.mxu0 %v5944
    %5946 = vmatprep.subr.mxu0 0.0
    %v5947 = vand.u32 %v52, 4294901760
    %5948 = vmatpush1.msra.mxu0 %v5947
    %5949 = vmatprep.subr.mxu0 0.0
    %v5950 = vand.u32 %v53, 4294901760
    %5951 = vmatpush1.msra.mxu0 %v5950
    %5952 = vmatprep.subr.mxu0 0.0
    %v5953 = vand.u32 %v54, 4294901760
    %5954 = vmatpush1.msra.mxu0 %v5953
    %5955 = vmatprep.subr.mxu0 0.0
    %v5956 = vand.u32 %v55, 4294901760
    %5957 = vmatpush1.msra.mxu0 %v5956
    %5958 = vmatprep.subr.mxu0 0.0
    %v5959 = vand.u32 %v56, 4294901760
    %5960 = vmatpush1.msra.mxu0 %v5959
    %5961 = vmatprep.subr.mxu0 0.0
    %5962 = vmatpush1.msra.mxu0 0.0
    %5963 = vmatprep.subr.mxu0 0.0
    %5964 = vmatpush1.msra.mxu0 0.0
    %5965 = vmatprep.subr.mxu0 0.0
    %5966 = vmatpush1.msra.mxu0 0.0
    %5967 = vmatprep.subr.mxu0 0.0
    %5968 = vmatpush1.msra.mxu0 0.0
    %5969 = vmatprep.subr.mxu0 0.0
    %5970 = vmatpush1.msra.mxu0 0.0
    %5971 = vmatprep.subr.mxu0 0.0
    %5972 = vmatpush1.msra.mxu0 0.0
    %5973 = vmatprep.subr.mxu0 0.0
    %5974 = vmatpush1.msra.mxu0 0.0
    %5975 = vmatprep.subr.mxu0 0.0
    %5976 = vmatpush1.msra.mxu0 0.0
    %5977 = vmatprep.subr.mxu0 0.0
    %5978 = vmatpush1.msra.mxu0 0.0
    %5979 = vmatprep.subr.mxu0 0.0
    %5980 = vmatpush1.msra.mxu0 0.0
    %5981 = vmatprep.subr.mxu0 0.0
    %5982 = vmatpush1.msra.mxu0 0.0
    %5983 = vmatprep.subr.mxu0 0.0
    %5984 = vmatpush1.msra.mxu0 0.0
    %5985 = vmatprep.subr.mxu0 0.0
    %5986 = vmatpush1.msra.mxu0 0.0
    %5987 = vmatprep.subr.mxu0 0.0
    %5988 = vmatpush1.msra.mxu0 0.0
    %5989 = vmatprep.subr.mxu0 0.0
    %5990 = vmatpush1.msra.mxu0 0.0
    %5991 = vmatprep.subr.mxu0 0.0
    %5992 = vmatpush1.msra.mxu0 0.0
    %5993 = vmatprep.subr.mxu0 0.0
    %5994 = vmatpush1.msra.mxu0 0.0
    %5995 = vmatprep.subr.mxu0 0.0
    %5996 = vmatpush1.msra.mxu0 0.0
    %5997 = vmatprep.subr.mxu0 0.0
    %5998 = vmatpush1.msra.mxu0 0.0
    %5999 = vmatprep.subr.mxu0 0.0
    %6000 = vmatpush1.msra.mxu0 0.0
    %6001 = vmatprep.subr.mxu0 0.0
    %6002 = vmatpush1.msra.mxu0 0.0
    %6003 = vmatprep.subr.mxu0 0.0
    %6004 = vmatpush1.msra.mxu0 0.0
    %6005 = vmatprep.subr.mxu0 0.0
    %6006 = vmatpush1.msra.mxu0 0.0
    %6007 = vmatprep.subr.mxu0 0.0
    %6008 = vmatpush1.msra.mxu0 0.0
    %6009 = vmatprep.mubr.f32.mxu0 0.0
    %v6010 = vand.u32 %v4857, 4294901760
    %6011 = vmatmul.mubr.f32.gmra.mrb[0].mxu0 %v6010
    %v6012 = vpop.f32.mrb[0].mxu0
    %v6013 = vadd.f32 %v5928, %v6012
    %v6014 = vpop.f32.mrb[0].mxu0
    %6015 = vmatprep.mubr.f32.mxu0 0.0
    %v6016 = vand.u32 %v4860, 4294901760
    %6017 = vmatmul.mubr.f32.gmra.mrb[0].mxu0 %v6016
    %v6018 = vpop.f32.mrb[0].mxu0
    %v6019 = vadd.f32 %v5934, %v6018
    %v6020 = vpop.f32.mrb[0].mxu0
    %6021 = vdwg.mxu0
    %v6022 = vrcp.pop %v6013
    %v6023 = vmul.f32 %v5433, %v6022
    %v6024 = vrcp.pop %v6019
    %v6025 = vmul.f32 %v5439, %v6024
    %v6026 = vld [vmem:[#allocation2 + $0x20] sm:$0xff]
    %v6027 = vld [vmem:[#allocation2 + $0x58] sm:$0xff]
    %v6028 = vld [vmem:[#allocation2 + $0x90] sm:$0xff]
    %v6029 = vld [vmem:[#allocation2 + $0xc8] sm:$0xff]
    %v6030 = vld [vmem:[#allocation5 + $0x6] sm:$0x1]
    %v6031 = vlaneseq
    %v6032 = vshrl.u32 %v6031, 7
    %v6033 = vsub.s32 0, %v6032
    %v6034 = vrot.slane %v6030, %v6033
    %v6036 = vsel %vm66, %v6023, 0
    %v6039 = vsel %vm66, %v6025, 0
    %6041 = vmatprep.subr.mxu0 0.0
    %v6042 = vand.u32 %v6026, 4294901760
    %6043 = vmatpush1.msra.mxu0 %v6042
    %6044 = vmatprep.subr.mxu0 0.0
    %v6045 = vand.u32 %v6027, 4294901760
    %6046 = vmatpush1.msra.mxu0 %v6045
    %6047 = vmatprep.subr.mxu0 0.0
    %v6048 = vand.u32 %v6028, 4294901760
    %6049 = vmatpush1.msra.mxu0 %v6048
    %6050 = vmatprep.subr.mxu0 0.0
    %v6051 = vand.u32 %v6029, 4294901760
    %6052 = vmatpush1.msra.mxu0 %v6051
    %6053 = vmatprep.subr.mxu0 0.0
    %6054 = vmatpush1.msra.mxu0 0.0
    %6055 = vmatprep.subr.mxu0 0.0
    %6056 = vmatpush1.msra.mxu0 0.0
    %6057 = vmatprep.subr.mxu0 0.0
    %6058 = vmatpush1.msra.mxu0 0.0
    %6059 = vmatprep.subr.mxu0 0.0
    %6060 = vmatpush1.msra.mxu0 0.0
    %6061 = vmatprep.subr.mxu0 0.0
    %6062 = vmatpush1.msra.mxu0 0.0
    %6063 = vmatprep.subr.mxu0 0.0
    %6064 = vmatpush1.msra.mxu0 0.0
    %6065 = vmatprep.subr.mxu0 0.0
    %6066 = vmatpush1.msra.mxu0 0.0
    %6067 = vmatprep.subr.mxu0 0.0
    %6068 = vmatpush1.msra.mxu0 0.0
    %6069 = vmatprep.subr.mxu0 0.0
    %6070 = vmatpush1.msra.mxu0 0.0
    %6071 = vmatprep.subr.mxu0 0.0
    %6072 = vmatpush1.msra.mxu0 0.0
    %6073 = vmatprep.subr.mxu0 0.0
    %6074 = vmatpush1.msra.mxu0 0.0
    %6075 = vmatprep.subr.mxu0 0.0
    %6076 = vmatpush1.msra.mxu0 0.0
    %6077 = vmatprep.subr.mxu0 0.0
    %6078 = vmatpush1.msra.mxu0 0.0
    %6079 = vmatprep.subr.mxu0 0.0
    %6080 = vmatpush1.msra.mxu0 0.0
    %6081 = vmatprep.subr.mxu0 0.0
    %6082 = vmatpush1.msra.mxu0 0.0
    %6083 = vmatprep.subr.mxu0 0.0
    %6084 = vmatpush1.msra.mxu0 0.0
    %6085 = vmatprep.subr.mxu0 0.0
    %6086 = vmatpush1.msra.mxu0 0.0
    %6087 = vmatprep.subr.mxu0 0.0
    %6088 = vmatpush1.msra.mxu0 0.0
    %6089 = vmatprep.subr.mxu0 0.0
    %6090 = vmatpush1.msra.mxu0 0.0
    %6091 = vmatprep.subr.mxu0 0.0
    %6092 = vmatpush1.msra.mxu0 0.0
    %6093 = vmatprep.subr.mxu0 0.0
    %6094 = vmatpush1.msra.mxu0 0.0
    %6095 = vmatprep.subr.mxu0 0.0
    %6096 = vmatpush1.msra.mxu0 0.0
    %6097 = vmatprep.subr.mxu0 0.0
    %6098 = vmatpush1.msra.mxu0 0.0
    %6099 = vmatprep.subr.mxu0 0.0
    %6100 = vmatpush1.msra.mxu0 0.0
    %6101 = vmatprep.subr.mxu0 0.0
    %6102 = vmatpush1.msra.mxu0 0.0
    %6103 = vmatprep.subr.mxu0 0.0
    %6104 = vmatpush1.msra.mxu0 0.0
    %6105 = vmatprep.subr.mxu0 0.0
    %6106 = vmatpush1.msra.mxu0 0.0
    %6107 = vmatprep.subr.mxu0 0.0
    %6108 = vmatpush1.msra.mxu0 0.0
    %6109 = vmatprep.mubr.f32.mxu0 0.0
    %v6110 = vand.u32 %v6036, 4294901760
    %v6111 = vsub.f32 %v6036, %v6110
    %v6112 = vand.u32 %v6111, 4294901760
    %v6113 = vsub.f32 %v6111, %v6112
    %v6114 = vand.u32 %v6113, 4294901760
    %6115 = vmatmul.mubr.f32.gmra.mrb[0].mxu0 %v6114
    %v6116 = vpop.f32.mrb[0].mxu0
    %v6117 = vadd.f32 %v6034, %v6116
    %v6118 = vpop.f32.mrb[0].mxu0
    %6119 = vmatprep.mubr.f32.mxu0 0.0
    %v6120 = vand.u32 %v6039, 4294901760
    %v6121 = vsub.f32 %v6039, %v6120
    %v6122 = vand.u32 %v6121, 4294901760
    %v6123 = vsub.f32 %v6121, %v6122
    %v6124 = vand.u32 %v6123, 4294901760
    %6125 = vmatmul.mubr.f32.gmra.mrb[0].mxu0 %v6124
    %v6126 = vpop.f32.mrb[0].mxu0
    %v6127 = vadd.f32 %v6034, %v6126
    %v6128 = vpop.f32.mrb[0].mxu0
    %6129 = vdwg.mxu0
    %6130 = vmatprep.subr.mxu0 0.0
    %v6131 = vand.u32 %v6026, 4294901760
    %v6132 = vsub.f32 %v6026, %v6131
    %v6133 = vand.u32 %v6132, 4294901760
    %v6134 = vsub.f32 %v6132, %v6133
    %v6135 = vand.u32 %v6134, 4294901760
    %6136 = vmatpush1.msra.mxu0 %v6135
    %6137 = vmatprep.subr.mxu0 0.0
    %v6138 = vand.u32 %v6027, 4294901760
    %v6139 = vsub.f32 %v6027, %v6138
    %v6140 = vand.u32 %v6139, 4294901760
    %v6141 = vsub.f32 %v6139, %v6140
    %v6142 = vand.u32 %v6141, 4294901760
    %6143 = vmatpush1.msra.mxu0 %v6142
    %6144 = vmatprep.subr.mxu0 0.0
    %v6145 = vand.u32 %v6028, 4294901760
    %v6146 = vsub.f32 %v6028, %v6145
    %v6147 = vand.u32 %v6146, 4294901760
    %v6148 = vsub.f32 %v6146, %v6147
    %v6149 = vand.u32 %v6148, 4294901760
    %6150 = vmatpush1.msra.mxu0 %v6149
    %6151 = vmatprep.subr.mxu0 0.0
    %v6152 = vand.u32 %v6029, 4294901760
    %v6153 = vsub.f32 %v6029, %v6152
    %v6154 = vand.u32 %v6153, 4294901760
    %v6155 = vsub.f32 %v6153, %v6154
    %v6156 = vand.u32 %v6155, 4294901760
    %6157 = vmatpush1.msra.mxu0 %v6156
    %6158 = vmatprep.subr.mxu0 0.0
    %6159 = vmatpush1.msra.mxu0 0.0
    %6160 = vmatprep.subr.mxu0 0.0
    %6161 = vmatpush1.msra.mxu0 0.0
    %6162 = vmatprep.subr.mxu0 0.0
    %6163 = vmatpush1.msra.mxu0 0.0
    %6164 = vmatprep.subr.mxu0 0.0
    %6165 = vmatpush1.msra.mxu0 0.0
    %6166 = vmatprep.subr.mxu0 0.0
    %6167 = vmatpush1.msra.mxu0 0.0
    %6168 = vmatprep.subr.mxu0 0.0
    %6169 = vmatpush1.msra.mxu0 0.0
    %6170 = vmatprep.subr.mxu0 0.0
    %6171 = vmatpush1.msra.mxu0 0.0
    %6172 = vmatprep.subr.mxu0 0.0
    %6173 = vmatpush1.msra.mxu0 0.0
    %6174 = vmatprep.subr.mxu0 0.0
    %6175 = vmatpush1.msra.mxu0 0.0
    %6176 = vmatprep.subr.mxu0 0.0
    %6177 = vmatpush1.msra.mxu0 0.0
    %6178 = vmatprep.subr.mxu0 0.0
    %6179 = vmatpush1.msra.mxu0 0.0
    %6180 = vmatprep.subr.mxu0 0.0
    %6181 = vmatpush1.msra.mxu0 0.0
    %6182 = vmatprep.subr.mxu0 0.0
    %6183 = vmatpush1.msra.mxu0 0.0
    %6184 = vmatprep.subr.mxu0 0.0
    %6185 = vmatpush1.msra.mxu0 0.0
    %6186 = vmatprep.subr.mxu0 0.0
    %6187 = vmatpush1.msra.mxu0 0.0
    %6188 = vmatprep.subr.mxu0 0.0
    %6189 = vmatpush1.msra.mxu0 0.0
    %6190 = vmatprep.subr.mxu0 0.0
    %6191 = vmatpush1.msra.mxu0 0.0
    %6192 = vmatprep.subr.mxu0 0.0
    %6193 = vmatpush1.msra.mxu0 0.0
    %6194 = vmatprep.subr.mxu0 0.0
    %6195 = vmatpush1.msra.mxu0 0.0
    %6196 = vmatprep.subr.mxu0 0.0
    %6197 = vmatpush1.msra.mxu0 0.0
    %6198 = vmatprep.subr.mxu0 0.0
    %6199 = vmatpush1.msra.mxu0 0.0
    %6200 = vmatprep.subr.mxu0 0.0
    %6201 = vmatpush1.msra.mxu0 0.0
    %6202 = vmatprep.subr.mxu0 0.0
    %6203 = vmatpush1.msra.mxu0 0.0
    %6204 = vmatprep.subr.mxu0 0.0
    %6205 = vmatpush1.msra.mxu0 0.0
    %6206 = vmatprep.subr.mxu0 0.0
    %6207 = vmatpush1.msra.mxu0 0.0
    %6208 = vmatprep.subr.mxu0 0.0
    %6209 = vmatpush1.msra.mxu0 0.0
    %6210 = vmatprep.subr.mxu0 0.0
    %6211 = vmatpush1.msra.mxu0 0.0
    %6212 = vmatprep.subr.mxu0 0.0
    %6213 = vmatpush1.msra.mxu0 0.0
    %6214 = vmatprep.mubr.f32.mxu0 0.0
    %v6215 = vand.u32 %v6036, 4294901760
    %6216 = vmatmul.mubr.f32.gmra.mrb[0].mxu0 %v6215
    %v6217 = vpop.f32.mrb[0].mxu0
    %v6218 = vadd.f32 %v6117, %v6217
    %v6219 = vpop.f32.mrb[0].mxu0
    %6220 = vmatprep.mubr.f32.mxu0 0.0
    %v6221 = vand.u32 %v6039, 4294901760
    %6222 = vmatmul.mubr.f32.gmra.mrb[0].mxu0 %v6221
    %v6223 = vpop.f32.mrb[0].mxu0
    %v6224 = vadd.f32 %v6127, %v6223
    %v6225 = vpop.f32.mrb[0].mxu0
    %6226 = vdwg.mxu0
    %6227 = vmatprep.subr.mxu0 0.0
    %v6228 = vand.u32 %v6026, 4294901760
    %v6229 = vsub.f32 %v6026, %v6228
    %6230 = vmatpush1.msra.mxu0 %v6229
    %6231 = vmatprep.subr.mxu0 0.0
    %v6232 = vand.u32 %v6027, 4294901760
    %v6233 = vsub.f32 %v6027, %v6232
    %6234 = vmatpush1.msra.mxu0 %v6233
    %6235 = vmatprep.subr.mxu0 0.0
    %v6236 = vand.u32 %v6028, 4294901760
    %v6237 = vsub.f32 %v6028, %v6236
    %6238 = vmatpush1.msra.mxu0 %v6237
    %6239 = vmatprep.subr.mxu0 0.0
    %v6240 = vand.u32 %v6029, 4294901760
    %v6241 = vsub.f32 %v6029, %v6240
    %6242 = vmatpush1.msra.mxu0 %v6241
    %6243 = vmatprep.subr.mxu0 0.0
    %6244 = vmatpush1.msra.mxu0 0.0
    %6245 = vmatprep.subr.mxu0 0.0
    %6246 = vmatpush1.msra.mxu0 0.0
    %6247 = vmatprep.subr.mxu0 0.0
    %6248 = vmatpush1.msra.mxu0 0.0
    %6249 = vmatprep.subr.mxu0 0.0
    %6250 = vmatpush1.msra.mxu0 0.0
    %6251 = vmatprep.subr.mxu0 0.0
    %6252 = vmatpush1.msra.mxu0 0.0
    %6253 = vmatprep.subr.mxu0 0.0
    %6254 = vmatpush1.msra.mxu0 0.0
    %6255 = vmatprep.subr.mxu0 0.0
    %6256 = vmatpush1.msra.mxu0 0.0
    %6257 = vmatprep.subr.mxu0 0.0
    %6258 = vmatpush1.msra.mxu0 0.0
    %6259 = vmatprep.subr.mxu0 0.0
    %6260 = vmatpush1.msra.mxu0 0.0
    %6261 = vmatprep.subr.mxu0 0.0
    %6262 = vmatpush1.msra.mxu0 0.0
    %6263 = vmatprep.subr.mxu0 0.0
    %6264 = vmatpush1.msra.mxu0 0.0
    %6265 = vmatprep.subr.mxu0 0.0
    %6266 = vmatpush1.msra.mxu0 0.0
    %6267 = vmatprep.subr.mxu0 0.0
    %6268 = vmatpush1.msra.mxu0 0.0
    %6269 = vmatprep.subr.mxu0 0.0
    %6270 = vmatpush1.msra.mxu0 0.0
    %6271 = vmatprep.subr.mxu0 0.0
    %6272 = vmatpush1.msra.mxu0 0.0
    %6273 = vmatprep.subr.mxu0 0.0
    %6274 = vmatpush1.msra.mxu0 0.0
    %6275 = vmatprep.subr.mxu0 0.0
    %6276 = vmatpush1.msra.mxu0 0.0
    %6277 = vmatprep.subr.mxu0 0.0
    %6278 = vmatpush1.msra.mxu0 0.0
    %6279 = vmatprep.subr.mxu0 0.0
    %6280 = vmatpush1.msra.mxu0 0.0
    %6281 = vmatprep.subr.mxu0 0.0
    %6282 = vmatpush1.msra.mxu0 0.0
    %6283 = vmatprep.subr.mxu0 0.0
    %6284 = vmatpush1.msra.mxu0 0.0
    %6285 = vmatprep.subr.mxu0 0.0
    %6286 = vmatpush1.msra.mxu0 0.0
    %6287 = vmatprep.subr.mxu0 0.0
    %6288 = vmatpush1.msra.mxu0 0.0
    %6289 = vmatprep.subr.mxu0 0.0
    %6290 = vmatpush1.msra.mxu0 0.0
    %6291 = vmatprep.subr.mxu0 0.0
    %6292 = vmatpush1.msra.mxu0 0.0
    %6293 = vmatprep.subr.mxu0 0.0
    %6294 = vmatpush1.msra.mxu0 0.0
    %6295 = vmatprep.subr.mxu0 0.0
    %6296 = vmatpush1.msra.mxu0 0.0
    %6297 = vmatprep.subr.mxu0 0.0
    %6298 = vmatpush1.msra.mxu0 0.0
    %6299 = vmatprep.mubr.f32.mxu0 0.0
    %v6300 = vand.u32 %v6036, 4294901760
    %v6301 = vsub.f32 %v6036, %v6300
    %6302 = vmatmul.mubr.f32.gmra.mrb[0].mxu0 %v6301
    %v6303 = vpop.f32.mrb[0].mxu0
    %v6304 = vadd.f32 %v6218, %v6303
    %v6305 = vpop.f32.mrb[0].mxu0
    %6306 = vmatprep.mubr.f32.mxu0 0.0
    %v6307 = vand.u32 %v6039, 4294901760
    %v6308 = vsub.f32 %v6039, %v6307
    %6309 = vmatmul.mubr.f32.gmra.mrb[0].mxu0 %v6308
    %v6310 = vpop.f32.mrb[0].mxu0
    %v6311 = vadd.f32 %v6224, %v6310
    %v6312 = vpop.f32.mrb[0].mxu0
    %6313 = vdwg.mxu0
    %6314 = vmatprep.subr.mxu0 0.0
    %v6315 = vand.u32 %v6026, 4294901760
    %6316 = vmatpush1.msra.mxu0 %v6315
    %6317 = vmatprep.subr.mxu0 0.0
    %v6318 = vand.u32 %v6027, 4294901760
    %6319 = vmatpush1.msra.mxu0 %v6318
    %6320 = vmatprep.subr.mxu0 0.0
    %v6321 = vand.u32 %v6028, 4294901760
    %6322 = vmatpush1.msra.mxu0 %v6321
    %6323 = vmatprep.subr.mxu0 0.0
    %v6324 = vand.u32 %v6029, 4294901760
    %6325 = vmatpush1.msra.mxu0 %v6324
    %6326 = vmatprep.subr.mxu0 0.0
    %6327 = vmatpush1.msra.mxu0 0.0
    %6328 = vmatprep.subr.mxu0 0.0
    %6329 = vmatpush1.msra.mxu0 0.0
    %6330 = vmatprep.subr.mxu0 0.0
    %6331 = vmatpush1.msra.mxu0 0.0
    %6332 = vmatprep.subr.mxu0 0.0
    %6333 = vmatpush1.msra.mxu0 0.0
    %6334 = vmatprep.subr.mxu0 0.0
    %6335 = vmatpush1.msra.mxu0 0.0
    %6336 = vmatprep.subr.mxu0 0.0
    %6337 = vmatpush1.msra.mxu0 0.0
    %6338 = vmatprep.subr.mxu0 0.0
    %6339 = vmatpush1.msra.mxu0 0.0
    %6340 = vmatprep.subr.mxu0 0.0
    %6341 = vmatpush1.msra.mxu0 0.0
    %6342 = vmatprep.subr.mxu0 0.0
    %6343 = vmatpush1.msra.mxu0 0.0
    %6344 = vmatprep.subr.mxu0 0.0
    %6345 = vmatpush1.msra.mxu0 0.0
    %6346 = vmatprep.subr.mxu0 0.0
    %6347 = vmatpush1.msra.mxu0 0.0
    %6348 = vmatprep.subr.mxu0 0.0
    %6349 = vmatpush1.msra.mxu0 0.0
    %6350 = vmatprep.subr.mxu0 0.0
    %6351 = vmatpush1.msra.mxu0 0.0
    %6352 = vmatprep.subr.mxu0 0.0
    %6353 = vmatpush1.msra.mxu0 0.0
    %6354 = vmatprep.subr.mxu0 0.0
    %6355 = vmatpush1.msra.mxu0 0.0
    %6356 = vmatprep.subr.mxu0 0.0
    %6357 = vmatpush1.msra.mxu0 0.0
    %6358 = vmatprep.subr.mxu0 0.0
    %6359 = vmatpush1.msra.mxu0 0.0
    %6360 = vmatprep.subr.mxu0 0.0
    %6361 = vmatpush1.msra.mxu0 0.0
    %6362 = vmatprep.subr.mxu0 0.0
    %6363 = vmatpush1.msra.mxu0 0.0
    %6364 = vmatprep.subr.mxu0 0.0
    %6365 = vmatpush1.msra.mxu0 0.0
    %6366 = vmatprep.subr.mxu0 0.0
    %6367 = vmatpush1.msra.mxu0 0.0
    %6368 = vmatprep.subr.mxu0 0.0
    %6369 = vmatpush1.msra.mxu0 0.0
    %6370 = vmatprep.subr.mxu0 0.0
    %6371 = vmatpush1.msra.mxu0 0.0
    %6372 = vmatprep.subr.mxu0 0.0
    %6373 = vmatpush1.msra.mxu0 0.0
    %6374 = vmatprep.subr.mxu0 0.0
    %6375 = vmatpush1.msra.mxu0 0.0
    %6376 = vmatprep.subr.mxu0 0.0
    %6377 = vmatpush1.msra.mxu0 0.0
    %6378 = vmatprep.subr.mxu0 0.0
    %6379 = vmatpush1.msra.mxu0 0.0
    %6380 = vmatprep.subr.mxu0 0.0
    %6381 = vmatpush1.msra.mxu0 0.0
    %6382 = vmatprep.mubr.f32.mxu0 0.0
    %v6383 = vand.u32 %v6036, 4294901760
    %v6384 = vsub.f32 %v6036, %v6383
    %v6385 = vand.u32 %v6384, 4294901760
    %6386 = vmatmul.mubr.f32.gmra.mrb[0].mxu0 %v6385
    %v6387 = vpop.f32.mrb[0].mxu0
    %v6388 = vadd.f32 %v6304, %v6387
    %v6389 = vpop.f32.mrb[0].mxu0
    %6390 = vmatprep.mubr.f32.mxu0 0.0
    %v6391 = vand.u32 %v6039, 4294901760
    %v6392 = vsub.f32 %v6039, %v6391
    %v6393 = vand.u32 %v6392, 4294901760
    %6394 = vmatmul.mubr.f32.gmra.mrb[0].mxu0 %v6393
    %v6395 = vpop.f32.mrb[0].mxu0
    %v6396 = vadd.f32 %v6311, %v6395
    %v6397 = vpop.f32.mrb[0].mxu0
    %6398 = vdwg.mxu0
    %6399 = vmatprep.subr.mxu0 0.0
    %v6400 = vand.u32 %v6026, 4294901760
    %v6401 = vsub.f32 %v6026, %v6400
    %v6402 = vand.u32 %v6401, 4294901760
    %6403 = vmatpush1.msra.mxu0 %v6402
    %6404 = vmatprep.subr.mxu0 0.0
    %v6405 = vand.u32 %v6027, 4294901760
    %v6406 = vsub.f32 %v6027, %v6405
    %v6407 = vand.u32 %v6406, 4294901760
    %6408 = vmatpush1.msra.mxu0 %v6407
    %6409 = vmatprep.subr.mxu0 0.0
    %v6410 = vand.u32 %v6028, 4294901760
    %v6411 = vsub.f32 %v6028, %v6410
    %v6412 = vand.u32 %v6411, 4294901760
    %6413 = vmatpush1.msra.mxu0 %v6412
    %6414 = vmatprep.subr.mxu0 0.0
    %v6415 = vand.u32 %v6029, 4294901760
    %v6416 = vsub.f32 %v6029, %v6415
    %v6417 = vand.u32 %v6416, 4294901760
    %6418 = vmatpush1.msra.mxu0 %v6417
    %6419 = vmatprep.subr.mxu0 0.0
    %6420 = vmatpush1.msra.mxu0 0.0
    %6421 = vmatprep.subr.mxu0 0.0
    %6422 = vmatpush1.msra.mxu0 0.0
    %6423 = vmatprep.subr.mxu0 0.0
    %6424 = vmatpush1.msra.mxu0 0.0
    %6425 = vmatprep.subr.mxu0 0.0
    %6426 = vmatpush1.msra.mxu0 0.0
    %6427 = vmatprep.subr.mxu0 0.0
    %6428 = vmatpush1.msra.mxu0 0.0
    %6429 = vmatprep.subr.mxu0 0.0
    %6430 = vmatpush1.msra.mxu0 0.0
    %6431 = vmatprep.subr.mxu0 0.0
    %6432 = vmatpush1.msra.mxu0 0.0
    %6433 = vmatprep.subr.mxu0 0.0
    %6434 = vmatpush1.msra.mxu0 0.0
    %6435 = vmatprep.subr.mxu0 0.0
    %6436 = vmatpush1.msra.mxu0 0.0
    %6437 = vmatprep.subr.mxu0 0.0
    %6438 = vmatpush1.msra.mxu0 0.0
    %6439 = vmatprep.subr.mxu0 0.0
    %6440 = vmatpush1.msra.mxu0 0.0
    %6441 = vmatprep.subr.mxu0 0.0
    %6442 = vmatpush1.msra.mxu0 0.0
    %6443 = vmatprep.subr.mxu0 0.0
    %6444 = vmatpush1.msra.mxu0 0.0
    %6445 = vmatprep.subr.mxu0 0.0
    %6446 = vmatpush1.msra.mxu0 0.0
    %6447 = vmatprep.subr.mxu0 0.0
    %6448 = vmatpush1.msra.mxu0 0.0
    %6449 = vmatprep.subr.mxu0 0.0
    %6450 = vmatpush1.msra.mxu0 0.0
    %6451 = vmatprep.subr.mxu0 0.0
    %6452 = vmatpush1.msra.mxu0 0.0
    %6453 = vmatprep.subr.mxu0 0.0
    %6454 = vmatpush1.msra.mxu0 0.0
    %6455 = vmatprep.subr.mxu0 0.0
    %6456 = vmatpush1.msra.mxu0 0.0
    %6457 = vmatprep.subr.mxu0 0.0
    %6458 = vmatpush1.msra.mxu0 0.0
    %6459 = vmatprep.subr.mxu0 0.0
    %6460 = vmatpush1.msra.mxu0 0.0
    %6461 = vmatprep.subr.mxu0 0.0
    %6462 = vmatpush1.msra.mxu0 0.0
    %6463 = vmatprep.subr.mxu0 0.0
    %6464 = vmatpush1.msra.mxu0 0.0
    %6465 = vmatprep.subr.mxu0 0.0
    %6466 = vmatpush1.msra.mxu0 0.0
    %6467 = vmatprep.subr.mxu0 0.0
    %6468 = vmatpush1.msra.mxu0 0.0
    %6469 = vmatprep.subr.mxu0 0.0
    %6470 = vmatpush1.msra.mxu0 0.0
    %6471 = vmatprep.subr.mxu0 0.0
    %6472 = vmatpush1.msra.mxu0 0.0
    %6473 = vmatprep.subr.mxu0 0.0
    %6474 = vmatpush1.msra.mxu0 0.0
    %6475 = vmatprep.mubr.f32.mxu0 0.0
    %v6476 = vand.u32 %v6036, 4294901760
    %6477 = vmatmul.mubr.f32.gmra.mrb[0].mxu0 %v6476
    %v6478 = vpop.f32.mrb[0].mxu0
    %v6479 = vadd.f32 %v6388, %v6478
    %v6480 = vpop.f32.mrb[0].mxu0
    %6481 = vmatprep.mubr.f32.mxu0 0.0
    %v6482 = vand.u32 %v6039, 4294901760
    %6483 = vmatmul.mubr.f32.gmra.mrb[0].mxu0 %v6482
    %v6484 = vpop.f32.mrb[0].mxu0
    %v6485 = vadd.f32 %v6396, %v6484
    %v6486 = vpop.f32.mrb[0].mxu0
    %6487 = vdwg.mxu0
    %6488 = vmatprep.subr.mxu0 0.0
    %v6489 = vand.u32 %v6026, 4294901760
    %6490 = vmatpush1.msra.mxu0 %v6489
    %6491 = vmatprep.subr.mxu0 0.0
    %v6492 = vand.u32 %v6027, 4294901760
    %6493 = vmatpush1.msra.mxu0 %v6492
    %6494 = vmatprep.subr.mxu0 0.0
    %v6495 = vand.u32 %v6028, 4294901760
    %6496 = vmatpush1.msra.mxu0 %v6495
    %6497 = vmatprep.subr.mxu0 0.0
    %v6498 = vand.u32 %v6029, 4294901760
    %6499 = vmatpush1.msra.mxu0 %v6498
    %6500 = vmatprep.subr.mxu0 0.0
    %6501 = vmatpush1.msra.mxu0 0.0
    %6502 = vmatprep.subr.mxu0 0.0
    %6503 = vmatpush1.msra.mxu0 0.0
    %6504 = vmatprep.subr.mxu0 0.0
    %6505 = vmatpush1.msra.mxu0 0.0
    %6506 = vmatprep.subr.mxu0 0.0
    %6507 = vmatpush1.msra.mxu0 0.0
    %6508 = vmatprep.subr.mxu0 0.0
    %6509 = vmatpush1.msra.mxu0 0.0
    %6510 = vmatprep.subr.mxu0 0.0
    %6511 = vmatpush1.msra.mxu0 0.0
    %6512 = vmatprep.subr.mxu0 0.0
    %6513 = vmatpush1.msra.mxu0 0.0
    %6514 = vmatprep.subr.mxu0 0.0
    %6515 = vmatpush1.msra.mxu0 0.0
    %6516 = vmatprep.subr.mxu0 0.0
    %6517 = vmatpush1.msra.mxu0 0.0
    %6518 = vmatprep.subr.mxu0 0.0
    %6519 = vmatpush1.msra.mxu0 0.0
    %6520 = vmatprep.subr.mxu0 0.0
    %6521 = vmatpush1.msra.mxu0 0.0
    %6522 = vmatprep.subr.mxu0 0.0
    %6523 = vmatpush1.msra.mxu0 0.0
    %6524 = vmatprep.subr.mxu0 0.0
    %6525 = vmatpush1.msra.mxu0 0.0
    %6526 = vmatprep.subr.mxu0 0.0
    %6527 = vmatpush1.msra.mxu0 0.0
    %6528 = vmatprep.subr.mxu0 0.0
    %6529 = vmatpush1.msra.mxu0 0.0
    %6530 = vmatprep.subr.mxu0 0.0
    %6531 = vmatpush1.msra.mxu0 0.0
    %6532 = vmatprep.subr.mxu0 0.0
    %6533 = vmatpush1.msra.mxu0 0.0
    %6534 = vmatprep.subr.mxu0 0.0
    %6535 = vmatpush1.msra.mxu0 0.0
    %6536 = vmatprep.subr.mxu0 0.0
    %6537 = vmatpush1.msra.mxu0 0.0
    %6538 = vmatprep.subr.mxu0 0.0
    %6539 = vmatpush1.msra.mxu0 0.0
    %6540 = vmatprep.subr.mxu0 0.0
    %6541 = vmatpush1.msra.mxu0 0.0
    %6542 = vmatprep.subr.mxu0 0.0
    %6543 = vmatpush1.msra.mxu0 0.0
    %6544 = vmatprep.subr.mxu0 0.0
    %6545 = vmatpush1.msra.mxu0 0.0
    %6546 = vmatprep.subr.mxu0 0.0
    %6547 = vmatpush1.msra.mxu0 0.0
    %6548 = vmatprep.subr.mxu0 0.0
    %6549 = vmatpush1.msra.mxu0 0.0
    %6550 = vmatprep.subr.mxu0 0.0
    %6551 = vmatpush1.msra.mxu0 0.0
    %6552 = vmatprep.subr.mxu0 0.0
    %6553 = vmatpush1.msra.mxu0 0.0
    %6554 = vmatprep.subr.mxu0 0.0
    %6555 = vmatpush1.msra.mxu0 0.0
    %6556 = vmatprep.mubr.f32.mxu0 0.0
    %v6557 = vand.u32 %v6036, 4294901760
    %6558 = vmatmul.mubr.f32.gmra.mrb[0].mxu0 %v6557
    %v6559 = vpop.f32.mrb[0].mxu0
    %v6560 = vadd.f32 %v6479, %v6559
    %v6561 = vpop.f32.mrb[0].mxu0
    %6562 = vmatprep.mubr.f32.mxu0 0.0
    %v6563 = vand.u32 %v6039, 4294901760
    %6564 = vmatmul.mubr.f32.gmra.mrb[0].mxu0 %v6563
    %v6565 = vpop.f32.mrb[0].mxu0
    %v6566 = vadd.f32 %v6485, %v6565
    %v6567 = vpop.f32.mrb[0].mxu0
    %6568 = vdwg.mxu0
    %v6569 = vadd.f32 %v3098, %v6560
    %v6570 = vadd.f32 %v3099, %v6566
    %v6571 = vsel %vm66, %v6569, 0.0
    %6572 = vadd.xlane.f32.xlu0 %v6571
    %v6573 = vpop.xlane.xlu0 %6572
    %v6574 = vsel %vm66, %v6570, 0.0
    %6575 = vadd.xlane.f32.xlu0 %v6574
    %v6576 = vpop.xlane.xlu0 %6575
    %v6577 = vmul.f32 %v6573, %v3065
    %v6578 = vmul.f32 %v6576, %v3065
    %v6579 = vsub.f32 %v6569, %v6577
    %v6580 = vsub.f32 %v6570, %v6578
    %v6581 = vmul.f32 %v6579, %v6579
    %v6582 = vmul.f32 %v6580, %v6580
    %v6583 = vsel %vm66, %v6581, 0.0
    %6584 = vadd.xlane.f32.xlu0 %v6583
    %v6585 = vpop.xlane.xlu0 %6584
    %v6586 = vsel %vm66, %v6582, 0.0
    %6587 = vadd.xlane.f32.xlu0 %v6586
    %v6588 = vpop.xlane.xlu0 %6587
    %v6589 = vmul.f32 %v6585, %v3065
    %v6590 = vmul.f32 %v6588, %v3065
    %v6591 = vadd.f32 %v6589, 1e-05
    %v6592 = vadd.f32 %v6590, 1e-05
    %v6593 = vrsqrt.pop %v6591
    %v6594 = vrsqrt.pop %v6592
    %v6595 = vmul.f32 %v6579, %v6593
    %v6596 = vmul.f32 %v6580, %v6594
    %v6597 = vld [vmem:[#allocation5 + $0x7] sm:$0x1]
    %v6598 = vlaneseq
    %v6599 = vshrl.u32 %v6598, 7
    %v6600 = vsub.s32 0, %v6599
    %v6601 = vrot.slane %v6597, %v6600
    %v6602 = vmul.f32 %v6595, %v6601
    %v6603 = vmul.f32 %v6596, %v6601
    %v6604 = vld [vmem:[#allocation5 + $0x8] sm:$0x1]
    %v6605 = vlaneseq
    %v6606 = vshrl.u32 %v6605, 7
    %v6607 = vsub.s32 0, %v6606
    %v6608 = vrot.slane %v6604, %v6607
    %v6609 = vadd.f32 %v6602, %v6608
    %v6610 = vadd.f32 %v6603, %v6608
    %v6611 = vld [vmem:[#allocation2 + $0x28] sm:$0xff]
    %v6612 = vld [vmem:[#allocation2 + $0x60] sm:$0xff]
    %v6613 = vld [vmem:[#allocation2 + $0x98] sm:$0xff]
    %v6614 = vld [vmem:[#allocation2 + $0xd0] sm:$0xff]
    %v6615 = vld [vmem:[#allocation5 + $0x9] sm:$0x1]
    %v6616 = vlaneseq
    %v6617 = vshrl.u32 %v6616, 7
    %v6618 = vsub.s32 0, %v6617
    %v6619 = vrot.slane %v6615, %v6618
    %v6621 = vsel %vm66, %v6609, 0
    %v6624 = vsel %vm66, %v6610, 0
    %6626 = vmatprep.subr.mxu0 0.0
    %v6627 = vand.u32 %v6611, 4294901760
    %6628 = vmatpush1.msra.mxu0 %v6627
    %6629 = vmatprep.subr.mxu0 0.0
    %v6630 = vand.u32 %v6612, 4294901760
    %6631 = vmatpush1.msra.mxu0 %v6630
    %6632 = vmatprep.subr.mxu0 0.0
    %v6633 = vand.u32 %v6613, 4294901760
    %6634 = vmatpush1.msra.mxu0 %v6633
    %6635 = vmatprep.subr.mxu0 0.0
    %v6636 = vand.u32 %v6614, 4294901760
    %6637 = vmatpush1.msra.mxu0 %v6636
    %6638 = vmatprep.subr.mxu0 0.0
    %6639 = vmatpush1.msra.mxu0 0.0
    %6640 = vmatprep.subr.mxu0 0.0
    %6641 = vmatpush1.msra.mxu0 0.0
    %6642 = vmatprep.subr.mxu0 0.0
    %6643 = vmatpush1.msra.mxu0 0.0
    %6644 = vmatprep.subr.mxu0 0.0
    %6645 = vmatpush1.msra.mxu0 0.0
    %6646 = vmatprep.subr.mxu0 0.0
    %6647 = vmatpush1.msra.mxu0 0.0
    %6648 = vmatprep.subr.mxu0 0.0
    %6649 = vmatpush1.msra.mxu0 0.0
    %6650 = vmatprep.subr.mxu0 0.0
    %6651 = vmatpush1.msra.mxu0 0.0
    %6652 = vmatprep.subr.mxu0 0.0
    %6653 = vmatpush1.msra.mxu0 0.0
    %6654 = vmatprep.subr.mxu0 0.0
    %6655 = vmatpush1.msra.mxu0 0.0
    %6656 = vmatprep.subr.mxu0 0.0
    %6657 = vmatpush1.msra.mxu0 0.0
    %6658 = vmatprep.subr.mxu0 0.0
    %6659 = vmatpush1.msra.mxu0 0.0
    %6660 = vmatprep.subr.mxu0 0.0
    %6661 = vmatpush1.msra.mxu0 0.0
    %6662 = vmatprep.subr.mxu0 0.0
    %6663 = vmatpush1.msra.mxu0 0.0
    %6664 = vmatprep.subr.mxu0 0.0
    %6665 = vmatpush1.msra.mxu0 0.0
    %6666 = vmatprep.subr.mxu0 0.0
    %6667 = vmatpush1.msra.mxu0 0.0
    %6668 = vmatprep.subr.mxu0 0.0
    %6669 = vmatpush1.msra.mxu0 0.0
    %6670 = vmatprep.subr.mxu0 0.0
    %6671 = vmatpush1.msra.mxu0 0.0
    %6672 = vmatprep.subr.mxu0 0.0
    %6673 = vmatpush1.msra.mxu0 0.0
    %6674 = vmatprep.subr.mxu0 0.0
    %6675 = vmatpush1.msra.mxu0 0.0
    %6676 = vmatprep.subr.mxu0 0.0
    %6677 = vmatpush1.msra.mxu0 0.0
    %6678 = vmatprep.subr.mxu0 0.0
    %6679 = vmatpush1.msra.mxu0 0.0
    %6680 = vmatprep.subr.mxu0 0.0
    %6681 = vmatpush1.msra.mxu0 0.0
    %6682 = vmatprep.subr.mxu0 0.0
    %6683 = vmatpush1.msra.mxu0 0.0
    %6684 = vmatprep.subr.mxu0 0.0
    %6685 = vmatpush1.msra.mxu0 0.0
    %6686 = vmatprep.subr.mxu0 0.0
    %6687 = vmatpush1.msra.mxu0 0.0
    %6688 = vmatprep.subr.mxu0 0.0
    %6689 = vmatpush1.msra.mxu0 0.0
    %6690 = vmatprep.subr.mxu0 0.0
    %6691 = vmatpush1.msra.mxu0 0.0
    %6692 = vmatprep.subr.mxu0 0.0
    %6693 = vmatpush1.msra.mxu0 0.0
    %6694 = vmatprep.mubr.f32.mxu0 0.0
    %v6695 = vand.u32 %v6621, 4294901760
    %v6696 = vsub.f32 %v6621, %v6695
    %v6697 = vand.u32 %v6696, 4294901760
    %v6698 = vsub.f32 %v6696, %v6697
    %v6699 = vand.u32 %v6698, 4294901760
    %6700 = vmatmul.mubr.f32.gmra.mrb[0].mxu0 %v6699
    %v6701 = vpop.f32.mrb[0].mxu0
    %v6702 = vadd.f32 %v6619, %v6701
    %v6703 = vpop.f32.mrb[0].mxu0
    %6704 = vmatprep.mubr.f32.mxu0 0.0
    %v6705 = vand.u32 %v6624, 4294901760
    %v6706 = vsub.f32 %v6624, %v6705
    %v6707 = vand.u32 %v6706, 4294901760
    %v6708 = vsub.f32 %v6706, %v6707
    %v6709 = vand.u32 %v6708, 4294901760
    %6710 = vmatmul.mubr.f32.gmra.mrb[0].mxu0 %v6709
    %v6711 = vpop.f32.mrb[0].mxu0
    %v6712 = vadd.f32 %v6619, %v6711
    %v6713 = vpop.f32.mrb[0].mxu0
    %6714 = vdwg.mxu0
    %6715 = vmatprep.subr.mxu0 0.0
    %v6716 = vand.u32 %v6611, 4294901760
    %v6717 = vsub.f32 %v6611, %v6716
    %v6718 = vand.u32 %v6717, 4294901760
    %v6719 = vsub.f32 %v6717, %v6718
    %v6720 = vand.u32 %v6719, 4294901760
    %6721 = vmatpush1.msra.mxu0 %v6720
    %6722 = vmatprep.subr.mxu0 0.0
    %v6723 = vand.u32 %v6612, 4294901760
    %v6724 = vsub.f32 %v6612, %v6723
    %v6725 = vand.u32 %v6724, 4294901760
    %v6726 = vsub.f32 %v6724, %v6725
    %v6727 = vand.u32 %v6726, 4294901760
    %6728 = vmatpush1.msra.mxu0 %v6727
    %6729 = vmatprep.subr.mxu0 0.0
    %v6730 = vand.u32 %v6613, 4294901760
    %v6731 = vsub.f32 %v6613, %v6730
    %v6732 = vand.u32 %v6731, 4294901760
    %v6733 = vsub.f32 %v6731, %v6732
    %v6734 = vand.u32 %v6733, 4294901760
    %6735 = vmatpush1.msra.mxu0 %v6734
    %6736 = vmatprep.subr.mxu0 0.0
    %v6737 = vand.u32 %v6614, 4294901760
    %v6738 = vsub.f32 %v6614, %v6737
    %v6739 = vand.u32 %v6738, 4294901760
    %v6740 = vsub.f32 %v6738, %v6739
    %v6741 = vand.u32 %v6740, 4294901760
    %6742 = vmatpush1.msra.mxu0 %v6741
    %6743 = vmatprep.subr.mxu0 0.0
    %6744 = vmatpush1.msra.mxu0 0.0
    %6745 = vmatprep.subr.mxu0 0.0
    %6746 = vmatpush1.msra.mxu0 0.0
    %6747 = vmatprep.subr.mxu0 0.0
    %6748 = vmatpush1.msra.mxu0 0.0
    %6749 = vmatprep.subr.mxu0 0.0
    %6750 = vmatpush1.msra.mxu0 0.0
    %6751 = vmatprep.subr.mxu0 0.0
    %6752 = vmatpush1.msra.mxu0 0.0
    %6753 = vmatprep.subr.mxu0 0.0
    %6754 = vmatpush1.msra.mxu0 0.0
    %6755 = vmatprep.subr.mxu0 0.0
    %6756 = vmatpush1.msra.mxu0 0.0
    %6757 = vmatprep.subr.mxu0 0.0
    %6758 = vmatpush1.msra.mxu0 0.0
    %6759 = vmatprep.subr.mxu0 0.0
    %6760 = vmatpush1.msra.mxu0 0.0
    %6761 = vmatprep.subr.mxu0 0.0
    %6762 = vmatpush1.msra.mxu0 0.0
    %6763 = vmatprep.subr.mxu0 0.0
    %6764 = vmatpush1.msra.mxu0 0.0
    %6765 = vmatprep.subr.mxu0 0.0
    %6766 = vmatpush1.msra.mxu0 0.0
    %6767 = vmatprep.subr.mxu0 0.0
    %6768 = vmatpush1.msra.mxu0 0.0
    %6769 = vmatprep.subr.mxu0 0.0
    %6770 = vmatpush1.msra.mxu0 0.0
    %6771 = vmatprep.subr.mxu0 0.0
    %6772 = vmatpush1.msra.mxu0 0.0
    %6773 = vmatprep.subr.mxu0 0.0
    %6774 = vmatpush1.msra.mxu0 0.0
    %6775 = vmatprep.subr.mxu0 0.0
    %6776 = vmatpush1.msra.mxu0 0.0
    %6777 = vmatprep.subr.mxu0 0.0
    %6778 = vmatpush1.msra.mxu0 0.0
    %6779 = vmatprep.subr.mxu0 0.0
    %6780 = vmatpush1.msra.mxu0 0.0
    %6781 = vmatprep.subr.mxu0 0.0
    %6782 = vmatpush1.msra.mxu0 0.0
    %6783 = vmatprep.subr.mxu0 0.0
    %6784 = vmatpush1.msra.mxu0 0.0
    %6785 = vmatprep.subr.mxu0 0.0
    %6786 = vmatpush1.msra.mxu0 0.0
    %6787 = vmatprep.subr.mxu0 0.0
    %6788 = vmatpush1.msra.mxu0 0.0
    %6789 = vmatprep.subr.mxu0 0.0
    %6790 = vmatpush1.msra.mxu0 0.0
    %6791 = vmatprep.subr.mxu0 0.0
    %6792 = vmatpush1.msra.mxu0 0.0
    %6793 = vmatprep.subr.mxu0 0.0
    %6794 = vmatpush1.msra.mxu0 0.0
    %6795 = vmatprep.subr.mxu0 0.0
    %6796 = vmatpush1.msra.mxu0 0.0
    %6797 = vmatprep.subr.mxu0 0.0
    %6798 = vmatpush1.msra.mxu0 0.0
    %6799 = vmatprep.mubr.f32.mxu0 0.0
    %v6800 = vand.u32 %v6621, 4294901760
    %6801 = vmatmul.mubr.f32.gmra.mrb[0].mxu0 %v6800
    %v6802 = vpop.f32.mrb[0].mxu0
    %v6803 = vadd.f32 %v6702, %v6802
    %v6804 = vpop.f32.mrb[0].mxu0
    %6805 = vmatprep.mubr.f32.mxu0 0.0
    %v6806 = vand.u32 %v6624, 4294901760
    %6807 = vmatmul.mubr.f32.gmra.mrb[0].mxu0 %v6806
    %v6808 = vpop.f32.mrb[0].mxu0
    %v6809 = vadd.f32 %v6712, %v6808
    %v6810 = vpop.f32.mrb[0].mxu0
    %6811 = vdwg.mxu0
    %6812 = vmatprep.subr.mxu0 0.0
    %v6813 = vand.u32 %v6611, 4294901760
    %v6814 = vsub.f32 %v6611, %v6813
    %6815 = vmatpush1.msra.mxu0 %v6814
    %6816 = vmatprep.subr.mxu0 0.0
    %v6817 = vand.u32 %v6612, 4294901760
    %v6818 = vsub.f32 %v6612, %v6817
    %6819 = vmatpush1.msra.mxu0 %v6818
    %6820 = vmatprep.subr.mxu0 0.0
    %v6821 = vand.u32 %v6613, 4294901760
    %v6822 = vsub.f32 %v6613, %v6821
    %6823 = vmatpush1.msra.mxu0 %v6822
    %6824 = vmatprep.subr.mxu0 0.0
    %v6825 = vand.u32 %v6614, 4294901760
    %v6826 = vsub.f32 %v6614, %v6825
    %6827 = vmatpush1.msra.mxu0 %v6826
    %6828 = vmatprep.subr.mxu0 0.0
    %6829 = vmatpush1.msra.mxu0 0.0
    %6830 = vmatprep.subr.mxu0 0.0
    %6831 = vmatpush1.msra.mxu0 0.0
    %6832 = vmatprep.subr.mxu0 0.0
    %6833 = vmatpush1.msra.mxu0 0.0
    %6834 = vmatprep.subr.mxu0 0.0
    %6835 = vmatpush1.msra.mxu0 0.0
    %6836 = vmatprep.subr.mxu0 0.0
    %6837 = vmatpush1.msra.mxu0 0.0
    %6838 = vmatprep.subr.mxu0 0.0
    %6839 = vmatpush1.msra.mxu0 0.0
    %6840 = vmatprep.subr.mxu0 0.0
    %6841 = vmatpush1.msra.mxu0 0.0
    %6842 = vmatprep.subr.mxu0 0.0
    %6843 = vmatpush1.msra.mxu0 0.0
    %6844 = vmatprep.subr.mxu0 0.0
    %6845 = vmatpush1.msra.mxu0 0.0
    %6846 = vmatprep.subr.mxu0 0.0
    %6847 = vmatpush1.msra.mxu0 0.0
    %6848 = vmatprep.subr.mxu0 0.0
    %6849 = vmatpush1.msra.mxu0 0.0
    %6850 = vmatprep.subr.mxu0 0.0
    %6851 = vmatpush1.msra.mxu0 0.0
    %6852 = vmatprep.subr.mxu0 0.0
    %6853 = vmatpush1.msra.mxu0 0.0
    %6854 = vmatprep.subr.mxu0 0.0
    %6855 = vmatpush1.msra.mxu0 0.0
    %6856 = vmatprep.subr.mxu0 0.0
    %6857 = vmatpush1.msra.mxu0 0.0
    %6858 = vmatprep.subr.mxu0 0.0
    %6859 = vmatpush1.msra.mxu0 0.0
    %6860 = vmatprep.subr.mxu0 0.0
    %6861 = vmatpush1.msra.mxu0 0.0
    %6862 = vmatprep.subr.mxu0 0.0
    %6863 = vmatpush1.msra.mxu0 0.0
    %6864 = vmatprep.subr.mxu0 0.0
    %6865 = vmatpush1.msra.mxu0 0.0
    %6866 = vmatprep.subr.mxu0 0.0
    %6867 = vmatpush1.msra.mxu0 0.0
    %6868 = vmatprep.subr.mxu0 0.0
    %6869 = vmatpush1.msra.mxu0 0.0
    %6870 = vmatprep.subr.mxu0 0.0
    %6871 = vmatpush1.msra.mxu0 0.0
    %6872 = vmatprep.subr.mxu0 0.0
    %6873 = vmatpush1.msra.mxu0 0.0
    %6874 = vmatprep.subr.mxu0 0.0
    %6875 = vmatpush1.msra.mxu0 0.0
    %6876 = vmatprep.subr.mxu0 0.0
    %6877 = vmatpush1.msra.mxu0 0.0
    %6878 = vmatprep.subr.mxu0 0.0
    %6879 = vmatpush1.msra.mxu0 0.0
    %6880 = vmatprep.subr.mxu0 0.0
    %6881 = vmatpush1.msra.mxu0 0.0
    %6882 = vmatprep.subr.mxu0 0.0
    %6883 = vmatpush1.msra.mxu0 0.0
    %6884 = vmatprep.mubr.f32.mxu0 0.0
    %v6885 = vand.u32 %v6621, 4294901760
    %v6886 = vsub.f32 %v6621, %v6885
    %6887 = vmatmul.mubr.f32.gmra.mrb[0].mxu0 %v6886
    %v6888 = vpop.f32.mrb[0].mxu0
    %v6889 = vadd.f32 %v6803, %v6888
    %v6890 = vpop.f32.mrb[0].mxu0
    %6891 = vmatprep.mubr.f32.mxu0 0.0
    %v6892 = vand.u32 %v6624, 4294901760
    %v6893 = vsub.f32 %v6624, %v6892
    %6894 = vmatmul.mubr.f32.gmra.mrb[0].mxu0 %v6893
    %v6895 = vpop.f32.mrb[0].mxu0
    %v6896 = vadd.f32 %v6809, %v6895
    %v6897 = vpop.f32.mrb[0].mxu0
    %6898 = vdwg.mxu0
    %6899 = vmatprep.subr.mxu0 0.0
    %v6900 = vand.u32 %v6611, 4294901760
    %6901 = vmatpush1.msra.mxu0 %v6900
    %6902 = vmatprep.subr.mxu0 0.0
    %v6903 = vand.u32 %v6612, 4294901760
    %6904 = vmatpush1.msra.mxu0 %v6903
    %6905 = vmatprep.subr.mxu0 0.0
    %v6906 = vand.u32 %v6613, 4294901760
    %6907 = vmatpush1.msra.mxu0 %v6906
    %6908 = vmatprep.subr.mxu0 0.0
    %v6909 = vand.u32 %v6614, 4294901760
    %6910 = vmatpush1.msra.mxu0 %v6909
    %6911 = vmatprep.subr.mxu0 0.0
    %6912 = vmatpush1.msra.mxu0 0.0
    %6913 = vmatprep.subr.mxu0 0.0
    %6914 = vmatpush1.msra.mxu0 0.0
    %6915 = vmatprep.subr.mxu0 0.0
    %6916 = vmatpush1.msra.mxu0 0.0
    %6917 = vmatprep.subr.mxu0 0.0
    %6918 = vmatpush1.msra.mxu0 0.0
    %6919 = vmatprep.subr.mxu0 0.0
    %6920 = vmatpush1.msra.mxu0 0.0
    %6921 = vmatprep.subr.mxu0 0.0
    %6922 = vmatpush1.msra.mxu0 0.0
    %6923 = vmatprep.subr.mxu0 0.0
    %6924 = vmatpush1.msra.mxu0 0.0
    %6925 = vmatprep.subr.mxu0 0.0
    %6926 = vmatpush1.msra.mxu0 0.0
    %6927 = vmatprep.subr.mxu0 0.0
    %6928 = vmatpush1.msra.mxu0 0.0
    %6929 = vmatprep.subr.mxu0 0.0
    %6930 = vmatpush1.msra.mxu0 0.0
    %6931 = vmatprep.subr.mxu0 0.0
    %6932 = vmatpush1.msra.mxu0 0.0
    %6933 = vmatprep.subr.mxu0 0.0
    %6934 = vmatpush1.msra.mxu0 0.0
    %6935 = vmatprep.subr.mxu0 0.0
    %6936 = vmatpush1.msra.mxu0 0.0
    %6937 = vmatprep.subr.mxu0 0.0
    %6938 = vmatpush1.msra.mxu0 0.0
    %6939 = vmatprep.subr.mxu0 0.0
    %6940 = vmatpush1.msra.mxu0 0.0
    %6941 = vmatprep.subr.mxu0 0.0
    %6942 = vmatpush1.msra.mxu0 0.0
    %6943 = vmatprep.subr.mxu0 0.0
    %6944 = vmatpush1.msra.mxu0 0.0
    %6945 = vmatprep.subr.mxu0 0.0
    %6946 = vmatpush1.msra.mxu0 0.0
    %6947 = vmatprep.subr.mxu0 0.0
    %6948 = vmatpush1.msra.mxu0 0.0
    %6949 = vmatprep.subr.mxu0 0.0
    %6950 = vmatpush1.msra.mxu0 0.0
    %6951 = vmatprep.subr.mxu0 0.0
    %6952 = vmatpush1.msra.mxu0 0.0
    %6953 = vmatprep.subr.mxu0 0.0
    %6954 = vmatpush1.msra.mxu0 0.0
    %6955 = vmatprep.subr.mxu0 0.0
    %6956 = vmatpush1.msra.mxu0 0.0
    %6957 = vmatprep.subr.mxu0 0.0
    %6958 = vmatpush1.msra.mxu0 0.0
    %6959 = vmatprep.subr.mxu0 0.0
    %6960 = vmatpush1.msra.mxu0 0.0
    %6961 = vmatprep.subr.mxu0 0.0
    %6962 = vmatpush1.msra.mxu0 0.0
    %6963 = vmatprep.subr.mxu0 0.0
    %6964 = vmatpush1.msra.mxu0 0.0
    %6965 = vmatprep.subr.mxu0 0.0
    %6966 = vmatpush1.msra.mxu0 0.0
    %6967 = vmatprep.mubr.f32.mxu0 0.0
    %v6968 = vand.u32 %v6621, 4294901760
    %v6969 = vsub.f32 %v6621, %v6968
    %v6970 = vand.u32 %v6969, 4294901760
    %6971 = vmatmul.mubr.f32.gmra.mrb[0].mxu0 %v6970
    %v6972 = vpop.f32.mrb[0].mxu0
    %v6973 = vadd.f32 %v6889, %v6972
    %v6974 = vpop.f32.mrb[0].mxu0
    %6975 = vmatprep.mubr.f32.mxu0 0.0
    %v6976 = vand.u32 %v6624, 4294901760
    %v6977 = vsub.f32 %v6624, %v6976
    %v6978 = vand.u32 %v6977, 4294901760
    %6979 = vmatmul.mubr.f32.gmra.mrb[0].mxu0 %v6978
    %v6980 = vpop.f32.mrb[0].mxu0
    %v6981 = vadd.f32 %v6896, %v6980
    %v6982 = vpop.f32.mrb[0].mxu0
    %6983 = vdwg.mxu0
    %6984 = vmatprep.subr.mxu0 0.0
    %v6985 = vand.u32 %v6611, 4294901760
    %v6986 = vsub.f32 %v6611, %v6985
    %v6987 = vand.u32 %v6986, 4294901760
    %6988 = vmatpush1.msra.mxu0 %v6987
    %6989 = vmatprep.subr.mxu0 0.0
    %v6990 = vand.u32 %v6612, 4294901760
    %v6991 = vsub.f32 %v6612, %v6990
    %v6992 = vand.u32 %v6991, 4294901760
    %6993 = vmatpush1.msra.mxu0 %v6992
    %6994 = vmatprep.subr.mxu0 0.0
    %v6995 = vand.u32 %v6613, 4294901760
    %v6996 = vsub.f32 %v6613, %v6995
    %v6997 = vand.u32 %v6996, 4294901760
    %6998 = vmatpush1.msra.mxu0 %v6997
    %6999 = vmatprep.subr.mxu0 0.0
    %v7000 = vand.u32 %v6614, 4294901760
    %v7001 = vsub.f32 %v6614, %v7000
    %v7002 = vand.u32 %v7001, 4294901760
    %7003 = vmatpush1.msra.mxu0 %v7002
    %7004 = vmatprep.subr.mxu0 0.0
    %7005 = vmatpush1.msra.mxu0 0.0
    %7006 = vmatprep.subr.mxu0 0.0
    %7007 = vmatpush1.msra.mxu0 0.0
    %7008 = vmatprep.subr.mxu0 0.0
    %7009 = vmatpush1.msra.mxu0 0.0
    %7010 = vmatprep.subr.mxu0 0.0
    %7011 = vmatpush1.msra.mxu0 0.0
    %7012 = vmatprep.subr.mxu0 0.0
    %7013 = vmatpush1.msra.mxu0 0.0
    %7014 = vmatprep.subr.mxu0 0.0
    %7015 = vmatpush1.msra.mxu0 0.0
    %7016 = vmatprep.subr.mxu0 0.0
    %7017 = vmatpush1.msra.mxu0 0.0
    %7018 = vmatprep.subr.mxu0 0.0
    %7019 = vmatpush1.msra.mxu0 0.0
    %7020 = vmatprep.subr.mxu0 0.0
    %7021 = vmatpush1.msra.mxu0 0.0
    %7022 = vmatprep.subr.mxu0 0.0
    %7023 = vmatpush1.msra.mxu0 0.0
    %7024 = vmatprep.subr.mxu0 0.0
    %7025 = vmatpush1.msra.mxu0 0.0
    %7026 = vmatprep.subr.mxu0 0.0
    %7027 = vmatpush1.msra.mxu0 0.0
    %7028 = vmatprep.subr.mxu0 0.0
    %7029 = vmatpush1.msra.mxu0 0.0
    %7030 = vmatprep.subr.mxu0 0.0
    %7031 = vmatpush1.msra.mxu0 0.0
    %7032 = vmatprep.subr.mxu0 0.0
    %7033 = vmatpush1.msra.mxu0 0.0
    %7034 = vmatprep.subr.mxu0 0.0
    %7035 = vmatpush1.msra.mxu0 0.0
    %7036 = vmatprep.subr.mxu0 0.0
    %7037 = vmatpush1.msra.mxu0 0.0
    %7038 = vmatprep.subr.mxu0 0.0
    %7039 = vmatpush1.msra.mxu0 0.0
    %7040 = vmatprep.subr.mxu0 0.0
    %7041 = vmatpush1.msra.mxu0 0.0
    %7042 = vmatprep.subr.mxu0 0.0
    %7043 = vmatpush1.msra.mxu0 0.0
    %7044 = vmatprep.subr.mxu0 0.0
    %7045 = vmatpush1.msra.mxu0 0.0
    %7046 = vmatprep.subr.mxu0 0.0
    %7047 = vmatpush1.msra.mxu0 0.0
    %7048 = vmatprep.subr.mxu0 0.0
    %7049 = vmatpush1.msra.mxu0 0.0
    %7050 = vmatprep.subr.mxu0 0.0
    %7051 = vmatpush1.msra.mxu0 0.0
    %7052 = vmatprep.subr.mxu0 0.0
    %7053 = vmatpush1.msra.mxu0 0.0
    %7054 = vmatprep.subr.mxu0 0.0
    %7055 = vmatpush1.msra.mxu0 0.0
    %7056 = vmatprep.subr.mxu0 0.0
    %7057 = vmatpush1.msra.mxu0 0.0
    %7058 = vmatprep.subr.mxu0 0.0
    %7059 = vmatpush1.msra.mxu0 0.0
    %7060 = vmatprep.mubr.f32.mxu0 0.0
    %v7061 = vand.u32 %v6621, 4294901760
    %7062 = vmatmul.mubr.f32.gmra.mrb[0].mxu0 %v7061
    %v7063 = vpop.f32.mrb[0].mxu0
    %v7064 = vadd.f32 %v6973, %v7063
    %v7065 = vpop.f32.mrb[0].mxu0
    %7066 = vmatprep.mubr.f32.mxu0 0.0
    %v7067 = vand.u32 %v6624, 4294901760
    %7068 = vmatmul.mubr.f32.gmra.mrb[0].mxu0 %v7067
    %v7069 = vpop.f32.mrb[0].mxu0
    %v7070 = vadd.f32 %v6981, %v7069
    %v7071 = vpop.f32.mrb[0].mxu0
    %7072 = vdwg.mxu0
    %7073 = vmatprep.subr.mxu0 0.0
    %v7074 = vand.u32 %v6611, 4294901760
    %7075 = vmatpush1.msra.mxu0 %v7074
    %7076 = vmatprep.subr.mxu0 0.0
    %v7077 = vand.u32 %v6612, 4294901760
    %7078 = vmatpush1.msra.mxu0 %v7077
    %7079 = vmatprep.subr.mxu0 0.0
    %v7080 = vand.u32 %v6613, 4294901760
    %7081 = vmatpush1.msra.mxu0 %v7080
    %7082 = vmatprep.subr.mxu0 0.0
    %v7083 = vand.u32 %v6614, 4294901760
    %7084 = vmatpush1.msra.mxu0 %v7083
    %7085 = vmatprep.subr.mxu0 0.0
    %7086 = vmatpush1.msra.mxu0 0.0
    %7087 = vmatprep.subr.mxu0 0.0
    %7088 = vmatpush1.msra.mxu0 0.0
    %7089 = vmatprep.subr.mxu0 0.0
    %7090 = vmatpush1.msra.mxu0 0.0
    %7091 = vmatprep.subr.mxu0 0.0
    %7092 = vmatpush1.msra.mxu0 0.0
    %7093 = vmatprep.subr.mxu0 0.0
    %7094 = vmatpush1.msra.mxu0 0.0
    %7095 = vmatprep.subr.mxu0 0.0
    %7096 = vmatpush1.msra.mxu0 0.0
    %7097 = vmatprep.subr.mxu0 0.0
    %7098 = vmatpush1.msra.mxu0 0.0
    %7099 = vmatprep.subr.mxu0 0.0
    %7100 = vmatpush1.msra.mxu0 0.0
    %7101 = vmatprep.subr.mxu0 0.0
    %7102 = vmatpush1.msra.mxu0 0.0
    %7103 = vmatprep.subr.mxu0 0.0
    %7104 = vmatpush1.msra.mxu0 0.0
    %7105 = vmatprep.subr.mxu0 0.0
    %7106 = vmatpush1.msra.mxu0 0.0
    %7107 = vmatprep.subr.mxu0 0.0
    %7108 = vmatpush1.msra.mxu0 0.0
    %7109 = vmatprep.subr.mxu0 0.0
    %7110 = vmatpush1.msra.mxu0 0.0
    %7111 = vmatprep.subr.mxu0 0.0
    %7112 = vmatpush1.msra.mxu0 0.0
    %7113 = vmatprep.subr.mxu0 0.0
    %7114 = vmatpush1.msra.mxu0 0.0
    %7115 = vmatprep.subr.mxu0 0.0
    %7116 = vmatpush1.msra.mxu0 0.0
    %7117 = vmatprep.subr.mxu0 0.0
    %7118 = vmatpush1.msra.mxu0 0.0
    %7119 = vmatprep.subr.mxu0 0.0
    %7120 = vmatpush1.msra.mxu0 0.0
    %7121 = vmatprep.subr.mxu0 0.0
    %7122 = vmatpush1.msra.mxu0 0.0
    %7123 = vmatprep.subr.mxu0 0.0
    %7124 = vmatpush1.msra.mxu0 0.0
    %7125 = vmatprep.subr.mxu0 0.0
    %7126 = vmatpush1.msra.mxu0 0.0
    %7127 = vmatprep.subr.mxu0 0.0
    %7128 = vmatpush1.msra.mxu0 0.0
    %7129 = vmatprep.subr.mxu0 0.0
    %7130 = vmatpush1.msra.mxu0 0.0
    %7131 = vmatprep.subr.mxu0 0.0
    %7132 = vmatpush1.msra.mxu0 0.0
    %7133 = vmatprep.subr.mxu0 0.0
    %7134 = vmatpush1.msra.mxu0 0.0
    %7135 = vmatprep.subr.mxu0 0.0
    %7136 = vmatpush1.msra.mxu0 0.0
    %7137 = vmatprep.subr.mxu0 0.0
    %7138 = vmatpush1.msra.mxu0 0.0
    %7139 = vmatprep.subr.mxu0 0.0
    %7140 = vmatpush1.msra.mxu0 0.0
    %7141 = vmatprep.mubr.f32.mxu0 0.0
    %v7142 = vand.u32 %v6621, 4294901760
    %7143 = vmatmul.mubr.f32.gmra.mrb[0].mxu0 %v7142
    %v7144 = vpop.f32.mrb[0].mxu0
    %v7145 = vadd.f32 %v7064, %v7144
    %v7146 = vpop.f32.mrb[0].mxu0
    %7147 = vmatprep.mubr.f32.mxu0 0.0
    %v7148 = vand.u32 %v6624, 4294901760
    %7149 = vmatmul.mubr.f32.gmra.mrb[0].mxu0 %v7148
    %v7150 = vpop.f32.mrb[0].mxu0
    %v7151 = vadd.f32 %v7070, %v7150
    %v7152 = vpop.f32.mrb[0].mxu0
    %7153 = vdwg.mxu0
    %v7154 = vmax.f32 %v7145, 0.0
    %v7155 = vmax.f32 %v7151, 0.0
    %v7156 = vld [vmem:[#allocation2 + $0x30] sm:$0xff]
    %v7157 = vld [vmem:[#allocation2 + $0x68] sm:$0xff]
    %v7158 = vld [vmem:[#allocation2 + $0xa0] sm:$0xff]
    %v7159 = vld [vmem:[#allocation2 + $0xd8] sm:$0xff]
    %v7160 = vld [vmem:[#allocation5 + $0xa] sm:$0x1]
    %v7161 = vlaneseq
    %v7162 = vshrl.u32 %v7161, 7
    %v7163 = vsub.s32 0, %v7162
    %v7164 = vrot.slane %v7160, %v7163
    %v7166 = vsel %vm1299, %v7154, 0
    %v7169 = vsel %vm1299, %v7155, 0
    %v7172 = vsel %vm1299, %v7156, 0
    %v7175 = vsel %vm1299, %v7157, 0
    %v7178 = vsel %vm1299, %v7158, 0
    %v7181 = vsel %vm1299, %v7159, 0
    %7183 = vmatprep.subr.mxu0 0.0
    %v7184 = vand.u32 %v7172, 4294901760
    %7185 = vmatpush1.xpose.msra.mxu0 %v7184
    %7186 = vmatprep.subr.mxu0 0.0
    %v7187 = vand.u32 %v7175, 4294901760
    %7188 = vmatpush1.xpose.msra.mxu0 %v7187
    %7189 = vmatprep.subr.mxu0 0.0
    %v7190 = vand.u32 %v7178, 4294901760
    %7191 = vmatpush1.xpose.msra.mxu0 %v7190
    %7192 = vmatprep.subr.mxu0 0.0
    %v7193 = vand.u32 %v7181, 4294901760
    %7194 = vmatpush1.xpose.msra.mxu0 %v7193
    %7195 = vmatprep.subr.mxu0 0.0
    %7196 = vmatpush1.xpose.msra.mxu0 0.0
    %7197 = vmatprep.subr.mxu0 0.0
    %7198 = vmatpush1.xpose.msra.mxu0 0.0
    %7199 = vmatprep.subr.mxu0 0.0
    %7200 = vmatpush1.xpose.msra.mxu0 0.0
    %7201 = vmatprep.subr.mxu0 0.0
    %7202 = vmatpush1.xpose.msra.mxu0 0.0
    %7203 = vmatprep.subr.mxu0 0.0
    %7204 = vmatpush1.xpose.msra.mxu0 0.0
    %7205 = vmatprep.subr.mxu0 0.0
    %7206 = vmatpush1.xpose.msra.mxu0 0.0
    %7207 = vmatprep.subr.mxu0 0.0
    %7208 = vmatpush1.xpose.msra.mxu0 0.0
    %7209 = vmatprep.subr.mxu0 0.0
    %7210 = vmatpush1.xpose.msra.mxu0 0.0
    %7211 = vmatprep.subr.mxu0 0.0
    %7212 = vmatpush1.xpose.msra.mxu0 0.0
    %7213 = vmatprep.subr.mxu0 0.0
    %7214 = vmatpush1.xpose.msra.mxu0 0.0
    %7215 = vmatprep.subr.mxu0 0.0
    %7216 = vmatpush1.xpose.msra.mxu0 0.0
    %7217 = vmatprep.subr.mxu0 0.0
    %7218 = vmatpush1.xpose.msra.mxu0 0.0
    %7219 = vmatprep.subr.mxu0 0.0
    %7220 = vmatpush1.xpose.msra.mxu0 0.0
    %7221 = vmatprep.subr.mxu0 0.0
    %7222 = vmatpush1.xpose.msra.mxu0 0.0
    %7223 = vmatprep.subr.mxu0 0.0
    %7224 = vmatpush1.xpose.msra.mxu0 0.0
    %7225 = vmatprep.subr.mxu0 0.0
    %7226 = vmatpush1.xpose.msra.mxu0 0.0
    %7227 = vmatprep.subr.mxu0 0.0
    %7228 = vmatpush1.xpose.msra.mxu0 0.0
    %7229 = vmatprep.subr.mxu0 0.0
    %7230 = vmatpush1.xpose.msra.mxu0 0.0
    %7231 = vmatprep.subr.mxu0 0.0
    %7232 = vmatpush1.xpose.msra.mxu0 0.0
    %7233 = vmatprep.subr.mxu0 0.0
    %7234 = vmatpush1.xpose.msra.mxu0 0.0
    %7235 = vmatprep.subr.mxu0 0.0
    %7236 = vmatpush1.xpose.msra.mxu0 0.0
    %7237 = vmatprep.subr.mxu0 0.0
    %7238 = vmatpush1.xpose.msra.mxu0 0.0
    %7239 = vmatprep.subr.mxu0 0.0
    %7240 = vmatpush1.xpose.msra.mxu0 0.0
    %7241 = vmatprep.subr.mxu0 0.0
    %7242 = vmatpush1.xpose.msra.mxu0 0.0
    %7243 = vmatprep.subr.mxu0 0.0
    %7244 = vmatpush1.xpose.msra.mxu0 0.0
    %7245 = vmatprep.subr.mxu0 0.0
    %7246 = vmatpush1.xpose.msra.mxu0 0.0
    %7247 = vmatprep.subr.mxu0 0.0
    %7248 = vmatpush1.xpose.msra.mxu0 0.0
    %7249 = vmatprep.subr.mxu0 0.0
    %7250 = vmatpush1.xpose.msra.mxu0 0.0
    %7251 = vmatprep.mubr.f32.mxu0 0.0
    %v7252 = vand.u32 %v7166, 4294901760
    %v7253 = vsub.f32 %v7166, %v7252
    %v7254 = vand.u32 %v7253, 4294901760
    %v7255 = vsub.f32 %v7253, %v7254
    %v7256 = vand.u32 %v7255, 4294901760
    %7257 = vmatmul.mubr.f32.gmra.mrb[0].mxu0 %v7256
    %v7258 = vpop.f32.mrb[0].mxu0
    %v7259 = vadd.f32 %v7164, %v7258
    %v7260 = vpop.f32.mrb[0].mxu0
    %7261 = vmatprep.mubr.f32.mxu0 0.0
    %v7262 = vand.u32 %v7169, 4294901760
    %v7263 = vsub.f32 %v7169, %v7262
    %v7264 = vand.u32 %v7263, 4294901760
    %v7265 = vsub.f32 %v7263, %v7264
    %v7266 = vand.u32 %v7265, 4294901760
    %7267 = vmatmul.mubr.f32.gmra.mrb[0].mxu0 %v7266
    %v7268 = vpop.f32.mrb[0].mxu0
    %v7269 = vadd.f32 %v7164, %v7268
    %v7270 = vpop.f32.mrb[0].mxu0
    %7271 = vdwg.mxu0
    %7272 = vmatprep.subr.mxu0 0.0
    %v7273 = vand.u32 %v7172, 4294901760
    %v7274 = vsub.f32 %v7172, %v7273
    %v7275 = vand.u32 %v7274, 4294901760
    %v7276 = vsub.f32 %v7274, %v7275
    %v7277 = vand.u32 %v7276, 4294901760
    %7278 = vmatpush1.xpose.msra.mxu0 %v7277
    %7279 = vmatprep.subr.mxu0 0.0
    %v7280 = vand.u32 %v7175, 4294901760
    %v7281 = vsub.f32 %v7175, %v7280
    %v7282 = vand.u32 %v7281, 4294901760
    %v7283 = vsub.f32 %v7281, %v7282
    %v7284 = vand.u32 %v7283, 4294901760
    %7285 = vmatpush1.xpose.msra.mxu0 %v7284
    %7286 = vmatprep.subr.mxu0 0.0
    %v7287 = vand.u32 %v7178, 4294901760
    %v7288 = vsub.f32 %v7178, %v7287
    %v7289 = vand.u32 %v7288, 4294901760
    %v7290 = vsub.f32 %v7288, %v7289
    %v7291 = vand.u32 %v7290, 4294901760
    %7292 = vmatpush1.xpose.msra.mxu0 %v7291
    %7293 = vmatprep.subr.mxu0 0.0
    %v7294 = vand.u32 %v7181, 4294901760
    %v7295 = vsub.f32 %v7181, %v7294
    %v7296 = vand.u32 %v7295, 4294901760
    %v7297 = vsub.f32 %v7295, %v7296
    %v7298 = vand.u32 %v7297, 4294901760
    %7299 = vmatpush1.xpose.msra.mxu0 %v7298
    %7300 = vmatprep.subr.mxu0 0.0
    %7301 = vmatpush1.xpose.msra.mxu0 0.0
    %7302 = vmatprep.subr.mxu0 0.0
    %7303 = vmatpush1.xpose.msra.mxu0 0.0
    %7304 = vmatprep.subr.mxu0 0.0
    %7305 = vmatpush1.xpose.msra.mxu0 0.0
    %7306 = vmatprep.subr.mxu0 0.0
    %7307 = vmatpush1.xpose.msra.mxu0 0.0
    %7308 = vmatprep.subr.mxu0 0.0
    %7309 = vmatpush1.xpose.msra.mxu0 0.0
    %7310 = vmatprep.subr.mxu0 0.0
    %7311 = vmatpush1.xpose.msra.mxu0 0.0
    %7312 = vmatprep.subr.mxu0 0.0
    %7313 = vmatpush1.xpose.msra.mxu0 0.0
    %7314 = vmatprep.subr.mxu0 0.0
    %7315 = vmatpush1.xpose.msra.mxu0 0.0
    %7316 = vmatprep.subr.mxu0 0.0
    %7317 = vmatpush1.xpose.msra.mxu0 0.0
    %7318 = vmatprep.subr.mxu0 0.0
    %7319 = vmatpush1.xpose.msra.mxu0 0.0
    %7320 = vmatprep.subr.mxu0 0.0
    %7321 = vmatpush1.xpose.msra.mxu0 0.0
    %7322 = vmatprep.subr.mxu0 0.0
    %7323 = vmatpush1.xpose.msra.mxu0 0.0
    %7324 = vmatprep.subr.mxu0 0.0
    %7325 = vmatpush1.xpose.msra.mxu0 0.0
    %7326 = vmatprep.subr.mxu0 0.0
    %7327 = vmatpush1.xpose.msra.mxu0 0.0
    %7328 = vmatprep.subr.mxu0 0.0
    %7329 = vmatpush1.xpose.msra.mxu0 0.0
    %7330 = vmatprep.subr.mxu0 0.0
    %7331 = vmatpush1.xpose.msra.mxu0 0.0
    %7332 = vmatprep.subr.mxu0 0.0
    %7333 = vmatpush1.xpose.msra.mxu0 0.0
    %7334 = vmatprep.subr.mxu0 0.0
    %7335 = vmatpush1.xpose.msra.mxu0 0.0
    %7336 = vmatprep.subr.mxu0 0.0
    %7337 = vmatpush1.xpose.msra.mxu0 0.0
    %7338 = vmatprep.subr.mxu0 0.0
    %7339 = vmatpush1.xpose.msra.mxu0 0.0
    %7340 = vmatprep.subr.mxu0 0.0
    %7341 = vmatpush1.xpose.msra.mxu0 0.0
    %7342 = vmatprep.subr.mxu0 0.0
    %7343 = vmatpush1.xpose.msra.mxu0 0.0
    %7344 = vmatprep.subr.mxu0 0.0
    %7345 = vmatpush1.xpose.msra.mxu0 0.0
    %7346 = vmatprep.subr.mxu0 0.0
    %7347 = vmatpush1.xpose.msra.mxu0 0.0
    %7348 = vmatprep.subr.mxu0 0.0
    %7349 = vmatpush1.xpose.msra.mxu0 0.0
    %7350 = vmatprep.subr.mxu0 0.0
    %7351 = vmatpush1.xpose.msra.mxu0 0.0
    %7352 = vmatprep.subr.mxu0 0.0
    %7353 = vmatpush1.xpose.msra.mxu0 0.0
    %7354 = vmatprep.subr.mxu0 0.0
    %7355 = vmatpush1.xpose.msra.mxu0 0.0
    %7356 = vmatprep.mubr.f32.mxu0 0.0
    %v7357 = vand.u32 %v7166, 4294901760
    %7358 = vmatmul.mubr.f32.gmra.mrb[0].mxu0 %v7357
    %v7359 = vpop.f32.mrb[0].mxu0
    %v7360 = vadd.f32 %v7259, %v7359
    %v7361 = vpop.f32.mrb[0].mxu0
    %7362 = vmatprep.mubr.f32.mxu0 0.0
    %v7363 = vand.u32 %v7169, 4294901760
    %7364 = vmatmul.mubr.f32.gmra.mrb[0].mxu0 %v7363
    %v7365 = vpop.f32.mrb[0].mxu0
    %v7366 = vadd.f32 %v7269, %v7365
    %v7367 = vpop.f32.mrb[0].mxu0
    %7368 = vdwg.mxu0
    %7369 = vmatprep.subr.mxu0 0.0
    %v7370 = vand.u32 %v7172, 4294901760
    %v7371 = vsub.f32 %v7172, %v7370
    %7372 = vmatpush1.xpose.msra.mxu0 %v7371
    %7373 = vmatprep.subr.mxu0 0.0
    %v7374 = vand.u32 %v7175, 4294901760
    %v7375 = vsub.f32 %v7175, %v7374
    %7376 = vmatpush1.xpose.msra.mxu0 %v7375
    %7377 = vmatprep.subr.mxu0 0.0
    %v7378 = vand.u32 %v7178, 4294901760
    %v7379 = vsub.f32 %v7178, %v7378
    %7380 = vmatpush1.xpose.msra.mxu0 %v7379
    %7381 = vmatprep.subr.mxu0 0.0
    %v7382 = vand.u32 %v7181, 4294901760
    %v7383 = vsub.f32 %v7181, %v7382
    %7384 = vmatpush1.xpose.msra.mxu0 %v7383
    %7385 = vmatprep.subr.mxu0 0.0
    %7386 = vmatpush1.xpose.msra.mxu0 0.0
    %7387 = vmatprep.subr.mxu0 0.0
    %7388 = vmatpush1.xpose.msra.mxu0 0.0
    %7389 = vmatprep.subr.mxu0 0.0
    %7390 = vmatpush1.xpose.msra.mxu0 0.0
    %7391 = vmatprep.subr.mxu0 0.0
    %7392 = vmatpush1.xpose.msra.mxu0 0.0
    %7393 = vmatprep.subr.mxu0 0.0
    %7394 = vmatpush1.xpose.msra.mxu0 0.0
    %7395 = vmatprep.subr.mxu0 0.0
    %7396 = vmatpush1.xpose.msra.mxu0 0.0
    %7397 = vmatprep.subr.mxu0 0.0
    %7398 = vmatpush1.xpose.msra.mxu0 0.0
    %7399 = vmatprep.subr.mxu0 0.0
    %7400 = vmatpush1.xpose.msra.mxu0 0.0
    %7401 = vmatprep.subr.mxu0 0.0
    %7402 = vmatpush1.xpose.msra.mxu0 0.0
    %7403 = vmatprep.subr.mxu0 0.0
    %7404 = vmatpush1.xpose.msra.mxu0 0.0
    %7405 = vmatprep.subr.mxu0 0.0
    %7406 = vmatpush1.xpose.msra.mxu0 0.0
    %7407 = vmatprep.subr.mxu0 0.0
    %7408 = vmatpush1.xpose.msra.mxu0 0.0
    %7409 = vmatprep.subr.mxu0 0.0
    %7410 = vmatpush1.xpose.msra.mxu0 0.0
    %7411 = vmatprep.subr.mxu0 0.0
    %7412 = vmatpush1.xpose.msra.mxu0 0.0
    %7413 = vmatprep.subr.mxu0 0.0
    %7414 = vmatpush1.xpose.msra.mxu0 0.0
    %7415 = vmatprep.subr.mxu0 0.0
    %7416 = vmatpush1.xpose.msra.mxu0 0.0
    %7417 = vmatprep.subr.mxu0 0.0
    %7418 = vmatpush1.xpose.msra.mxu0 0.0
    %7419 = vmatprep.subr.mxu0 0.0
    %7420 = vmatpush1.xpose.msra.mxu0 0.0
    %7421 = vmatprep.subr.mxu0 0.0
    %7422 = vmatpush1.xpose.msra.mxu0 0.0
    %7423 = vmatprep.subr.mxu0 0.0
    %7424 = vmatpush1.xpose.msra.mxu0 0.0
    %7425 = vmatprep.subr.mxu0 0.0
    %7426 = vmatpush1.xpose.msra.mxu0 0.0
    %7427 = vmatprep.subr.mxu0 0.0
    %7428 = vmatpush1.xpose.msra.mxu0 0.0
    %7429 = vmatprep.subr.mxu0 0.0
    %7430 = vmatpush1.xpose.msra.mxu0 0.0
    %7431 = vmatprep.subr.mxu0 0.0
    %7432 = vmatpush1.xpose.msra.mxu0 0.0
    %7433 = vmatprep.subr.mxu0 0.0
    %7434 = vmatpush1.xpose.msra.mxu0 0.0
    %7435 = vmatprep.subr.mxu0 0.0
    %7436 = vmatpush1.xpose.msra.mxu0 0.0
    %7437 = vmatprep.subr.mxu0 0.0
    %7438 = vmatpush1.xpose.msra.mxu0 0.0
    %7439 = vmatprep.subr.mxu0 0.0
    %7440 = vmatpush1.xpose.msra.mxu0 0.0
    %7441 = vmatprep.mubr.f32.mxu0 0.0
    %v7442 = vand.u32 %v7166, 4294901760
    %v7443 = vsub.f32 %v7166, %v7442
    %7444 = vmatmul.mubr.f32.gmra.mrb[0].mxu0 %v7443
    %v7445 = vpop.f32.mrb[0].mxu0
    %v7446 = vadd.f32 %v7360, %v7445
    %v7447 = vpop.f32.mrb[0].mxu0
    %7448 = vmatprep.mubr.f32.mxu0 0.0
    %v7449 = vand.u32 %v7169, 4294901760
    %v7450 = vsub.f32 %v7169, %v7449
    %7451 = vmatmul.mubr.f32.gmra.mrb[0].mxu0 %v7450
    %v7452 = vpop.f32.mrb[0].mxu0
    %v7453 = vadd.f32 %v7366, %v7452
    %v7454 = vpop.f32.mrb[0].mxu0
    %7455 = vdwg.mxu0
    %7456 = vmatprep.subr.mxu0 0.0
    %v7457 = vand.u32 %v7172, 4294901760
    %7458 = vmatpush1.xpose.msra.mxu0 %v7457
    %7459 = vmatprep.subr.mxu0 0.0
    %v7460 = vand.u32 %v7175, 4294901760
    %7461 = vmatpush1.xpose.msra.mxu0 %v7460
    %7462 = vmatprep.subr.mxu0 0.0
    %v7463 = vand.u32 %v7178, 4294901760
    %7464 = vmatpush1.xpose.msra.mxu0 %v7463
    %7465 = vmatprep.subr.mxu0 0.0
    %v7466 = vand.u32 %v7181, 4294901760
    %7467 = vmatpush1.xpose.msra.mxu0 %v7466
    %7468 = vmatprep.subr.mxu0 0.0
    %7469 = vmatpush1.xpose.msra.mxu0 0.0
    %7470 = vmatprep.subr.mxu0 0.0
    %7471 = vmatpush1.xpose.msra.mxu0 0.0
    %7472 = vmatprep.subr.mxu0 0.0
    %7473 = vmatpush1.xpose.msra.mxu0 0.0
    %7474 = vmatprep.subr.mxu0 0.0
    %7475 = vmatpush1.xpose.msra.mxu0 0.0
    %7476 = vmatprep.subr.mxu0 0.0
    %7477 = vmatpush1.xpose.msra.mxu0 0.0
    %7478 = vmatprep.subr.mxu0 0.0
    %7479 = vmatpush1.xpose.msra.mxu0 0.0
    %7480 = vmatprep.subr.mxu0 0.0
    %7481 = vmatpush1.xpose.msra.mxu0 0.0
    %7482 = vmatprep.subr.mxu0 0.0
    %7483 = vmatpush1.xpose.msra.mxu0 0.0
    %7484 = vmatprep.subr.mxu0 0.0
    %7485 = vmatpush1.xpose.msra.mxu0 0.0
    %7486 = vmatprep.subr.mxu0 0.0
    %7487 = vmatpush1.xpose.msra.mxu0 0.0
    %7488 = vmatprep.subr.mxu0 0.0
    %7489 = vmatpush1.xpose.msra.mxu0 0.0
    %7490 = vmatprep.subr.mxu0 0.0
    %7491 = vmatpush1.xpose.msra.mxu0 0.0
    %7492 = vmatprep.subr.mxu0 0.0
    %7493 = vmatpush1.xpose.msra.mxu0 0.0
    %7494 = vmatprep.subr.mxu0 0.0
    %7495 = vmatpush1.xpose.msra.mxu0 0.0
    %7496 = vmatprep.subr.mxu0 0.0
    %7497 = vmatpush1.xpose.msra.mxu0 0.0
    %7498 = vmatprep.subr.mxu0 0.0
    %7499 = vmatpush1.xpose.msra.mxu0 0.0
    %7500 = vmatprep.subr.mxu0 0.0
    %7501 = vmatpush1.xpose.msra.mxu0 0.0
    %7502 = vmatprep.subr.mxu0 0.0
    %7503 = vmatpush1.xpose.msra.mxu0 0.0
    %7504 = vmatprep.subr.mxu0 0.0
    %7505 = vmatpush1.xpose.msra.mxu0 0.0
    %7506 = vmatprep.subr.mxu0 0.0
    %7507 = vmatpush1.xpose.msra.mxu0 0.0
    %7508 = vmatprep.subr.mxu0 0.0
    %7509 = vmatpush1.xpose.msra.mxu0 0.0
    %7510 = vmatprep.subr.mxu0 0.0
    %7511 = vmatpush1.xpose.msra.mxu0 0.0
    %7512 = vmatprep.subr.mxu0 0.0
    %7513 = vmatpush1.xpose.msra.mxu0 0.0
    %7514 = vmatprep.subr.mxu0 0.0
    %7515 = vmatpush1.xpose.msra.mxu0 0.0
    %7516 = vmatprep.subr.mxu0 0.0
    %7517 = vmatpush1.xpose.msra.mxu0 0.0
    %7518 = vmatprep.subr.mxu0 0.0
    %7519 = vmatpush1.xpose.msra.mxu0 0.0
    %7520 = vmatprep.subr.mxu0 0.0
    %7521 = vmatpush1.xpose.msra.mxu0 0.0
    %7522 = vmatprep.subr.mxu0 0.0
    %7523 = vmatpush1.xpose.msra.mxu0 0.0
    %7524 = vmatprep.mubr.f32.mxu0 0.0
    %v7525 = vand.u32 %v7166, 4294901760
    %v7526 = vsub.f32 %v7166, %v7525
    %v7527 = vand.u32 %v7526, 4294901760
    %7528 = vmatmul.mubr.f32.gmra.mrb[0].mxu0 %v7527
    %v7529 = vpop.f32.mrb[0].mxu0
    %v7530 = vadd.f32 %v7446, %v7529
    %v7531 = vpop.f32.mrb[0].mxu0
    %7532 = vmatprep.mubr.f32.mxu0 0.0
    %v7533 = vand.u32 %v7169, 4294901760
    %v7534 = vsub.f32 %v7169, %v7533
    %v7535 = vand.u32 %v7534, 4294901760
    %7536 = vmatmul.mubr.f32.gmra.mrb[0].mxu0 %v7535
    %v7537 = vpop.f32.mrb[0].mxu0
    %v7538 = vadd.f32 %v7453, %v7537
    %v7539 = vpop.f32.mrb[0].mxu0
    %7540 = vdwg.mxu0
    %7541 = vmatprep.subr.mxu0 0.0
    %v7542 = vand.u32 %v7172, 4294901760
    %v7543 = vsub.f32 %v7172, %v7542
    %v7544 = vand.u32 %v7543, 4294901760
    %7545 = vmatpush1.xpose.msra.mxu0 %v7544
    %7546 = vmatprep.subr.mxu0 0.0
    %v7547 = vand.u32 %v7175, 4294901760
    %v7548 = vsub.f32 %v7175, %v7547
    %v7549 = vand.u32 %v7548, 4294901760
    %7550 = vmatpush1.xpose.msra.mxu0 %v7549
    %7551 = vmatprep.subr.mxu0 0.0
    %v7552 = vand.u32 %v7178, 4294901760
    %v7553 = vsub.f32 %v7178, %v7552
    %v7554 = vand.u32 %v7553, 4294901760
    %7555 = vmatpush1.xpose.msra.mxu0 %v7554
    %7556 = vmatprep.subr.mxu0 0.0
    %v7557 = vand.u32 %v7181, 4294901760
    %v7558 = vsub.f32 %v7181, %v7557
    %v7559 = vand.u32 %v7558, 4294901760
    %7560 = vmatpush1.xpose.msra.mxu0 %v7559
    %7561 = vmatprep.subr.mxu0 0.0
    %7562 = vmatpush1.xpose.msra.mxu0 0.0
    %7563 = vmatprep.subr.mxu0 0.0
    %7564 = vmatpush1.xpose.msra.mxu0 0.0
    %7565 = vmatprep.subr.mxu0 0.0
    %7566 = vmatpush1.xpose.msra.mxu0 0.0
    %7567 = vmatprep.subr.mxu0 0.0
    %7568 = vmatpush1.xpose.msra.mxu0 0.0
    %7569 = vmatprep.subr.mxu0 0.0
    %7570 = vmatpush1.xpose.msra.mxu0 0.0
    %7571 = vmatprep.subr.mxu0 0.0
    %7572 = vmatpush1.xpose.msra.mxu0 0.0
    %7573 = vmatprep.subr.mxu0 0.0
    %7574 = vmatpush1.xpose.msra.mxu0 0.0
    %7575 = vmatprep.subr.mxu0 0.0
    %7576 = vmatpush1.xpose.msra.mxu0 0.0
    %7577 = vmatprep.subr.mxu0 0.0
    %7578 = vmatpush1.xpose.msra.mxu0 0.0
    %7579 = vmatprep.subr.mxu0 0.0
    %7580 = vmatpush1.xpose.msra.mxu0 0.0
    %7581 = vmatprep.subr.mxu0 0.0
    %7582 = vmatpush1.xpose.msra.mxu0 0.0
    %7583 = vmatprep.subr.mxu0 0.0
    %7584 = vmatpush1.xpose.msra.mxu0 0.0
    %7585 = vmatprep.subr.mxu0 0.0
    %7586 = vmatpush1.xpose.msra.mxu0 0.0
    %7587 = vmatprep.subr.mxu0 0.0
    %7588 = vmatpush1.xpose.msra.mxu0 0.0
    %7589 = vmatprep.subr.mxu0 0.0
    %7590 = vmatpush1.xpose.msra.mxu0 0.0
    %7591 = vmatprep.subr.mxu0 0.0
    %7592 = vmatpush1.xpose.msra.mxu0 0.0
    %7593 = vmatprep.subr.mxu0 0.0
    %7594 = vmatpush1.xpose.msra.mxu0 0.0
    %7595 = vmatprep.subr.mxu0 0.0
    %7596 = vmatpush1.xpose.msra.mxu0 0.0
    %7597 = vmatprep.subr.mxu0 0.0
    %7598 = vmatpush1.xpose.msra.mxu0 0.0
    %7599 = vmatprep.subr.mxu0 0.0
    %7600 = vmatpush1.xpose.msra.mxu0 0.0
    %7601 = vmatprep.subr.mxu0 0.0
    %7602 = vmatpush1.xpose.msra.mxu0 0.0
    %7603 = vmatprep.subr.mxu0 0.0
    %7604 = vmatpush1.xpose.msra.mxu0 0.0
    %7605 = vmatprep.subr.mxu0 0.0
    %7606 = vmatpush1.xpose.msra.mxu0 0.0
    %7607 = vmatprep.subr.mxu0 0.0
    %7608 = vmatpush1.xpose.msra.mxu0 0.0
    %7609 = vmatprep.subr.mxu0 0.0
    %7610 = vmatpush1.xpose.msra.mxu0 0.0
    %7611 = vmatprep.subr.mxu0 0.0
    %7612 = vmatpush1.xpose.msra.mxu0 0.0
    %7613 = vmatprep.subr.mxu0 0.0
    %7614 = vmatpush1.xpose.msra.mxu0 0.0
    %7615 = vmatprep.subr.mxu0 0.0
    %7616 = vmatpush1.xpose.msra.mxu0 0.0
    %7617 = vmatprep.mubr.f32.mxu0 0.0
    %v7618 = vand.u32 %v7166, 4294901760
    %7619 = vmatmul.mubr.f32.gmra.mrb[0].mxu0 %v7618
    %v7620 = vpop.f32.mrb[0].mxu0
    %v7621 = vadd.f32 %v7530, %v7620
    %v7622 = vpop.f32.mrb[0].mxu0
    %7623 = vmatprep.mubr.f32.mxu0 0.0
    %v7624 = vand.u32 %v7169, 4294901760
    %7625 = vmatmul.mubr.f32.gmra.mrb[0].mxu0 %v7624
    %v7626 = vpop.f32.mrb[0].mxu0
    %v7627 = vadd.f32 %v7538, %v7626
    %v7628 = vpop.f32.mrb[0].mxu0
    %7629 = vdwg.mxu0
    %7630 = vmatprep.subr.mxu0 0.0
    %v7631 = vand.u32 %v7172, 4294901760
    %7632 = vmatpush1.xpose.msra.mxu0 %v7631
    %7633 = vmatprep.subr.mxu0 0.0
    %v7634 = vand.u32 %v7175, 4294901760
    %7635 = vmatpush1.xpose.msra.mxu0 %v7634
    %7636 = vmatprep.subr.mxu0 0.0
    %v7637 = vand.u32 %v7178, 4294901760
    %7638 = vmatpush1.xpose.msra.mxu0 %v7637
    %7639 = vmatprep.subr.mxu0 0.0
    %v7640 = vand.u32 %v7181, 4294901760
    %7641 = vmatpush1.xpose.msra.mxu0 %v7640
    %7642 = vmatprep.subr.mxu0 0.0
    %7643 = vmatpush1.xpose.msra.mxu0 0.0
    %7644 = vmatprep.subr.mxu0 0.0
    %7645 = vmatpush1.xpose.msra.mxu0 0.0
    %7646 = vmatprep.subr.mxu0 0.0
    %7647 = vmatpush1.xpose.msra.mxu0 0.0
    %7648 = vmatprep.subr.mxu0 0.0
    %7649 = vmatpush1.xpose.msra.mxu0 0.0
    %7650 = vmatprep.subr.mxu0 0.0
    %7651 = vmatpush1.xpose.msra.mxu0 0.0
    %7652 = vmatprep.subr.mxu0 0.0
    %7653 = vmatpush1.xpose.msra.mxu0 0.0
    %7654 = vmatprep.subr.mxu0 0.0
    %7655 = vmatpush1.xpose.msra.mxu0 0.0
    %7656 = vmatprep.subr.mxu0 0.0
    %7657 = vmatpush1.xpose.msra.mxu0 0.0
    %7658 = vmatprep.subr.mxu0 0.0
    %7659 = vmatpush1.xpose.msra.mxu0 0.0
    %7660 = vmatprep.subr.mxu0 0.0
    %7661 = vmatpush1.xpose.msra.mxu0 0.0
    %7662 = vmatprep.subr.mxu0 0.0
    %7663 = vmatpush1.xpose.msra.mxu0 0.0
    %7664 = vmatprep.subr.mxu0 0.0
    %7665 = vmatpush1.xpose.msra.mxu0 0.0
    %7666 = vmatprep.subr.mxu0 0.0
    %7667 = vmatpush1.xpose.msra.mxu0 0.0
    %7668 = vmatprep.subr.mxu0 0.0
    %7669 = vmatpush1.xpose.msra.mxu0 0.0
    %7670 = vmatprep.subr.mxu0 0.0
    %7671 = vmatpush1.xpose.msra.mxu0 0.0
    %7672 = vmatprep.subr.mxu0 0.0
    %7673 = vmatpush1.xpose.msra.mxu0 0.0
    %7674 = vmatprep.subr.mxu0 0.0
    %7675 = vmatpush1.xpose.msra.mxu0 0.0
    %7676 = vmatprep.subr.mxu0 0.0
    %7677 = vmatpush1.xpose.msra.mxu0 0.0
    %7678 = vmatprep.subr.mxu0 0.0
    %7679 = vmatpush1.xpose.msra.mxu0 0.0
    %7680 = vmatprep.subr.mxu0 0.0
    %7681 = vmatpush1.xpose.msra.mxu0 0.0
    %7682 = vmatprep.subr.mxu0 0.0
    %7683 = vmatpush1.xpose.msra.mxu0 0.0
    %7684 = vmatprep.subr.mxu0 0.0
    %7685 = vmatpush1.xpose.msra.mxu0 0.0
    %7686 = vmatprep.subr.mxu0 0.0
    %7687 = vmatpush1.xpose.msra.mxu0 0.0
    %7688 = vmatprep.subr.mxu0 0.0
    %7689 = vmatpush1.xpose.msra.mxu0 0.0
    %7690 = vmatprep.subr.mxu0 0.0
    %7691 = vmatpush1.xpose.msra.mxu0 0.0
    %7692 = vmatprep.subr.mxu0 0.0
    %7693 = vmatpush1.xpose.msra.mxu0 0.0
    %7694 = vmatprep.subr.mxu0 0.0
    %7695 = vmatpush1.xpose.msra.mxu0 0.0
    %7696 = vmatprep.subr.mxu0 0.0
    %7697 = vmatpush1.xpose.msra.mxu0 0.0
    %7698 = vmatprep.mubr.f32.mxu0 0.0
    %v7699 = vand.u32 %v7166, 4294901760
    %7700 = vmatmul.mubr.f32.gmra.mrb[0].mxu0 %v7699
    %v7701 = vpop.f32.mrb[0].mxu0
    %v7702 = vadd.f32 %v7621, %v7701
    %v7703 = vpop.f32.mrb[0].mxu0
    %7704 = vmatprep.mubr.f32.mxu0 0.0
    %v7705 = vand.u32 %v7169, 4294901760
    %7706 = vmatmul.mubr.f32.gmra.mrb[0].mxu0 %v7705
    %v7707 = vpop.f32.mrb[0].mxu0
    %v7708 = vadd.f32 %v7627, %v7707
    %v7709 = vpop.f32.mrb[0].mxu0
    %7710 = vdwg.mxu0
    %v7711 = vadd.f32 %v6609, %v7702
    %v7712 = vadd.f32 %v6610, %v7708
    %v7713 = vsel %vm66, %v7711, 0.0
    %7714 = vadd.xlane.f32.xlu0 %v7713
    %v7715 = vpop.xlane.xlu0 %7714
    %v7716 = vsel %vm66, %v7712, 0.0
    %7717 = vadd.xlane.f32.xlu0 %v7716
    %v7718 = vpop.xlane.xlu0 %7717
    %v7719 = vmul.f32 %v7715, %v3065
    %v7720 = vmul.f32 %v7718, %v3065
    %v7721 = vsub.f32 %v7711, %v7719
    %v7722 = vsub.f32 %v7712, %v7720
    %v7723 = vmul.f32 %v7721, %v7721
    %v7724 = vmul.f32 %v7722, %v7722
    %v7725 = vsel %vm66, %v7723, 0.0
    %7726 = vadd.xlane.f32.xlu0 %v7725
    %v7727 = vpop.xlane.xlu0 %7726
    %v7728 = vsel %vm66, %v7724, 0.0
    %7729 = vadd.xlane.f32.xlu0 %v7728
    %v7730 = vpop.xlane.xlu0 %7729
    %v7731 = vmul.f32 %v7727, %v3065
    %v7732 = vmul.f32 %v7730, %v3065
    %v7733 = vadd.f32 %v7731, 1e-05
    %v7734 = vadd.f32 %v7732, 1e-05
    %v7735 = vrsqrt.pop %v7733
    %v7736 = vrsqrt.pop %v7734
    %v7737 = vmul.f32 %v7721, %v7735
    %v7738 = vmul.f32 %v7722, %v7736
    %v7739 = vld [vmem:[#allocation5 + $0xb] sm:$0x1]
    %v7740 = vlaneseq
    %v7741 = vshrl.u32 %v7740, 7
    %v7742 = vsub.s32 0, %v7741
    %v7743 = vrot.slane %v7739, %v7742
    %v7744 = vmul.f32 %v7737, %v7743
    %v7745 = vmul.f32 %v7738, %v7743
    %v7746 = vld [vmem:[#allocation5 + $0xc] sm:$0x1]
    %v7747 = vlaneseq
    %v7748 = vshrl.u32 %v7747, 7
    %v7749 = vsub.s32 0, %v7748
    %v7750 = vrot.slane %v7746, %v7749
    %v7751 = vadd.f32 %v7744, %v7750
    %v7752 = vadd.f32 %v7745, %v7750
    %7753 = vst.msk [vmem:[#allocation7] sm:$0xff] %vm66, %v7751
    %7754 = vst.msk [vmem:[#allocation7 + $0x8] sm:$0xff] %vm66, %v7752
    // Predicated region
    $region22: #{transformer_decoder_block.1} parent=1 // pred_check
      _
    $region23: #{transformer_decoder_block.1} parent=1 // pred_check_branch
      %7756 = sbr.rel (0) target = $region25
    $region24: #{transformer_decoder_block.1} parent=1 // pred_region
      %s7758 = ssub.s32 256, 256
      %7759 = vsyncadd [#allocation4], %s7758
      %s7760 = sshll.u32 [#allocation7], 4
      %s7761 = int_to_ptr.vmem [resolvable:$true] %s7760
      %7766 = dma.vmem_to_hbm [thread:$0]  %s7761, 256, %s3, [#allocation4], 128, 128, 8
    $region25: #{transformer_decoder_block.1} parent=1 // pred_fallthru
      _
    // Predicated region
    $region26: #{transformer_decoder_block.1} parent=1 // pred_check
      _
    $region27: #{transformer_decoder_block.1} parent=1 // pred_check_branch
      %7768 = sbr.rel (0) target = $region29
    $region28: #{transformer_decoder_block.1} parent=1 // pred_region
      %7769 = dma.done [#allocation4], 256
    $region29: #{transformer_decoder_block.1} parent=1 // pred_fallthru
      _
    %7770 = vsyncpa [#allocation3], 1
    %7771 = vsyncpa [#allocation6], 1
    %7772 = vsyncpa [#allocation4], 1

</llo_original>
